<compile_context>
chip_gen: v7x
topology: tpu7x:2x2x1
jax: 0.10.0
libtpu: 0.0.40
codegen_flags: <defaults>
</compile_context>

<pallas_src>
import functools

import jax
import jax.numpy as jnp
from jax import lax
from jax.experimental import pallas as pl
from jax.experimental.pallas import tpu as pltpu

# ---- static problem sizes ----
C_IN = 4                 # num_channels
F = 8                    # num_filters
H = W = 16
KH = KW = 5
PAD = 2
C1 = C_IN + F            # 12 : conv2 input channels (input ++ o3)
C2 = C_IN + 2 * F        # 20 : conv3 input channels (input ++ o3 ++ o7)
HP = H + 2 * PAD         # 20
WP = W + 2 * PAD         # 20
LIMG = 512               # per-image flattened padded length (>= HP*WP + max tap shift, lane aligned)
LEFT = PAD * WP + PAD    # 42 : flat offset of image pixel (0,0) inside its padded plane


def dense_block_kernel(x_ref, mask_ref, w1_ref, b1_ref, w2_ref, b2_ref,
                       w3_ref, b3_ref, alpha_ref,
                       out_ref, feat_ref, patch_ref, *, ltot):
    # Conv outputs are computed for lane positions [0, lc); lc is a multiple of 128
    # and large enough to cover every image's valid pixels while keeping all tap
    # reads (max shift 4*WP+4 = 84 lanes) in bounds.
    lc = ltot - 128
    alpha = alpha_ref[0, 0]

    def prelu(v):
        return jnp.where(v >= 0, v, alpha * v)

    # Channels 0:C_IN of the dense feature buffer = prelu(input).
    # The wrapper already supplies the input zero-padded spatially, and prelu(0)=0,
    # so the padding ring stays zero.
    feat_ref[0:C_IN, :] = prelu(x_ref[...])

    mask = mask_ref[:, 0:lc]     # (1, lc): 1.0 at valid image pixels, 0.0 at padding / tail

    def conv5x5(cin, w_ref, b_ref, dst):
        # im2col: one lane-shifted copy per tap, then a single MXU matmul.
        for kh in range(KH):
            for kw in range(KW):
                tap = kh * KW + kw
                s = kh * WP + kw
                patch_ref[tap * cin:(tap + 1) * cin, 0:lc] = feat_ref[0:cin, s:s + lc]
        acc = jnp.dot(w_ref[...], patch_ref[0:KH * KW * cin, 0:lc],
                      preferred_element_type=jnp.float32)          # (F, lc)
        val = prelu(acc + b_ref[...]) * mask                        # zero outside image interior
        # Place into the dense feature buffer at this block's channel offset, shifted
        # by LEFT so pixel (h, w) lands at padded flat position (h+PAD)*WP + (w+PAD).
        # Only the tiny halo strips outside the shifted store need explicit zeros.
        feat_ref[dst:dst + F, 0:LEFT] = jnp.zeros((F, LEFT), jnp.float32)
        feat_ref[dst:dst + F, LEFT:LEFT + lc] = val
        feat_ref[dst:dst + F, LEFT + lc:ltot] = jnp.zeros((F, ltot - LEFT - lc), jnp.float32)

    conv5x5(C_IN, w1_ref, b1_ref, C_IN)     # o3 -> channels 4:12  (stored as prelu(o3))
    conv5x5(C1, w2_ref, b2_ref, C1)         # o7 -> channels 12:20 (stored as prelu(o7))

    # conv3 is 1x1: one lane-dense matmul over the whole padded slab; padding
    # columns produce bias-only values that the wrapper discards.
    out_ref[...] = (jnp.dot(w3_ref[...], feat_ref[...],
                            preferred_element_type=jnp.float32) + b3_ref[...])


def dense_block_nobn(x_nchw, w1, b1, w2, b2, w3, b3, alpha, *, batch_tile=None):
    """DenseBlockNoBN forward.  x: (N, C_IN, H, W); weights in PyTorch OIHW layout."""
    N = x_nchw.shape[0]
    if batch_tile is None:
        batch_tile = min(N, 8)
    assert N % batch_tile == 0, "batch must be divisible by batch_tile"
    ltot = batch_tile * LIMG

    # Input -> flattened zero-padded layout (C_IN, N*LIMG), batch folded on lanes.
    x = x_nchw.astype(jnp.float32)
    xp = jnp.pad(x, ((0, 0), (0, 0), (PAD, PAD), (PAD, PAD)))                 # (N, C, HP, WP)
    xf = jnp.pad(xp.reshape(N, C_IN, HP * WP), ((0, 0), (0, 0), (0, LIMG - HP * WP)))
    xf = jnp.transpose(xf, (1, 0, 2)).reshape(C_IN, N * LIMG)                 # (C, N*LIMG)

    # Valid-pixel mask in conv-output coordinates p = h*WP + w (per-image, tiled).
    pos = jnp.arange(LIMG, dtype=jnp.int32)
    valid = ((pos < H * WP) & ((pos % WP) < W)).astype(jnp.float32)
    mask = jnp.tile(valid, (batch_tile,)).reshape(1, ltot)

    # Weights pre-reshaped for im2col (column index = (kh*KW + kw)*Cin + c).
    w1m = jnp.transpose(w1.astype(jnp.float32), (0, 2, 3, 1)).reshape(F, KH * KW * C_IN)
    w2m = jnp.transpose(w2.astype(jnp.float32), (0, 2, 3, 1)).reshape(F, KH * KW * C1)
    w3m = w3.astype(jnp.float32).reshape(F, C2)
    b1c = b1.astype(jnp.float32).reshape(F, 1)
    b2c = b2.astype(jnp.float32).reshape(F, 1)
    b3c = b3.astype(jnp.float32).reshape(F, 1)
    alpha2d = jnp.reshape(jnp.asarray(alpha, jnp.float32), (1, 1))

    kernel = functools.partial(dense_block_kernel, ltot=ltot)
    grid = (N // batch_tile,)
    out_flat = pl.pallas_call(
        kernel,
        out_shape=jax.ShapeDtypeStruct((F, N * LIMG), jnp.float32),
        grid_spec=pltpu.PrefetchScalarGridSpec(
            num_scalar_prefetch=0,
            grid=grid,
            in_specs=[
                pl.BlockSpec((C_IN, ltot), lambda g: (0, g)),
                pl.BlockSpec((1, ltot), lambda g: (0, 0)),
                pl.BlockSpec((F, KH * KW * C_IN), lambda g: (0, 0)),
                pl.BlockSpec((F, 1), lambda g: (0, 0)),
                pl.BlockSpec((F, KH * KW * C1), lambda g: (0, 0)),
                pl.BlockSpec((F, 1), lambda g: (0, 0)),
                pl.BlockSpec((F, C2), lambda g: (0, 0)),
                pl.BlockSpec((F, 1), lambda g: (0, 0)),
                pl.BlockSpec(memory_space=pltpu.MemorySpace.SMEM),   # shared PReLU alpha
            ],
            out_specs=pl.BlockSpec((F, ltot), lambda g: (0, g)),
            scratch_shapes=[
                pltpu.VMEM((C2, ltot), jnp.float32),           # dense feature buffer
                pltpu.VMEM((KH * KW * C1, ltot), jnp.float32), # im2col patch buffer
            ],
        ),
        compiler_params=pltpu.CompilerParams(dimension_semantics=("parallel",)),
    )(xf, mask, w1m, b1c, w2m, b2c, w3m, b3c, alpha2d)

    # Back to NCHW: strip the zero tail and the spatial padding ring.
    out = jnp.transpose(out_flat.reshape(F, N, LIMG), (1, 0, 2))              # (N, F, LIMG)
    out = out[:, :, :HP * WP].reshape(N, F, HP, WP)[:, :, PAD:PAD + H, PAD:PAD + W]
    return out


def _ref_forward(x, w1, b1, w2, b2, w3, b3, alpha):
    """Pure-JAX reference of DenseBlockNoBN.forward (NCHW, OIHW weights)."""
    pre = lambda t: jnp.where(t >= 0, t, alpha * t)

    def conv(t, w, b, p):
        y = lax.conv_general_dilated(t, w, (1, 1), ((p, p), (p, p)),
                                     dimension_numbers=('NCHW', 'OIHW', 'NCHW'))
        return y + b.reshape(1, -1, 1, 1)

    o3 = conv(pre(x), w1, b1, PAD)
    o4 = jnp.concatenate([x, o3], axis=1)
    o7 = conv(pre(o4), w2, b2, PAD)
    o8 = jnp.concatenate([x, o3, o7], axis=1)
    return conv(pre(o8), w3, b3, 0)


if __name__ == "__main__":
    key = jax.random.PRNGKey(0)
    ks = jax.random.split(key, 7)
    # Deterministic synthetic parameters (PyTorch OIHW conv layout).
    x = jax.random.normal(ks[0], (2, C_IN, H, W), jnp.float32)
    w1 = jax.random.normal(ks[1], (F, C_IN, KH, KW), jnp.float32) * 0.1
    b1 = jax.random.normal(ks[2], (F,), jnp.float32) * 0.1
    w2 = jax.random.normal(ks[3], (F, C1, KH, KW), jnp.float32) * 0.1
    b2 = jax.random.normal(ks[4], (F,), jnp.float32) * 0.1
    w3 = jax.random.normal(ks[5], (F, C2, 1, 1), jnp.float32) * 0.1
    b3 = jax.random.normal(ks[6], (F,), jnp.float32) * 0.1
    alpha = jnp.float32(0.25)                      # nn.PReLU() default init

    out = dense_block_nobn(x, w1, b1, w2, b2, w3, b3, alpha)
    jax.block_until_ready(out)

    ref = _ref_forward(x, w1, b1, w2, b2, w3, b3, alpha)
    assert out.shape == (2, F, H, W)
    assert jnp.allclose(out, ref, atol=1e-4, rtol=1e-4), "DenseBlockNoBN output mismatch"

    print("KERNEL_OK")
</pallas_src>

<mosaic_0001>
module attributes {stable_mosaic.version = 11 : i64} {
  func.func @dense_block_kernel(%arg0: i32, %arg1: memref<4x1024xf32, #tpu.memory_space<vmem>>, %arg2: memref<1x1024xf32, #tpu.memory_space<vmem>>, %arg3: memref<8x100xf32, #tpu.memory_space<vmem>>, %arg4: memref<8x1xf32, #tpu.memory_space<vmem>>, %arg5: memref<8x300xf32, #tpu.memory_space<vmem>>, %arg6: memref<8x1xf32, #tpu.memory_space<vmem>>, %arg7: memref<8x20xf32, #tpu.memory_space<vmem>>, %arg8: memref<8x1xf32, #tpu.memory_space<vmem>>, %arg9: memref<1x1xf32, #tpu.memory_space<smem>>, %arg10: memref<8x1024xf32, #tpu.memory_space<vmem>>, %arg11: memref<20x1024xf32, #tpu.memory_space<vmem>>, %arg12: memref<300x1024xf32, #tpu.memory_space<vmem>>) attributes {dimension_semantics = [#tpu.dimension_semantics<parallel>], iteration_bounds = array<i64: 1>, scalar_prefetch = 0 : i64, scratch_operands = 2 : i64, tpu.core_type = #tpu.core_type<tc>, window_params = [{transform_indices = @transform_0, window_bounds = array<i64: 4, 1024>}, {pipeline_mode = #tpu.pipeline_mode<synchronous>, transform_indices = @transform_1, window_bounds = array<i64: 1, 1024>}, {pipeline_mode = #tpu.pipeline_mode<synchronous>, transform_indices = @transform_2, window_bounds = array<i64: 8, 100>}, {pipeline_mode = #tpu.pipeline_mode<synchronous>, transform_indices = @transform_3, window_bounds = array<i64: 8, 1>}, {pipeline_mode = #tpu.pipeline_mode<synchronous>, transform_indices = @transform_4, window_bounds = array<i64: 8, 300>}, {pipeline_mode = #tpu.pipeline_mode<synchronous>, transform_indices = @transform_5, window_bounds = array<i64: 8, 1>}, {pipeline_mode = #tpu.pipeline_mode<synchronous>, transform_indices = @transform_6, window_bounds = array<i64: 8, 20>}, {pipeline_mode = #tpu.pipeline_mode<synchronous>, transform_indices = @transform_7, window_bounds = array<i64: 8, 1>}, {transform_indices = @transform_8, window_bounds = array<i64: 1, 1>}, {transform_indices = @transform_9, window_bounds = array<i64: 8, 1024>}]} {
    %c0 = arith.constant 0 : index
    %c0_0 = arith.constant 0 : index
    %0 = memref.load %arg9[%c0, %c0_0] : memref<1x1xf32, #tpu.memory_space<smem>>
    %c0_1 = arith.constant 0 : index
    %c0_2 = arith.constant 0 : index
    %1 = vector.load %arg1[%c0_1, %c0_2] : memref<4x1024xf32, #tpu.memory_space<vmem>>, vector<4x1024xf32>
    %cst = arith.constant 0.000000e+00 : f32
    %2 = vector.broadcast %cst : f32 to vector<4x1024xf32>
    %3 = arith.cmpf oge, %1, %2 : vector<4x1024xf32>
    %4 = vector.broadcast %0 : f32 to vector<4x1024xf32>
    %5 = arith.mulf %4, %1 : vector<4x1024xf32>
    %6 = arith.select %3, %1, %5 : vector<4x1024xi1>, vector<4x1024xf32>
    %c0_3 = arith.constant 0 : index
    %c0_4 = arith.constant 0 : index
    %7 = vector.load %arg11[%c0_3, %c0_4] : memref<20x1024xf32, #tpu.memory_space<vmem>>, vector<4x1024xf32>
    tpu.vector_store %arg11[%c0_3, %c0_4], %6 {strides = array<i32>} : memref<20x1024xf32, #tpu.memory_space<vmem>>, vector<4x1024xf32>,
    %c0_5 = arith.constant 0 : index
    %c0_6 = arith.constant 0 : index
    %8 = vector.load %arg2[%c0_5, %c0_6] : memref<1x1024xf32, #tpu.memory_space<vmem>>, vector<1x896xf32>
    %c0_7 = arith.constant 0 : index
    %c0_8 = arith.constant 0 : index
    %9 = vector.load %arg11[%c0_7, %c0_8] : memref<20x1024xf32, #tpu.memory_space<vmem>>, vector<4x896xf32>
    %c0_9 = arith.constant 0 : index
    %c0_10 = arith.constant 0 : index
    %10 = vector.load %arg12[%c0_9, %c0_10] : memref<300x1024xf32, #tpu.memory_space<vmem>>, vector<4x896xf32>
    tpu.vector_store %arg12[%c0_9, %c0_10], %9 {strides = array<i32>} : memref<300x1024xf32, #tpu.memory_space<vmem>>, vector<4x896xf32>,
    %c0_11 = arith.constant 0 : index
    %c1 = arith.constant 1 : index
    %11 = vector.load %arg11[%c0_11, %c1] : memref<20x1024xf32, #tpu.memory_space<vmem>>, vector<4x896xf32>
    %c4 = arith.constant 4 : index
    %c0_12 = arith.constant 0 : index
    %12 = vector.load %arg12[%c4, %c0_12] : memref<300x1024xf32, #tpu.memory_space<vmem>>, vector<4x896xf32>
    tpu.vector_store %arg12[%c4, %c0_12], %11 {strides = array<i32>} : memref<300x1024xf32, #tpu.memory_space<vmem>>, vector<4x896xf32>,
    %c0_13 = arith.constant 0 : index
    %c2 = arith.constant 2 : index
    %13 = vector.load %arg11[%c0_13, %c2] : memref<20x1024xf32, #tpu.memory_space<vmem>>, vector<4x896xf32>
    %c8 = arith.constant 8 : index
    %c0_14 = arith.constant 0 : index
    %14 = vector.load %arg12[%c8, %c0_14] : memref<300x1024xf32, #tpu.memory_space<vmem>>, vector<4x896xf32>
    tpu.vector_store %arg12[%c8, %c0_14], %13 {strides = array<i32>} : memref<300x1024xf32, #tpu.memory_space<vmem>>, vector<4x896xf32>,
    %c0_15 = arith.constant 0 : index
    %c3 = arith.constant 3 : index
    %15 = vector.load %arg11[%c0_15, %c3] : memref<20x1024xf32, #tpu.memory_space<vmem>>, vector<4x896xf32>
    %c12 = arith.constant 12 : index
    %c0_16 = arith.constant 0 : index
    %16 = vector.load %arg12[%c12, %c0_16] : memref<300x1024xf32, #tpu.memory_space<vmem>>, vector<4x896xf32>
    tpu.vector_store %arg12[%c12, %c0_16], %15 {strides = array<i32>} : memref<300x1024xf32, #tpu.memory_space<vmem>>, vector<4x896xf32>,
    %c0_17 = arith.constant 0 : index
    %c4_18 = arith.constant 4 : index
    %17 = vector.load %arg11[%c0_17, %c4_18] : memref<20x1024xf32, #tpu.memory_space<vmem>>, vector<4x896xf32>
    %c16 = arith.constant 16 : index
    %c0_19 = arith.constant 0 : index
    %18 = vector.load %arg12[%c16, %c0_19] : memref<300x1024xf32, #tpu.memory_space<vmem>>, vector<4x896xf32>
    tpu.vector_store %arg12[%c16, %c0_19], %17 {strides = array<i32>} : memref<300x1024xf32, #tpu.memory_space<vmem>>, vector<4x896xf32>,
    %c0_20 = arith.constant 0 : index
    %c20 = arith.constant 20 : index
    %19 = vector.load %arg11[%c0_20, %c20] : memref<20x1024xf32, #tpu.memory_space<vmem>>, vector<4x896xf32>
    %c20_21 = arith.constant 20 : index
    %c0_22 = arith.constant 0 : index
    %20 = vector.load %arg12[%c20_21, %c0_22] : memref<300x1024xf32, #tpu.memory_space<vmem>>, vector<4x896xf32>
    tpu.vector_store %arg12[%c20_21, %c0_22], %19 {strides = array<i32>} : memref<300x1024xf32, #tpu.memory_space<vmem>>, vector<4x896xf32>,
    %c0_23 = arith.constant 0 : index
    %c21 = arith.constant 21 : index
    %21 = vector.load %arg11[%c0_23, %c21] : memref<20x1024xf32, #tpu.memory_space<vmem>>, vector<4x896xf32>
    %c24 = arith.constant 24 : index
    %c0_24 = arith.constant 0 : index
    %22 = vector.load %arg12[%c24, %c0_24] : memref<300x1024xf32, #tpu.memory_space<vmem>>, vector<4x896xf32>
    tpu.vector_store %arg12[%c24, %c0_24], %21 {strides = array<i32>} : memref<300x1024xf32, #tpu.memory_space<vmem>>, vector<4x896xf32>,
    %c0_25 = arith.constant 0 : index
    %c22 = arith.constant 22 : index
    %23 = vector.load %arg11[%c0_25, %c22] : memref<20x1024xf32, #tpu.memory_space<vmem>>, vector<4x896xf32>
    %c28 = arith.constant 28 : index
    %c0_26 = arith.constant 0 : index
    %24 = vector.load %arg12[%c28, %c0_26] : memref<300x1024xf32, #tpu.memory_space<vmem>>, vector<4x896xf32>
    tpu.vector_store %arg12[%c28, %c0_26], %23 {strides = array<i32>} : memref<300x1024xf32, #tpu.memory_space<vmem>>, vector<4x896xf32>,
    %c0_27 = arith.constant 0 : index
    %c23 = arith.constant 23 : index
    %25 = vector.load %arg11[%c0_27, %c23] : memref<20x1024xf32, #tpu.memory_space<vmem>>, vector<4x896xf32>
    %c32 = arith.constant 32 : index
    %c0_28 = arith.constant 0 : index
    %26 = vector.load %arg12[%c32, %c0_28] : memref<300x1024xf32, #tpu.memory_space<vmem>>, vector<4x896xf32>
    tpu.vector_store %arg12[%c32, %c0_28], %25 {strides = array<i32>} : memref<300x1024xf32, #tpu.memory_space<vmem>>, vector<4x896xf32>,
    %c0_29 = arith.constant 0 : index
    %c24_30 = arith.constant 24 : index
    %27 = vector.load %arg11[%c0_29, %c24_30] : memref<20x1024xf32, #tpu.memory_space<vmem>>, vector<4x896xf32>
    %c36 = arith.constant 36 : index
    %c0_31 = arith.constant 0 : index
    %28 = vector.load %arg12[%c36, %c0_31] : memref<300x1024xf32, #tpu.memory_space<vmem>>, vector<4x896xf32>
    tpu.vector_store %arg12[%c36, %c0_31], %27 {strides = array<i32>} : memref<300x1024xf32, #tpu.memory_space<vmem>>, vector<4x896xf32>,
    %c0_32 = arith.constant 0 : index
    %c40 = arith.constant 40 : index
    %29 = vector.load %arg11[%c0_32, %c40] : memref<20x1024xf32, #tpu.memory_space<vmem>>, vector<4x896xf32>
    %c40_33 = arith.constant 40 : index
    %c0_34 = arith.constant 0 : index
    %30 = vector.load %arg12[%c40_33, %c0_34] : memref<300x1024xf32, #tpu.memory_space<vmem>>, vector<4x896xf32>
    tpu.vector_store %arg12[%c40_33, %c0_34], %29 {strides = array<i32>} : memref<300x1024xf32, #tpu.memory_space<vmem>>, vector<4x896xf32>,
    %c0_35 = arith.constant 0 : index
    %c41 = arith.constant 41 : index
    %31 = vector.load %arg11[%c0_35, %c41] : memref<20x1024xf32, #tpu.memory_space<vmem>>, vector<4x896xf32>
    %c44 = arith.constant 44 : index
    %c0_36 = arith.constant 0 : index
    %32 = vector.load %arg12[%c44, %c0_36] : memref<300x1024xf32, #tpu.memory_space<vmem>>, vector<4x896xf32>
    tpu.vector_store %arg12[%c44, %c0_36], %31 {strides = array<i32>} : memref<300x1024xf32, #tpu.memory_space<vmem>>, vector<4x896xf32>,
    %c0_37 = arith.constant 0 : index
    %c42 = arith.constant 42 : index
    %33 = vector.load %arg11[%c0_37, %c42] : memref<20x1024xf32, #tpu.memory_space<vmem>>, vector<4x896xf32>
    %c48 = arith.constant 48 : index
    %c0_38 = arith.constant 0 : index
    %34 = vector.load %arg12[%c48, %c0_38] : memref<300x1024xf32, #tpu.memory_space<vmem>>, vector<4x896xf32>
    tpu.vector_store %arg12[%c48, %c0_38], %33 {strides = array<i32>} : memref<300x1024xf32, #tpu.memory_space<vmem>>, vector<4x896xf32>,
    %c0_39 = arith.constant 0 : index
    %c43 = arith.constant 43 : index
    %35 = vector.load %arg11[%c0_39, %c43] : memref<20x1024xf32, #tpu.memory_space<vmem>>, vector<4x896xf32>
    %c52 = arith.constant 52 : index
    %c0_40 = arith.constant 0 : index
    %36 = vector.load %arg12[%c52, %c0_40] : memref<300x1024xf32, #tpu.memory_space<vmem>>, vector<4x896xf32>
    tpu.vector_store %arg12[%c52, %c0_40], %35 {strides = array<i32>} : memref<300x1024xf32, #tpu.memory_space<vmem>>, vector<4x896xf32>,
    %c0_41 = arith.constant 0 : index
    %c44_42 = arith.constant 44 : index
    %37 = vector.load %arg11[%c0_41, %c44_42] : memref<20x1024xf32, #tpu.memory_space<vmem>>, vector<4x896xf32>
    %c56 = arith.constant 56 : index
    %c0_43 = arith.constant 0 : index
    %38 = vector.load %arg12[%c56, %c0_43] : memref<300x1024xf32, #tpu.memory_space<vmem>>, vector<4x896xf32>
    tpu.vector_store %arg12[%c56, %c0_43], %37 {strides = array<i32>} : memref<300x1024xf32, #tpu.memory_space<vmem>>, vector<4x896xf32>,
    %c0_44 = arith.constant 0 : index
    %c60 = arith.constant 60 : index
    %39 = vector.load %arg11[%c0_44, %c60] : memref<20x1024xf32, #tpu.memory_space<vmem>>, vector<4x896xf32>
    %c60_45 = arith.constant 60 : index
    %c0_46 = arith.constant 0 : index
    %40 = vector.load %arg12[%c60_45, %c0_46] : memref<300x1024xf32, #tpu.memory_space<vmem>>, vector<4x896xf32>
    tpu.vector_store %arg12[%c60_45, %c0_46], %39 {strides = array<i32>} : memref<300x1024xf32, #tpu.memory_space<vmem>>, vector<4x896xf32>,
    %c0_47 = arith.constant 0 : index
    %c61 = arith.constant 61 : index
    %41 = vector.load %arg11[%c0_47, %c61] : memref<20x1024xf32, #tpu.memory_space<vmem>>, vector<4x896xf32>
    %c64 = arith.constant 64 : index
    %c0_48 = arith.constant 0 : index
    %42 = vector.load %arg12[%c64, %c0_48] : memref<300x1024xf32, #tpu.memory_space<vmem>>, vector<4x896xf32>
    tpu.vector_store %arg12[%c64, %c0_48], %41 {strides = array<i32>} : memref<300x1024xf32, #tpu.memory_space<vmem>>, vector<4x896xf32>,
    %c0_49 = arith.constant 0 : index
    %c62 = arith.constant 62 : index
    %43 = vector.load %arg11[%c0_49, %c62] : memref<20x1024xf32, #tpu.memory_space<vmem>>, vector<4x896xf32>
    %c68 = arith.constant 68 : index
    %c0_50 = arith.constant 0 : index
    %44 = vector.load %arg12[%c68, %c0_50] : memref<300x1024xf32, #tpu.memory_space<vmem>>, vector<4x896xf32>
    tpu.vector_store %arg12[%c68, %c0_50], %43 {strides = array<i32>} : memref<300x1024xf32, #tpu.memory_space<vmem>>, vector<4x896xf32>,
    %c0_51 = arith.constant 0 : index
    %c63 = arith.constant 63 : index
    %45 = vector.load %arg11[%c0_51, %c63] : memref<20x1024xf32, #tpu.memory_space<vmem>>, vector<4x896xf32>
    %c72 = arith.constant 72 : index
    %c0_52 = arith.constant 0 : index
    %46 = vector.load %arg12[%c72, %c0_52] : memref<300x1024xf32, #tpu.memory_space<vmem>>, vector<4x896xf32>
    tpu.vector_store %arg12[%c72, %c0_52], %45 {strides = array<i32>} : memref<300x1024xf32, #tpu.memory_space<vmem>>, vector<4x896xf32>,
    %c0_53 = arith.constant 0 : index
    %c64_54 = arith.constant 64 : index
    %47 = vector.load %arg11[%c0_53, %c64_54] : memref<20x1024xf32, #tpu.memory_space<vmem>>, vector<4x896xf32>
    %c76 = arith.constant 76 : index
    %c0_55 = arith.constant 0 : index
    %48 = vector.load %arg12[%c76, %c0_55] : memref<300x1024xf32, #tpu.memory_space<vmem>>, vector<4x896xf32>
    tpu.vector_store %arg12[%c76, %c0_55], %47 {strides = array<i32>} : memref<300x1024xf32, #tpu.memory_space<vmem>>, vector<4x896xf32>,
    %c0_56 = arith.constant 0 : index
    %c80 = arith.constant 80 : index
    %49 = vector.load %arg11[%c0_56, %c80] : memref<20x1024xf32, #tpu.memory_space<vmem>>, vector<4x896xf32>
    %c80_57 = arith.constant 80 : index
    %c0_58 = arith.constant 0 : index
    %50 = vector.load %arg12[%c80_57, %c0_58] : memref<300x1024xf32, #tpu.memory_space<vmem>>, vector<4x896xf32>
    tpu.vector_store %arg12[%c80_57, %c0_58], %49 {strides = array<i32>} : memref<300x1024xf32, #tpu.memory_space<vmem>>, vector<4x896xf32>,
    %c0_59 = arith.constant 0 : index
    %c81 = arith.constant 81 : index
    %51 = vector.load %arg11[%c0_59, %c81] : memref<20x1024xf32, #tpu.memory_space<vmem>>, vector<4x896xf32>
    %c84 = arith.constant 84 : index
    %c0_60 = arith.constant 0 : index
    %52 = vector.load %arg12[%c84, %c0_60] : memref<300x1024xf32, #tpu.memory_space<vmem>>, vector<4x896xf32>
    tpu.vector_store %arg12[%c84, %c0_60], %51 {strides = array<i32>} : memref<300x1024xf32, #tpu.memory_space<vmem>>, vector<4x896xf32>,
    %c0_61 = arith.constant 0 : index
    %c82 = arith.constant 82 : index
    %53 = vector.load %arg11[%c0_61, %c82] : memref<20x1024xf32, #tpu.memory_space<vmem>>, vector<4x896xf32>
    %c88 = arith.constant 88 : index
    %c0_62 = arith.constant 0 : index
    %54 = vector.load %arg12[%c88, %c0_62] : memref<300x1024xf32, #tpu.memory_space<vmem>>, vector<4x896xf32>
    tpu.vector_store %arg12[%c88, %c0_62], %53 {strides = array<i32>} : memref<300x1024xf32, #tpu.memory_space<vmem>>, vector<4x896xf32>,
    %c0_63 = arith.constant 0 : index
    %c83 = arith.constant 83 : index
    %55 = vector.load %arg11[%c0_63, %c83] : memref<20x1024xf32, #tpu.memory_space<vmem>>, vector<4x896xf32>
    %c92 = arith.constant 92 : index
    %c0_64 = arith.constant 0 : index
    %56 = vector.load %arg12[%c92, %c0_64] : memref<300x1024xf32, #tpu.memory_space<vmem>>, vector<4x896xf32>
    tpu.vector_store %arg12[%c92, %c0_64], %55 {strides = array<i32>} : memref<300x1024xf32, #tpu.memory_space<vmem>>, vector<4x896xf32>,
    %c0_65 = arith.constant 0 : index
    %c84_66 = arith.constant 84 : index
    %57 = vector.load %arg11[%c0_65, %c84_66] : memref<20x1024xf32, #tpu.memory_space<vmem>>, vector<4x896xf32>
    %c96 = arith.constant 96 : index
    %c0_67 = arith.constant 0 : index
    %58 = vector.load %arg12[%c96, %c0_67] : memref<300x1024xf32, #tpu.memory_space<vmem>>, vector<4x896xf32>
    tpu.vector_store %arg12[%c96, %c0_67], %57 {strides = array<i32>} : memref<300x1024xf32, #tpu.memory_space<vmem>>, vector<4x896xf32>,
    %c0_68 = arith.constant 0 : index
    %c0_69 = arith.constant 0 : index
    %59 = vector.load %arg3[%c0_68, %c0_69] : memref<8x100xf32, #tpu.memory_space<vmem>>, vector<8x100xf32>
    %c0_70 = arith.constant 0 : index
    %c0_71 = arith.constant 0 : index
    %60 = vector.load %arg12[%c0_70, %c0_71] : memref<300x1024xf32, #tpu.memory_space<vmem>>, vector<100x896xf32>
    %cst_72 = arith.constant dense<0.000000e+00> : vector<8x896xf32>
    %61 = tpu.matmul %59, %60, %cst_72 {dimension_numbers = #tpu.dot_dimension_numbers<[1], [0], [0], [1], [0, 0, 1, 1], [], []>} : vector<8x100xf32>, vector<100x896xf32>, vector<8x896xf32> -> vector<8x896xf32>
    %c0_73 = arith.constant 0 : index
    %c0_74 = arith.constant 0 : index
    %62 = vector.load %arg4[%c0_73, %c0_74] : memref<8x1xf32, #tpu.memory_space<vmem>>, vector<8x1xf32>
    %63 = vector.broadcast %62 : vector<8x1xf32> to vector<8x896xf32>
    %64 = arith.addf %61, %63 : vector<8x896xf32>
    %cst_75 = arith.constant 0.000000e+00 : f32
    %65 = vector.broadcast %cst_75 : f32 to vector<8x896xf32>
    %66 = arith.cmpf oge, %64, %65 : vector<8x896xf32>
    %67 = vector.broadcast %0 : f32 to vector<8x896xf32>
    %68 = arith.mulf %67, %64 : vector<8x896xf32>
    %69 = arith.select %66, %64, %68 : vector<8x896xi1>, vector<8x896xf32>
    %70 = vector.broadcast %8 : vector<1x896xf32> to vector<8x896xf32>
    %71 = arith.mulf %69, %70 : vector<8x896xf32>
    %cst_76 = arith.constant 0.000000e+00 : f32
    %72 = vector.broadcast %cst_76 : f32 to vector<8x42xf32>
    %c4_77 = arith.constant 4 : index
    %c0_78 = arith.constant 0 : index
    %73 = vector.load %arg11[%c4_77, %c0_78] : memref<20x1024xf32, #tpu.memory_space<vmem>>, vector<8x42xf32>
    tpu.vector_store %arg11[%c4_77, %c0_78], %72 {strides = array<i32>} : memref<20x1024xf32, #tpu.memory_space<vmem>>, vector<8x42xf32>,
    %c4_79 = arith.constant 4 : index
    %c42_80 = arith.constant 42 : index
    %74 = vector.load %arg11[%c4_79, %c42_80] : memref<20x1024xf32, #tpu.memory_space<vmem>>, vector<8x896xf32>
    tpu.vector_store %arg11[%c4_79, %c42_80], %71 {strides = array<i32>} : memref<20x1024xf32, #tpu.memory_space<vmem>>, vector<8x896xf32>,
    %cst_81 = arith.constant 0.000000e+00 : f32
    %75 = vector.broadcast %cst_81 : f32 to vector<8x86xf32>
    %c4_82 = arith.constant 4 : index
    %c938 = arith.constant 938 : index
    %76 = vector.load %arg11[%c4_82, %c938] : memref<20x1024xf32, #tpu.memory_space<vmem>>, vector<8x86xf32>
    tpu.vector_store %arg11[%c4_82, %c938], %75 {strides = array<i32>} : memref<20x1024xf32, #tpu.memory_space<vmem>>, vector<8x86xf32>,
    %c0_83 = arith.constant 0 : index
    %c0_84 = arith.constant 0 : index
    %77 = vector.load %arg11[%c0_83, %c0_84] : memref<20x1024xf32, #tpu.memory_space<vmem>>, vector<12x896xf32>
    %c0_85 = arith.constant 0 : index
    %c0_86 = arith.constant 0 : index
    %78 = vector.load %arg12[%c0_85, %c0_86] : memref<300x1024xf32, #tpu.memory_space<vmem>>, vector<12x896xf32>
    tpu.vector_store %arg12[%c0_85, %c0_86], %77 {strides = array<i32>} : memref<300x1024xf32, #tpu.memory_space<vmem>>, vector<12x896xf32>,
    %c0_87 = arith.constant 0 : index
    %c1_88 = arith.constant 1 : index
    %79 = vector.load %arg11[%c0_87, %c1_88] : memref<20x1024xf32, #tpu.memory_space<vmem>>, vector<12x896xf32>
    %c12_89 = arith.constant 12 : index
    %c0_90 = arith.constant 0 : index
    %80 = vector.load %arg12[%c12_89, %c0_90] : memref<300x1024xf32, #tpu.memory_space<vmem>>, vector<12x896xf32>
    tpu.vector_store %arg12[%c12_89, %c0_90], %79 {strides = array<i32>} : memref<300x1024xf32, #tpu.memory_space<vmem>>, vector<12x896xf32>,
    %c0_91 = arith.constant 0 : index
    %c2_92 = arith.constant 2 : index
    %81 = vector.load %arg11[%c0_91, %c2_92] : memref<20x1024xf32, #tpu.memory_space<vmem>>, vector<12x896xf32>
    %c24_93 = arith.constant 24 : index
    %c0_94 = arith.constant 0 : index
    %82 = vector.load %arg12[%c24_93, %c0_94] : memref<300x1024xf32, #tpu.memory_space<vmem>>, vector<12x896xf32>
    tpu.vector_store %arg12[%c24_93, %c0_94], %81 {strides = array<i32>} : memref<300x1024xf32, #tpu.memory_space<vmem>>, vector<12x896xf32>,
    %c0_95 = arith.constant 0 : index
    %c3_96 = arith.constant 3 : index
    %83 = vector.load %arg11[%c0_95, %c3_96] : memref<20x1024xf32, #tpu.memory_space<vmem>>, vector<12x896xf32>
    %c36_97 = arith.constant 36 : index
    %c0_98 = arith.constant 0 : index
    %84 = vector.load %arg12[%c36_97, %c0_98] : memref<300x1024xf32, #tpu.memory_space<vmem>>, vector<12x896xf32>
    tpu.vector_store %arg12[%c36_97, %c0_98], %83 {strides = array<i32>} : memref<300x1024xf32, #tpu.memory_space<vmem>>, vector<12x896xf32>,
    %c0_99 = arith.constant 0 : index
    %c4_100 = arith.constant 4 : index
    %85 = vector.load %arg11[%c0_99, %c4_100] : memref<20x1024xf32, #tpu.memory_space<vmem>>, vector<12x896xf32>
    %c48_101 = arith.constant 48 : index
    %c0_102 = arith.constant 0 : index
    %86 = vector.load %arg12[%c48_101, %c0_102] : memref<300x1024xf32, #tpu.memory_space<vmem>>, vector<12x896xf32>
    tpu.vector_store %arg12[%c48_101, %c0_102], %85 {strides = array<i32>} : memref<300x1024xf32, #tpu.memory_space<vmem>>, vector<12x896xf32>,
    %c0_103 = arith.constant 0 : index
    %c20_104 = arith.constant 20 : index
    %87 = vector.load %arg11[%c0_103, %c20_104] : memref<20x1024xf32, #tpu.memory_space<vmem>>, vector<12x896xf32>
    %c60_105 = arith.constant 60 : index
    %c0_106 = arith.constant 0 : index
    %88 = vector.load %arg12[%c60_105, %c0_106] : memref<300x1024xf32, #tpu.memory_space<vmem>>, vector<12x896xf32>
    tpu.vector_store %arg12[%c60_105, %c0_106], %87 {strides = array<i32>} : memref<300x1024xf32, #tpu.memory_space<vmem>>, vector<12x896xf32>,
    %c0_107 = arith.constant 0 : index
    %c21_108 = arith.constant 21 : index
    %89 = vector.load %arg11[%c0_107, %c21_108] : memref<20x1024xf32, #tpu.memory_space<vmem>>, vector<12x896xf32>
    %c72_109 = arith.constant 72 : index
    %c0_110 = arith.constant 0 : index
    %90 = vector.load %arg12[%c72_109, %c0_110] : memref<300x1024xf32, #tpu.memory_space<vmem>>, vector<12x896xf32>
    tpu.vector_store %arg12[%c72_109, %c0_110], %89 {strides = array<i32>} : memref<300x1024xf32, #tpu.memory_space<vmem>>, vector<12x896xf32>,
    %c0_111 = arith.constant 0 : index
    %c22_112 = arith.constant 22 : index
    %91 = vector.load %arg11[%c0_111, %c22_112] : memref<20x1024xf32, #tpu.memory_space<vmem>>, vector<12x896xf32>
    %c84_113 = arith.constant 84 : index
    %c0_114 = arith.constant 0 : index
    %92 = vector.load %arg12[%c84_113, %c0_114] : memref<300x1024xf32, #tpu.memory_space<vmem>>, vector<12x896xf32>
    tpu.vector_store %arg12[%c84_113, %c0_114], %91 {strides = array<i32>} : memref<300x1024xf32, #tpu.memory_space<vmem>>, vector<12x896xf32>,
    %c0_115 = arith.constant 0 : index
    %c23_116 = arith.constant 23 : index
    %93 = vector.load %arg11[%c0_115, %c23_116] : memref<20x1024xf32, #tpu.memory_space<vmem>>, vector<12x896xf32>
    %c96_117 = arith.constant 96 : index
    %c0_118 = arith.constant 0 : index
    %94 = vector.load %arg12[%c96_117, %c0_118] : memref<300x1024xf32, #tpu.memory_space<vmem>>, vector<12x896xf32>
    tpu.vector_store %arg12[%c96_117, %c0_118], %93 {strides = array<i32>} : memref<300x1024xf32, #tpu.memory_space<vmem>>, vector<12x896xf32>,
    %c0_119 = arith.constant 0 : index
    %c24_120 = arith.constant 24 : index
    %95 = vector.load %arg11[%c0_119, %c24_120] : memref<20x1024xf32, #tpu.memory_space<vmem>>, vector<12x896xf32>
    %c108 = arith.constant 108 : index
    %c0_121 = arith.constant 0 : index
    %96 = vector.load %arg12[%c108, %c0_121] : memref<300x1024xf32, #tpu.memory_space<vmem>>, vector<12x896xf32>
    tpu.vector_store %arg12[%c108, %c0_121], %95 {strides = array<i32>} : memref<300x1024xf32, #tpu.memory_space<vmem>>, vector<12x896xf32>,
    %c0_122 = arith.constant 0 : index
    %c40_123 = arith.constant 40 : index
    %97 = vector.load %arg11[%c0_122, %c40_123] : memref<20x1024xf32, #tpu.memory_space<vmem>>, vector<12x896xf32>
    %c120 = arith.constant 120 : index
    %c0_124 = arith.constant 0 : index
    %98 = vector.load %arg12[%c120, %c0_124] : memref<300x1024xf32, #tpu.memory_space<vmem>>, vector<12x896xf32>
    tpu.vector_store %arg12[%c120, %c0_124], %97 {strides = array<i32>} : memref<300x1024xf32, #tpu.memory_space<vmem>>, vector<12x896xf32>,
    %c0_125 = arith.constant 0 : index
    %c41_126 = arith.constant 41 : index
    %99 = vector.load %arg11[%c0_125, %c41_126] : memref<20x1024xf32, #tpu.memory_space<vmem>>, vector<12x896xf32>
    %c132 = arith.constant 132 : index
    %c0_127 = arith.constant 0 : index
    %100 = vector.load %arg12[%c132, %c0_127] : memref<300x1024xf32, #tpu.memory_space<vmem>>, vector<12x896xf32>
    tpu.vector_store %arg12[%c132, %c0_127], %99 {strides = array<i32>} : memref<300x1024xf32, #tpu.memory_space<vmem>>, vector<12x896xf32>,
    %c0_128 = arith.constant 0 : index
    %c42_129 = arith.constant 42 : index
    %101 = vector.load %arg11[%c0_128, %c42_129] : memref<20x1024xf32, #tpu.memory_space<vmem>>, vector<12x896xf32>
    %c144 = arith.constant 144 : index
    %c0_130 = arith.constant 0 : index
    %102 = vector.load %arg12[%c144, %c0_130] : memref<300x1024xf32, #tpu.memory_space<vmem>>, vector<12x896xf32>
    tpu.vector_store %arg12[%c144, %c0_130], %101 {strides = array<i32>} : memref<300x1024xf32, #tpu.memory_space<vmem>>, vector<12x896xf32>,
    %c0_131 = arith.constant 0 : index
    %c43_132 = arith.constant 43 : index
    %103 = vector.load %arg11[%c0_131, %c43_132] : memref<20x1024xf32, #tpu.memory_space<vmem>>, vector<12x896xf32>
    %c156 = arith.constant 156 : index
    %c0_133 = arith.constant 0 : index
    %104 = vector.load %arg12[%c156, %c0_133] : memref<300x1024xf32, #tpu.memory_space<vmem>>, vector<12x896xf32>
    tpu.vector_store %arg12[%c156, %c0_133], %103 {strides = array<i32>} : memref<300x1024xf32, #tpu.memory_space<vmem>>, vector<12x896xf32>,
    %c0_134 = arith.constant 0 : index
    %c44_135 = arith.constant 44 : index
    %105 = vector.load %arg11[%c0_134, %c44_135] : memref<20x1024xf32, #tpu.memory_space<vmem>>, vector<12x896xf32>
    %c168 = arith.constant 168 : index
    %c0_136 = arith.constant 0 : index
    %106 = vector.load %arg12[%c168, %c0_136] : memref<300x1024xf32, #tpu.memory_space<vmem>>, vector<12x896xf32>
    tpu.vector_store %arg12[%c168, %c0_136], %105 {strides = array<i32>} : memref<300x1024xf32, #tpu.memory_space<vmem>>, vector<12x896xf32>,
    %c0_137 = arith.constant 0 : index
    %c60_138 = arith.constant 60 : index
    %107 = vector.load %arg11[%c0_137, %c60_138] : memref<20x1024xf32, #tpu.memory_space<vmem>>, vector<12x896xf32>
    %c180 = arith.constant 180 : index
    %c0_139 = arith.constant 0 : index
    %108 = vector.load %arg12[%c180, %c0_139] : memref<300x1024xf32, #tpu.memory_space<vmem>>, vector<12x896xf32>
    tpu.vector_store %arg12[%c180, %c0_139], %107 {strides = array<i32>} : memref<300x1024xf32, #tpu.memory_space<vmem>>, vector<12x896xf32>,
    %c0_140 = arith.constant 0 : index
    %c61_141 = arith.constant 61 : index
    %109 = vector.load %arg11[%c0_140, %c61_141] : memref<20x1024xf32, #tpu.memory_space<vmem>>, vector<12x896xf32>
    %c192 = arith.constant 192 : index
    %c0_142 = arith.constant 0 : index
    %110 = vector.load %arg12[%c192, %c0_142] : memref<300x1024xf32, #tpu.memory_space<vmem>>, vector<12x896xf32>
    tpu.vector_store %arg12[%c192, %c0_142], %109 {strides = array<i32>} : memref<300x1024xf32, #tpu.memory_space<vmem>>, vector<12x896xf32>,
    %c0_143 = arith.constant 0 : index
    %c62_144 = arith.constant 62 : index
    %111 = vector.load %arg11[%c0_143, %c62_144] : memref<20x1024xf32, #tpu.memory_space<vmem>>, vector<12x896xf32>
    %c204 = arith.constant 204 : index
    %c0_145 = arith.constant 0 : index
    %112 = vector.load %arg12[%c204, %c0_145] : memref<300x1024xf32, #tpu.memory_space<vmem>>, vector<12x896xf32>
    tpu.vector_store %arg12[%c204, %c0_145], %111 {strides = array<i32>} : memref<300x1024xf32, #tpu.memory_space<vmem>>, vector<12x896xf32>,
    %c0_146 = arith.constant 0 : index
    %c63_147 = arith.constant 63 : index
    %113 = vector.load %arg11[%c0_146, %c63_147] : memref<20x1024xf32, #tpu.memory_space<vmem>>, vector<12x896xf32>
    %c216 = arith.constant 216 : index
    %c0_148 = arith.constant 0 : index
    %114 = vector.load %arg12[%c216, %c0_148] : memref<300x1024xf32, #tpu.memory_space<vmem>>, vector<12x896xf32>
    tpu.vector_store %arg12[%c216, %c0_148], %113 {strides = array<i32>} : memref<300x1024xf32, #tpu.memory_space<vmem>>, vector<12x896xf32>,
    %c0_149 = arith.constant 0 : index
    %c64_150 = arith.constant 64 : index
    %115 = vector.load %arg11[%c0_149, %c64_150] : memref<20x1024xf32, #tpu.memory_space<vmem>>, vector<12x896xf32>
    %c228 = arith.constant 228 : index
    %c0_151 = arith.constant 0 : index
    %116 = vector.load %arg12[%c228, %c0_151] : memref<300x1024xf32, #tpu.memory_space<vmem>>, vector<12x896xf32>
    tpu.vector_store %arg12[%c228, %c0_151], %115 {strides = array<i32>} : memref<300x1024xf32, #tpu.memory_space<vmem>>, vector<12x896xf32>,
    %c0_152 = arith.constant 0 : index
    %c80_153 = arith.constant 80 : index
    %117 = vector.load %arg11[%c0_152, %c80_153] : memref<20x1024xf32, #tpu.memory_space<vmem>>, vector<12x896xf32>
    %c240 = arith.constant 240 : index
    %c0_154 = arith.constant 0 : index
    %118 = vector.load %arg12[%c240, %c0_154] : memref<300x1024xf32, #tpu.memory_space<vmem>>, vector<12x896xf32>
    tpu.vector_store %arg12[%c240, %c0_154], %117 {strides = array<i32>} : memref<300x1024xf32, #tpu.memory_space<vmem>>, vector<12x896xf32>,
    %c0_155 = arith.constant 0 : index
    %c81_156 = arith.constant 81 : index
    %119 = vector.load %arg11[%c0_155, %c81_156] : memref<20x1024xf32, #tpu.memory_space<vmem>>, vector<12x896xf32>
    %c252 = arith.constant 252 : index
    %c0_157 = arith.constant 0 : index
    %120 = vector.load %arg12[%c252, %c0_157] : memref<300x1024xf32, #tpu.memory_space<vmem>>, vector<12x896xf32>
    tpu.vector_store %arg12[%c252, %c0_157], %119 {strides = array<i32>} : memref<300x1024xf32, #tpu.memory_space<vmem>>, vector<12x896xf32>,
    %c0_158 = arith.constant 0 : index
    %c82_159 = arith.constant 82 : index
    %121 = vector.load %arg11[%c0_158, %c82_159] : memref<20x1024xf32, #tpu.memory_space<vmem>>, vector<12x896xf32>
    %c264 = arith.constant 264 : index
    %c0_160 = arith.constant 0 : index
    %122 = vector.load %arg12[%c264, %c0_160] : memref<300x1024xf32, #tpu.memory_space<vmem>>, vector<12x896xf32>
    tpu.vector_store %arg12[%c264, %c0_160], %121 {strides = array<i32>} : memref<300x1024xf32, #tpu.memory_space<vmem>>, vector<12x896xf32>,
    %c0_161 = arith.constant 0 : index
    %c83_162 = arith.constant 83 : index
    %123 = vector.load %arg11[%c0_161, %c83_162] : memref<20x1024xf32, #tpu.memory_space<vmem>>, vector<12x896xf32>
    %c276 = arith.constant 276 : index
    %c0_163 = arith.constant 0 : index
    %124 = vector.load %arg12[%c276, %c0_163] : memref<300x1024xf32, #tpu.memory_space<vmem>>, vector<12x896xf32>
    tpu.vector_store %arg12[%c276, %c0_163], %123 {strides = array<i32>} : memref<300x1024xf32, #tpu.memory_space<vmem>>, vector<12x896xf32>,
    %c0_164 = arith.constant 0 : index
    %c84_165 = arith.constant 84 : index
    %125 = vector.load %arg11[%c0_164, %c84_165] : memref<20x1024xf32, #tpu.memory_space<vmem>>, vector<12x896xf32>
    %c288 = arith.constant 288 : index
    %c0_166 = arith.constant 0 : index
    %126 = vector.load %arg12[%c288, %c0_166] : memref<300x1024xf32, #tpu.memory_space<vmem>>, vector<12x896xf32>
    tpu.vector_store %arg12[%c288, %c0_166], %125 {strides = array<i32>} : memref<300x1024xf32, #tpu.memory_space<vmem>>, vector<12x896xf32>,
    %c0_167 = arith.constant 0 : index
    %c0_168 = arith.constant 0 : index
    %127 = vector.load %arg5[%c0_167, %c0_168] : memref<8x300xf32, #tpu.memory_space<vmem>>, vector<8x300xf32>
    %c0_169 = arith.constant 0 : index
    %c0_170 = arith.constant 0 : index
    %128 = vector.load %arg12[%c0_169, %c0_170] : memref<300x1024xf32, #tpu.memory_space<vmem>>, vector<300x896xf32>
    %cst_171 = arith.constant dense<0.000000e+00> : vector<8x896xf32>
    %129 = tpu.matmul %127, %128, %cst_171 {dimension_numbers = #tpu.dot_dimension_numbers<[1], [0], [0], [1], [0, 0, 1, 1], [], []>} : vector<8x300xf32>, vector<300x896xf32>, vector<8x896xf32> -> vector<8x896xf32>
    %c0_172 = arith.constant 0 : index
    %c0_173 = arith.constant 0 : index
    %130 = vector.load %arg6[%c0_172, %c0_173] : memref<8x1xf32, #tpu.memory_space<vmem>>, vector<8x1xf32>
    %131 = vector.broadcast %130 : vector<8x1xf32> to vector<8x896xf32>
    %132 = arith.addf %129, %131 : vector<8x896xf32>
    %cst_174 = arith.constant 0.000000e+00 : f32
    %133 = vector.broadcast %cst_174 : f32 to vector<8x896xf32>
    %134 = arith.cmpf oge, %132, %133 : vector<8x896xf32>
    %135 = vector.broadcast %0 : f32 to vector<8x896xf32>
    %136 = arith.mulf %135, %132 : vector<8x896xf32>
    %137 = arith.select %134, %132, %136 : vector<8x896xi1>, vector<8x896xf32>
    %138 = vector.broadcast %8 : vector<1x896xf32> to vector<8x896xf32>
    %139 = arith.mulf %137, %138 : vector<8x896xf32>
    %cst_175 = arith.constant 0.000000e+00 : f32
    %140 = vector.broadcast %cst_175 : f32 to vector<8x42xf32>
    %c12_176 = arith.constant 12 : index
    %c0_177 = arith.constant 0 : index
    %141 = vector.load %arg11[%c12_176, %c0_177] : memref<20x1024xf32, #tpu.memory_space<vmem>>, vector<8x42xf32>
    tpu.vector_store %arg11[%c12_176, %c0_177], %140 {strides = array<i32>} : memref<20x1024xf32, #tpu.memory_space<vmem>>, vector<8x42xf32>,
    %c12_178 = arith.constant 12 : index
    %c42_179 = arith.constant 42 : index
    %142 = vector.load %arg11[%c12_178, %c42_179] : memref<20x1024xf32, #tpu.memory_space<vmem>>, vector<8x896xf32>
    tpu.vector_store %arg11[%c12_178, %c42_179], %139 {strides = array<i32>} : memref<20x1024xf32, #tpu.memory_space<vmem>>, vector<8x896xf32>,
    %cst_180 = arith.constant 0.000000e+00 : f32
    %143 = vector.broadcast %cst_180 : f32 to vector<8x86xf32>
    %c12_181 = arith.constant 12 : index
    %c938_182 = arith.constant 938 : index
    %144 = vector.load %arg11[%c12_181, %c938_182] : memref<20x1024xf32, #tpu.memory_space<vmem>>, vector<8x86xf32>
    tpu.vector_store %arg11[%c12_181, %c938_182], %143 {strides = array<i32>} : memref<20x1024xf32, #tpu.memory_space<vmem>>, vector<8x86xf32>,
    %c0_183 = arith.constant 0 : index
    %c0_184 = arith.constant 0 : index
    %145 = vector.load %arg7[%c0_183, %c0_184] : memref<8x20xf32, #tpu.memory_space<vmem>>, vector<8x20xf32>
    %c0_185 = arith.constant 0 : index
    %c0_186 = arith.constant 0 : index
    %146 = vector.load %arg11[%c0_185, %c0_186] : memref<20x1024xf32, #tpu.memory_space<vmem>>, vector<20x1024xf32>
    %cst_187 = arith.constant dense<0.000000e+00> : vector<8x1024xf32>
    %147 = tpu.matmul %145, %146, %cst_187 {dimension_numbers = #tpu.dot_dimension_numbers<[1], [0], [0], [1], [0, 0, 1, 1], [], []>} : vector<8x20xf32>, vector<20x1024xf32>, vector<8x1024xf32> -> vector<8x1024xf32>
    %c0_188 = arith.constant 0 : index
    %c0_189 = arith.constant 0 : index
    %148 = vector.load %arg8[%c0_188, %c0_189] : memref<8x1xf32, #tpu.memory_space<vmem>>, vector<8x1xf32>
    %149 = vector.broadcast %148 : vector<8x1xf32> to vector<8x1024xf32>
    %150 = arith.addf %147, %149 : vector<8x1024xf32>
    %c0_190 = arith.constant 0 : index
    %c0_191 = arith.constant 0 : index
    %151 = vector.load %arg10[%c0_190, %c0_191] : memref<8x1024xf32, #tpu.memory_space<vmem>>, vector<8x1024xf32>
    tpu.vector_store %arg10[%c0_190, %c0_191], %150 {strides = array<i32>} : memref<8x1024xf32, #tpu.memory_space<vmem>>, vector<8x1024xf32>,
    return
  }
  func.func @transform_0(%arg0: i32) -> (i32, i32) {
    %c0_i32 = arith.constant 0 : i32
    %c0_i32_0 = arith.constant 0 : i32
    return %c0_i32, %arg0 : i32, i32
  }
  func.func @transform_1(%arg0: i32) -> (i32, i32) {
    %c0_i32 = arith.constant 0 : i32
    %c0_i32_0 = arith.constant 0 : i32
    %c0_i32_1 = arith.constant 0 : i32
    return %c0_i32, %c0_i32_0 : i32, i32
  }
  func.func @transform_2(%arg0: i32) -> (i32, i32) {
    %c0_i32 = arith.constant 0 : i32
    %c0_i32_0 = arith.constant 0 : i32
    %c0_i32_1 = arith.constant 0 : i32
    return %c0_i32, %c0_i32_0 : i32, i32
  }
  func.func @transform_3(%arg0: i32) -> (i32, i32) {
    %c0_i32 = arith.constant 0 : i32
    %c0_i32_0 = arith.constant 0 : i32
    %c0_i32_1 = arith.constant 0 : i32
    return %c0_i32, %c0_i32_0 : i32, i32
  }
  func.func @transform_4(%arg0: i32) -> (i32, i32) {
    %c0_i32 = arith.constant 0 : i32
    %c0_i32_0 = arith.constant 0 : i32
    %c0_i32_1 = arith.constant 0 : i32
    return %c0_i32, %c0_i32_0 : i32, i32
  }
  func.func @transform_5(%arg0: i32) -> (i32, i32) {
    %c0_i32 = arith.constant 0 : i32
    %c0_i32_0 = arith.constant 0 : i32
    %c0_i32_1 = arith.constant 0 : i32
    return %c0_i32, %c0_i32_0 : i32, i32
  }
  func.func @transform_6(%arg0: i32) -> (i32, i32) {
    %c0_i32 = arith.constant 0 : i32
    %c0_i32_0 = arith.constant 0 : i32
    %c0_i32_1 = arith.constant 0 : i32
    return %c0_i32, %c0_i32_0 : i32, i32
  }
  func.func @transform_7(%arg0: i32) -> (i32, i32) {
    %c0_i32 = arith.constant 0 : i32
    %c0_i32_0 = arith.constant 0 : i32
    %c0_i32_1 = arith.constant 0 : i32
    return %c0_i32, %c0_i32_0 : i32, i32
  }
  func.func @transform_8(%arg0: i32) -> (i32, i32) {
    %c0_i32 = arith.constant 0 : i32
    %c0_i32_0 = arith.constant 0 : i32
    %c0_i32_1 = arith.constant 0 : i32
    return %c0_i32, %c0_i32_0 : i32, i32
  }
  func.func @transform_9(%arg0: i32) -> (i32, i32) {
    %c0_i32 = arith.constant 0 : i32
    %c0_i32_0 = arith.constant 0 : i32
    return %c0_i32, %arg0 : i32, i32
  }
}

</mosaic_0001>

<llo_original>
// kernel: tpu_custom_call.1
$region0: #{tpu_custom_call.1}
  #allocation0 [shape = 'u32[]', space=smem, size = 0x4, offset = 0x4, fixed_abs, tag = 'smem constant byte address 0x4 - core index']
  #allocation1 [shape = 'u32[144,128]{1,0:T(1,128)}', space=vmem, size = 0x12000, scoped, tag = 'internal scratch']
  #allocation2 [shape = 'f32[20,1024]{1,0:T(8,128)}', space=vmem, size = 0x18000, scoped, tag = 'scratch operand']
  #allocation3 [shape = 'f32[300,1024]{1,0:T(8,128)}', space=vmem, size = 0x130000, scoped, tag = 'scratch operand']
  #allocation4 [shape = 'f32[1,1]{1,0:T(1,128)S(6)}', space=smem, size = 0x200, scoped, tag = 'scoped memory for tpu_custom_call.1']
  %s0 = inlined_call_operand.hbm [shape: f32[4,1024], index: 0, kind: input, shape index: {}]
  %s1 = inlined_call_operand.vmem [shape: f32[1,1024], index: 1, kind: input, shape index: {}]
  %s2 = inlined_call_operand.vmem [shape: f32[8,100], index: 2, kind: input, shape index: {}]
  %s3 = inlined_call_operand.vmem [shape: f32[8,1], index: 3, kind: input, shape index: {}]
  %s4 = inlined_call_operand.vmem [shape: f32[8,300], index: 4, kind: input, shape index: {}]
  %s5 = inlined_call_operand.vmem [shape: f32[8,1], index: 5, kind: input, shape index: {}]
  %s6 = inlined_call_operand.vmem [shape: f32[8,20], index: 6, kind: input, shape index: {}]
  %s7 = inlined_call_operand.vmem [shape: f32[8,1], index: 7, kind: input, shape index: {}]
  %s8 = inlined_call_operand.<no memory space> [shape: f32[1,1], index: 8, kind: input, shape index: {}]
  %s9 = inlined_call_operand.hbm [shape: f32[8,1024], index: 9, kind: output, shape index: {}]
  %s10 = sld [smem:[#allocation0]]
  $region50: #{tpu_custom_call.1} parent=0
    _
  %s12 = ssub.s32 1, %s10
  %s13 = scalar_select 0, %s12, %s10
  %14 = sst [smem:[#allocation4]] %s8
  $region1: #{tpu_custom_call.1} parent=0
    #allocation5 [shape = 'u8[16384]{0}', space=vmem, size = 0x4000, scoped, tag = 'input window, operand 0, single buffered']
    #allocation6 [shape = 's32[1]{0}', space=sflag, size = 0x4, scoped, tag = 'scoped memory for tpu_custom_call.1']
    #allocation7 [shape = 's32[1]{0}', space=sflag, size = 0x4, scoped, tag = 'scoped memory for tpu_custom_call.1']
    #allocation8 [shape = 'u8[32768]{0}', space=vmem, size = 0x8000, scoped, tag = 'output window, operand 0, single buffered']
    %15 = vsyncpa [#allocation6], 0
    %16 = vsyncpa [#allocation7], 0
    // Predicated region
    $region2: #{tpu_custom_call.1} parent=1 // pred_check
      _
    $region3: #{tpu_custom_call.1} parent=1 // pred_check_branch
      %18 = sbr.rel (0) target = $region5
    $region4: #{tpu_custom_call.1} parent=1 // pred_region
      %s20 = ssub.s32 512, 512
      %21 = vsyncadd [#allocation6], %s20
      %s23 = sshll.u32 [#allocation5], 4
      %s24 = int_to_ptr.vmem [resolvable:$true] %s23
      %26 = dma.hbm_to_vmem [thread:$0]  %s0, 512, %s24, [#allocation6]
    $region5: #{tpu_custom_call.1} parent=1 // pred_fallthru
      _
    // Predicated region
    $region6: #{tpu_custom_call.1} parent=1 // pred_check
      _
    $region7: #{tpu_custom_call.1} parent=1 // pred_check_branch
      %28 = sbr.rel (0) target = $region9
    $region8: #{tpu_custom_call.1} parent=1 // pred_region
      _
    $region9: #{tpu_custom_call.1} parent=1 // pred_fallthru
      _
    // Predicated region
    $region10: #{tpu_custom_call.1} parent=1 // pred_check
      _
    $region11: #{tpu_custom_call.1} parent=1 // pred_check_branch
      %30 = sbr.rel (0) target = $region13
    $region12: #{tpu_custom_call.1} parent=1 // pred_region
      _
    $region13: #{tpu_custom_call.1} parent=1 // pred_fallthru
      _
    // Predicated region
    $region14: #{tpu_custom_call.1} parent=1 // pred_check
      _
    $region15: #{tpu_custom_call.1} parent=1 // pred_check_branch
      %32 = sbr.rel (0) target = $region17
    $region16: #{tpu_custom_call.1} parent=1 // pred_region
      _
    $region17: #{tpu_custom_call.1} parent=1 // pred_fallthru
      _
    // Predicated region
    $region18: #{tpu_custom_call.1} parent=1 // pred_check
      _
    $region19: #{tpu_custom_call.1} parent=1 // pred_check_branch
      %34 = sbr.rel (0) target = $region21
    $region20: #{tpu_custom_call.1} parent=1 // pred_region
      _
    $region21: #{tpu_custom_call.1} parent=1 // pred_fallthru
      _
    // Predicated region
    $region22: #{tpu_custom_call.1} parent=1 // pred_check
      _
    $region23: #{tpu_custom_call.1} parent=1 // pred_check_branch
      %36 = sbr.rel (0) target = $region25
    $region24: #{tpu_custom_call.1} parent=1 // pred_region
      _
    $region25: #{tpu_custom_call.1} parent=1 // pred_fallthru
      _
    // Predicated region
    $region26: #{tpu_custom_call.1} parent=1 // pred_check
      _
    $region27: #{tpu_custom_call.1} parent=1 // pred_check_branch
      %38 = sbr.rel (0) target = $region29
    $region28: #{tpu_custom_call.1} parent=1 // pred_region
      _
    $region29: #{tpu_custom_call.1} parent=1 // pred_fallthru
      _
    // Predicated region
    $region30: #{tpu_custom_call.1} parent=1 // pred_check
      _
    $region31: #{tpu_custom_call.1} parent=1 // pred_check_branch
      %40 = sbr.rel (0) target = $region33
    $region32: #{tpu_custom_call.1} parent=1 // pred_region
      _
    $region33: #{tpu_custom_call.1} parent=1 // pred_fallthru
      _
    // Predicated region
    $region34: #{tpu_custom_call.1} parent=1 // pred_check
      _
    $region35: #{tpu_custom_call.1} parent=1 // pred_check_branch
      %42 = sbr.rel (0) target = $region37
    $region36: #{tpu_custom_call.1} parent=1 // pred_region
      _
    $region37: #{tpu_custom_call.1} parent=1 // pred_fallthru
      _
    // Predicated region
    $region38: #{tpu_custom_call.1} parent=1 // pred_check
      _
    $region39: #{tpu_custom_call.1} parent=1 // pred_check_branch
      %44 = sbr.rel (0) target = $region41
    $region40: #{tpu_custom_call.1} parent=1 // pred_region
      %45 = dma.done [#allocation6], 512
    $region41: #{tpu_custom_call.1} parent=1 // pred_fallthru
      _
    %s46 = sld [smem:[#allocation4]]
    %v47 = vld [vmem:[#allocation5] sm:$0xff]
    %v48 = vld [vmem:[#allocation5 + $0x8] sm:$0xff]
    %v49 = vld [vmem:[#allocation5 + $0x10] sm:$0xff]
    %v50 = vld [vmem:[#allocation5 + $0x18] sm:$0xff]
    %vm51 = vcmp.ge.f32.partialorder %v47, 0.0
    %vm52 = vcmp.ge.f32.partialorder %v48, 0.0
    %vm53 = vcmp.ge.f32.partialorder %v49, 0.0
    %vm54 = vcmp.ge.f32.partialorder %v50, 0.0
    %v55 = vstv %s46
    %v56 = vmul.f32 %v55, %v47
    %v57 = vmul.f32 %v55, %v48
    %v58 = vmul.f32 %v55, %v49
    %v59 = vmul.f32 %v55, %v50
    %v60 = vsel %vm51, %v47, %v56
    %v61 = vsel %vm52, %v48, %v57
    %v62 = vsel %vm53, %v49, %v58
    %v63 = vsel %vm54, %v50, %v59
    %v68 = vcombine.high %v60, %v60
    %v69 = vcombine.high %v61, %v61
    %v70 = vcombine.high %v62, %v62
    %v71 = vcombine.high %v63, %v63
    %76 = vst [vmem:[#allocation2] sm:$0xf] %v60
    %77 = vst [vmem:[#allocation2 + $0x8] sm:$0xf] %v68
    %78 = vst [vmem:[#allocation2 + $0x10] sm:$0xf] %v61
    %79 = vst [vmem:[#allocation2 + $0x18] sm:$0xf] %v69
    %80 = vst [vmem:[#allocation2 + $0x20] sm:$0xf] %v62
    %81 = vst [vmem:[#allocation2 + $0x28] sm:$0xf] %v70
    %82 = vst [vmem:[#allocation2 + $0x30] sm:$0xf] %v63
    %83 = vst [vmem:[#allocation2 + $0x38] sm:$0xf] %v71
    %v84 = vld [vmem:[%s1] sm:$0xff]
    %v85 = vld [vmem:[#allocation2] sm:$0xf]
    %v86 = vld [vmem:[#allocation2 + $0x8] sm:$0xf]
    %v87 = vld [vmem:[#allocation2 + $0x10] sm:$0xf]
    %v88 = vld [vmem:[#allocation2 + $0x18] sm:$0xf]
    %v89 = vld [vmem:[#allocation2 + $0x20] sm:$0xf]
    %v90 = vld [vmem:[#allocation2 + $0x28] sm:$0xf]
    %v91 = vld [vmem:[#allocation2 + $0x30] sm:$0xf]
    %92 = vst [vmem:[#allocation3] sm:$0xf] %v85
    %93 = vst [vmem:[#allocation3 + $0x8] sm:$0xf] %v86
    %94 = vst [vmem:[#allocation3 + $0x10] sm:$0xf] %v87
    %95 = vst [vmem:[#allocation3 + $0x18] sm:$0xf] %v88
    %96 = vst [vmem:[#allocation3 + $0x20] sm:$0xf] %v89
    %97 = vst [vmem:[#allocation3 + $0x28] sm:$0xf] %v90
    %98 = vst [vmem:[#allocation3 + $0x30] sm:$0xf] %v91
    %v99 = vld [vmem:[#allocation2] sm:$0xf]
    %v100 = vld [vmem:[#allocation2 + $0x8] sm:$0xf]
    %v101 = vld [vmem:[#allocation2 + $0x10] sm:$0xf]
    %v102 = vld [vmem:[#allocation2 + $0x18] sm:$0xf]
    %v103 = vld [vmem:[#allocation2 + $0x20] sm:$0xf]
    %v104 = vld [vmem:[#allocation2 + $0x28] sm:$0xf]
    %v105 = vld [vmem:[#allocation2 + $0x30] sm:$0xf]
    %v106 = vld [vmem:[#allocation2 + $0x38] sm:$0xf]
    %v115 = vrot.slane %v99, 4
    %v116 = vrot.slane %v100, 4
    %v117 = vrot.slane %v101, 4
    %v118 = vrot.slane %v102, 4
    %v119 = vrot.slane %v103, 4
    %v120 = vrot.slane %v104, 4
    %v121 = vrot.slane %v105, 4
    %v122 = vrot.slane %v106, 4
    %123 = vrot.lane.b32.xlu0 %v115, 127
    %v124 = vpop.permute.xlu0 %123
    %125 = vrot.lane.b32.xlu0 %v116, 127
    %v126 = vpop.permute.xlu0 %125
    %127 = vrot.lane.b32.xlu0 %v117, 127
    %v128 = vpop.permute.xlu0 %127
    %129 = vrot.lane.b32.xlu0 %v118, 127
    %v130 = vpop.permute.xlu0 %129
    %131 = vrot.lane.b32.xlu0 %v119, 127
    %v132 = vpop.permute.xlu0 %131
    %133 = vrot.lane.b32.xlu0 %v120, 127
    %v134 = vpop.permute.xlu0 %133
    %135 = vrot.lane.b32.xlu0 %v121, 127
    %v136 = vpop.permute.xlu0 %135
    %137 = vrot.lane.b32.xlu0 %v122, 127
    %v138 = vpop.permute.xlu0 %137
    %vm139 = vcmask 1039360
    %v140 = vsel %vm139, %v124, %v126
    %v141 = vsel %vm139, %v126, %v128
    %v142 = vsel %vm139, %v128, %v130
    %v143 = vsel %vm139, %v130, %v132
    %v144 = vsel %vm139, %v132, %v134
    %v145 = vsel %vm139, %v134, %v136
    %v146 = vsel %vm139, %v136, %v138
    %154 = vst [vmem:[#allocation3] sm:$0xf0] %v140
    %155 = vst [vmem:[#allocation3 + $0x8] sm:$0xf0] %v141
    %156 = vst [vmem:[#allocation3 + $0x10] sm:$0xf0] %v142
    %157 = vst [vmem:[#allocation3 + $0x18] sm:$0xf0] %v143
    %158 = vst [vmem:[#allocation3 + $0x20] sm:$0xf0] %v144
    %159 = vst [vmem:[#allocation3 + $0x28] sm:$0xf0] %v145
    %160 = vst [vmem:[#allocation3 + $0x30] sm:$0xf0] %v146
    %v161 = vld [vmem:[#allocation2] sm:$0xf]
    %v162 = vld [vmem:[#allocation2 + $0x8] sm:$0xf]
    %v163 = vld [vmem:[#allocation2 + $0x10] sm:$0xf]
    %v164 = vld [vmem:[#allocation2 + $0x18] sm:$0xf]
    %v165 = vld [vmem:[#allocation2 + $0x20] sm:$0xf]
    %v166 = vld [vmem:[#allocation2 + $0x28] sm:$0xf]
    %v167 = vld [vmem:[#allocation2 + $0x30] sm:$0xf]
    %v168 = vld [vmem:[#allocation2 + $0x38] sm:$0xf]
    %177 = vrot.lane.b32.xlu0 %v161, 126
    %v178 = vpop.permute.xlu0 %177
    %179 = vrot.lane.b32.xlu0 %v162, 126
    %v180 = vpop.permute.xlu0 %179
    %181 = vrot.lane.b32.xlu0 %v163, 126
    %v182 = vpop.permute.xlu0 %181
    %183 = vrot.lane.b32.xlu0 %v164, 126
    %v184 = vpop.permute.xlu0 %183
    %185 = vrot.lane.b32.xlu0 %v165, 126
    %v186 = vpop.permute.xlu0 %185
    %187 = vrot.lane.b32.xlu0 %v166, 126
    %v188 = vpop.permute.xlu0 %187
    %189 = vrot.lane.b32.xlu0 %v167, 126
    %v190 = vpop.permute.xlu0 %189
    %191 = vrot.lane.b32.xlu0 %v168, 126
    %v192 = vpop.permute.xlu0 %191
    %vm193 = vcmask 1031168
    %v194 = vsel %vm193, %v178, %v180
    %v195 = vsel %vm193, %v180, %v182
    %v196 = vsel %vm193, %v182, %v184
    %v197 = vsel %vm193, %v184, %v186
    %v198 = vsel %vm193, %v186, %v188
    %v199 = vsel %vm193, %v188, %v190
    %v200 = vsel %vm193, %v190, %v192
    %208 = vst [vmem:[#allocation3 + $0x40] sm:$0xf] %v194
    %209 = vst [vmem:[#allocation3 + $0x48] sm:$0xf] %v195
    %210 = vst [vmem:[#allocation3 + $0x50] sm:$0xf] %v196
    %211 = vst [vmem:[#allocation3 + $0x58] sm:$0xf] %v197
    %212 = vst [vmem:[#allocation3 + $0x60] sm:$0xf] %v198
    %213 = vst [vmem:[#allocation3 + $0x68] sm:$0xf] %v199
    %214 = vst [vmem:[#allocation3 + $0x70] sm:$0xf] %v200
    %v215 = vld [vmem:[#allocation2] sm:$0xf]
    %v216 = vld [vmem:[#allocation2 + $0x8] sm:$0xf]
    %v217 = vld [vmem:[#allocation2 + $0x10] sm:$0xf]
    %v218 = vld [vmem:[#allocation2 + $0x18] sm:$0xf]
    %v219 = vld [vmem:[#allocation2 + $0x20] sm:$0xf]
    %v220 = vld [vmem:[#allocation2 + $0x28] sm:$0xf]
    %v221 = vld [vmem:[#allocation2 + $0x30] sm:$0xf]
    %v222 = vld [vmem:[#allocation2 + $0x38] sm:$0xf]
    %v231 = vrot.slane %v215, 4
    %v232 = vrot.slane %v216, 4
    %v233 = vrot.slane %v217, 4
    %v234 = vrot.slane %v218, 4
    %v235 = vrot.slane %v219, 4
    %v236 = vrot.slane %v220, 4
    %v237 = vrot.slane %v221, 4
    %v238 = vrot.slane %v222, 4
    %239 = vrot.lane.b32.xlu0 %v231, 125
    %v240 = vpop.permute.xlu0 %239
    %241 = vrot.lane.b32.xlu0 %v232, 125
    %v242 = vpop.permute.xlu0 %241
    %243 = vrot.lane.b32.xlu0 %v233, 125
    %v244 = vpop.permute.xlu0 %243
    %245 = vrot.lane.b32.xlu0 %v234, 125
    %v246 = vpop.permute.xlu0 %245
    %247 = vrot.lane.b32.xlu0 %v235, 125
    %v248 = vpop.permute.xlu0 %247
    %249 = vrot.lane.b32.xlu0 %v236, 125
    %v250 = vpop.permute.xlu0 %249
    %251 = vrot.lane.b32.xlu0 %v237, 125
    %v252 = vpop.permute.xlu0 %251
    %253 = vrot.lane.b32.xlu0 %v238, 125
    %v254 = vpop.permute.xlu0 %253
    %vm255 = vcmask 1022976
    %v256 = vsel %vm255, %v240, %v242
    %v257 = vsel %vm255, %v242, %v244
    %v258 = vsel %vm255, %v244, %v246
    %v259 = vsel %vm255, %v246, %v248
    %v260 = vsel %vm255, %v248, %v250
    %v261 = vsel %vm255, %v250, %v252
    %v262 = vsel %vm255, %v252, %v254
    %270 = vst [vmem:[#allocation3 + $0x40] sm:$0xf0] %v256
    %271 = vst [vmem:[#allocation3 + $0x48] sm:$0xf0] %v257
    %272 = vst [vmem:[#allocation3 + $0x50] sm:$0xf0] %v258
    %273 = vst [vmem:[#allocation3 + $0x58] sm:$0xf0] %v259
    %274 = vst [vmem:[#allocation3 + $0x60] sm:$0xf0] %v260
    %275 = vst [vmem:[#allocation3 + $0x68] sm:$0xf0] %v261
    %276 = vst [vmem:[#allocation3 + $0x70] sm:$0xf0] %v262
    %v277 = vld [vmem:[#allocation2] sm:$0xf]
    %v278 = vld [vmem:[#allocation2 + $0x8] sm:$0xf]
    %v279 = vld [vmem:[#allocation2 + $0x10] sm:$0xf]
    %v280 = vld [vmem:[#allocation2 + $0x18] sm:$0xf]
    %v281 = vld [vmem:[#allocation2 + $0x20] sm:$0xf]
    %v282 = vld [vmem:[#allocation2 + $0x28] sm:$0xf]
    %v283 = vld [vmem:[#allocation2 + $0x30] sm:$0xf]
    %v284 = vld [vmem:[#allocation2 + $0x38] sm:$0xf]
    %293 = vrot.lane.b32.xlu0 %v277, 124
    %v294 = vpop.permute.xlu0 %293
    %295 = vrot.lane.b32.xlu0 %v278, 124
    %v296 = vpop.permute.xlu0 %295
    %297 = vrot.lane.b32.xlu0 %v279, 124
    %v298 = vpop.permute.xlu0 %297
    %299 = vrot.lane.b32.xlu0 %v280, 124
    %v300 = vpop.permute.xlu0 %299
    %301 = vrot.lane.b32.xlu0 %v281, 124
    %v302 = vpop.permute.xlu0 %301
    %303 = vrot.lane.b32.xlu0 %v282, 124
    %v304 = vpop.permute.xlu0 %303
    %305 = vrot.lane.b32.xlu0 %v283, 124
    %v306 = vpop.permute.xlu0 %305
    %307 = vrot.lane.b32.xlu0 %v284, 124
    %v308 = vpop.permute.xlu0 %307
    %vm309 = vcmask 1014784
    %v310 = vsel %vm309, %v294, %v296
    %v311 = vsel %vm309, %v296, %v298
    %v312 = vsel %vm309, %v298, %v300
    %v313 = vsel %vm309, %v300, %v302
    %v314 = vsel %vm309, %v302, %v304
    %v315 = vsel %vm309, %v304, %v306
    %v316 = vsel %vm309, %v306, %v308
    %324 = vst [vmem:[#allocation3 + $0x80] sm:$0xf] %v310
    %325 = vst [vmem:[#allocation3 + $0x88] sm:$0xf] %v311
    %326 = vst [vmem:[#allocation3 + $0x90] sm:$0xf] %v312
    %327 = vst [vmem:[#allocation3 + $0x98] sm:$0xf] %v313
    %328 = vst [vmem:[#allocation3 + $0xa0] sm:$0xf] %v314
    %329 = vst [vmem:[#allocation3 + $0xa8] sm:$0xf] %v315
    %330 = vst [vmem:[#allocation3 + $0xb0] sm:$0xf] %v316
    %v331 = vld [vmem:[#allocation2] sm:$0xf]
    %v332 = vld [vmem:[#allocation2 + $0x8] sm:$0xf]
    %v333 = vld [vmem:[#allocation2 + $0x10] sm:$0xf]
    %v334 = vld [vmem:[#allocation2 + $0x18] sm:$0xf]
    %v335 = vld [vmem:[#allocation2 + $0x20] sm:$0xf]
    %v336 = vld [vmem:[#allocation2 + $0x28] sm:$0xf]
    %v337 = vld [vmem:[#allocation2 + $0x30] sm:$0xf]
    %v338 = vld [vmem:[#allocation2 + $0x38] sm:$0xf]
    %v347 = vrot.slane %v331, 4
    %v348 = vrot.slane %v332, 4
    %v349 = vrot.slane %v333, 4
    %v350 = vrot.slane %v334, 4
    %v351 = vrot.slane %v335, 4
    %v352 = vrot.slane %v336, 4
    %v353 = vrot.slane %v337, 4
    %v354 = vrot.slane %v338, 4
    %355 = vrot.lane.b32.xlu0 %v347, 108
    %v356 = vpop.permute.xlu0 %355
    %357 = vrot.lane.b32.xlu0 %v348, 108
    %v358 = vpop.permute.xlu0 %357
    %359 = vrot.lane.b32.xlu0 %v349, 108
    %v360 = vpop.permute.xlu0 %359
    %361 = vrot.lane.b32.xlu0 %v350, 108
    %v362 = vpop.permute.xlu0 %361
    %363 = vrot.lane.b32.xlu0 %v351, 108
    %v364 = vpop.permute.xlu0 %363
    %365 = vrot.lane.b32.xlu0 %v352, 108
    %v366 = vpop.permute.xlu0 %365
    %367 = vrot.lane.b32.xlu0 %v353, 108
    %v368 = vpop.permute.xlu0 %367
    %369 = vrot.lane.b32.xlu0 %v354, 108
    %v370 = vpop.permute.xlu0 %369
    %vm371 = vcmask 883712
    %v372 = vsel %vm371, %v356, %v358
    %v373 = vsel %vm371, %v358, %v360
    %v374 = vsel %vm371, %v360, %v362
    %v375 = vsel %vm371, %v362, %v364
    %v376 = vsel %vm371, %v364, %v366
    %v377 = vsel %vm371, %v366, %v368
    %v378 = vsel %vm371, %v368, %v370
    %386 = vst [vmem:[#allocation3 + $0x80] sm:$0xf0] %v372
    %387 = vst [vmem:[#allocation3 + $0x88] sm:$0xf0] %v373
    %388 = vst [vmem:[#allocation3 + $0x90] sm:$0xf0] %v374
    %389 = vst [vmem:[#allocation3 + $0x98] sm:$0xf0] %v375
    %390 = vst [vmem:[#allocation3 + $0xa0] sm:$0xf0] %v376
    %391 = vst [vmem:[#allocation3 + $0xa8] sm:$0xf0] %v377
    %392 = vst [vmem:[#allocation3 + $0xb0] sm:$0xf0] %v378
    %v393 = vld [vmem:[#allocation2] sm:$0xf]
    %v394 = vld [vmem:[#allocation2 + $0x8] sm:$0xf]
    %v395 = vld [vmem:[#allocation2 + $0x10] sm:$0xf]
    %v396 = vld [vmem:[#allocation2 + $0x18] sm:$0xf]
    %v397 = vld [vmem:[#allocation2 + $0x20] sm:$0xf]
    %v398 = vld [vmem:[#allocation2 + $0x28] sm:$0xf]
    %v399 = vld [vmem:[#allocation2 + $0x30] sm:$0xf]
    %v400 = vld [vmem:[#allocation2 + $0x38] sm:$0xf]
    %409 = vrot.lane.b32.xlu0 %v393, 107
    %v410 = vpop.permute.xlu0 %409
    %411 = vrot.lane.b32.xlu0 %v394, 107
    %v412 = vpop.permute.xlu0 %411
    %413 = vrot.lane.b32.xlu0 %v395, 107
    %v414 = vpop.permute.xlu0 %413
    %415 = vrot.lane.b32.xlu0 %v396, 107
    %v416 = vpop.permute.xlu0 %415
    %417 = vrot.lane.b32.xlu0 %v397, 107
    %v418 = vpop.permute.xlu0 %417
    %419 = vrot.lane.b32.xlu0 %v398, 107
    %v420 = vpop.permute.xlu0 %419
    %421 = vrot.lane.b32.xlu0 %v399, 107
    %v422 = vpop.permute.xlu0 %421
    %423 = vrot.lane.b32.xlu0 %v400, 107
    %v424 = vpop.permute.xlu0 %423
    %vm425 = vcmask 875520
    %v426 = vsel %vm425, %v410, %v412
    %v427 = vsel %vm425, %v412, %v414
    %v428 = vsel %vm425, %v414, %v416
    %v429 = vsel %vm425, %v416, %v418
    %v430 = vsel %vm425, %v418, %v420
    %v431 = vsel %vm425, %v420, %v422
    %v432 = vsel %vm425, %v422, %v424
    %440 = vst [vmem:[#allocation3 + $0xc0] sm:$0xf] %v426
    %441 = vst [vmem:[#allocation3 + $0xc8] sm:$0xf] %v427
    %442 = vst [vmem:[#allocation3 + $0xd0] sm:$0xf] %v428
    %443 = vst [vmem:[#allocation3 + $0xd8] sm:$0xf] %v429
    %444 = vst [vmem:[#allocation3 + $0xe0] sm:$0xf] %v430
    %445 = vst [vmem:[#allocation3 + $0xe8] sm:$0xf] %v431
    %446 = vst [vmem:[#allocation3 + $0xf0] sm:$0xf] %v432
    %v447 = vld [vmem:[#allocation2] sm:$0xf]
    %v448 = vld [vmem:[#allocation2 + $0x8] sm:$0xf]
    %v449 = vld [vmem:[#allocation2 + $0x10] sm:$0xf]
    %v450 = vld [vmem:[#allocation2 + $0x18] sm:$0xf]
    %v451 = vld [vmem:[#allocation2 + $0x20] sm:$0xf]
    %v452 = vld [vmem:[#allocation2 + $0x28] sm:$0xf]
    %v453 = vld [vmem:[#allocation2 + $0x30] sm:$0xf]
    %v454 = vld [vmem:[#allocation2 + $0x38] sm:$0xf]
    %v463 = vrot.slane %v447, 4
    %v464 = vrot.slane %v448, 4
    %v465 = vrot.slane %v449, 4
    %v466 = vrot.slane %v450, 4
    %v467 = vrot.slane %v451, 4
    %v468 = vrot.slane %v452, 4
    %v469 = vrot.slane %v453, 4
    %v470 = vrot.slane %v454, 4
    %471 = vrot.lane.b32.xlu0 %v463, 106
    %v472 = vpop.permute.xlu0 %471
    %473 = vrot.lane.b32.xlu0 %v464, 106
    %v474 = vpop.permute.xlu0 %473
    %475 = vrot.lane.b32.xlu0 %v465, 106
    %v476 = vpop.permute.xlu0 %475
    %477 = vrot.lane.b32.xlu0 %v466, 106
    %v478 = vpop.permute.xlu0 %477
    %479 = vrot.lane.b32.xlu0 %v467, 106
    %v480 = vpop.permute.xlu0 %479
    %481 = vrot.lane.b32.xlu0 %v468, 106
    %v482 = vpop.permute.xlu0 %481
    %483 = vrot.lane.b32.xlu0 %v469, 106
    %v484 = vpop.permute.xlu0 %483
    %485 = vrot.lane.b32.xlu0 %v470, 106
    %v486 = vpop.permute.xlu0 %485
    %vm487 = vcmask 867328
    %v488 = vsel %vm487, %v472, %v474
    %v489 = vsel %vm487, %v474, %v476
    %v490 = vsel %vm487, %v476, %v478
    %v491 = vsel %vm487, %v478, %v480
    %v492 = vsel %vm487, %v480, %v482
    %v493 = vsel %vm487, %v482, %v484
    %v494 = vsel %vm487, %v484, %v486
    %502 = vst [vmem:[#allocation3 + $0xc0] sm:$0xf0] %v488
    %503 = vst [vmem:[#allocation3 + $0xc8] sm:$0xf0] %v489
    %504 = vst [vmem:[#allocation3 + $0xd0] sm:$0xf0] %v490
    %505 = vst [vmem:[#allocation3 + $0xd8] sm:$0xf0] %v491
    %506 = vst [vmem:[#allocation3 + $0xe0] sm:$0xf0] %v492
    %507 = vst [vmem:[#allocation3 + $0xe8] sm:$0xf0] %v493
    %508 = vst [vmem:[#allocation3 + $0xf0] sm:$0xf0] %v494
    %v509 = vld [vmem:[#allocation2] sm:$0xf]
    %v510 = vld [vmem:[#allocation2 + $0x8] sm:$0xf]
    %v511 = vld [vmem:[#allocation2 + $0x10] sm:$0xf]
    %v512 = vld [vmem:[#allocation2 + $0x18] sm:$0xf]
    %v513 = vld [vmem:[#allocation2 + $0x20] sm:$0xf]
    %v514 = vld [vmem:[#allocation2 + $0x28] sm:$0xf]
    %v515 = vld [vmem:[#allocation2 + $0x30] sm:$0xf]
    %v516 = vld [vmem:[#allocation2 + $0x38] sm:$0xf]
    %525 = vrot.lane.b32.xlu0 %v509, 105
    %v526 = vpop.permute.xlu0 %525
    %527 = vrot.lane.b32.xlu0 %v510, 105
    %v528 = vpop.permute.xlu0 %527
    %529 = vrot.lane.b32.xlu0 %v511, 105
    %v530 = vpop.permute.xlu0 %529
    %531 = vrot.lane.b32.xlu0 %v512, 105
    %v532 = vpop.permute.xlu0 %531
    %533 = vrot.lane.b32.xlu0 %v513, 105
    %v534 = vpop.permute.xlu0 %533
    %535 = vrot.lane.b32.xlu0 %v514, 105
    %v536 = vpop.permute.xlu0 %535
    %537 = vrot.lane.b32.xlu0 %v515, 105
    %v538 = vpop.permute.xlu0 %537
    %539 = vrot.lane.b32.xlu0 %v516, 105
    %v540 = vpop.permute.xlu0 %539
    %vm541 = vcmask 859136
    %v542 = vsel %vm541, %v526, %v528
    %v543 = vsel %vm541, %v528, %v530
    %v544 = vsel %vm541, %v530, %v532
    %v545 = vsel %vm541, %v532, %v534
    %v546 = vsel %vm541, %v534, %v536
    %v547 = vsel %vm541, %v536, %v538
    %v548 = vsel %vm541, %v538, %v540
    %556 = vst [vmem:[#allocation3 + $0x100] sm:$0xf] %v542
    %557 = vst [vmem:[#allocation3 + $0x108] sm:$0xf] %v543
    %558 = vst [vmem:[#allocation3 + $0x110] sm:$0xf] %v544
    %559 = vst [vmem:[#allocation3 + $0x118] sm:$0xf] %v545
    %560 = vst [vmem:[#allocation3 + $0x120] sm:$0xf] %v546
    %561 = vst [vmem:[#allocation3 + $0x128] sm:$0xf] %v547
    %562 = vst [vmem:[#allocation3 + $0x130] sm:$0xf] %v548
    %v563 = vld [vmem:[#allocation2] sm:$0xf]
    %v564 = vld [vmem:[#allocation2 + $0x8] sm:$0xf]
    %v565 = vld [vmem:[#allocation2 + $0x10] sm:$0xf]
    %v566 = vld [vmem:[#allocation2 + $0x18] sm:$0xf]
    %v567 = vld [vmem:[#allocation2 + $0x20] sm:$0xf]
    %v568 = vld [vmem:[#allocation2 + $0x28] sm:$0xf]
    %v569 = vld [vmem:[#allocation2 + $0x30] sm:$0xf]
    %v570 = vld [vmem:[#allocation2 + $0x38] sm:$0xf]
    %v579 = vrot.slane %v563, 4
    %v580 = vrot.slane %v564, 4
    %v581 = vrot.slane %v565, 4
    %v582 = vrot.slane %v566, 4
    %v583 = vrot.slane %v567, 4
    %v584 = vrot.slane %v568, 4
    %v585 = vrot.slane %v569, 4
    %v586 = vrot.slane %v570, 4
    %587 = vrot.lane.b32.xlu0 %v579, 104
    %v588 = vpop.permute.xlu0 %587
    %589 = vrot.lane.b32.xlu0 %v580, 104
    %v590 = vpop.permute.xlu0 %589
    %591 = vrot.lane.b32.xlu0 %v581, 104
    %v592 = vpop.permute.xlu0 %591
    %593 = vrot.lane.b32.xlu0 %v582, 104
    %v594 = vpop.permute.xlu0 %593
    %595 = vrot.lane.b32.xlu0 %v583, 104
    %v596 = vpop.permute.xlu0 %595
    %597 = vrot.lane.b32.xlu0 %v584, 104
    %v598 = vpop.permute.xlu0 %597
    %599 = vrot.lane.b32.xlu0 %v585, 104
    %v600 = vpop.permute.xlu0 %599
    %601 = vrot.lane.b32.xlu0 %v586, 104
    %v602 = vpop.permute.xlu0 %601
    %vm603 = vcmask 850944
    %v604 = vsel %vm603, %v588, %v590
    %v605 = vsel %vm603, %v590, %v592
    %v606 = vsel %vm603, %v592, %v594
    %v607 = vsel %vm603, %v594, %v596
    %v608 = vsel %vm603, %v596, %v598
    %v609 = vsel %vm603, %v598, %v600
    %v610 = vsel %vm603, %v600, %v602
    %618 = vst [vmem:[#allocation3 + $0x100] sm:$0xf0] %v604
    %619 = vst [vmem:[#allocation3 + $0x108] sm:$0xf0] %v605
    %620 = vst [vmem:[#allocation3 + $0x110] sm:$0xf0] %v606
    %621 = vst [vmem:[#allocation3 + $0x118] sm:$0xf0] %v607
    %622 = vst [vmem:[#allocation3 + $0x120] sm:$0xf0] %v608
    %623 = vst [vmem:[#allocation3 + $0x128] sm:$0xf0] %v609
    %624 = vst [vmem:[#allocation3 + $0x130] sm:$0xf0] %v610
    %v625 = vld [vmem:[#allocation2] sm:$0xf]
    %v626 = vld [vmem:[#allocation2 + $0x8] sm:$0xf]
    %v627 = vld [vmem:[#allocation2 + $0x10] sm:$0xf]
    %v628 = vld [vmem:[#allocation2 + $0x18] sm:$0xf]
    %v629 = vld [vmem:[#allocation2 + $0x20] sm:$0xf]
    %v630 = vld [vmem:[#allocation2 + $0x28] sm:$0xf]
    %v631 = vld [vmem:[#allocation2 + $0x30] sm:$0xf]
    %v632 = vld [vmem:[#allocation2 + $0x38] sm:$0xf]
    %641 = vrot.lane.b32.xlu0 %v625, 88
    %v642 = vpop.permute.xlu0 %641
    %643 = vrot.lane.b32.xlu0 %v626, 88
    %v644 = vpop.permute.xlu0 %643
    %645 = vrot.lane.b32.xlu0 %v627, 88
    %v646 = vpop.permute.xlu0 %645
    %647 = vrot.lane.b32.xlu0 %v628, 88
    %v648 = vpop.permute.xlu0 %647
    %649 = vrot.lane.b32.xlu0 %v629, 88
    %v650 = vpop.permute.xlu0 %649
    %651 = vrot.lane.b32.xlu0 %v630, 88
    %v652 = vpop.permute.xlu0 %651
    %653 = vrot.lane.b32.xlu0 %v631, 88
    %v654 = vpop.permute.xlu0 %653
    %655 = vrot.lane.b32.xlu0 %v632, 88
    %v656 = vpop.permute.xlu0 %655
    %vm657 = vcmask 719872
    %v658 = vsel %vm657, %v642, %v644
    %v659 = vsel %vm657, %v644, %v646
    %v660 = vsel %vm657, %v646, %v648
    %v661 = vsel %vm657, %v648, %v650
    %v662 = vsel %vm657, %v650, %v652
    %v663 = vsel %vm657, %v652, %v654
    %v664 = vsel %vm657, %v654, %v656
    %672 = vst [vmem:[#allocation3 + $0x140] sm:$0xf] %v658
    %673 = vst [vmem:[#allocation3 + $0x148] sm:$0xf] %v659
    %674 = vst [vmem:[#allocation3 + $0x150] sm:$0xf] %v660
    %675 = vst [vmem:[#allocation3 + $0x158] sm:$0xf] %v661
    %676 = vst [vmem:[#allocation3 + $0x160] sm:$0xf] %v662
    %677 = vst [vmem:[#allocation3 + $0x168] sm:$0xf] %v663
    %678 = vst [vmem:[#allocation3 + $0x170] sm:$0xf] %v664
    %v679 = vld [vmem:[#allocation2] sm:$0xf]
    %v680 = vld [vmem:[#allocation2 + $0x8] sm:$0xf]
    %v681 = vld [vmem:[#allocation2 + $0x10] sm:$0xf]
    %v682 = vld [vmem:[#allocation2 + $0x18] sm:$0xf]
    %v683 = vld [vmem:[#allocation2 + $0x20] sm:$0xf]
    %v684 = vld [vmem:[#allocation2 + $0x28] sm:$0xf]
    %v685 = vld [vmem:[#allocation2 + $0x30] sm:$0xf]
    %v686 = vld [vmem:[#allocation2 + $0x38] sm:$0xf]
    %v695 = vrot.slane %v679, 4
    %v696 = vrot.slane %v680, 4
    %v697 = vrot.slane %v681, 4
    %v698 = vrot.slane %v682, 4
    %v699 = vrot.slane %v683, 4
    %v700 = vrot.slane %v684, 4
    %v701 = vrot.slane %v685, 4
    %v702 = vrot.slane %v686, 4
    %703 = vrot.lane.b32.xlu0 %v695, 87
    %v704 = vpop.permute.xlu0 %703
    %705 = vrot.lane.b32.xlu0 %v696, 87
    %v706 = vpop.permute.xlu0 %705
    %707 = vrot.lane.b32.xlu0 %v697, 87
    %v708 = vpop.permute.xlu0 %707
    %709 = vrot.lane.b32.xlu0 %v698, 87
    %v710 = vpop.permute.xlu0 %709
    %711 = vrot.lane.b32.xlu0 %v699, 87
    %v712 = vpop.permute.xlu0 %711
    %713 = vrot.lane.b32.xlu0 %v700, 87
    %v714 = vpop.permute.xlu0 %713
    %715 = vrot.lane.b32.xlu0 %v701, 87
    %v716 = vpop.permute.xlu0 %715
    %717 = vrot.lane.b32.xlu0 %v702, 87
    %v718 = vpop.permute.xlu0 %717
    %vm719 = vcmask 711680
    %v720 = vsel %vm719, %v704, %v706
    %v721 = vsel %vm719, %v706, %v708
    %v722 = vsel %vm719, %v708, %v710
    %v723 = vsel %vm719, %v710, %v712
    %v724 = vsel %vm719, %v712, %v714
    %v725 = vsel %vm719, %v714, %v716
    %v726 = vsel %vm719, %v716, %v718
    %734 = vst [vmem:[#allocation3 + $0x140] sm:$0xf0] %v720
    %735 = vst [vmem:[#allocation3 + $0x148] sm:$0xf0] %v721
    %736 = vst [vmem:[#allocation3 + $0x150] sm:$0xf0] %v722
    %737 = vst [vmem:[#allocation3 + $0x158] sm:$0xf0] %v723
    %738 = vst [vmem:[#allocation3 + $0x160] sm:$0xf0] %v724
    %739 = vst [vmem:[#allocation3 + $0x168] sm:$0xf0] %v725
    %740 = vst [vmem:[#allocation3 + $0x170] sm:$0xf0] %v726
    %v741 = vld [vmem:[#allocation2] sm:$0xf]
    %v742 = vld [vmem:[#allocation2 + $0x8] sm:$0xf]
    %v743 = vld [vmem:[#allocation2 + $0x10] sm:$0xf]
    %v744 = vld [vmem:[#allocation2 + $0x18] sm:$0xf]
    %v745 = vld [vmem:[#allocation2 + $0x20] sm:$0xf]
    %v746 = vld [vmem:[#allocation2 + $0x28] sm:$0xf]
    %v747 = vld [vmem:[#allocation2 + $0x30] sm:$0xf]
    %v748 = vld [vmem:[#allocation2 + $0x38] sm:$0xf]
    %757 = vrot.lane.b32.xlu0 %v741, 86
    %v758 = vpop.permute.xlu0 %757
    %759 = vrot.lane.b32.xlu0 %v742, 86
    %v760 = vpop.permute.xlu0 %759
    %761 = vrot.lane.b32.xlu0 %v743, 86
    %v762 = vpop.permute.xlu0 %761
    %763 = vrot.lane.b32.xlu0 %v744, 86
    %v764 = vpop.permute.xlu0 %763
    %765 = vrot.lane.b32.xlu0 %v745, 86
    %v766 = vpop.permute.xlu0 %765
    %767 = vrot.lane.b32.xlu0 %v746, 86
    %v768 = vpop.permute.xlu0 %767
    %769 = vrot.lane.b32.xlu0 %v747, 86
    %v770 = vpop.permute.xlu0 %769
    %771 = vrot.lane.b32.xlu0 %v748, 86
    %v772 = vpop.permute.xlu0 %771
    %vm773 = vcmask 703488
    %v774 = vsel %vm773, %v758, %v760
    %v775 = vsel %vm773, %v760, %v762
    %v776 = vsel %vm773, %v762, %v764
    %v777 = vsel %vm773, %v764, %v766
    %v778 = vsel %vm773, %v766, %v768
    %v779 = vsel %vm773, %v768, %v770
    %v780 = vsel %vm773, %v770, %v772
    %788 = vst [vmem:[#allocation3 + $0x180] sm:$0xf] %v774
    %789 = vst [vmem:[#allocation3 + $0x188] sm:$0xf] %v775
    %790 = vst [vmem:[#allocation3 + $0x190] sm:$0xf] %v776
    %791 = vst [vmem:[#allocation3 + $0x198] sm:$0xf] %v777
    %792 = vst [vmem:[#allocation3 + $0x1a0] sm:$0xf] %v778
    %793 = vst [vmem:[#allocation3 + $0x1a8] sm:$0xf] %v779
    %794 = vst [vmem:[#allocation3 + $0x1b0] sm:$0xf] %v780
    %v795 = vld [vmem:[#allocation2] sm:$0xf]
    %v796 = vld [vmem:[#allocation2 + $0x8] sm:$0xf]
    %v797 = vld [vmem:[#allocation2 + $0x10] sm:$0xf]
    %v798 = vld [vmem:[#allocation2 + $0x18] sm:$0xf]
    %v799 = vld [vmem:[#allocation2 + $0x20] sm:$0xf]
    %v800 = vld [vmem:[#allocation2 + $0x28] sm:$0xf]
    %v801 = vld [vmem:[#allocation2 + $0x30] sm:$0xf]
    %v802 = vld [vmem:[#allocation2 + $0x38] sm:$0xf]
    %v811 = vrot.slane %v795, 4
    %v812 = vrot.slane %v796, 4
    %v813 = vrot.slane %v797, 4
    %v814 = vrot.slane %v798, 4
    %v815 = vrot.slane %v799, 4
    %v816 = vrot.slane %v800, 4
    %v817 = vrot.slane %v801, 4
    %v818 = vrot.slane %v802, 4
    %819 = vrot.lane.b32.xlu0 %v811, 85
    %v820 = vpop.permute.xlu0 %819
    %821 = vrot.lane.b32.xlu0 %v812, 85
    %v822 = vpop.permute.xlu0 %821
    %823 = vrot.lane.b32.xlu0 %v813, 85
    %v824 = vpop.permute.xlu0 %823
    %825 = vrot.lane.b32.xlu0 %v814, 85
    %v826 = vpop.permute.xlu0 %825
    %827 = vrot.lane.b32.xlu0 %v815, 85
    %v828 = vpop.permute.xlu0 %827
    %829 = vrot.lane.b32.xlu0 %v816, 85
    %v830 = vpop.permute.xlu0 %829
    %831 = vrot.lane.b32.xlu0 %v817, 85
    %v832 = vpop.permute.xlu0 %831
    %833 = vrot.lane.b32.xlu0 %v818, 85
    %v834 = vpop.permute.xlu0 %833
    %vm835 = vcmask 695296
    %v836 = vsel %vm835, %v820, %v822
    %v837 = vsel %vm835, %v822, %v824
    %v838 = vsel %vm835, %v824, %v826
    %v839 = vsel %vm835, %v826, %v828
    %v840 = vsel %vm835, %v828, %v830
    %v841 = vsel %vm835, %v830, %v832
    %v842 = vsel %vm835, %v832, %v834
    %850 = vst [vmem:[#allocation3 + $0x180] sm:$0xf0] %v836
    %851 = vst [vmem:[#allocation3 + $0x188] sm:$0xf0] %v837
    %852 = vst [vmem:[#allocation3 + $0x190] sm:$0xf0] %v838
    %853 = vst [vmem:[#allocation3 + $0x198] sm:$0xf0] %v839
    %854 = vst [vmem:[#allocation3 + $0x1a0] sm:$0xf0] %v840
    %855 = vst [vmem:[#allocation3 + $0x1a8] sm:$0xf0] %v841
    %856 = vst [vmem:[#allocation3 + $0x1b0] sm:$0xf0] %v842
    %v857 = vld [vmem:[#allocation2] sm:$0xf]
    %v858 = vld [vmem:[#allocation2 + $0x8] sm:$0xf]
    %v859 = vld [vmem:[#allocation2 + $0x10] sm:$0xf]
    %v860 = vld [vmem:[#allocation2 + $0x18] sm:$0xf]
    %v861 = vld [vmem:[#allocation2 + $0x20] sm:$0xf]
    %v862 = vld [vmem:[#allocation2 + $0x28] sm:$0xf]
    %v863 = vld [vmem:[#allocation2 + $0x30] sm:$0xf]
    %v864 = vld [vmem:[#allocation2 + $0x38] sm:$0xf]
    %873 = vrot.lane.b32.xlu0 %v857, 84
    %v874 = vpop.permute.xlu0 %873
    %875 = vrot.lane.b32.xlu0 %v858, 84
    %v876 = vpop.permute.xlu0 %875
    %877 = vrot.lane.b32.xlu0 %v859, 84
    %v878 = vpop.permute.xlu0 %877
    %879 = vrot.lane.b32.xlu0 %v860, 84
    %v880 = vpop.permute.xlu0 %879
    %881 = vrot.lane.b32.xlu0 %v861, 84
    %v882 = vpop.permute.xlu0 %881
    %883 = vrot.lane.b32.xlu0 %v862, 84
    %v884 = vpop.permute.xlu0 %883
    %885 = vrot.lane.b32.xlu0 %v863, 84
    %v886 = vpop.permute.xlu0 %885
    %887 = vrot.lane.b32.xlu0 %v864, 84
    %v888 = vpop.permute.xlu0 %887
    %vm889 = vcmask 687104
    %v890 = vsel %vm889, %v874, %v876
    %v891 = vsel %vm889, %v876, %v878
    %v892 = vsel %vm889, %v878, %v880
    %v893 = vsel %vm889, %v880, %v882
    %v894 = vsel %vm889, %v882, %v884
    %v895 = vsel %vm889, %v884, %v886
    %v896 = vsel %vm889, %v886, %v888
    %904 = vst [vmem:[#allocation3 + $0x1c0] sm:$0xf] %v890
    %905 = vst [vmem:[#allocation3 + $0x1c8] sm:$0xf] %v891
    %906 = vst [vmem:[#allocation3 + $0x1d0] sm:$0xf] %v892
    %907 = vst [vmem:[#allocation3 + $0x1d8] sm:$0xf] %v893
    %908 = vst [vmem:[#allocation3 + $0x1e0] sm:$0xf] %v894
    %909 = vst [vmem:[#allocation3 + $0x1e8] sm:$0xf] %v895
    %910 = vst [vmem:[#allocation3 + $0x1f0] sm:$0xf] %v896
    %v911 = vld [vmem:[#allocation2] sm:$0xf]
    %v912 = vld [vmem:[#allocation2 + $0x8] sm:$0xf]
    %v913 = vld [vmem:[#allocation2 + $0x10] sm:$0xf]
    %v914 = vld [vmem:[#allocation2 + $0x18] sm:$0xf]
    %v915 = vld [vmem:[#allocation2 + $0x20] sm:$0xf]
    %v916 = vld [vmem:[#allocation2 + $0x28] sm:$0xf]
    %v917 = vld [vmem:[#allocation2 + $0x30] sm:$0xf]
    %v918 = vld [vmem:[#allocation2 + $0x38] sm:$0xf]
    %v927 = vrot.slane %v911, 4
    %v928 = vrot.slane %v912, 4
    %v929 = vrot.slane %v913, 4
    %v930 = vrot.slane %v914, 4
    %v931 = vrot.slane %v915, 4
    %v932 = vrot.slane %v916, 4
    %v933 = vrot.slane %v917, 4
    %v934 = vrot.slane %v918, 4
    %935 = vrot.lane.b32.xlu0 %v927, 68
    %v936 = vpop.permute.xlu0 %935
    %937 = vrot.lane.b32.xlu0 %v928, 68
    %v938 = vpop.permute.xlu0 %937
    %939 = vrot.lane.b32.xlu0 %v929, 68
    %v940 = vpop.permute.xlu0 %939
    %941 = vrot.lane.b32.xlu0 %v930, 68
    %v942 = vpop.permute.xlu0 %941
    %943 = vrot.lane.b32.xlu0 %v931, 68
    %v944 = vpop.permute.xlu0 %943
    %945 = vrot.lane.b32.xlu0 %v932, 68
    %v946 = vpop.permute.xlu0 %945
    %947 = vrot.lane.b32.xlu0 %v933, 68
    %v948 = vpop.permute.xlu0 %947
    %949 = vrot.lane.b32.xlu0 %v934, 68
    %v950 = vpop.permute.xlu0 %949
    %vm951 = vcmask 556032
    %v952 = vsel %vm951, %v936, %v938
    %v953 = vsel %vm951, %v938, %v940
    %v954 = vsel %vm951, %v940, %v942
    %v955 = vsel %vm951, %v942, %v944
    %v956 = vsel %vm951, %v944, %v946
    %v957 = vsel %vm951, %v946, %v948
    %v958 = vsel %vm951, %v948, %v950
    %966 = vst [vmem:[#allocation3 + $0x1c0] sm:$0xf0] %v952
    %967 = vst [vmem:[#allocation3 + $0x1c8] sm:$0xf0] %v953
    %968 = vst [vmem:[#allocation3 + $0x1d0] sm:$0xf0] %v954
    %969 = vst [vmem:[#allocation3 + $0x1d8] sm:$0xf0] %v955
    %970 = vst [vmem:[#allocation3 + $0x1e0] sm:$0xf0] %v956
    %971 = vst [vmem:[#allocation3 + $0x1e8] sm:$0xf0] %v957
    %972 = vst [vmem:[#allocation3 + $0x1f0] sm:$0xf0] %v958
    %v973 = vld [vmem:[#allocation2] sm:$0xf]
    %v974 = vld [vmem:[#allocation2 + $0x8] sm:$0xf]
    %v975 = vld [vmem:[#allocation2 + $0x10] sm:$0xf]
    %v976 = vld [vmem:[#allocation2 + $0x18] sm:$0xf]
    %v977 = vld [vmem:[#allocation2 + $0x20] sm:$0xf]
    %v978 = vld [vmem:[#allocation2 + $0x28] sm:$0xf]
    %v979 = vld [vmem:[#allocation2 + $0x30] sm:$0xf]
    %v980 = vld [vmem:[#allocation2 + $0x38] sm:$0xf]
    %989 = vrot.lane.b32.xlu0 %v973, 67
    %v990 = vpop.permute.xlu0 %989
    %991 = vrot.lane.b32.xlu0 %v974, 67
    %v992 = vpop.permute.xlu0 %991
    %993 = vrot.lane.b32.xlu0 %v975, 67
    %v994 = vpop.permute.xlu0 %993
    %995 = vrot.lane.b32.xlu0 %v976, 67
    %v996 = vpop.permute.xlu0 %995
    %997 = vrot.lane.b32.xlu0 %v977, 67
    %v998 = vpop.permute.xlu0 %997
    %999 = vrot.lane.b32.xlu0 %v978, 67
    %v1000 = vpop.permute.xlu0 %999
    %1001 = vrot.lane.b32.xlu0 %v979, 67
    %v1002 = vpop.permute.xlu0 %1001
    %1003 = vrot.lane.b32.xlu0 %v980, 67
    %v1004 = vpop.permute.xlu0 %1003
    %vm1005 = vcmask 547840
    %v1006 = vsel %vm1005, %v990, %v992
    %v1007 = vsel %vm1005, %v992, %v994
    %v1008 = vsel %vm1005, %v994, %v996
    %v1009 = vsel %vm1005, %v996, %v998
    %v1010 = vsel %vm1005, %v998, %v1000
    %v1011 = vsel %vm1005, %v1000, %v1002
    %v1012 = vsel %vm1005, %v1002, %v1004
    %1020 = vst [vmem:[#allocation3 + $0x200] sm:$0xf] %v1006
    %1021 = vst [vmem:[#allocation3 + $0x208] sm:$0xf] %v1007
    %1022 = vst [vmem:[#allocation3 + $0x210] sm:$0xf] %v1008
    %1023 = vst [vmem:[#allocation3 + $0x218] sm:$0xf] %v1009
    %1024 = vst [vmem:[#allocation3 + $0x220] sm:$0xf] %v1010
    %1025 = vst [vmem:[#allocation3 + $0x228] sm:$0xf] %v1011
    %1026 = vst [vmem:[#allocation3 + $0x230] sm:$0xf] %v1012
    %v1027 = vld [vmem:[#allocation2] sm:$0xf]
    %v1028 = vld [vmem:[#allocation2 + $0x8] sm:$0xf]
    %v1029 = vld [vmem:[#allocation2 + $0x10] sm:$0xf]
    %v1030 = vld [vmem:[#allocation2 + $0x18] sm:$0xf]
    %v1031 = vld [vmem:[#allocation2 + $0x20] sm:$0xf]
    %v1032 = vld [vmem:[#allocation2 + $0x28] sm:$0xf]
    %v1033 = vld [vmem:[#allocation2 + $0x30] sm:$0xf]
    %v1034 = vld [vmem:[#allocation2 + $0x38] sm:$0xf]
    %v1043 = vrot.slane %v1027, 4
    %v1044 = vrot.slane %v1028, 4
    %v1045 = vrot.slane %v1029, 4
    %v1046 = vrot.slane %v1030, 4
    %v1047 = vrot.slane %v1031, 4
    %v1048 = vrot.slane %v1032, 4
    %v1049 = vrot.slane %v1033, 4
    %v1050 = vrot.slane %v1034, 4
    %1051 = vrot.lane.b32.xlu0 %v1043, 66
    %v1052 = vpop.permute.xlu0 %1051
    %1053 = vrot.lane.b32.xlu0 %v1044, 66
    %v1054 = vpop.permute.xlu0 %1053
    %1055 = vrot.lane.b32.xlu0 %v1045, 66
    %v1056 = vpop.permute.xlu0 %1055
    %1057 = vrot.lane.b32.xlu0 %v1046, 66
    %v1058 = vpop.permute.xlu0 %1057
    %1059 = vrot.lane.b32.xlu0 %v1047, 66
    %v1060 = vpop.permute.xlu0 %1059
    %1061 = vrot.lane.b32.xlu0 %v1048, 66
    %v1062 = vpop.permute.xlu0 %1061
    %1063 = vrot.lane.b32.xlu0 %v1049, 66
    %v1064 = vpop.permute.xlu0 %1063
    %1065 = vrot.lane.b32.xlu0 %v1050, 66
    %v1066 = vpop.permute.xlu0 %1065
    %vm1067 = vcmask 539648
    %v1068 = vsel %vm1067, %v1052, %v1054
    %v1069 = vsel %vm1067, %v1054, %v1056
    %v1070 = vsel %vm1067, %v1056, %v1058
    %v1071 = vsel %vm1067, %v1058, %v1060
    %v1072 = vsel %vm1067, %v1060, %v1062
    %v1073 = vsel %vm1067, %v1062, %v1064
    %v1074 = vsel %vm1067, %v1064, %v1066
    %1082 = vst [vmem:[#allocation3 + $0x200] sm:$0xf0] %v1068
    %1083 = vst [vmem:[#allocation3 + $0x208] sm:$0xf0] %v1069
    %1084 = vst [vmem:[#allocation3 + $0x210] sm:$0xf0] %v1070
    %1085 = vst [vmem:[#allocation3 + $0x218] sm:$0xf0] %v1071
    %1086 = vst [vmem:[#allocation3 + $0x220] sm:$0xf0] %v1072
    %1087 = vst [vmem:[#allocation3 + $0x228] sm:$0xf0] %v1073
    %1088 = vst [vmem:[#allocation3 + $0x230] sm:$0xf0] %v1074
    %v1089 = vld [vmem:[#allocation2] sm:$0xf]
    %v1090 = vld [vmem:[#allocation2 + $0x8] sm:$0xf]
    %v1091 = vld [vmem:[#allocation2 + $0x10] sm:$0xf]
    %v1092 = vld [vmem:[#allocation2 + $0x18] sm:$0xf]
    %v1093 = vld [vmem:[#allocation2 + $0x20] sm:$0xf]
    %v1094 = vld [vmem:[#allocation2 + $0x28] sm:$0xf]
    %v1095 = vld [vmem:[#allocation2 + $0x30] sm:$0xf]
    %v1096 = vld [vmem:[#allocation2 + $0x38] sm:$0xf]
    %1105 = vrot.lane.b32.xlu0 %v1089, 65
    %v1106 = vpop.permute.xlu0 %1105
    %1107 = vrot.lane.b32.xlu0 %v1090, 65
    %v1108 = vpop.permute.xlu0 %1107
    %1109 = vrot.lane.b32.xlu0 %v1091, 65
    %v1110 = vpop.permute.xlu0 %1109
    %1111 = vrot.lane.b32.xlu0 %v1092, 65
    %v1112 = vpop.permute.xlu0 %1111
    %1113 = vrot.lane.b32.xlu0 %v1093, 65
    %v1114 = vpop.permute.xlu0 %1113
    %1115 = vrot.lane.b32.xlu0 %v1094, 65
    %v1116 = vpop.permute.xlu0 %1115
    %1117 = vrot.lane.b32.xlu0 %v1095, 65
    %v1118 = vpop.permute.xlu0 %1117
    %1119 = vrot.lane.b32.xlu0 %v1096, 65
    %v1120 = vpop.permute.xlu0 %1119
    %vm1121 = vcmask 531456
    %v1122 = vsel %vm1121, %v1106, %v1108
    %v1123 = vsel %vm1121, %v1108, %v1110
    %v1124 = vsel %vm1121, %v1110, %v1112
    %v1125 = vsel %vm1121, %v1112, %v1114
    %v1126 = vsel %vm1121, %v1114, %v1116
    %v1127 = vsel %vm1121, %v1116, %v1118
    %v1128 = vsel %vm1121, %v1118, %v1120
    %1136 = vst [vmem:[#allocation3 + $0x240] sm:$0xf] %v1122
    %1137 = vst [vmem:[#allocation3 + $0x248] sm:$0xf] %v1123
    %1138 = vst [vmem:[#allocation3 + $0x250] sm:$0xf] %v1124
    %1139 = vst [vmem:[#allocation3 + $0x258] sm:$0xf] %v1125
    %1140 = vst [vmem:[#allocation3 + $0x260] sm:$0xf] %v1126
    %1141 = vst [vmem:[#allocation3 + $0x268] sm:$0xf] %v1127
    %1142 = vst [vmem:[#allocation3 + $0x270] sm:$0xf] %v1128
    %v1143 = vld [vmem:[#allocation2] sm:$0xf]
    %v1144 = vld [vmem:[#allocation2 + $0x8] sm:$0xf]
    %v1145 = vld [vmem:[#allocation2 + $0x10] sm:$0xf]
    %v1146 = vld [vmem:[#allocation2 + $0x18] sm:$0xf]
    %v1147 = vld [vmem:[#allocation2 + $0x20] sm:$0xf]
    %v1148 = vld [vmem:[#allocation2 + $0x28] sm:$0xf]
    %v1149 = vld [vmem:[#allocation2 + $0x30] sm:$0xf]
    %v1150 = vld [vmem:[#allocation2 + $0x38] sm:$0xf]
    %v1159 = vrot.slane %v1143, 4
    %v1160 = vrot.slane %v1144, 4
    %v1161 = vrot.slane %v1145, 4
    %v1162 = vrot.slane %v1146, 4
    %v1163 = vrot.slane %v1147, 4
    %v1164 = vrot.slane %v1148, 4
    %v1165 = vrot.slane %v1149, 4
    %v1166 = vrot.slane %v1150, 4
    %1167 = vrot.lane.b32.xlu0 %v1159, 64
    %v1168 = vpop.permute.xlu0 %1167
    %1169 = vrot.lane.b32.xlu0 %v1160, 64
    %v1170 = vpop.permute.xlu0 %1169
    %1171 = vrot.lane.b32.xlu0 %v1161, 64
    %v1172 = vpop.permute.xlu0 %1171
    %1173 = vrot.lane.b32.xlu0 %v1162, 64
    %v1174 = vpop.permute.xlu0 %1173
    %1175 = vrot.lane.b32.xlu0 %v1163, 64
    %v1176 = vpop.permute.xlu0 %1175
    %1177 = vrot.lane.b32.xlu0 %v1164, 64
    %v1178 = vpop.permute.xlu0 %1177
    %1179 = vrot.lane.b32.xlu0 %v1165, 64
    %v1180 = vpop.permute.xlu0 %1179
    %1181 = vrot.lane.b32.xlu0 %v1166, 64
    %v1182 = vpop.permute.xlu0 %1181
    %vm1183 = vcmask 523264
    %v1184 = vsel %vm1183, %v1168, %v1170
    %v1185 = vsel %vm1183, %v1170, %v1172
    %v1186 = vsel %vm1183, %v1172, %v1174
    %v1187 = vsel %vm1183, %v1174, %v1176
    %v1188 = vsel %vm1183, %v1176, %v1178
    %v1189 = vsel %vm1183, %v1178, %v1180
    %v1190 = vsel %vm1183, %v1180, %v1182
    %1198 = vst [vmem:[#allocation3 + $0x240] sm:$0xf0] %v1184
    %1199 = vst [vmem:[#allocation3 + $0x248] sm:$0xf0] %v1185
    %1200 = vst [vmem:[#allocation3 + $0x250] sm:$0xf0] %v1186
    %1201 = vst [vmem:[#allocation3 + $0x258] sm:$0xf0] %v1187
    %1202 = vst [vmem:[#allocation3 + $0x260] sm:$0xf0] %v1188
    %1203 = vst [vmem:[#allocation3 + $0x268] sm:$0xf0] %v1189
    %1204 = vst [vmem:[#allocation3 + $0x270] sm:$0xf0] %v1190
    %v1205 = vld [vmem:[#allocation2] sm:$0xf]
    %v1206 = vld [vmem:[#allocation2 + $0x8] sm:$0xf]
    %v1207 = vld [vmem:[#allocation2 + $0x10] sm:$0xf]
    %v1208 = vld [vmem:[#allocation2 + $0x18] sm:$0xf]
    %v1209 = vld [vmem:[#allocation2 + $0x20] sm:$0xf]
    %v1210 = vld [vmem:[#allocation2 + $0x28] sm:$0xf]
    %v1211 = vld [vmem:[#allocation2 + $0x30] sm:$0xf]
    %v1212 = vld [vmem:[#allocation2 + $0x38] sm:$0xf]
    %1221 = vrot.lane.b32.xlu0 %v1205, 48
    %v1222 = vpop.permute.xlu0 %1221
    %1223 = vrot.lane.b32.xlu0 %v1206, 48
    %v1224 = vpop.permute.xlu0 %1223
    %1225 = vrot.lane.b32.xlu0 %v1207, 48
    %v1226 = vpop.permute.xlu0 %1225
    %1227 = vrot.lane.b32.xlu0 %v1208, 48
    %v1228 = vpop.permute.xlu0 %1227
    %1229 = vrot.lane.b32.xlu0 %v1209, 48
    %v1230 = vpop.permute.xlu0 %1229
    %1231 = vrot.lane.b32.xlu0 %v1210, 48
    %v1232 = vpop.permute.xlu0 %1231
    %1233 = vrot.lane.b32.xlu0 %v1211, 48
    %v1234 = vpop.permute.xlu0 %1233
    %1235 = vrot.lane.b32.xlu0 %v1212, 48
    %v1236 = vpop.permute.xlu0 %1235
    %vm1237 = vcmask 392192
    %v1238 = vsel %vm1237, %v1222, %v1224
    %v1239 = vsel %vm1237, %v1224, %v1226
    %v1240 = vsel %vm1237, %v1226, %v1228
    %v1241 = vsel %vm1237, %v1228, %v1230
    %v1242 = vsel %vm1237, %v1230, %v1232
    %v1243 = vsel %vm1237, %v1232, %v1234
    %v1244 = vsel %vm1237, %v1234, %v1236
    %1252 = vst [vmem:[#allocation3 + $0x280] sm:$0xf] %v1238
    %1253 = vst [vmem:[#allocation3 + $0x288] sm:$0xf] %v1239
    %1254 = vst [vmem:[#allocation3 + $0x290] sm:$0xf] %v1240
    %1255 = vst [vmem:[#allocation3 + $0x298] sm:$0xf] %v1241
    %1256 = vst [vmem:[#allocation3 + $0x2a0] sm:$0xf] %v1242
    %1257 = vst [vmem:[#allocation3 + $0x2a8] sm:$0xf] %v1243
    %1258 = vst [vmem:[#allocation3 + $0x2b0] sm:$0xf] %v1244
    %v1259 = vld [vmem:[#allocation2] sm:$0xf]
    %v1260 = vld [vmem:[#allocation2 + $0x8] sm:$0xf]
    %v1261 = vld [vmem:[#allocation2 + $0x10] sm:$0xf]
    %v1262 = vld [vmem:[#allocation2 + $0x18] sm:$0xf]
    %v1263 = vld [vmem:[#allocation2 + $0x20] sm:$0xf]
    %v1264 = vld [vmem:[#allocation2 + $0x28] sm:$0xf]
    %v1265 = vld [vmem:[#allocation2 + $0x30] sm:$0xf]
    %v1266 = vld [vmem:[#allocation2 + $0x38] sm:$0xf]
    %v1275 = vrot.slane %v1259, 4
    %v1276 = vrot.slane %v1260, 4
    %v1277 = vrot.slane %v1261, 4
    %v1278 = vrot.slane %v1262, 4
    %v1279 = vrot.slane %v1263, 4
    %v1280 = vrot.slane %v1264, 4
    %v1281 = vrot.slane %v1265, 4
    %v1282 = vrot.slane %v1266, 4
    %1283 = vrot.lane.b32.xlu0 %v1275, 47
    %v1284 = vpop.permute.xlu0 %1283
    %1285 = vrot.lane.b32.xlu0 %v1276, 47
    %v1286 = vpop.permute.xlu0 %1285
    %1287 = vrot.lane.b32.xlu0 %v1277, 47
    %v1288 = vpop.permute.xlu0 %1287
    %1289 = vrot.lane.b32.xlu0 %v1278, 47
    %v1290 = vpop.permute.xlu0 %1289
    %1291 = vrot.lane.b32.xlu0 %v1279, 47
    %v1292 = vpop.permute.xlu0 %1291
    %1293 = vrot.lane.b32.xlu0 %v1280, 47
    %v1294 = vpop.permute.xlu0 %1293
    %1295 = vrot.lane.b32.xlu0 %v1281, 47
    %v1296 = vpop.permute.xlu0 %1295
    %1297 = vrot.lane.b32.xlu0 %v1282, 47
    %v1298 = vpop.permute.xlu0 %1297
    %vm1299 = vcmask 384000
    %v1300 = vsel %vm1299, %v1284, %v1286
    %v1301 = vsel %vm1299, %v1286, %v1288
    %v1302 = vsel %vm1299, %v1288, %v1290
    %v1303 = vsel %vm1299, %v1290, %v1292
    %v1304 = vsel %vm1299, %v1292, %v1294
    %v1305 = vsel %vm1299, %v1294, %v1296
    %v1306 = vsel %vm1299, %v1296, %v1298
    %1314 = vst [vmem:[#allocation3 + $0x280] sm:$0xf0] %v1300
    %1315 = vst [vmem:[#allocation3 + $0x288] sm:$0xf0] %v1301
    %1316 = vst [vmem:[#allocation3 + $0x290] sm:$0xf0] %v1302
    %1317 = vst [vmem:[#allocation3 + $0x298] sm:$0xf0] %v1303
    %1318 = vst [vmem:[#allocation3 + $0x2a0] sm:$0xf0] %v1304
    %1319 = vst [vmem:[#allocation3 + $0x2a8] sm:$0xf0] %v1305
    %1320 = vst [vmem:[#allocation3 + $0x2b0] sm:$0xf0] %v1306
    %v1321 = vld [vmem:[#allocation2] sm:$0xf]
    %v1322 = vld [vmem:[#allocation2 + $0x8] sm:$0xf]
    %v1323 = vld [vmem:[#allocation2 + $0x10] sm:$0xf]
    %v1324 = vld [vmem:[#allocation2 + $0x18] sm:$0xf]
    %v1325 = vld [vmem:[#allocation2 + $0x20] sm:$0xf]
    %v1326 = vld [vmem:[#allocation2 + $0x28] sm:$0xf]
    %v1327 = vld [vmem:[#allocation2 + $0x30] sm:$0xf]
    %v1328 = vld [vmem:[#allocation2 + $0x38] sm:$0xf]
    %1337 = vrot.lane.b32.xlu0 %v1321, 46
    %v1338 = vpop.permute.xlu0 %1337
    %1339 = vrot.lane.b32.xlu0 %v1322, 46
    %v1340 = vpop.permute.xlu0 %1339
    %1341 = vrot.lane.b32.xlu0 %v1323, 46
    %v1342 = vpop.permute.xlu0 %1341
    %1343 = vrot.lane.b32.xlu0 %v1324, 46
    %v1344 = vpop.permute.xlu0 %1343
    %1345 = vrot.lane.b32.xlu0 %v1325, 46
    %v1346 = vpop.permute.xlu0 %1345
    %1347 = vrot.lane.b32.xlu0 %v1326, 46
    %v1348 = vpop.permute.xlu0 %1347
    %1349 = vrot.lane.b32.xlu0 %v1327, 46
    %v1350 = vpop.permute.xlu0 %1349
    %1351 = vrot.lane.b32.xlu0 %v1328, 46
    %v1352 = vpop.permute.xlu0 %1351
    %vm1353 = vcmask 375808
    %v1354 = vsel %vm1353, %v1338, %v1340
    %v1355 = vsel %vm1353, %v1340, %v1342
    %v1356 = vsel %vm1353, %v1342, %v1344
    %v1357 = vsel %vm1353, %v1344, %v1346
    %v1358 = vsel %vm1353, %v1346, %v1348
    %v1359 = vsel %vm1353, %v1348, %v1350
    %v1360 = vsel %vm1353, %v1350, %v1352
    %1368 = vst [vmem:[#allocation3 + $0x2c0] sm:$0xf] %v1354
    %1369 = vst [vmem:[#allocation3 + $0x2c8] sm:$0xf] %v1355
    %1370 = vst [vmem:[#allocation3 + $0x2d0] sm:$0xf] %v1356
    %1371 = vst [vmem:[#allocation3 + $0x2d8] sm:$0xf] %v1357
    %1372 = vst [vmem:[#allocation3 + $0x2e0] sm:$0xf] %v1358
    %1373 = vst [vmem:[#allocation3 + $0x2e8] sm:$0xf] %v1359
    %1374 = vst [vmem:[#allocation3 + $0x2f0] sm:$0xf] %v1360
    %v1375 = vld [vmem:[#allocation2] sm:$0xf]
    %v1376 = vld [vmem:[#allocation2 + $0x8] sm:$0xf]
    %v1377 = vld [vmem:[#allocation2 + $0x10] sm:$0xf]
    %v1378 = vld [vmem:[#allocation2 + $0x18] sm:$0xf]
    %v1379 = vld [vmem:[#allocation2 + $0x20] sm:$0xf]
    %v1380 = vld [vmem:[#allocation2 + $0x28] sm:$0xf]
    %v1381 = vld [vmem:[#allocation2 + $0x30] sm:$0xf]
    %v1382 = vld [vmem:[#allocation2 + $0x38] sm:$0xf]
    %v1391 = vrot.slane %v1375, 4
    %v1392 = vrot.slane %v1376, 4
    %v1393 = vrot.slane %v1377, 4
    %v1394 = vrot.slane %v1378, 4
    %v1395 = vrot.slane %v1379, 4
    %v1396 = vrot.slane %v1380, 4
    %v1397 = vrot.slane %v1381, 4
    %v1398 = vrot.slane %v1382, 4
    %1399 = vrot.lane.b32.xlu0 %v1391, 45
    %v1400 = vpop.permute.xlu0 %1399
    %1401 = vrot.lane.b32.xlu0 %v1392, 45
    %v1402 = vpop.permute.xlu0 %1401
    %1403 = vrot.lane.b32.xlu0 %v1393, 45
    %v1404 = vpop.permute.xlu0 %1403
    %1405 = vrot.lane.b32.xlu0 %v1394, 45
    %v1406 = vpop.permute.xlu0 %1405
    %1407 = vrot.lane.b32.xlu0 %v1395, 45
    %v1408 = vpop.permute.xlu0 %1407
    %1409 = vrot.lane.b32.xlu0 %v1396, 45
    %v1410 = vpop.permute.xlu0 %1409
    %1411 = vrot.lane.b32.xlu0 %v1397, 45
    %v1412 = vpop.permute.xlu0 %1411
    %1413 = vrot.lane.b32.xlu0 %v1398, 45
    %v1414 = vpop.permute.xlu0 %1413
    %vm1415 = vcmask 367616
    %v1416 = vsel %vm1415, %v1400, %v1402
    %v1417 = vsel %vm1415, %v1402, %v1404
    %v1418 = vsel %vm1415, %v1404, %v1406
    %v1419 = vsel %vm1415, %v1406, %v1408
    %v1420 = vsel %vm1415, %v1408, %v1410
    %v1421 = vsel %vm1415, %v1410, %v1412
    %v1422 = vsel %vm1415, %v1412, %v1414
    %1430 = vst [vmem:[#allocation3 + $0x2c0] sm:$0xf0] %v1416
    %1431 = vst [vmem:[#allocation3 + $0x2c8] sm:$0xf0] %v1417
    %1432 = vst [vmem:[#allocation3 + $0x2d0] sm:$0xf0] %v1418
    %1433 = vst [vmem:[#allocation3 + $0x2d8] sm:$0xf0] %v1419
    %1434 = vst [vmem:[#allocation3 + $0x2e0] sm:$0xf0] %v1420
    %1435 = vst [vmem:[#allocation3 + $0x2e8] sm:$0xf0] %v1421
    %1436 = vst [vmem:[#allocation3 + $0x2f0] sm:$0xf0] %v1422
    %v1437 = vld [vmem:[#allocation2] sm:$0xf]
    %v1438 = vld [vmem:[#allocation2 + $0x8] sm:$0xf]
    %v1439 = vld [vmem:[#allocation2 + $0x10] sm:$0xf]
    %v1440 = vld [vmem:[#allocation2 + $0x18] sm:$0xf]
    %v1441 = vld [vmem:[#allocation2 + $0x20] sm:$0xf]
    %v1442 = vld [vmem:[#allocation2 + $0x28] sm:$0xf]
    %v1443 = vld [vmem:[#allocation2 + $0x30] sm:$0xf]
    %v1444 = vld [vmem:[#allocation2 + $0x38] sm:$0xf]
    %1453 = vrot.lane.b32.xlu0 %v1437, 44
    %v1454 = vpop.permute.xlu0 %1453
    %1455 = vrot.lane.b32.xlu0 %v1438, 44
    %v1456 = vpop.permute.xlu0 %1455
    %1457 = vrot.lane.b32.xlu0 %v1439, 44
    %v1458 = vpop.permute.xlu0 %1457
    %1459 = vrot.lane.b32.xlu0 %v1440, 44
    %v1460 = vpop.permute.xlu0 %1459
    %1461 = vrot.lane.b32.xlu0 %v1441, 44
    %v1462 = vpop.permute.xlu0 %1461
    %1463 = vrot.lane.b32.xlu0 %v1442, 44
    %v1464 = vpop.permute.xlu0 %1463
    %1465 = vrot.lane.b32.xlu0 %v1443, 44
    %v1466 = vpop.permute.xlu0 %1465
    %1467 = vrot.lane.b32.xlu0 %v1444, 44
    %v1468 = vpop.permute.xlu0 %1467
    %vm1469 = vcmask 359424
    %v1470 = vsel %vm1469, %v1454, %v1456
    %v1471 = vsel %vm1469, %v1456, %v1458
    %v1472 = vsel %vm1469, %v1458, %v1460
    %v1473 = vsel %vm1469, %v1460, %v1462
    %v1474 = vsel %vm1469, %v1462, %v1464
    %v1475 = vsel %vm1469, %v1464, %v1466
    %v1476 = vsel %vm1469, %v1466, %v1468
    %1484 = vst [vmem:[#allocation3 + $0x300] sm:$0xf] %v1470
    %1485 = vst [vmem:[#allocation3 + $0x308] sm:$0xf] %v1471
    %1486 = vst [vmem:[#allocation3 + $0x310] sm:$0xf] %v1472
    %1487 = vst [vmem:[#allocation3 + $0x318] sm:$0xf] %v1473
    %1488 = vst [vmem:[#allocation3 + $0x320] sm:$0xf] %v1474
    %1489 = vst [vmem:[#allocation3 + $0x328] sm:$0xf] %v1475
    %1490 = vst [vmem:[#allocation3 + $0x330] sm:$0xf] %v1476
    %v1491 = vld [vmem:[%s2] sm:$0xff]
    %v1492 = vld [vmem:[#allocation3] sm:$0xff]
    %v1493 = vld [vmem:[#allocation3 + $0x8] sm:$0xff]
    %v1494 = vld [vmem:[#allocation3 + $0x10] sm:$0xff]
    %v1495 = vld [vmem:[#allocation3 + $0x18] sm:$0xff]
    %v1496 = vld [vmem:[#allocation3 + $0x20] sm:$0xff]
    %v1497 = vld [vmem:[#allocation3 + $0x28] sm:$0xff]
    %v1498 = vld [vmem:[#allocation3 + $0x30] sm:$0xff]
    %v1499 = vld [vmem:[#allocation3 + $0x40] sm:$0xff]
    %v1500 = vld [vmem:[#allocation3 + $0x48] sm:$0xff]
    %v1501 = vld [vmem:[#allocation3 + $0x50] sm:$0xff]
    %v1502 = vld [vmem:[#allocation3 + $0x58] sm:$0xff]
    %v1503 = vld [vmem:[#allocation3 + $0x60] sm:$0xff]
    %v1504 = vld [vmem:[#allocation3 + $0x68] sm:$0xff]
    %v1505 = vld [vmem:[#allocation3 + $0x70] sm:$0xff]
    %v1506 = vld [vmem:[#allocation3 + $0x80] sm:$0xff]
    %v1507 = vld [vmem:[#allocation3 + $0x88] sm:$0xff]
    %v1508 = vld [vmem:[#allocation3 + $0x90] sm:$0xff]
    %v1509 = vld [vmem:[#allocation3 + $0x98] sm:$0xff]
    %v1510 = vld [vmem:[#allocation3 + $0xa0] sm:$0xff]
    %v1511 = vld [vmem:[#allocation3 + $0xa8] sm:$0xff]
    %v1512 = vld [vmem:[#allocation3 + $0xb0] sm:$0xff]
    %v1513 = vld [vmem:[#allocation3 + $0xc0] sm:$0xff]
    %v1514 = vld [vmem:[#allocation3 + $0xc8] sm:$0xff]
    %v1515 = vld [vmem:[#allocation3 + $0xd0] sm:$0xff]
    %v1516 = vld [vmem:[#allocation3 + $0xd8] sm:$0xff]
    %v1517 = vld [vmem:[#allocation3 + $0xe0] sm:$0xff]
    %v1518 = vld [vmem:[#allocation3 + $0xe8] sm:$0xff]
    %v1519 = vld [vmem:[#allocation3 + $0xf0] sm:$0xff]
    %v1520 = vld [vmem:[#allocation3 + $0x100] sm:$0xff]
    %v1521 = vld [vmem:[#allocation3 + $0x108] sm:$0xff]
    %v1522 = vld [vmem:[#allocation3 + $0x110] sm:$0xff]
    %v1523 = vld [vmem:[#allocation3 + $0x118] sm:$0xff]
    %v1524 = vld [vmem:[#allocation3 + $0x120] sm:$0xff]
    %v1525 = vld [vmem:[#allocation3 + $0x128] sm:$0xff]
    %v1526 = vld [vmem:[#allocation3 + $0x130] sm:$0xff]
    %v1527 = vld [vmem:[#allocation3 + $0x140] sm:$0xff]
    %v1528 = vld [vmem:[#allocation3 + $0x148] sm:$0xff]
    %v1529 = vld [vmem:[#allocation3 + $0x150] sm:$0xff]
    %v1530 = vld [vmem:[#allocation3 + $0x158] sm:$0xff]
    %v1531 = vld [vmem:[#allocation3 + $0x160] sm:$0xff]
    %v1532 = vld [vmem:[#allocation3 + $0x168] sm:$0xff]
    %v1533 = vld [vmem:[#allocation3 + $0x170] sm:$0xff]
    %v1534 = vld [vmem:[#allocation3 + $0x180] sm:$0xff]
    %v1535 = vld [vmem:[#allocation3 + $0x188] sm:$0xff]
    %v1536 = vld [vmem:[#allocation3 + $0x190] sm:$0xff]
    %v1537 = vld [vmem:[#allocation3 + $0x198] sm:$0xff]
    %v1538 = vld [vmem:[#allocation3 + $0x1a0] sm:$0xff]
    %v1539 = vld [vmem:[#allocation3 + $0x1a8] sm:$0xff]
    %v1540 = vld [vmem:[#allocation3 + $0x1b0] sm:$0xff]
    %v1541 = vld [vmem:[#allocation3 + $0x1c0] sm:$0xff]
    %v1542 = vld [vmem:[#allocation3 + $0x1c8] sm:$0xff]
    %v1543 = vld [vmem:[#allocation3 + $0x1d0] sm:$0xff]
    %v1544 = vld [vmem:[#allocation3 + $0x1d8] sm:$0xff]
    %v1545 = vld [vmem:[#allocation3 + $0x1e0] sm:$0xff]
    %v1546 = vld [vmem:[#allocation3 + $0x1e8] sm:$0xff]
    %v1547 = vld [vmem:[#allocation3 + $0x1f0] sm:$0xff]
    %v1548 = vld [vmem:[#allocation3 + $0x200] sm:$0xff]
    %v1549 = vld [vmem:[#allocation3 + $0x208] sm:$0xff]
    %v1550 = vld [vmem:[#allocation3 + $0x210] sm:$0xff]
    %v1551 = vld [vmem:[#allocation3 + $0x218] sm:$0xff]
    %v1552 = vld [vmem:[#allocation3 + $0x220] sm:$0xff]
    %v1553 = vld [vmem:[#allocation3 + $0x228] sm:$0xff]
    %v1554 = vld [vmem:[#allocation3 + $0x230] sm:$0xff]
    %v1555 = vld [vmem:[#allocation3 + $0x240] sm:$0xff]
    %v1556 = vld [vmem:[#allocation3 + $0x248] sm:$0xff]
    %v1557 = vld [vmem:[#allocation3 + $0x250] sm:$0xff]
    %v1558 = vld [vmem:[#allocation3 + $0x258] sm:$0xff]
    %v1559 = vld [vmem:[#allocation3 + $0x260] sm:$0xff]
    %v1560 = vld [vmem:[#allocation3 + $0x268] sm:$0xff]
    %v1561 = vld [vmem:[#allocation3 + $0x270] sm:$0xff]
    %v1562 = vld [vmem:[#allocation3 + $0x280] sm:$0xff]
    %v1563 = vld [vmem:[#allocation3 + $0x288] sm:$0xff]
    %v1564 = vld [vmem:[#allocation3 + $0x290] sm:$0xff]
    %v1565 = vld [vmem:[#allocation3 + $0x298] sm:$0xff]
    %v1566 = vld [vmem:[#allocation3 + $0x2a0] sm:$0xff]
    %v1567 = vld [vmem:[#allocation3 + $0x2a8] sm:$0xff]
    %v1568 = vld [vmem:[#allocation3 + $0x2b0] sm:$0xff]
    %v1569 = vld [vmem:[#allocation3 + $0x2c0] sm:$0xff]
    %v1570 = vld [vmem:[#allocation3 + $0x2c8] sm:$0xff]
    %v1571 = vld [vmem:[#allocation3 + $0x2d0] sm:$0xff]
    %v1572 = vld [vmem:[#allocation3 + $0x2d8] sm:$0xff]
    %v1573 = vld [vmem:[#allocation3 + $0x2e0] sm:$0xff]
    %v1574 = vld [vmem:[#allocation3 + $0x2e8] sm:$0xff]
    %v1575 = vld [vmem:[#allocation3 + $0x2f0] sm:$0xff]
    %v1576 = vld [vmem:[#allocation3 + $0x300] sm:$0xf]
    %v1577 = vld [vmem:[#allocation3 + $0x308] sm:$0xf]
    %v1578 = vld [vmem:[#allocation3 + $0x310] sm:$0xf]
    %v1579 = vld [vmem:[#allocation3 + $0x318] sm:$0xf]
    %v1580 = vld [vmem:[#allocation3 + $0x320] sm:$0xf]
    %v1581 = vld [vmem:[#allocation3 + $0x328] sm:$0xf]
    %v1582 = vld [vmem:[#allocation3 + $0x330] sm:$0xf]
    %v1583 = vld [vmem:[%s3] sm:$0xff]
    %1585 = vset.pattern.permute.xlu0 0
    %1586 = vperm.xlu0 %1585, %v1583
    %v1587 = vpop.permute.xlu0 %1586
    %vm1589 = vcmask 818176
    %v1591 = vsel %vm1589, %v1491, 0
    %vm1593 = vcmask 1043456
    %v1595 = vsel %vm1593, %v1576, 0
    %v1598 = vsel %vm1593, %v1577, 0
    %v1601 = vsel %vm1593, %v1578, 0
    %v1604 = vsel %vm1593, %v1579, 0
    %v1607 = vsel %vm1593, %v1580, 0
    %v1610 = vsel %vm1593, %v1581, 0
    %v1613 = vsel %vm1593, %v1582, 0
    %1615 = vmatprep.subr.mxu0 %v1493
    %1616 = vmatpush1.msra.mxu0 %v1492
    %1617 = vmatprep.subr.mxu0 %v1500
    %1618 = vmatpush1.msra.mxu0 %v1499
    %1619 = vmatprep.subr.mxu0 %v1507
    %1620 = vmatpush1.msra.mxu0 %v1506
    %1621 = vmatprep.subr.mxu0 %v1514
    %1622 = vmatpush1.msra.mxu0 %v1513
    %1623 = vmatprep.subr.mxu0 %v1521
    %1624 = vmatpush1.msra.mxu0 %v1520
    %1625 = vmatprep.subr.mxu0 %v1528
    %1626 = vmatpush1.msra.mxu0 %v1527
    %1627 = vmatprep.subr.mxu0 %v1535
    %1628 = vmatpush1.msra.mxu0 %v1534
    %1629 = vmatprep.subr.mxu0 %v1542
    %1630 = vmatpush1.msra.mxu0 %v1541
    %1631 = vmatprep.subr.mxu0 %v1549
    %1632 = vmatpush1.msra.mxu0 %v1548
    %1633 = vmatprep.subr.mxu0 %v1556
    %1634 = vmatpush1.msra.mxu0 %v1555
    %1635 = vmatprep.subr.mxu0 %v1563
    %1636 = vmatpush1.msra.mxu0 %v1562
    %1637 = vmatprep.subr.mxu0 %v1570
    %1638 = vmatpush1.msra.mxu0 %v1569
    %1639 = vmatprep.subr.mxu0 %v1598
    %1640 = vmatpush1.msra.mxu0 %v1595
    %1641 = vmatprep.subr.mxu0 0.0
    %1642 = vmatpush1.msra.mxu0 0.0
    %1643 = vmatprep.subr.mxu0 0.0
    %1644 = vmatpush1.msra.mxu0 0.0
    %1645 = vmatprep.subr.mxu0 0.0
    %1646 = vmatpush1.msra.mxu0 0.0
    %1647 = vmatprep.subr.mxu0 0.0
    %1648 = vmatpush1.msra.mxu0 0.0
    %1649 = vmatprep.subr.mxu0 0.0
    %1650 = vmatpush1.msra.mxu0 0.0
    %1651 = vmatprep.subr.mxu0 0.0
    %1652 = vmatpush1.msra.mxu0 0.0
    %1653 = vmatprep.subr.mxu0 0.0
    %1654 = vmatpush1.msra.mxu0 0.0
    %1655 = vmatprep.subr.mxu0 0.0
    %1656 = vmatpush1.msra.mxu0 0.0
    %1657 = vmatprep.subr.mxu0 0.0
    %1658 = vmatpush1.msra.mxu0 0.0
    %1659 = vmatprep.subr.mxu0 0.0
    %1660 = vmatpush1.msra.mxu0 0.0
    %1661 = vmatprep.subr.mxu0 0.0
    %1662 = vmatpush1.msra.mxu0 0.0
    %1663 = vmatprep.subr.mxu0 0.0
    %1664 = vmatpush1.msra.mxu0 0.0
    %1665 = vmatprep.subr.mxu0 0.0
    %1666 = vmatpush1.msra.mxu0 0.0
    %1667 = vmatprep.subr.mxu0 0.0
    %1668 = vmatpush1.msra.mxu0 0.0
    %1669 = vmatprep.subr.mxu0 0.0
    %1670 = vmatpush1.msra.mxu0 0.0
    %1671 = vmatprep.subr.mxu0 0.0
    %1672 = vmatpush1.msra.mxu0 0.0
    %1673 = vmatprep.subr.mxu0 0.0
    %1674 = vmatpush1.msra.mxu0 0.0
    %1675 = vmatprep.subr.mxu0 0.0
    %1676 = vmatpush1.msra.mxu0 0.0
    %1677 = vmatprep.subr.mxu0 0.0
    %1678 = vmatpush1.msra.mxu0 0.0
    %1679 = vmatprep.mubr.f32.mxu0 0.0
    %1680 = vmatmul.mubr.f32.gmra.mrb[0].mxu0 %v1591
    %v1681 = vpop.f32.mrb[0].mxu0
    %v1682 = vadd.f32 %v1587, %v1681
    %v1683 = vpop.f32.mrb[0].mxu0
    %v1684 = vadd.f32 %v1587, %v1683
    %1685 = vdwg.mxu0
    %1686 = vmatprep.subr.mxu0 %v1495
    %1687 = vmatpush1.msra.mxu0 %v1494
    %1688 = vmatprep.subr.mxu0 %v1502
    %1689 = vmatpush1.msra.mxu0 %v1501
    %1690 = vmatprep.subr.mxu0 %v1509
    %1691 = vmatpush1.msra.mxu0 %v1508
    %1692 = vmatprep.subr.mxu0 %v1516
    %1693 = vmatpush1.msra.mxu0 %v1515
    %1694 = vmatprep.subr.mxu0 %v1523
    %1695 = vmatpush1.msra.mxu0 %v1522
    %1696 = vmatprep.subr.mxu0 %v1530
    %1697 = vmatpush1.msra.mxu0 %v1529
    %1698 = vmatprep.subr.mxu0 %v1537
    %1699 = vmatpush1.msra.mxu0 %v1536
    %1700 = vmatprep.subr.mxu0 %v1544
    %1701 = vmatpush1.msra.mxu0 %v1543
    %1702 = vmatprep.subr.mxu0 %v1551
    %1703 = vmatpush1.msra.mxu0 %v1550
    %1704 = vmatprep.subr.mxu0 %v1558
    %1705 = vmatpush1.msra.mxu0 %v1557
    %1706 = vmatprep.subr.mxu0 %v1565
    %1707 = vmatpush1.msra.mxu0 %v1564
    %1708 = vmatprep.subr.mxu0 %v1572
    %1709 = vmatpush1.msra.mxu0 %v1571
    %1710 = vmatprep.subr.mxu0 %v1604
    %1711 = vmatpush1.msra.mxu0 %v1601
    %1712 = vmatprep.subr.mxu0 0.0
    %1713 = vmatpush1.msra.mxu0 0.0
    %1714 = vmatprep.subr.mxu0 0.0
    %1715 = vmatpush1.msra.mxu0 0.0
    %1716 = vmatprep.subr.mxu0 0.0
    %1717 = vmatpush1.msra.mxu0 0.0
    %1718 = vmatprep.subr.mxu0 0.0
    %1719 = vmatpush1.msra.mxu0 0.0
    %1720 = vmatprep.subr.mxu0 0.0
    %1721 = vmatpush1.msra.mxu0 0.0
    %1722 = vmatprep.subr.mxu0 0.0
    %1723 = vmatpush1.msra.mxu0 0.0
    %1724 = vmatprep.subr.mxu0 0.0
    %1725 = vmatpush1.msra.mxu0 0.0
    %1726 = vmatprep.subr.mxu0 0.0
    %1727 = vmatpush1.msra.mxu0 0.0
    %1728 = vmatprep.subr.mxu0 0.0
    %1729 = vmatpush1.msra.mxu0 0.0
    %1730 = vmatprep.subr.mxu0 0.0
    %1731 = vmatpush1.msra.mxu0 0.0
    %1732 = vmatprep.subr.mxu0 0.0
    %1733 = vmatpush1.msra.mxu0 0.0
    %1734 = vmatprep.subr.mxu0 0.0
    %1735 = vmatpush1.msra.mxu0 0.0
    %1736 = vmatprep.subr.mxu0 0.0
    %1737 = vmatpush1.msra.mxu0 0.0
    %1738 = vmatprep.subr.mxu0 0.0
    %1739 = vmatpush1.msra.mxu0 0.0
    %1740 = vmatprep.subr.mxu0 0.0
    %1741 = vmatpush1.msra.mxu0 0.0
    %1742 = vmatprep.subr.mxu0 0.0
    %1743 = vmatpush1.msra.mxu0 0.0
    %1744 = vmatprep.subr.mxu0 0.0
    %1745 = vmatpush1.msra.mxu0 0.0
    %1746 = vmatprep.subr.mxu0 0.0
    %1747 = vmatpush1.msra.mxu0 0.0
    %1748 = vmatprep.subr.mxu0 0.0
    %1749 = vmatpush1.msra.mxu0 0.0
    %1750 = vmatprep.mubr.f32.mxu0 0.0
    %1751 = vmatmul.mubr.f32.gmra.mrb[0].mxu0 %v1591
    %v1752 = vpop.f32.mrb[0].mxu0
    %v1753 = vadd.f32 %v1587, %v1752
    %v1754 = vpop.f32.mrb[0].mxu0
    %v1755 = vadd.f32 %v1587, %v1754
    %1756 = vdwg.mxu0
    %1757 = vmatprep.subr.mxu0 %v1497
    %1758 = vmatpush1.msra.mxu0 %v1496
    %1759 = vmatprep.subr.mxu0 %v1504
    %1760 = vmatpush1.msra.mxu0 %v1503
    %1761 = vmatprep.subr.mxu0 %v1511
    %1762 = vmatpush1.msra.mxu0 %v1510
    %1763 = vmatprep.subr.mxu0 %v1518
    %1764 = vmatpush1.msra.mxu0 %v1517
    %1765 = vmatprep.subr.mxu0 %v1525
    %1766 = vmatpush1.msra.mxu0 %v1524
    %1767 = vmatprep.subr.mxu0 %v1532
    %1768 = vmatpush1.msra.mxu0 %v1531
    %1769 = vmatprep.subr.mxu0 %v1539
    %1770 = vmatpush1.msra.mxu0 %v1538
    %1771 = vmatprep.subr.mxu0 %v1546
    %1772 = vmatpush1.msra.mxu0 %v1545
    %1773 = vmatprep.subr.mxu0 %v1553
    %1774 = vmatpush1.msra.mxu0 %v1552
    %1775 = vmatprep.subr.mxu0 %v1560
    %1776 = vmatpush1.msra.mxu0 %v1559
    %1777 = vmatprep.subr.mxu0 %v1567
    %1778 = vmatpush1.msra.mxu0 %v1566
    %1779 = vmatprep.subr.mxu0 %v1574
    %1780 = vmatpush1.msra.mxu0 %v1573
    %1781 = vmatprep.subr.mxu0 %v1610
    %1782 = vmatpush1.msra.mxu0 %v1607
    %1783 = vmatprep.subr.mxu0 0.0
    %1784 = vmatpush1.msra.mxu0 0.0
    %1785 = vmatprep.subr.mxu0 0.0
    %1786 = vmatpush1.msra.mxu0 0.0
    %1787 = vmatprep.subr.mxu0 0.0
    %1788 = vmatpush1.msra.mxu0 0.0
    %1789 = vmatprep.subr.mxu0 0.0
    %1790 = vmatpush1.msra.mxu0 0.0
    %1791 = vmatprep.subr.mxu0 0.0
    %1792 = vmatpush1.msra.mxu0 0.0
    %1793 = vmatprep.subr.mxu0 0.0
    %1794 = vmatpush1.msra.mxu0 0.0
    %1795 = vmatprep.subr.mxu0 0.0
    %1796 = vmatpush1.msra.mxu0 0.0
    %1797 = vmatprep.subr.mxu0 0.0
    %1798 = vmatpush1.msra.mxu0 0.0
    %1799 = vmatprep.subr.mxu0 0.0
    %1800 = vmatpush1.msra.mxu0 0.0
    %1801 = vmatprep.subr.mxu0 0.0
    %1802 = vmatpush1.msra.mxu0 0.0
    %1803 = vmatprep.subr.mxu0 0.0
    %1804 = vmatpush1.msra.mxu0 0.0
    %1805 = vmatprep.subr.mxu0 0.0
    %1806 = vmatpush1.msra.mxu0 0.0
    %1807 = vmatprep.subr.mxu0 0.0
    %1808 = vmatpush1.msra.mxu0 0.0
    %1809 = vmatprep.subr.mxu0 0.0
    %1810 = vmatpush1.msra.mxu0 0.0
    %1811 = vmatprep.subr.mxu0 0.0
    %1812 = vmatpush1.msra.mxu0 0.0
    %1813 = vmatprep.subr.mxu0 0.0
    %1814 = vmatpush1.msra.mxu0 0.0
    %1815 = vmatprep.subr.mxu0 0.0
    %1816 = vmatpush1.msra.mxu0 0.0
    %1817 = vmatprep.subr.mxu0 0.0
    %1818 = vmatpush1.msra.mxu0 0.0
    %1819 = vmatprep.subr.mxu0 0.0
    %1820 = vmatpush1.msra.mxu0 0.0
    %1821 = vmatprep.mubr.f32.mxu0 0.0
    %1822 = vmatmul.mubr.f32.gmra.mrb[0].mxu0 %v1591
    %v1823 = vpop.f32.mrb[0].mxu0
    %v1824 = vadd.f32 %v1587, %v1823
    %v1825 = vpop.f32.mrb[0].mxu0
    %v1826 = vadd.f32 %v1587, %v1825
    %1827 = vdwg.mxu0
    %1828 = vmatprep.subr.mxu0 0.0
    %1829 = vmatpush1.msra.mxu0 %v1498
    %1830 = vmatprep.subr.mxu0 0.0
    %1831 = vmatpush1.msra.mxu0 %v1505
    %1832 = vmatprep.subr.mxu0 0.0
    %1833 = vmatpush1.msra.mxu0 %v1512
    %1834 = vmatprep.subr.mxu0 0.0
    %1835 = vmatpush1.msra.mxu0 %v1519
    %1836 = vmatprep.subr.mxu0 0.0
    %1837 = vmatpush1.msra.mxu0 %v1526
    %1838 = vmatprep.subr.mxu0 0.0
    %1839 = vmatpush1.msra.mxu0 %v1533
    %1840 = vmatprep.subr.mxu0 0.0
    %1841 = vmatpush1.msra.mxu0 %v1540
    %1842 = vmatprep.subr.mxu0 0.0
    %1843 = vmatpush1.msra.mxu0 %v1547
    %1844 = vmatprep.subr.mxu0 0.0
    %1845 = vmatpush1.msra.mxu0 %v1554
    %1846 = vmatprep.subr.mxu0 0.0
    %1847 = vmatpush1.msra.mxu0 %v1561
    %1848 = vmatprep.subr.mxu0 0.0
    %1849 = vmatpush1.msra.mxu0 %v1568
    %1850 = vmatprep.subr.mxu0 0.0
    %1851 = vmatpush1.msra.mxu0 %v1575
    %1852 = vmatprep.subr.mxu0 0.0
    %1853 = vmatpush1.msra.mxu0 %v1613
    %1854 = vmatprep.subr.mxu0 0.0
    %1855 = vmatpush1.msra.mxu0 0.0
    %1856 = vmatprep.subr.mxu0 0.0
    %1857 = vmatpush1.msra.mxu0 0.0
    %1858 = vmatprep.subr.mxu0 0.0
    %1859 = vmatpush1.msra.mxu0 0.0
    %1860 = vmatprep.subr.mxu0 0.0
    %1861 = vmatpush1.msra.mxu0 0.0
    %1862 = vmatprep.subr.mxu0 0.0
    %1863 = vmatpush1.msra.mxu0 0.0
    %1864 = vmatprep.subr.mxu0 0.0
    %1865 = vmatpush1.msra.mxu0 0.0
    %1866 = vmatprep.subr.mxu0 0.0
    %1867 = vmatpush1.msra.mxu0 0.0
    %1868 = vmatprep.subr.mxu0 0.0
    %1869 = vmatpush1.msra.mxu0 0.0
    %1870 = vmatprep.subr.mxu0 0.0
    %1871 = vmatpush1.msra.mxu0 0.0
    %1872 = vmatprep.subr.mxu0 0.0
    %1873 = vmatpush1.msra.mxu0 0.0
    %1874 = vmatprep.subr.mxu0 0.0
    %1875 = vmatpush1.msra.mxu0 0.0
    %1876 = vmatprep.subr.mxu0 0.0
    %1877 = vmatpush1.msra.mxu0 0.0
    %1878 = vmatprep.subr.mxu0 0.0
    %1879 = vmatpush1.msra.mxu0 0.0
    %1880 = vmatprep.subr.mxu0 0.0
    %1881 = vmatpush1.msra.mxu0 0.0
    %1882 = vmatprep.subr.mxu0 0.0
    %1883 = vmatpush1.msra.mxu0 0.0
    %1884 = vmatprep.subr.mxu0 0.0
    %1885 = vmatpush1.msra.mxu0 0.0
    %1886 = vmatprep.subr.mxu0 0.0
    %1887 = vmatpush1.msra.mxu0 0.0
    %1888 = vmatprep.subr.mxu0 0.0
    %1889 = vmatpush1.msra.mxu0 0.0
    %1890 = vmatprep.subr.mxu0 0.0
    %1891 = vmatpush1.msra.mxu0 0.0
    %1892 = vmatprep.mubr.f32.mxu0 0.0
    %1893 = vmatmul.mubr.f32.gmra.mrb[0].mxu0 %v1591
    %v1894 = vpop.f32.mrb[0].mxu0
    %v1895 = vadd.f32 %v1587, %v1894
    %v1896 = vpop.f32.mrb[0].mxu0
    %1897 = vdwg.mxu0
    %vm1898 = vcmp.ge.f32.partialorder %v1682, 0.0
    %vm1899 = vcmp.ge.f32.partialorder %v1684, 0.0
    %vm1900 = vcmp.ge.f32.partialorder %v1753, 0.0
    %vm1901 = vcmp.ge.f32.partialorder %v1755, 0.0
    %vm1902 = vcmp.ge.f32.partialorder %v1824, 0.0
    %vm1903 = vcmp.ge.f32.partialorder %v1826, 0.0
    %vm1904 = vcmp.ge.f32.partialorder %v1895, 0.0
    %v1905 = vmul.f32 %v55, %v1682
    %v1906 = vmul.f32 %v55, %v1684
    %v1907 = vmul.f32 %v55, %v1753
    %v1908 = vmul.f32 %v55, %v1755
    %v1909 = vmul.f32 %v55, %v1824
    %v1910 = vmul.f32 %v55, %v1826
    %v1911 = vmul.f32 %v55, %v1895
    %v1912 = vsel %vm1898, %v1682, %v1905
    %v1913 = vsel %vm1899, %v1684, %v1906
    %v1914 = vsel %vm1900, %v1753, %v1907
    %v1915 = vsel %vm1901, %v1755, %v1908
    %v1916 = vsel %vm1902, %v1824, %v1909
    %v1917 = vsel %vm1903, %v1826, %v1910
    %v1918 = vsel %vm1904, %v1895, %v1911
    %v1920 = vlaneseq
    %v1921 = vshrl.u32 %v1920, 7
    %v1922 = vsub.s32 0, %v1921
    %v1923 = vrot.slane %v84, %v1922
    %v1924 = vlaneseq
    %v1925 = vshrl.u32 %v1924, 7
    %v1926 = vsub.s32 1, %v1925
    %v1927 = vrot.slane %v84, %v1926
    %v1928 = vlaneseq
    %v1929 = vshrl.u32 %v1928, 7
    %v1930 = vsub.s32 2, %v1929
    %v1931 = vrot.slane %v84, %v1930
    %v1932 = vlaneseq
    %v1933 = vshrl.u32 %v1932, 7
    %v1934 = vsub.s32 3, %v1933
    %v1935 = vrot.slane %v84, %v1934
    %v1936 = vlaneseq
    %v1937 = vshrl.u32 %v1936, 7
    %v1938 = vsub.s32 4, %v1937
    %v1939 = vrot.slane %v84, %v1938
    %v1940 = vlaneseq
    %v1941 = vshrl.u32 %v1940, 7
    %v1942 = vsub.s32 5, %v1941
    %v1943 = vrot.slane %v84, %v1942
    %v1944 = vlaneseq
    %v1945 = vshrl.u32 %v1944, 7
    %v1946 = vsub.s32 6, %v1945
    %v1947 = vrot.slane %v84, %v1946
    %v1955 = vmul.f32 %v1912, %v1923
    %v1956 = vmul.f32 %v1913, %v1927
    %v1957 = vmul.f32 %v1914, %v1931
    %v1958 = vmul.f32 %v1915, %v1935
    %v1959 = vmul.f32 %v1916, %v1939
    %v1960 = vmul.f32 %v1917, %v1943
    %v1961 = vmul.f32 %v1918, %v1947
    %vm1962 = vcmask 343044
    %1963 = vst.msk [vmem:[#allocation2] sm:$0xf0] %vm1962, 0.0
    %vm1964 = vcmask 338944
    %1965 = vst.msk [vmem:[#allocation2 + $0x40] sm:$0xf] %vm1964, 0.0
    %v1973 = vrot.slane %v1955, 4
    %v1974 = vrot.slane %v1956, 4
    %v1975 = vrot.slane %v1957, 4
    %v1976 = vrot.slane %v1958, 4
    %v1977 = vrot.slane %v1959, 4
    %v1978 = vrot.slane %v1960, 4
    %v1979 = vrot.slane %v1961, 4
    %1980 = vrot.lane.b32.xlu0 %v1973, 42
    %v1981 = vpop.permute.xlu0 %1980
    %1982 = vrot.lane.b32.xlu0 %v1974, 42
    %v1983 = vpop.permute.xlu0 %1982
    %1984 = vrot.lane.b32.xlu0 %v1975, 42
    %v1985 = vpop.permute.xlu0 %1984
    %1986 = vrot.lane.b32.xlu0 %v1976, 42
    %v1987 = vpop.permute.xlu0 %1986
    %1988 = vrot.lane.b32.xlu0 %v1977, 42
    %v1989 = vpop.permute.xlu0 %1988
    %1990 = vrot.lane.b32.xlu0 %v1978, 42
    %v1991 = vpop.permute.xlu0 %1990
    %1992 = vrot.lane.b32.xlu0 %v1979, 42
    %v1993 = vpop.permute.xlu0 %1992
    %vm1994 = vcmask 343040
    %v1995 = vsel %vm1994, %v1981, %v1983
    %v1996 = vsel %vm1994, %v1983, %v1985
    %v1997 = vsel %vm1994, %v1985, %v1987
    %v1998 = vsel %vm1994, %v1987, %v1989
    %v1999 = vsel %vm1994, %v1989, %v1991
    %v2000 = vsel %vm1994, %v1991, %v1993
    %vm2009 = vcmask 1047892
    %2010 = vst.msk [vmem:[#allocation2] sm:$0xf0] %vm2009, %v1981
    %2011 = vst [vmem:[#allocation2 + $0x8] sm:$0xf0] %v1995
    %2012 = vst [vmem:[#allocation2 + $0x10] sm:$0xf0] %v1996
    %2013 = vst [vmem:[#allocation2 + $0x18] sm:$0xf0] %v1997
    %2014 = vst [vmem:[#allocation2 + $0x20] sm:$0xf0] %v1998
    %2015 = vst [vmem:[#allocation2 + $0x28] sm:$0xf0] %v1999
    %2016 = vst [vmem:[#allocation2 + $0x30] sm:$0xf0] %v2000
    %2017 = vst.msk [vmem:[#allocation2 + $0x38] sm:$0xf0] %vm1962, %v1993
    %vm2018 = vcmask 1043792
    %2019 = vst.msk [vmem:[#allocation2 + $0x40] sm:$0xf] %vm2018, %v1981
    %2020 = vst [vmem:[#allocation2 + $0x48] sm:$0xf] %v1995
    %2021 = vst [vmem:[#allocation2 + $0x50] sm:$0xf] %v1996
    %2022 = vst [vmem:[#allocation2 + $0x58] sm:$0xf] %v1997
    %2023 = vst [vmem:[#allocation2 + $0x60] sm:$0xf] %v1998
    %2024 = vst [vmem:[#allocation2 + $0x68] sm:$0xf] %v1999
    %2025 = vst [vmem:[#allocation2 + $0x70] sm:$0xf] %v2000
    %2026 = vst.msk [vmem:[#allocation2 + $0x78] sm:$0xf] %vm1964, %v1993
    %2027 = vst.msk [vmem:[#allocation2 + $0x38] sm:$0xf0] %vm2009, 0.0
    %2028 = vst.msk [vmem:[#allocation2 + $0x78] sm:$0xf] %vm2018, 0.0
    %v2029 = vld [vmem:[#allocation2] sm:$0xff]
    %v2030 = vld [vmem:[#allocation2 + $0x8] sm:$0xff]
    %v2031 = vld [vmem:[#allocation2 + $0x10] sm:$0xff]
    %v2032 = vld [vmem:[#allocation2 + $0x18] sm:$0xff]
    %v2033 = vld [vmem:[#allocation2 + $0x20] sm:$0xff]
    %v2034 = vld [vmem:[#allocation2 + $0x28] sm:$0xff]
    %v2035 = vld [vmem:[#allocation2 + $0x30] sm:$0xff]
    %v2036 = vld [vmem:[#allocation2 + $0x40] sm:$0xf]
    %v2037 = vld [vmem:[#allocation2 + $0x48] sm:$0xf]
    %v2038 = vld [vmem:[#allocation2 + $0x50] sm:$0xf]
    %v2039 = vld [vmem:[#allocation2 + $0x58] sm:$0xf]
    %v2040 = vld [vmem:[#allocation2 + $0x60] sm:$0xf]
    %v2041 = vld [vmem:[#allocation2 + $0x68] sm:$0xf]
    %v2042 = vld [vmem:[#allocation2 + $0x70] sm:$0xf]
    %2043 = vst [vmem:[#allocation3] sm:$0xff] %v2029
    %2044 = vst [vmem:[#allocation3 + $0x8] sm:$0xff] %v2030
    %2045 = vst [vmem:[#allocation3 + $0x10] sm:$0xff] %v2031
    %2046 = vst [vmem:[#allocation3 + $0x18] sm:$0xff] %v2032
    %2047 = vst [vmem:[#allocation3 + $0x20] sm:$0xff] %v2033
    %2048 = vst [vmem:[#allocation3 + $0x28] sm:$0xff] %v2034
    %2049 = vst [vmem:[#allocation3 + $0x30] sm:$0xff] %v2035
    %2050 = vst [vmem:[#allocation3 + $0x40] sm:$0xf] %v2036
    %2051 = vst [vmem:[#allocation3 + $0x48] sm:$0xf] %v2037
    %2052 = vst [vmem:[#allocation3 + $0x50] sm:$0xf] %v2038
    %2053 = vst [vmem:[#allocation3 + $0x58] sm:$0xf] %v2039
    %2054 = vst [vmem:[#allocation3 + $0x60] sm:$0xf] %v2040
    %2055 = vst [vmem:[#allocation3 + $0x68] sm:$0xf] %v2041
    %2056 = vst [vmem:[#allocation3 + $0x70] sm:$0xf] %v2042
    %v2057 = vld [vmem:[#allocation2] sm:$0xff]
    %v2058 = vld [vmem:[#allocation2 + $0x8] sm:$0xff]
    %v2059 = vld [vmem:[#allocation2 + $0x10] sm:$0xff]
    %v2060 = vld [vmem:[#allocation2 + $0x18] sm:$0xff]
    %v2061 = vld [vmem:[#allocation2 + $0x20] sm:$0xff]
    %v2062 = vld [vmem:[#allocation2 + $0x28] sm:$0xff]
    %v2063 = vld [vmem:[#allocation2 + $0x30] sm:$0xff]
    %v2064 = vld [vmem:[#allocation2 + $0x38] sm:$0xff]
    %v2065 = vld [vmem:[#allocation2 + $0x40] sm:$0xf]
    %v2066 = vld [vmem:[#allocation2 + $0x48] sm:$0xf]
    %v2067 = vld [vmem:[#allocation2 + $0x50] sm:$0xf]
    %v2068 = vld [vmem:[#allocation2 + $0x58] sm:$0xf]
    %v2069 = vld [vmem:[#allocation2 + $0x60] sm:$0xf]
    %v2070 = vld [vmem:[#allocation2 + $0x68] sm:$0xf]
    %v2071 = vld [vmem:[#allocation2 + $0x70] sm:$0xf]
    %v2072 = vld [vmem:[#allocation2 + $0x78] sm:$0xf]
    %v2089 = vrot.slane %v2057, 4
    %v2090 = vrot.slane %v2058, 4
    %v2091 = vrot.slane %v2059, 4
    %v2092 = vrot.slane %v2060, 4
    %v2093 = vrot.slane %v2061, 4
    %v2094 = vrot.slane %v2062, 4
    %v2095 = vrot.slane %v2063, 4
    %v2096 = vrot.slane %v2064, 4
    %v2097 = vrot.slane %v2065, 4
    %v2098 = vsel %vm1593, %v2089, %v2097
    %v2099 = vrot.slane %v2066, 4
    %v2100 = vsel %vm1593, %v2090, %v2099
    %v2101 = vrot.slane %v2067, 4
    %v2102 = vsel %vm1593, %v2091, %v2101
    %v2103 = vrot.slane %v2068, 4
    %v2104 = vsel %vm1593, %v2092, %v2103
    %v2105 = vrot.slane %v2069, 4
    %v2106 = vsel %vm1593, %v2093, %v2105
    %v2107 = vrot.slane %v2070, 4
    %v2108 = vsel %vm1593, %v2094, %v2107
    %v2109 = vrot.slane %v2071, 4
    %v2110 = vsel %vm1593, %v2095, %v2109
    %v2111 = vrot.slane %v2072, 4
    %v2112 = vsel %vm1593, %v2096, %v2111
    %2113 = vrot.lane.b32.xlu0 %v2089, 127
    %v2114 = vpop.permute.xlu0 %2113
    %2115 = vrot.lane.b32.xlu0 %v2090, 127
    %v2116 = vpop.permute.xlu0 %2115
    %2117 = vrot.lane.b32.xlu0 %v2091, 127
    %v2118 = vpop.permute.xlu0 %2117
    %2119 = vrot.lane.b32.xlu0 %v2092, 127
    %v2120 = vpop.permute.xlu0 %2119
    %2121 = vrot.lane.b32.xlu0 %v2093, 127
    %v2122 = vpop.permute.xlu0 %2121
    %2123 = vrot.lane.b32.xlu0 %v2094, 127
    %v2124 = vpop.permute.xlu0 %2123
    %2125 = vrot.lane.b32.xlu0 %v2095, 127
    %v2126 = vpop.permute.xlu0 %2125
    %2127 = vrot.lane.b32.xlu0 %v2096, 127
    %v2128 = vpop.permute.xlu0 %2127
    %2129 = vrot.lane.b32.xlu0 %v2098, 127
    %v2130 = vpop.permute.xlu0 %2129
    %2131 = vrot.lane.b32.xlu0 %v2100, 127
    %v2132 = vpop.permute.xlu0 %2131
    %2133 = vrot.lane.b32.xlu0 %v2102, 127
    %v2134 = vpop.permute.xlu0 %2133
    %2135 = vrot.lane.b32.xlu0 %v2104, 127
    %v2136 = vpop.permute.xlu0 %2135
    %2137 = vrot.lane.b32.xlu0 %v2106, 127
    %v2138 = vpop.permute.xlu0 %2137
    %2139 = vrot.lane.b32.xlu0 %v2108, 127
    %v2140 = vpop.permute.xlu0 %2139
    %2141 = vrot.lane.b32.xlu0 %v2110, 127
    %v2142 = vpop.permute.xlu0 %2141
    %2143 = vrot.lane.b32.xlu0 %v2112, 127
    %v2144 = vpop.permute.xlu0 %2143
    %v2145 = vsel %vm139, %v2114, %v2116
    %v2146 = vsel %vm139, %v2116, %v2118
    %v2147 = vsel %vm139, %v2118, %v2120
    %v2148 = vsel %vm139, %v2120, %v2122
    %v2149 = vsel %vm139, %v2122, %v2124
    %v2150 = vsel %vm139, %v2124, %v2126
    %v2151 = vsel %vm139, %v2126, %v2128
    %v2152 = vsel %vm139, %v2130, %v2132
    %v2153 = vsel %vm139, %v2132, %v2134
    %v2154 = vsel %vm139, %v2134, %v2136
    %v2155 = vsel %vm139, %v2136, %v2138
    %v2156 = vsel %vm139, %v2138, %v2140
    %v2157 = vsel %vm139, %v2140, %v2142
    %v2158 = vsel %vm139, %v2142, %v2144
    %2173 = vst [vmem:[#allocation3 + $0x40] sm:$0xf0] %v2145
    %2174 = vst [vmem:[#allocation3 + $0x48] sm:$0xf0] %v2146
    %2175 = vst [vmem:[#allocation3 + $0x50] sm:$0xf0] %v2147
    %2176 = vst [vmem:[#allocation3 + $0x58] sm:$0xf0] %v2148
    %2177 = vst [vmem:[#allocation3 + $0x60] sm:$0xf0] %v2149
    %2178 = vst [vmem:[#allocation3 + $0x68] sm:$0xf0] %v2150
    %2179 = vst [vmem:[#allocation3 + $0x70] sm:$0xf0] %v2151
    %2180 = vst [vmem:[#allocation3 + $0x80] sm:$0xff] %v2152
    %2181 = vst [vmem:[#allocation3 + $0x88] sm:$0xff] %v2153
    %2182 = vst [vmem:[#allocation3 + $0x90] sm:$0xff] %v2154
    %2183 = vst [vmem:[#allocation3 + $0x98] sm:$0xff] %v2155
    %2184 = vst [vmem:[#allocation3 + $0xa0] sm:$0xff] %v2156
    %2185 = vst [vmem:[#allocation3 + $0xa8] sm:$0xff] %v2157
    %2186 = vst [vmem:[#allocation3 + $0xb0] sm:$0xff] %v2158
    %v2187 = vld [vmem:[#allocation2] sm:$0xff]
    %v2188 = vld [vmem:[#allocation2 + $0x8] sm:$0xff]
    %v2189 = vld [vmem:[#allocation2 + $0x10] sm:$0xff]
    %v2190 = vld [vmem:[#allocation2 + $0x18] sm:$0xff]
    %v2191 = vld [vmem:[#allocation2 + $0x20] sm:$0xff]
    %v2192 = vld [vmem:[#allocation2 + $0x28] sm:$0xff]
    %v2193 = vld [vmem:[#allocation2 + $0x30] sm:$0xff]
    %v2194 = vld [vmem:[#allocation2 + $0x38] sm:$0xff]
    %v2195 = vld [vmem:[#allocation2 + $0x40] sm:$0xf]
    %v2196 = vld [vmem:[#allocation2 + $0x48] sm:$0xf]
    %v2197 = vld [vmem:[#allocation2 + $0x50] sm:$0xf]
    %v2198 = vld [vmem:[#allocation2 + $0x58] sm:$0xf]
    %v2199 = vld [vmem:[#allocation2 + $0x60] sm:$0xf]
    %v2200 = vld [vmem:[#allocation2 + $0x68] sm:$0xf]
    %v2201 = vld [vmem:[#allocation2 + $0x70] sm:$0xf]
    %v2202 = vld [vmem:[#allocation2 + $0x78] sm:$0xf]
    %2219 = vrot.lane.b32.xlu0 %v2187, 126
    %v2220 = vpop.permute.xlu0 %2219
    %2221 = vrot.lane.b32.xlu0 %v2188, 126
    %v2222 = vpop.permute.xlu0 %2221
    %2223 = vrot.lane.b32.xlu0 %v2189, 126
    %v2224 = vpop.permute.xlu0 %2223
    %2225 = vrot.lane.b32.xlu0 %v2190, 126
    %v2226 = vpop.permute.xlu0 %2225
    %2227 = vrot.lane.b32.xlu0 %v2191, 126
    %v2228 = vpop.permute.xlu0 %2227
    %2229 = vrot.lane.b32.xlu0 %v2192, 126
    %v2230 = vpop.permute.xlu0 %2229
    %2231 = vrot.lane.b32.xlu0 %v2193, 126
    %v2232 = vpop.permute.xlu0 %2231
    %2233 = vrot.lane.b32.xlu0 %v2194, 126
    %v2234 = vpop.permute.xlu0 %2233
    %2235 = vrot.lane.b32.xlu0 %v2195, 126
    %v2236 = vpop.permute.xlu0 %2235
    %2237 = vrot.lane.b32.xlu0 %v2196, 126
    %v2238 = vpop.permute.xlu0 %2237
    %2239 = vrot.lane.b32.xlu0 %v2197, 126
    %v2240 = vpop.permute.xlu0 %2239
    %2241 = vrot.lane.b32.xlu0 %v2198, 126
    %v2242 = vpop.permute.xlu0 %2241
    %2243 = vrot.lane.b32.xlu0 %v2199, 126
    %v2244 = vpop.permute.xlu0 %2243
    %2245 = vrot.lane.b32.xlu0 %v2200, 126
    %v2246 = vpop.permute.xlu0 %2245
    %2247 = vrot.lane.b32.xlu0 %v2201, 126
    %v2248 = vpop.permute.xlu0 %2247
    %2249 = vrot.lane.b32.xlu0 %v2202, 126
    %v2250 = vpop.permute.xlu0 %2249
    %v2251 = vsel %vm193, %v2220, %v2222
    %v2252 = vsel %vm193, %v2222, %v2224
    %v2253 = vsel %vm193, %v2224, %v2226
    %v2254 = vsel %vm193, %v2226, %v2228
    %v2255 = vsel %vm193, %v2228, %v2230
    %v2256 = vsel %vm193, %v2230, %v2232
    %v2257 = vsel %vm193, %v2232, %v2234
    %v2258 = vsel %vm193, %v2236, %v2238
    %v2259 = vsel %vm193, %v2238, %v2240
    %v2260 = vsel %vm193, %v2240, %v2242
    %v2261 = vsel %vm193, %v2242, %v2244
    %v2262 = vsel %vm193, %v2244, %v2246
    %v2263 = vsel %vm193, %v2246, %v2248
    %v2264 = vsel %vm193, %v2248, %v2250
    %2279 = vst [vmem:[#allocation3 + $0xc0] sm:$0xff] %v2251
    %2280 = vst [vmem:[#allocation3 + $0xc8] sm:$0xff] %v2252
    %2281 = vst [vmem:[#allocation3 + $0xd0] sm:$0xff] %v2253
    %2282 = vst [vmem:[#allocation3 + $0xd8] sm:$0xff] %v2254
    %2283 = vst [vmem:[#allocation3 + $0xe0] sm:$0xff] %v2255
    %2284 = vst [vmem:[#allocation3 + $0xe8] sm:$0xff] %v2256
    %2285 = vst [vmem:[#allocation3 + $0xf0] sm:$0xff] %v2257
    %2286 = vst [vmem:[#allocation3 + $0x100] sm:$0xf] %v2258
    %2287 = vst [vmem:[#allocation3 + $0x108] sm:$0xf] %v2259
    %2288 = vst [vmem:[#allocation3 + $0x110] sm:$0xf] %v2260
    %2289 = vst [vmem:[#allocation3 + $0x118] sm:$0xf] %v2261
    %2290 = vst [vmem:[#allocation3 + $0x120] sm:$0xf] %v2262
    %2291 = vst [vmem:[#allocation3 + $0x128] sm:$0xf] %v2263
    %2292 = vst [vmem:[#allocation3 + $0x130] sm:$0xf] %v2264
    %v2293 = vld [vmem:[#allocation2] sm:$0xff]
    %v2294 = vld [vmem:[#allocation2 + $0x8] sm:$0xff]
    %v2295 = vld [vmem:[#allocation2 + $0x10] sm:$0xff]
    %v2296 = vld [vmem:[#allocation2 + $0x18] sm:$0xff]
    %v2297 = vld [vmem:[#allocation2 + $0x20] sm:$0xff]
    %v2298 = vld [vmem:[#allocation2 + $0x28] sm:$0xff]
    %v2299 = vld [vmem:[#allocation2 + $0x30] sm:$0xff]
    %v2300 = vld [vmem:[#allocation2 + $0x38] sm:$0xff]
    %v2301 = vld [vmem:[#allocation2 + $0x40] sm:$0xf]
    %v2302 = vld [vmem:[#allocation2 + $0x48] sm:$0xf]
    %v2303 = vld [vmem:[#allocation2 + $0x50] sm:$0xf]
    %v2304 = vld [vmem:[#allocation2 + $0x58] sm:$0xf]
    %v2305 = vld [vmem:[#allocation2 + $0x60] sm:$0xf]
    %v2306 = vld [vmem:[#allocation2 + $0x68] sm:$0xf]
    %v2307 = vld [vmem:[#allocation2 + $0x70] sm:$0xf]
    %v2308 = vld [vmem:[#allocation2 + $0x78] sm:$0xf]
    %v2325 = vrot.slane %v2293, 4
    %v2326 = vrot.slane %v2294, 4
    %v2327 = vrot.slane %v2295, 4
    %v2328 = vrot.slane %v2296, 4
    %v2329 = vrot.slane %v2297, 4
    %v2330 = vrot.slane %v2298, 4
    %v2331 = vrot.slane %v2299, 4
    %v2332 = vrot.slane %v2300, 4
    %v2333 = vrot.slane %v2301, 4
    %v2334 = vsel %vm1593, %v2325, %v2333
    %v2335 = vrot.slane %v2302, 4
    %v2336 = vsel %vm1593, %v2326, %v2335
    %v2337 = vrot.slane %v2303, 4
    %v2338 = vsel %vm1593, %v2327, %v2337
    %v2339 = vrot.slane %v2304, 4
    %v2340 = vsel %vm1593, %v2328, %v2339
    %v2341 = vrot.slane %v2305, 4
    %v2342 = vsel %vm1593, %v2329, %v2341
    %v2343 = vrot.slane %v2306, 4
    %v2344 = vsel %vm1593, %v2330, %v2343
    %v2345 = vrot.slane %v2307, 4
    %v2346 = vsel %vm1593, %v2331, %v2345
    %v2347 = vrot.slane %v2308, 4
    %v2348 = vsel %vm1593, %v2332, %v2347
    %2349 = vrot.lane.b32.xlu0 %v2325, 125
    %v2350 = vpop.permute.xlu0 %2349
    %2351 = vrot.lane.b32.xlu0 %v2326, 125
    %v2352 = vpop.permute.xlu0 %2351
    %2353 = vrot.lane.b32.xlu0 %v2327, 125
    %v2354 = vpop.permute.xlu0 %2353
    %2355 = vrot.lane.b32.xlu0 %v2328, 125
    %v2356 = vpop.permute.xlu0 %2355
    %2357 = vrot.lane.b32.xlu0 %v2329, 125
    %v2358 = vpop.permute.xlu0 %2357
    %2359 = vrot.lane.b32.xlu0 %v2330, 125
    %v2360 = vpop.permute.xlu0 %2359
    %2361 = vrot.lane.b32.xlu0 %v2331, 125
    %v2362 = vpop.permute.xlu0 %2361
    %2363 = vrot.lane.b32.xlu0 %v2332, 125
    %v2364 = vpop.permute.xlu0 %2363
    %2365 = vrot.lane.b32.xlu0 %v2334, 125
    %v2366 = vpop.permute.xlu0 %2365
    %2367 = vrot.lane.b32.xlu0 %v2336, 125
    %v2368 = vpop.permute.xlu0 %2367
    %2369 = vrot.lane.b32.xlu0 %v2338, 125
    %v2370 = vpop.permute.xlu0 %2369
    %2371 = vrot.lane.b32.xlu0 %v2340, 125
    %v2372 = vpop.permute.xlu0 %2371
    %2373 = vrot.lane.b32.xlu0 %v2342, 125
    %v2374 = vpop.permute.xlu0 %2373
    %2375 = vrot.lane.b32.xlu0 %v2344, 125
    %v2376 = vpop.permute.xlu0 %2375
    %2377 = vrot.lane.b32.xlu0 %v2346, 125
    %v2378 = vpop.permute.xlu0 %2377
    %2379 = vrot.lane.b32.xlu0 %v2348, 125
    %v2380 = vpop.permute.xlu0 %2379
    %v2381 = vsel %vm255, %v2350, %v2352
    %v2382 = vsel %vm255, %v2352, %v2354
    %v2383 = vsel %vm255, %v2354, %v2356
    %v2384 = vsel %vm255, %v2356, %v2358
    %v2385 = vsel %vm255, %v2358, %v2360
    %v2386 = vsel %vm255, %v2360, %v2362
    %v2387 = vsel %vm255, %v2362, %v2364
    %v2388 = vsel %vm255, %v2366, %v2368
    %v2389 = vsel %vm255, %v2368, %v2370
    %v2390 = vsel %vm255, %v2370, %v2372
    %v2391 = vsel %vm255, %v2372, %v2374
    %v2392 = vsel %vm255, %v2374, %v2376
    %v2393 = vsel %vm255, %v2376, %v2378
    %v2394 = vsel %vm255, %v2378, %v2380
    %2409 = vst [vmem:[#allocation3 + $0x100] sm:$0xf0] %v2381
    %2410 = vst [vmem:[#allocation3 + $0x108] sm:$0xf0] %v2382
    %2411 = vst [vmem:[#allocation3 + $0x110] sm:$0xf0] %v2383
    %2412 = vst [vmem:[#allocation3 + $0x118] sm:$0xf0] %v2384
    %2413 = vst [vmem:[#allocation3 + $0x120] sm:$0xf0] %v2385
    %2414 = vst [vmem:[#allocation3 + $0x128] sm:$0xf0] %v2386
    %2415 = vst [vmem:[#allocation3 + $0x130] sm:$0xf0] %v2387
    %2416 = vst [vmem:[#allocation3 + $0x140] sm:$0xff] %v2388
    %2417 = vst [vmem:[#allocation3 + $0x148] sm:$0xff] %v2389
    %2418 = vst [vmem:[#allocation3 + $0x150] sm:$0xff] %v2390
    %2419 = vst [vmem:[#allocation3 + $0x158] sm:$0xff] %v2391
    %2420 = vst [vmem:[#allocation3 + $0x160] sm:$0xff] %v2392
    %2421 = vst [vmem:[#allocation3 + $0x168] sm:$0xff] %v2393
    %2422 = vst [vmem:[#allocation3 + $0x170] sm:$0xff] %v2394
    %v2423 = vld [vmem:[#allocation2] sm:$0xff]
    %v2424 = vld [vmem:[#allocation2 + $0x8] sm:$0xff]
    %v2425 = vld [vmem:[#allocation2 + $0x10] sm:$0xff]
    %v2426 = vld [vmem:[#allocation2 + $0x18] sm:$0xff]
    %v2427 = vld [vmem:[#allocation2 + $0x20] sm:$0xff]
    %v2428 = vld [vmem:[#allocation2 + $0x28] sm:$0xff]
    %v2429 = vld [vmem:[#allocation2 + $0x30] sm:$0xff]
    %v2430 = vld [vmem:[#allocation2 + $0x38] sm:$0xff]
    %v2431 = vld [vmem:[#allocation2 + $0x40] sm:$0xf]
    %v2432 = vld [vmem:[#allocation2 + $0x48] sm:$0xf]
    %v2433 = vld [vmem:[#allocation2 + $0x50] sm:$0xf]
    %v2434 = vld [vmem:[#allocation2 + $0x58] sm:$0xf]
    %v2435 = vld [vmem:[#allocation2 + $0x60] sm:$0xf]
    %v2436 = vld [vmem:[#allocation2 + $0x68] sm:$0xf]
    %v2437 = vld [vmem:[#allocation2 + $0x70] sm:$0xf]
    %v2438 = vld [vmem:[#allocation2 + $0x78] sm:$0xf]
    %2455 = vrot.lane.b32.xlu0 %v2423, 124
    %v2456 = vpop.permute.xlu0 %2455
    %2457 = vrot.lane.b32.xlu0 %v2424, 124
    %v2458 = vpop.permute.xlu0 %2457
    %2459 = vrot.lane.b32.xlu0 %v2425, 124
    %v2460 = vpop.permute.xlu0 %2459
    %2461 = vrot.lane.b32.xlu0 %v2426, 124
    %v2462 = vpop.permute.xlu0 %2461
    %2463 = vrot.lane.b32.xlu0 %v2427, 124
    %v2464 = vpop.permute.xlu0 %2463
    %2465 = vrot.lane.b32.xlu0 %v2428, 124
    %v2466 = vpop.permute.xlu0 %2465
    %2467 = vrot.lane.b32.xlu0 %v2429, 124
    %v2468 = vpop.permute.xlu0 %2467
    %2469 = vrot.lane.b32.xlu0 %v2430, 124
    %v2470 = vpop.permute.xlu0 %2469
    %2471 = vrot.lane.b32.xlu0 %v2431, 124
    %v2472 = vpop.permute.xlu0 %2471
    %2473 = vrot.lane.b32.xlu0 %v2432, 124
    %v2474 = vpop.permute.xlu0 %2473
    %2475 = vrot.lane.b32.xlu0 %v2433, 124
    %v2476 = vpop.permute.xlu0 %2475
    %2477 = vrot.lane.b32.xlu0 %v2434, 124
    %v2478 = vpop.permute.xlu0 %2477
    %2479 = vrot.lane.b32.xlu0 %v2435, 124
    %v2480 = vpop.permute.xlu0 %2479
    %2481 = vrot.lane.b32.xlu0 %v2436, 124
    %v2482 = vpop.permute.xlu0 %2481
    %2483 = vrot.lane.b32.xlu0 %v2437, 124
    %v2484 = vpop.permute.xlu0 %2483
    %2485 = vrot.lane.b32.xlu0 %v2438, 124
    %v2486 = vpop.permute.xlu0 %2485
    %v2487 = vsel %vm309, %v2456, %v2458
    %v2488 = vsel %vm309, %v2458, %v2460
    %v2489 = vsel %vm309, %v2460, %v2462
    %v2490 = vsel %vm309, %v2462, %v2464
    %v2491 = vsel %vm309, %v2464, %v2466
    %v2492 = vsel %vm309, %v2466, %v2468
    %v2493 = vsel %vm309, %v2468, %v2470
    %v2494 = vsel %vm309, %v2472, %v2474
    %v2495 = vsel %vm309, %v2474, %v2476
    %v2496 = vsel %vm309, %v2476, %v2478
    %v2497 = vsel %vm309, %v2478, %v2480
    %v2498 = vsel %vm309, %v2480, %v2482
    %v2499 = vsel %vm309, %v2482, %v2484
    %v2500 = vsel %vm309, %v2484, %v2486
    %2515 = vst [vmem:[#allocation3 + $0x180] sm:$0xff] %v2487
    %2516 = vst [vmem:[#allocation3 + $0x188] sm:$0xff] %v2488
    %2517 = vst [vmem:[#allocation3 + $0x190] sm:$0xff] %v2489
    %2518 = vst [vmem:[#allocation3 + $0x198] sm:$0xff] %v2490
    %2519 = vst [vmem:[#allocation3 + $0x1a0] sm:$0xff] %v2491
    %2520 = vst [vmem:[#allocation3 + $0x1a8] sm:$0xff] %v2492
    %2521 = vst [vmem:[#allocation3 + $0x1b0] sm:$0xff] %v2493
    %2522 = vst [vmem:[#allocation3 + $0x1c0] sm:$0xf] %v2494
    %2523 = vst [vmem:[#allocation3 + $0x1c8] sm:$0xf] %v2495
    %2524 = vst [vmem:[#allocation3 + $0x1d0] sm:$0xf] %v2496
    %2525 = vst [vmem:[#allocation3 + $0x1d8] sm:$0xf] %v2497
    %2526 = vst [vmem:[#allocation3 + $0x1e0] sm:$0xf] %v2498
    %2527 = vst [vmem:[#allocation3 + $0x1e8] sm:$0xf] %v2499
    %2528 = vst [vmem:[#allocation3 + $0x1f0] sm:$0xf] %v2500
    %v2529 = vld [vmem:[#allocation2] sm:$0xff]
    %v2530 = vld [vmem:[#allocation2 + $0x8] sm:$0xff]
    %v2531 = vld [vmem:[#allocation2 + $0x10] sm:$0xff]
    %v2532 = vld [vmem:[#allocation2 + $0x18] sm:$0xff]
    %v2533 = vld [vmem:[#allocation2 + $0x20] sm:$0xff]
    %v2534 = vld [vmem:[#allocation2 + $0x28] sm:$0xff]
    %v2535 = vld [vmem:[#allocation2 + $0x30] sm:$0xff]
    %v2536 = vld [vmem:[#allocation2 + $0x38] sm:$0xff]
    %v2537 = vld [vmem:[#allocation2 + $0x40] sm:$0xf]
    %v2538 = vld [vmem:[#allocation2 + $0x48] sm:$0xf]
    %v2539 = vld [vmem:[#allocation2 + $0x50] sm:$0xf]
    %v2540 = vld [vmem:[#allocation2 + $0x58] sm:$0xf]
    %v2541 = vld [vmem:[#allocation2 + $0x60] sm:$0xf]
    %v2542 = vld [vmem:[#allocation2 + $0x68] sm:$0xf]
    %v2543 = vld [vmem:[#allocation2 + $0x70] sm:$0xf]
    %v2544 = vld [vmem:[#allocation2 + $0x78] sm:$0xf]
    %v2561 = vrot.slane %v2529, 4
    %v2562 = vrot.slane %v2530, 4
    %v2563 = vrot.slane %v2531, 4
    %v2564 = vrot.slane %v2532, 4
    %v2565 = vrot.slane %v2533, 4
    %v2566 = vrot.slane %v2534, 4
    %v2567 = vrot.slane %v2535, 4
    %v2568 = vrot.slane %v2536, 4
    %v2569 = vrot.slane %v2537, 4
    %v2570 = vsel %vm1593, %v2561, %v2569
    %v2571 = vrot.slane %v2538, 4
    %v2572 = vsel %vm1593, %v2562, %v2571
    %v2573 = vrot.slane %v2539, 4
    %v2574 = vsel %vm1593, %v2563, %v2573
    %v2575 = vrot.slane %v2540, 4
    %v2576 = vsel %vm1593, %v2564, %v2575
    %v2577 = vrot.slane %v2541, 4
    %v2578 = vsel %vm1593, %v2565, %v2577
    %v2579 = vrot.slane %v2542, 4
    %v2580 = vsel %vm1593, %v2566, %v2579
    %v2581 = vrot.slane %v2543, 4
    %v2582 = vsel %vm1593, %v2567, %v2581
    %v2583 = vrot.slane %v2544, 4
    %v2584 = vsel %vm1593, %v2568, %v2583
    %2585 = vrot.lane.b32.xlu0 %v2561, 108
    %v2586 = vpop.permute.xlu0 %2585
    %2587 = vrot.lane.b32.xlu0 %v2562, 108
    %v2588 = vpop.permute.xlu0 %2587
    %2589 = vrot.lane.b32.xlu0 %v2563, 108
    %v2590 = vpop.permute.xlu0 %2589
    %2591 = vrot.lane.b32.xlu0 %v2564, 108
    %v2592 = vpop.permute.xlu0 %2591
    %2593 = vrot.lane.b32.xlu0 %v2565, 108
    %v2594 = vpop.permute.xlu0 %2593
    %2595 = vrot.lane.b32.xlu0 %v2566, 108
    %v2596 = vpop.permute.xlu0 %2595
    %2597 = vrot.lane.b32.xlu0 %v2567, 108
    %v2598 = vpop.permute.xlu0 %2597
    %2599 = vrot.lane.b32.xlu0 %v2568, 108
    %v2600 = vpop.permute.xlu0 %2599
    %2601 = vrot.lane.b32.xlu0 %v2570, 108
    %v2602 = vpop.permute.xlu0 %2601
    %2603 = vrot.lane.b32.xlu0 %v2572, 108
    %v2604 = vpop.permute.xlu0 %2603
    %2605 = vrot.lane.b32.xlu0 %v2574, 108
    %v2606 = vpop.permute.xlu0 %2605
    %2607 = vrot.lane.b32.xlu0 %v2576, 108
    %v2608 = vpop.permute.xlu0 %2607
    %2609 = vrot.lane.b32.xlu0 %v2578, 108
    %v2610 = vpop.permute.xlu0 %2609
    %2611 = vrot.lane.b32.xlu0 %v2580, 108
    %v2612 = vpop.permute.xlu0 %2611
    %2613 = vrot.lane.b32.xlu0 %v2582, 108
    %v2614 = vpop.permute.xlu0 %2613
    %2615 = vrot.lane.b32.xlu0 %v2584, 108
    %v2616 = vpop.permute.xlu0 %2615
    %v2617 = vsel %vm371, %v2586, %v2588
    %v2618 = vsel %vm371, %v2588, %v2590
    %v2619 = vsel %vm371, %v2590, %v2592
    %v2620 = vsel %vm371, %v2592, %v2594
    %v2621 = vsel %vm371, %v2594, %v2596
    %v2622 = vsel %vm371, %v2596, %v2598
    %v2623 = vsel %vm371, %v2598, %v2600
    %v2624 = vsel %vm371, %v2602, %v2604
    %v2625 = vsel %vm371, %v2604, %v2606
    %v2626 = vsel %vm371, %v2606, %v2608
    %v2627 = vsel %vm371, %v2608, %v2610
    %v2628 = vsel %vm371, %v2610, %v2612
    %v2629 = vsel %vm371, %v2612, %v2614
    %v2630 = vsel %vm371, %v2614, %v2616
    %2645 = vst [vmem:[#allocation3 + $0x1c0] sm:$0xf0] %v2617
    %2646 = vst [vmem:[#allocation3 + $0x1c8] sm:$0xf0] %v2618
    %2647 = vst [vmem:[#allocation3 + $0x1d0] sm:$0xf0] %v2619
    %2648 = vst [vmem:[#allocation3 + $0x1d8] sm:$0xf0] %v2620
    %2649 = vst [vmem:[#allocation3 + $0x1e0] sm:$0xf0] %v2621
    %2650 = vst [vmem:[#allocation3 + $0x1e8] sm:$0xf0] %v2622
    %2651 = vst [vmem:[#allocation3 + $0x1f0] sm:$0xf0] %v2623
    %2652 = vst [vmem:[#allocation3 + $0x200] sm:$0xff] %v2624
    %2653 = vst [vmem:[#allocation3 + $0x208] sm:$0xff] %v2625
    %2654 = vst [vmem:[#allocation3 + $0x210] sm:$0xff] %v2626
    %2655 = vst [vmem:[#allocation3 + $0x218] sm:$0xff] %v2627
    %2656 = vst [vmem:[#allocation3 + $0x220] sm:$0xff] %v2628
    %2657 = vst [vmem:[#allocation3 + $0x228] sm:$0xff] %v2629
    %2658 = vst [vmem:[#allocation3 + $0x230] sm:$0xff] %v2630
    %v2659 = vld [vmem:[#allocation2] sm:$0xff]
    %v2660 = vld [vmem:[#allocation2 + $0x8] sm:$0xff]
    %v2661 = vld [vmem:[#allocation2 + $0x10] sm:$0xff]
    %v2662 = vld [vmem:[#allocation2 + $0x18] sm:$0xff]
    %v2663 = vld [vmem:[#allocation2 + $0x20] sm:$0xff]
    %v2664 = vld [vmem:[#allocation2 + $0x28] sm:$0xff]
    %v2665 = vld [vmem:[#allocation2 + $0x30] sm:$0xff]
    %v2666 = vld [vmem:[#allocation2 + $0x38] sm:$0xff]
    %v2667 = vld [vmem:[#allocation2 + $0x40] sm:$0xf]
    %v2668 = vld [vmem:[#allocation2 + $0x48] sm:$0xf]
    %v2669 = vld [vmem:[#allocation2 + $0x50] sm:$0xf]
    %v2670 = vld [vmem:[#allocation2 + $0x58] sm:$0xf]
    %v2671 = vld [vmem:[#allocation2 + $0x60] sm:$0xf]
    %v2672 = vld [vmem:[#allocation2 + $0x68] sm:$0xf]
    %v2673 = vld [vmem:[#allocation2 + $0x70] sm:$0xf]
    %v2674 = vld [vmem:[#allocation2 + $0x78] sm:$0xf]
    %2691 = vrot.lane.b32.xlu0 %v2659, 107
    %v2692 = vpop.permute.xlu0 %2691
    %2693 = vrot.lane.b32.xlu0 %v2660, 107
    %v2694 = vpop.permute.xlu0 %2693
    %2695 = vrot.lane.b32.xlu0 %v2661, 107
    %v2696 = vpop.permute.xlu0 %2695
    %2697 = vrot.lane.b32.xlu0 %v2662, 107
    %v2698 = vpop.permute.xlu0 %2697
    %2699 = vrot.lane.b32.xlu0 %v2663, 107
    %v2700 = vpop.permute.xlu0 %2699
    %2701 = vrot.lane.b32.xlu0 %v2664, 107
    %v2702 = vpop.permute.xlu0 %2701
    %2703 = vrot.lane.b32.xlu0 %v2665, 107
    %v2704 = vpop.permute.xlu0 %2703
    %2705 = vrot.lane.b32.xlu0 %v2666, 107
    %v2706 = vpop.permute.xlu0 %2705
    %2707 = vrot.lane.b32.xlu0 %v2667, 107
    %v2708 = vpop.permute.xlu0 %2707
    %2709 = vrot.lane.b32.xlu0 %v2668, 107
    %v2710 = vpop.permute.xlu0 %2709
    %2711 = vrot.lane.b32.xlu0 %v2669, 107
    %v2712 = vpop.permute.xlu0 %2711
    %2713 = vrot.lane.b32.xlu0 %v2670, 107
    %v2714 = vpop.permute.xlu0 %2713
    %2715 = vrot.lane.b32.xlu0 %v2671, 107
    %v2716 = vpop.permute.xlu0 %2715
    %2717 = vrot.lane.b32.xlu0 %v2672, 107
    %v2718 = vpop.permute.xlu0 %2717
    %2719 = vrot.lane.b32.xlu0 %v2673, 107
    %v2720 = vpop.permute.xlu0 %2719
    %2721 = vrot.lane.b32.xlu0 %v2674, 107
    %v2722 = vpop.permute.xlu0 %2721
    %v2723 = vsel %vm425, %v2692, %v2694
    %v2724 = vsel %vm425, %v2694, %v2696
    %v2725 = vsel %vm425, %v2696, %v2698
    %v2726 = vsel %vm425, %v2698, %v2700
    %v2727 = vsel %vm425, %v2700, %v2702
    %v2728 = vsel %vm425, %v2702, %v2704
    %v2729 = vsel %vm425, %v2704, %v2706
    %v2730 = vsel %vm425, %v2708, %v2710
    %v2731 = vsel %vm425, %v2710, %v2712
    %v2732 = vsel %vm425, %v2712, %v2714
    %v2733 = vsel %vm425, %v2714, %v2716
    %v2734 = vsel %vm425, %v2716, %v2718
    %v2735 = vsel %vm425, %v2718, %v2720
    %v2736 = vsel %vm425, %v2720, %v2722
    %2751 = vst [vmem:[#allocation3 + $0x240] sm:$0xff] %v2723
    %2752 = vst [vmem:[#allocation3 + $0x248] sm:$0xff] %v2724
    %2753 = vst [vmem:[#allocation3 + $0x250] sm:$0xff] %v2725
    %2754 = vst [vmem:[#allocation3 + $0x258] sm:$0xff] %v2726
    %2755 = vst [vmem:[#allocation3 + $0x260] sm:$0xff] %v2727
    %2756 = vst [vmem:[#allocation3 + $0x268] sm:$0xff] %v2728
    %2757 = vst [vmem:[#allocation3 + $0x270] sm:$0xff] %v2729
    %2758 = vst [vmem:[#allocation3 + $0x280] sm:$0xf] %v2730
    %2759 = vst [vmem:[#allocation3 + $0x288] sm:$0xf] %v2731
    %2760 = vst [vmem:[#allocation3 + $0x290] sm:$0xf] %v2732
    %2761 = vst [vmem:[#allocation3 + $0x298] sm:$0xf] %v2733
    %2762 = vst [vmem:[#allocation3 + $0x2a0] sm:$0xf] %v2734
    %2763 = vst [vmem:[#allocation3 + $0x2a8] sm:$0xf] %v2735
    %2764 = vst [vmem:[#allocation3 + $0x2b0] sm:$0xf] %v2736
    %v2765 = vld [vmem:[#allocation2] sm:$0xff]
    %v2766 = vld [vmem:[#allocation2 + $0x8] sm:$0xff]
    %v2767 = vld [vmem:[#allocation2 + $0x10] sm:$0xff]
    %v2768 = vld [vmem:[#allocation2 + $0x18] sm:$0xff]
    %v2769 = vld [vmem:[#allocation2 + $0x20] sm:$0xff]
    %v2770 = vld [vmem:[#allocation2 + $0x28] sm:$0xff]
    %v2771 = vld [vmem:[#allocation2 + $0x30] sm:$0xff]
    %v2772 = vld [vmem:[#allocation2 + $0x38] sm:$0xff]
    %v2773 = vld [vmem:[#allocation2 + $0x40] sm:$0xf]
    %v2774 = vld [vmem:[#allocation2 + $0x48] sm:$0xf]
    %v2775 = vld [vmem:[#allocation2 + $0x50] sm:$0xf]
    %v2776 = vld [vmem:[#allocation2 + $0x58] sm:$0xf]
    %v2777 = vld [vmem:[#allocation2 + $0x60] sm:$0xf]
    %v2778 = vld [vmem:[#allocation2 + $0x68] sm:$0xf]
    %v2779 = vld [vmem:[#allocation2 + $0x70] sm:$0xf]
    %v2780 = vld [vmem:[#allocation2 + $0x78] sm:$0xf]
    %v2797 = vrot.slane %v2765, 4
    %v2798 = vrot.slane %v2766, 4
    %v2799 = vrot.slane %v2767, 4
    %v2800 = vrot.slane %v2768, 4
    %v2801 = vrot.slane %v2769, 4
    %v2802 = vrot.slane %v2770, 4
    %v2803 = vrot.slane %v2771, 4
    %v2804 = vrot.slane %v2772, 4
    %v2805 = vrot.slane %v2773, 4
    %v2806 = vsel %vm1593, %v2797, %v2805
    %v2807 = vrot.slane %v2774, 4
    %v2808 = vsel %vm1593, %v2798, %v2807
    %v2809 = vrot.slane %v2775, 4
    %v2810 = vsel %vm1593, %v2799, %v2809
    %v2811 = vrot.slane %v2776, 4
    %v2812 = vsel %vm1593, %v2800, %v2811
    %v2813 = vrot.slane %v2777, 4
    %v2814 = vsel %vm1593, %v2801, %v2813
    %v2815 = vrot.slane %v2778, 4
    %v2816 = vsel %vm1593, %v2802, %v2815
    %v2817 = vrot.slane %v2779, 4
    %v2818 = vsel %vm1593, %v2803, %v2817
    %v2819 = vrot.slane %v2780, 4
    %v2820 = vsel %vm1593, %v2804, %v2819
    %2821 = vrot.lane.b32.xlu0 %v2797, 106
    %v2822 = vpop.permute.xlu0 %2821
    %2823 = vrot.lane.b32.xlu0 %v2798, 106
    %v2824 = vpop.permute.xlu0 %2823
    %2825 = vrot.lane.b32.xlu0 %v2799, 106
    %v2826 = vpop.permute.xlu0 %2825
    %2827 = vrot.lane.b32.xlu0 %v2800, 106
    %v2828 = vpop.permute.xlu0 %2827
    %2829 = vrot.lane.b32.xlu0 %v2801, 106
    %v2830 = vpop.permute.xlu0 %2829
    %2831 = vrot.lane.b32.xlu0 %v2802, 106
    %v2832 = vpop.permute.xlu0 %2831
    %2833 = vrot.lane.b32.xlu0 %v2803, 106
    %v2834 = vpop.permute.xlu0 %2833
    %2835 = vrot.lane.b32.xlu0 %v2804, 106
    %v2836 = vpop.permute.xlu0 %2835
    %2837 = vrot.lane.b32.xlu0 %v2806, 106
    %v2838 = vpop.permute.xlu0 %2837
    %2839 = vrot.lane.b32.xlu0 %v2808, 106
    %v2840 = vpop.permute.xlu0 %2839
    %2841 = vrot.lane.b32.xlu0 %v2810, 106
    %v2842 = vpop.permute.xlu0 %2841
    %2843 = vrot.lane.b32.xlu0 %v2812, 106
    %v2844 = vpop.permute.xlu0 %2843
    %2845 = vrot.lane.b32.xlu0 %v2814, 106
    %v2846 = vpop.permute.xlu0 %2845
    %2847 = vrot.lane.b32.xlu0 %v2816, 106
    %v2848 = vpop.permute.xlu0 %2847
    %2849 = vrot.lane.b32.xlu0 %v2818, 106
    %v2850 = vpop.permute.xlu0 %2849
    %2851 = vrot.lane.b32.xlu0 %v2820, 106
    %v2852 = vpop.permute.xlu0 %2851
    %v2853 = vsel %vm487, %v2822, %v2824
    %v2854 = vsel %vm487, %v2824, %v2826
    %v2855 = vsel %vm487, %v2826, %v2828
    %v2856 = vsel %vm487, %v2828, %v2830
    %v2857 = vsel %vm487, %v2830, %v2832
    %v2858 = vsel %vm487, %v2832, %v2834
    %v2859 = vsel %vm487, %v2834, %v2836
    %v2860 = vsel %vm487, %v2838, %v2840
    %v2861 = vsel %vm487, %v2840, %v2842
    %v2862 = vsel %vm487, %v2842, %v2844
    %v2863 = vsel %vm487, %v2844, %v2846
    %v2864 = vsel %vm487, %v2846, %v2848
    %v2865 = vsel %vm487, %v2848, %v2850
    %v2866 = vsel %vm487, %v2850, %v2852
    %2881 = vst [vmem:[#allocation3 + $0x280] sm:$0xf0] %v2853
    %2882 = vst [vmem:[#allocation3 + $0x288] sm:$0xf0] %v2854
    %2883 = vst [vmem:[#allocation3 + $0x290] sm:$0xf0] %v2855
    %2884 = vst [vmem:[#allocation3 + $0x298] sm:$0xf0] %v2856
    %2885 = vst [vmem:[#allocation3 + $0x2a0] sm:$0xf0] %v2857
    %2886 = vst [vmem:[#allocation3 + $0x2a8] sm:$0xf0] %v2858
    %2887 = vst [vmem:[#allocation3 + $0x2b0] sm:$0xf0] %v2859
    %2888 = vst [vmem:[#allocation3 + $0x2c0] sm:$0xff] %v2860
    %2889 = vst [vmem:[#allocation3 + $0x2c8] sm:$0xff] %v2861
    %2890 = vst [vmem:[#allocation3 + $0x2d0] sm:$0xff] %v2862
    %2891 = vst [vmem:[#allocation3 + $0x2d8] sm:$0xff] %v2863
    %2892 = vst [vmem:[#allocation3 + $0x2e0] sm:$0xff] %v2864
    %2893 = vst [vmem:[#allocation3 + $0x2e8] sm:$0xff] %v2865
    %2894 = vst [vmem:[#allocation3 + $0x2f0] sm:$0xff] %v2866
    %v2895 = vld [vmem:[#allocation2] sm:$0xff]
    %v2896 = vld [vmem:[#allocation2 + $0x8] sm:$0xff]
    %v2897 = vld [vmem:[#allocation2 + $0x10] sm:$0xff]
    %v2898 = vld [vmem:[#allocation2 + $0x18] sm:$0xff]
    %v2899 = vld [vmem:[#allocation2 + $0x20] sm:$0xff]
    %v2900 = vld [vmem:[#allocation2 + $0x28] sm:$0xff]
    %v2901 = vld [vmem:[#allocation2 + $0x30] sm:$0xff]
    %v2902 = vld [vmem:[#allocation2 + $0x38] sm:$0xff]
    %v2903 = vld [vmem:[#allocation2 + $0x40] sm:$0xf]
    %v2904 = vld [vmem:[#allocation2 + $0x48] sm:$0xf]
    %v2905 = vld [vmem:[#allocation2 + $0x50] sm:$0xf]
    %v2906 = vld [vmem:[#allocation2 + $0x58] sm:$0xf]
    %v2907 = vld [vmem:[#allocation2 + $0x60] sm:$0xf]
    %v2908 = vld [vmem:[#allocation2 + $0x68] sm:$0xf]
    %v2909 = vld [vmem:[#allocation2 + $0x70] sm:$0xf]
    %v2910 = vld [vmem:[#allocation2 + $0x78] sm:$0xf]
    %2927 = vrot.lane.b32.xlu0 %v2895, 105
    %v2928 = vpop.permute.xlu0 %2927
    %2929 = vrot.lane.b32.xlu0 %v2896, 105
    %v2930 = vpop.permute.xlu0 %2929
    %2931 = vrot.lane.b32.xlu0 %v2897, 105
    %v2932 = vpop.permute.xlu0 %2931
    %2933 = vrot.lane.b32.xlu0 %v2898, 105
    %v2934 = vpop.permute.xlu0 %2933
    %2935 = vrot.lane.b32.xlu0 %v2899, 105
    %v2936 = vpop.permute.xlu0 %2935
    %2937 = vrot.lane.b32.xlu0 %v2900, 105
    %v2938 = vpop.permute.xlu0 %2937
    %2939 = vrot.lane.b32.xlu0 %v2901, 105
    %v2940 = vpop.permute.xlu0 %2939
    %2941 = vrot.lane.b32.xlu0 %v2902, 105
    %v2942 = vpop.permute.xlu0 %2941
    %2943 = vrot.lane.b32.xlu0 %v2903, 105
    %v2944 = vpop.permute.xlu0 %2943
    %2945 = vrot.lane.b32.xlu0 %v2904, 105
    %v2946 = vpop.permute.xlu0 %2945
    %2947 = vrot.lane.b32.xlu0 %v2905, 105
    %v2948 = vpop.permute.xlu0 %2947
    %2949 = vrot.lane.b32.xlu0 %v2906, 105
    %v2950 = vpop.permute.xlu0 %2949
    %2951 = vrot.lane.b32.xlu0 %v2907, 105
    %v2952 = vpop.permute.xlu0 %2951
    %2953 = vrot.lane.b32.xlu0 %v2908, 105
    %v2954 = vpop.permute.xlu0 %2953
    %2955 = vrot.lane.b32.xlu0 %v2909, 105
    %v2956 = vpop.permute.xlu0 %2955
    %2957 = vrot.lane.b32.xlu0 %v2910, 105
    %v2958 = vpop.permute.xlu0 %2957
    %v2959 = vsel %vm541, %v2928, %v2930
    %v2960 = vsel %vm541, %v2930, %v2932
    %v2961 = vsel %vm541, %v2932, %v2934
    %v2962 = vsel %vm541, %v2934, %v2936
    %v2963 = vsel %vm541, %v2936, %v2938
    %v2964 = vsel %vm541, %v2938, %v2940
    %v2965 = vsel %vm541, %v2940, %v2942
    %v2966 = vsel %vm541, %v2944, %v2946
    %v2967 = vsel %vm541, %v2946, %v2948
    %v2968 = vsel %vm541, %v2948, %v2950
    %v2969 = vsel %vm541, %v2950, %v2952
    %v2970 = vsel %vm541, %v2952, %v2954
    %v2971 = vsel %vm541, %v2954, %v2956
    %v2972 = vsel %vm541, %v2956, %v2958
    %2987 = vst [vmem:[#allocation3 + $0x300] sm:$0xff] %v2959
    %2988 = vst [vmem:[#allocation3 + $0x308] sm:$0xff] %v2960
    %2989 = vst [vmem:[#allocation3 + $0x310] sm:$0xff] %v2961
    %2990 = vst [vmem:[#allocation3 + $0x318] sm:$0xff] %v2962
    %2991 = vst [vmem:[#allocation3 + $0x320] sm:$0xff] %v2963
    %2992 = vst [vmem:[#allocation3 + $0x328] sm:$0xff] %v2964
    %2993 = vst [vmem:[#allocation3 + $0x330] sm:$0xff] %v2965
    %2994 = vst [vmem:[#allocation3 + $0x340] sm:$0xf] %v2966
    %2995 = vst [vmem:[#allocation3 + $0x348] sm:$0xf] %v2967
    %2996 = vst [vmem:[#allocation3 + $0x350] sm:$0xf] %v2968
    %2997 = vst [vmem:[#allocation3 + $0x358] sm:$0xf] %v2969
    %2998 = vst [vmem:[#allocation3 + $0x360] sm:$0xf] %v2970
    %2999 = vst [vmem:[#allocation3 + $0x368] sm:$0xf] %v2971
    %3000 = vst [vmem:[#allocation3 + $0x370] sm:$0xf] %v2972
    %v3001 = vld [vmem:[#allocation2] sm:$0xff]
    %v3002 = vld [vmem:[#allocation2 + $0x8] sm:$0xff]
    %v3003 = vld [vmem:[#allocation2 + $0x10] sm:$0xff]
    %v3004 = vld [vmem:[#allocation2 + $0x18] sm:$0xff]
    %v3005 = vld [vmem:[#allocation2 + $0x20] sm:$0xff]
    %v3006 = vld [vmem:[#allocation2 + $0x28] sm:$0xff]
    %v3007 = vld [vmem:[#allocation2 + $0x30] sm:$0xff]
    %v3008 = vld [vmem:[#allocation2 + $0x38] sm:$0xff]
    %v3009 = vld [vmem:[#allocation2 + $0x40] sm:$0xf]
    %v3010 = vld [vmem:[#allocation2 + $0x48] sm:$0xf]
    %v3011 = vld [vmem:[#allocation2 + $0x50] sm:$0xf]
    %v3012 = vld [vmem:[#allocation2 + $0x58] sm:$0xf]
    %v3013 = vld [vmem:[#allocation2 + $0x60] sm:$0xf]
    %v3014 = vld [vmem:[#allocation2 + $0x68] sm:$0xf]
    %v3015 = vld [vmem:[#allocation2 + $0x70] sm:$0xf]
    %v3016 = vld [vmem:[#allocation2 + $0x78] sm:$0xf]
    %v3033 = vrot.slane %v3001, 4
    %v3034 = vrot.slane %v3002, 4
    %v3035 = vrot.slane %v3003, 4
    %v3036 = vrot.slane %v3004, 4
    %v3037 = vrot.slane %v3005, 4
    %v3038 = vrot.slane %v3006, 4
    %v3039 = vrot.slane %v3007, 4
    %v3040 = vrot.slane %v3008, 4
    %v3041 = vrot.slane %v3009, 4
    %v3042 = vsel %vm1593, %v3033, %v3041
    %v3043 = vrot.slane %v3010, 4
    %v3044 = vsel %vm1593, %v3034, %v3043
    %v3045 = vrot.slane %v3011, 4
    %v3046 = vsel %vm1593, %v3035, %v3045
    %v3047 = vrot.slane %v3012, 4
    %v3048 = vsel %vm1593, %v3036, %v3047
    %v3049 = vrot.slane %v3013, 4
    %v3050 = vsel %vm1593, %v3037, %v3049
    %v3051 = vrot.slane %v3014, 4
    %v3052 = vsel %vm1593, %v3038, %v3051
    %v3053 = vrot.slane %v3015, 4
    %v3054 = vsel %vm1593, %v3039, %v3053
    %v3055 = vrot.slane %v3016, 4
    %v3056 = vsel %vm1593, %v3040, %v3055
    %3057 = vrot.lane.b32.xlu0 %v3033, 104
    %v3058 = vpop.permute.xlu0 %3057
    %3059 = vrot.lane.b32.xlu0 %v3034, 104
    %v3060 = vpop.permute.xlu0 %3059
    %3061 = vrot.lane.b32.xlu0 %v3035, 104
    %v3062 = vpop.permute.xlu0 %3061
    %3063 = vrot.lane.b32.xlu0 %v3036, 104
    %v3064 = vpop.permute.xlu0 %3063
    %3065 = vrot.lane.b32.xlu0 %v3037, 104
    %v3066 = vpop.permute.xlu0 %3065
    %3067 = vrot.lane.b32.xlu0 %v3038, 104
    %v3068 = vpop.permute.xlu0 %3067
    %3069 = vrot.lane.b32.xlu0 %v3039, 104
    %v3070 = vpop.permute.xlu0 %3069
    %3071 = vrot.lane.b32.xlu0 %v3040, 104
    %v3072 = vpop.permute.xlu0 %3071
    %3073 = vrot.lane.b32.xlu0 %v3042, 104
    %v3074 = vpop.permute.xlu0 %3073
    %3075 = vrot.lane.b32.xlu0 %v3044, 104
    %v3076 = vpop.permute.xlu0 %3075
    %3077 = vrot.lane.b32.xlu0 %v3046, 104
    %v3078 = vpop.permute.xlu0 %3077
    %3079 = vrot.lane.b32.xlu0 %v3048, 104
    %v3080 = vpop.permute.xlu0 %3079
    %3081 = vrot.lane.b32.xlu0 %v3050, 104
    %v3082 = vpop.permute.xlu0 %3081
    %3083 = vrot.lane.b32.xlu0 %v3052, 104
    %v3084 = vpop.permute.xlu0 %3083
    %3085 = vrot.lane.b32.xlu0 %v3054, 104
    %v3086 = vpop.permute.xlu0 %3085
    %3087 = vrot.lane.b32.xlu0 %v3056, 104
    %v3088 = vpop.permute.xlu0 %3087
    %v3089 = vsel %vm603, %v3058, %v3060
    %v3090 = vsel %vm603, %v3060, %v3062
    %v3091 = vsel %vm603, %v3062, %v3064
    %v3092 = vsel %vm603, %v3064, %v3066
    %v3093 = vsel %vm603, %v3066, %v3068
    %v3094 = vsel %vm603, %v3068, %v3070
    %v3095 = vsel %vm603, %v3070, %v3072
    %v3096 = vsel %vm603, %v3074, %v3076
    %v3097 = vsel %vm603, %v3076, %v3078
    %v3098 = vsel %vm603, %v3078, %v3080
    %v3099 = vsel %vm603, %v3080, %v3082
    %v3100 = vsel %vm603, %v3082, %v3084
    %v3101 = vsel %vm603, %v3084, %v3086
    %v3102 = vsel %vm603, %v3086, %v3088
    %3117 = vst [vmem:[#allocation3 + $0x340] sm:$0xf0] %v3089
    %3118 = vst [vmem:[#allocation3 + $0x348] sm:$0xf0] %v3090
    %3119 = vst [vmem:[#allocation3 + $0x350] sm:$0xf0] %v3091
    %3120 = vst [vmem:[#allocation3 + $0x358] sm:$0xf0] %v3092
    %3121 = vst [vmem:[#allocation3 + $0x360] sm:$0xf0] %v3093
    %3122 = vst [vmem:[#allocation3 + $0x368] sm:$0xf0] %v3094
    %3123 = vst [vmem:[#allocation3 + $0x370] sm:$0xf0] %v3095
    %3124 = vst [vmem:[#allocation3 + $0x380] sm:$0xff] %v3096
    %3125 = vst [vmem:[#allocation3 + $0x388] sm:$0xff] %v3097
    %3126 = vst [vmem:[#allocation3 + $0x390] sm:$0xff] %v3098
    %3127 = vst [vmem:[#allocation3 + $0x398] sm:$0xff] %v3099
    %3128 = vst [vmem:[#allocation3 + $0x3a0] sm:$0xff] %v3100
    %3129 = vst [vmem:[#allocation3 + $0x3a8] sm:$0xff] %v3101
    %3130 = vst [vmem:[#allocation3 + $0x3b0] sm:$0xff] %v3102
    %v3131 = vld [vmem:[#allocation2] sm:$0xff]
    %v3132 = vld [vmem:[#allocation2 + $0x8] sm:$0xff]
    %v3133 = vld [vmem:[#allocation2 + $0x10] sm:$0xff]
    %v3134 = vld [vmem:[#allocation2 + $0x18] sm:$0xff]
    %v3135 = vld [vmem:[#allocation2 + $0x20] sm:$0xff]
    %v3136 = vld [vmem:[#allocation2 + $0x28] sm:$0xff]
    %v3137 = vld [vmem:[#allocation2 + $0x30] sm:$0xff]
    %v3138 = vld [vmem:[#allocation2 + $0x38] sm:$0xff]
    %v3139 = vld [vmem:[#allocation2 + $0x40] sm:$0xf]
    %v3140 = vld [vmem:[#allocation2 + $0x48] sm:$0xf]
    %v3141 = vld [vmem:[#allocation2 + $0x50] sm:$0xf]
    %v3142 = vld [vmem:[#allocation2 + $0x58] sm:$0xf]
    %v3143 = vld [vmem:[#allocation2 + $0x60] sm:$0xf]
    %v3144 = vld [vmem:[#allocation2 + $0x68] sm:$0xf]
    %v3145 = vld [vmem:[#allocation2 + $0x70] sm:$0xf]
    %v3146 = vld [vmem:[#allocation2 + $0x78] sm:$0xf]
    %3163 = vrot.lane.b32.xlu0 %v3131, 88
    %v3164 = vpop.permute.xlu0 %3163
    %3165 = vrot.lane.b32.xlu0 %v3132, 88
    %v3166 = vpop.permute.xlu0 %3165
    %3167 = vrot.lane.b32.xlu0 %v3133, 88
    %v3168 = vpop.permute.xlu0 %3167
    %3169 = vrot.lane.b32.xlu0 %v3134, 88
    %v3170 = vpop.permute.xlu0 %3169
    %3171 = vrot.lane.b32.xlu0 %v3135, 88
    %v3172 = vpop.permute.xlu0 %3171
    %3173 = vrot.lane.b32.xlu0 %v3136, 88
    %v3174 = vpop.permute.xlu0 %3173
    %3175 = vrot.lane.b32.xlu0 %v3137, 88
    %v3176 = vpop.permute.xlu0 %3175
    %3177 = vrot.lane.b32.xlu0 %v3138, 88
    %v3178 = vpop.permute.xlu0 %3177
    %3179 = vrot.lane.b32.xlu0 %v3139, 88
    %v3180 = vpop.permute.xlu0 %3179
    %3181 = vrot.lane.b32.xlu0 %v3140, 88
    %v3182 = vpop.permute.xlu0 %3181
    %3183 = vrot.lane.b32.xlu0 %v3141, 88
    %v3184 = vpop.permute.xlu0 %3183
    %3185 = vrot.lane.b32.xlu0 %v3142, 88
    %v3186 = vpop.permute.xlu0 %3185
    %3187 = vrot.lane.b32.xlu0 %v3143, 88
    %v3188 = vpop.permute.xlu0 %3187
    %3189 = vrot.lane.b32.xlu0 %v3144, 88
    %v3190 = vpop.permute.xlu0 %3189
    %3191 = vrot.lane.b32.xlu0 %v3145, 88
    %v3192 = vpop.permute.xlu0 %3191
    %3193 = vrot.lane.b32.xlu0 %v3146, 88
    %v3194 = vpop.permute.xlu0 %3193
    %v3195 = vsel %vm657, %v3164, %v3166
    %v3196 = vsel %vm657, %v3166, %v3168
    %v3197 = vsel %vm657, %v3168, %v3170
    %v3198 = vsel %vm657, %v3170, %v3172
    %v3199 = vsel %vm657, %v3172, %v3174
    %v3200 = vsel %vm657, %v3174, %v3176
    %v3201 = vsel %vm657, %v3176, %v3178
    %v3202 = vsel %vm657, %v3180, %v3182
    %v3203 = vsel %vm657, %v3182, %v3184
    %v3204 = vsel %vm657, %v3184, %v3186
    %v3205 = vsel %vm657, %v3186, %v3188
    %v3206 = vsel %vm657, %v3188, %v3190
    %v3207 = vsel %vm657, %v3190, %v3192
    %v3208 = vsel %vm657, %v3192, %v3194
    %3223 = vst [vmem:[#allocation3 + $0x3c0] sm:$0xff] %v3195
    %3224 = vst [vmem:[#allocation3 + $0x3c8] sm:$0xff] %v3196
    %3225 = vst [vmem:[#allocation3 + $0x3d0] sm:$0xff] %v3197
    %3226 = vst [vmem:[#allocation3 + $0x3d8] sm:$0xff] %v3198
    %3227 = vst [vmem:[#allocation3 + $0x3e0] sm:$0xff] %v3199
    %3228 = vst [vmem:[#allocation3 + $0x3e8] sm:$0xff] %v3200
    %3229 = vst [vmem:[#allocation3 + $0x3f0] sm:$0xff] %v3201
    %3230 = vst [vmem:[#allocation3 + $0x400] sm:$0xf] %v3202
    %3231 = vst [vmem:[#allocation3 + $0x408] sm:$0xf] %v3203
    %3232 = vst [vmem:[#allocation3 + $0x410] sm:$0xf] %v3204
    %3233 = vst [vmem:[#allocation3 + $0x418] sm:$0xf] %v3205
    %3234 = vst [vmem:[#allocation3 + $0x420] sm:$0xf] %v3206
    %3235 = vst [vmem:[#allocation3 + $0x428] sm:$0xf] %v3207
    %3236 = vst [vmem:[#allocation3 + $0x430] sm:$0xf] %v3208
    %v3237 = vld [vmem:[#allocation2] sm:$0xff]
    %v3238 = vld [vmem:[#allocation2 + $0x8] sm:$0xff]
    %v3239 = vld [vmem:[#allocation2 + $0x10] sm:$0xff]
    %v3240 = vld [vmem:[#allocation2 + $0x18] sm:$0xff]
    %v3241 = vld [vmem:[#allocation2 + $0x20] sm:$0xff]
    %v3242 = vld [vmem:[#allocation2 + $0x28] sm:$0xff]
    %v3243 = vld [vmem:[#allocation2 + $0x30] sm:$0xff]
    %v3244 = vld [vmem:[#allocation2 + $0x38] sm:$0xff]
    %v3245 = vld [vmem:[#allocation2 + $0x40] sm:$0xf]
    %v3246 = vld [vmem:[#allocation2 + $0x48] sm:$0xf]
    %v3247 = vld [vmem:[#allocation2 + $0x50] sm:$0xf]
    %v3248 = vld [vmem:[#allocation2 + $0x58] sm:$0xf]
    %v3249 = vld [vmem:[#allocation2 + $0x60] sm:$0xf]
    %v3250 = vld [vmem:[#allocation2 + $0x68] sm:$0xf]
    %v3251 = vld [vmem:[#allocation2 + $0x70] sm:$0xf]
    %v3252 = vld [vmem:[#allocation2 + $0x78] sm:$0xf]
    %v3269 = vrot.slane %v3237, 4
    %v3270 = vrot.slane %v3238, 4
    %v3271 = vrot.slane %v3239, 4
    %v3272 = vrot.slane %v3240, 4
    %v3273 = vrot.slane %v3241, 4
    %v3274 = vrot.slane %v3242, 4
    %v3275 = vrot.slane %v3243, 4
    %v3276 = vrot.slane %v3244, 4
    %v3277 = vrot.slane %v3245, 4
    %v3278 = vsel %vm1593, %v3269, %v3277
    %v3279 = vrot.slane %v3246, 4
    %v3280 = vsel %vm1593, %v3270, %v3279
    %v3281 = vrot.slane %v3247, 4
    %v3282 = vsel %vm1593, %v3271, %v3281
    %v3283 = vrot.slane %v3248, 4
    %v3284 = vsel %vm1593, %v3272, %v3283
    %v3285 = vrot.slane %v3249, 4
    %v3286 = vsel %vm1593, %v3273, %v3285
    %v3287 = vrot.slane %v3250, 4
    %v3288 = vsel %vm1593, %v3274, %v3287
    %v3289 = vrot.slane %v3251, 4
    %v3290 = vsel %vm1593, %v3275, %v3289
    %v3291 = vrot.slane %v3252, 4
    %v3292 = vsel %vm1593, %v3276, %v3291
    %3293 = vrot.lane.b32.xlu0 %v3269, 87
    %v3294 = vpop.permute.xlu0 %3293
    %3295 = vrot.lane.b32.xlu0 %v3270, 87
    %v3296 = vpop.permute.xlu0 %3295
    %3297 = vrot.lane.b32.xlu0 %v3271, 87
    %v3298 = vpop.permute.xlu0 %3297
    %3299 = vrot.lane.b32.xlu0 %v3272, 87
    %v3300 = vpop.permute.xlu0 %3299
    %3301 = vrot.lane.b32.xlu0 %v3273, 87
    %v3302 = vpop.permute.xlu0 %3301
    %3303 = vrot.lane.b32.xlu0 %v3274, 87
    %v3304 = vpop.permute.xlu0 %3303
    %3305 = vrot.lane.b32.xlu0 %v3275, 87
    %v3306 = vpop.permute.xlu0 %3305
    %3307 = vrot.lane.b32.xlu0 %v3276, 87
    %v3308 = vpop.permute.xlu0 %3307
    %3309 = vrot.lane.b32.xlu0 %v3278, 87
    %v3310 = vpop.permute.xlu0 %3309
    %3311 = vrot.lane.b32.xlu0 %v3280, 87
    %v3312 = vpop.permute.xlu0 %3311
    %3313 = vrot.lane.b32.xlu0 %v3282, 87
    %v3314 = vpop.permute.xlu0 %3313
    %3315 = vrot.lane.b32.xlu0 %v3284, 87
    %v3316 = vpop.permute.xlu0 %3315
    %3317 = vrot.lane.b32.xlu0 %v3286, 87
    %v3318 = vpop.permute.xlu0 %3317
    %3319 = vrot.lane.b32.xlu0 %v3288, 87
    %v3320 = vpop.permute.xlu0 %3319
    %3321 = vrot.lane.b32.xlu0 %v3290, 87
    %v3322 = vpop.permute.xlu0 %3321
    %3323 = vrot.lane.b32.xlu0 %v3292, 87
    %v3324 = vpop.permute.xlu0 %3323
    %v3325 = vsel %vm719, %v3294, %v3296
    %v3326 = vsel %vm719, %v3296, %v3298
    %v3327 = vsel %vm719, %v3298, %v3300
    %v3328 = vsel %vm719, %v3300, %v3302
    %v3329 = vsel %vm719, %v3302, %v3304
    %v3330 = vsel %vm719, %v3304, %v3306
    %v3331 = vsel %vm719, %v3306, %v3308
    %v3332 = vsel %vm719, %v3310, %v3312
    %v3333 = vsel %vm719, %v3312, %v3314
    %v3334 = vsel %vm719, %v3314, %v3316
    %v3335 = vsel %vm719, %v3316, %v3318
    %v3336 = vsel %vm719, %v3318, %v3320
    %v3337 = vsel %vm719, %v3320, %v3322
    %v3338 = vsel %vm719, %v3322, %v3324
    %3353 = vst [vmem:[#allocation3 + $0x400] sm:$0xf0] %v3325
    %3354 = vst [vmem:[#allocation3 + $0x408] sm:$0xf0] %v3326
    %3355 = vst [vmem:[#allocation3 + $0x410] sm:$0xf0] %v3327
    %3356 = vst [vmem:[#allocation3 + $0x418] sm:$0xf0] %v3328
    %3357 = vst [vmem:[#allocation3 + $0x420] sm:$0xf0] %v3329
    %3358 = vst [vmem:[#allocation3 + $0x428] sm:$0xf0] %v3330
    %3359 = vst [vmem:[#allocation3 + $0x430] sm:$0xf0] %v3331
    %3360 = vst [vmem:[#allocation3 + $0x440] sm:$0xff] %v3332
    %3361 = vst [vmem:[#allocation3 + $0x448] sm:$0xff] %v3333
    %3362 = vst [vmem:[#allocation3 + $0x450] sm:$0xff] %v3334
    %3363 = vst [vmem:[#allocation3 + $0x458] sm:$0xff] %v3335
    %3364 = vst [vmem:[#allocation3 + $0x460] sm:$0xff] %v3336
    %3365 = vst [vmem:[#allocation3 + $0x468] sm:$0xff] %v3337
    %3366 = vst [vmem:[#allocation3 + $0x470] sm:$0xff] %v3338
    %v3367 = vld [vmem:[#allocation2] sm:$0xff]
    %v3368 = vld [vmem:[#allocation2 + $0x8] sm:$0xff]
    %v3369 = vld [vmem:[#allocation2 + $0x10] sm:$0xff]
    %v3370 = vld [vmem:[#allocation2 + $0x18] sm:$0xff]
    %v3371 = vld [vmem:[#allocation2 + $0x20] sm:$0xff]
    %v3372 = vld [vmem:[#allocation2 + $0x28] sm:$0xff]
    %v3373 = vld [vmem:[#allocation2 + $0x30] sm:$0xff]
    %v3374 = vld [vmem:[#allocation2 + $0x38] sm:$0xff]
    %v3375 = vld [vmem:[#allocation2 + $0x40] sm:$0xf]
    %v3376 = vld [vmem:[#allocation2 + $0x48] sm:$0xf]
    %v3377 = vld [vmem:[#allocation2 + $0x50] sm:$0xf]
    %v3378 = vld [vmem:[#allocation2 + $0x58] sm:$0xf]
    %v3379 = vld [vmem:[#allocation2 + $0x60] sm:$0xf]
    %v3380 = vld [vmem:[#allocation2 + $0x68] sm:$0xf]
    %v3381 = vld [vmem:[#allocation2 + $0x70] sm:$0xf]
    %v3382 = vld [vmem:[#allocation2 + $0x78] sm:$0xf]
    %3399 = vrot.lane.b32.xlu0 %v3367, 86
    %v3400 = vpop.permute.xlu0 %3399
    %3401 = vrot.lane.b32.xlu0 %v3368, 86
    %v3402 = vpop.permute.xlu0 %3401
    %3403 = vrot.lane.b32.xlu0 %v3369, 86
    %v3404 = vpop.permute.xlu0 %3403
    %3405 = vrot.lane.b32.xlu0 %v3370, 86
    %v3406 = vpop.permute.xlu0 %3405
    %3407 = vrot.lane.b32.xlu0 %v3371, 86
    %v3408 = vpop.permute.xlu0 %3407
    %3409 = vrot.lane.b32.xlu0 %v3372, 86
    %v3410 = vpop.permute.xlu0 %3409
    %3411 = vrot.lane.b32.xlu0 %v3373, 86
    %v3412 = vpop.permute.xlu0 %3411
    %3413 = vrot.lane.b32.xlu0 %v3374, 86
    %v3414 = vpop.permute.xlu0 %3413
    %3415 = vrot.lane.b32.xlu0 %v3375, 86
    %v3416 = vpop.permute.xlu0 %3415
    %3417 = vrot.lane.b32.xlu0 %v3376, 86
    %v3418 = vpop.permute.xlu0 %3417
    %3419 = vrot.lane.b32.xlu0 %v3377, 86
    %v3420 = vpop.permute.xlu0 %3419
    %3421 = vrot.lane.b32.xlu0 %v3378, 86
    %v3422 = vpop.permute.xlu0 %3421
    %3423 = vrot.lane.b32.xlu0 %v3379, 86
    %v3424 = vpop.permute.xlu0 %3423
    %3425 = vrot.lane.b32.xlu0 %v3380, 86
    %v3426 = vpop.permute.xlu0 %3425
    %3427 = vrot.lane.b32.xlu0 %v3381, 86
    %v3428 = vpop.permute.xlu0 %3427
    %3429 = vrot.lane.b32.xlu0 %v3382, 86
    %v3430 = vpop.permute.xlu0 %3429
    %v3431 = vsel %vm773, %v3400, %v3402
    %v3432 = vsel %vm773, %v3402, %v3404
    %v3433 = vsel %vm773, %v3404, %v3406
    %v3434 = vsel %vm773, %v3406, %v3408
    %v3435 = vsel %vm773, %v3408, %v3410
    %v3436 = vsel %vm773, %v3410, %v3412
    %v3437 = vsel %vm773, %v3412, %v3414
    %v3438 = vsel %vm773, %v3416, %v3418
    %v3439 = vsel %vm773, %v3418, %v3420
    %v3440 = vsel %vm773, %v3420, %v3422
    %v3441 = vsel %vm773, %v3422, %v3424
    %v3442 = vsel %vm773, %v3424, %v3426
    %v3443 = vsel %vm773, %v3426, %v3428
    %v3444 = vsel %vm773, %v3428, %v3430
    %3459 = vst [vmem:[#allocation3 + $0x480] sm:$0xff] %v3431
    %3460 = vst [vmem:[#allocation3 + $0x488] sm:$0xff] %v3432
    %3461 = vst [vmem:[#allocation3 + $0x490] sm:$0xff] %v3433
    %3462 = vst [vmem:[#allocation3 + $0x498] sm:$0xff] %v3434
    %3463 = vst [vmem:[#allocation3 + $0x4a0] sm:$0xff] %v3435
    %3464 = vst [vmem:[#allocation3 + $0x4a8] sm:$0xff] %v3436
    %3465 = vst [vmem:[#allocation3 + $0x4b0] sm:$0xff] %v3437
    %3466 = vst [vmem:[#allocation3 + $0x4c0] sm:$0xf] %v3438
    %3467 = vst [vmem:[#allocation3 + $0x4c8] sm:$0xf] %v3439
    %3468 = vst [vmem:[#allocation3 + $0x4d0] sm:$0xf] %v3440
    %3469 = vst [vmem:[#allocation3 + $0x4d8] sm:$0xf] %v3441
    %3470 = vst [vmem:[#allocation3 + $0x4e0] sm:$0xf] %v3442
    %3471 = vst [vmem:[#allocation3 + $0x4e8] sm:$0xf] %v3443
    %3472 = vst [vmem:[#allocation3 + $0x4f0] sm:$0xf] %v3444
    %v3473 = vld [vmem:[#allocation2] sm:$0xff]
    %v3474 = vld [vmem:[#allocation2 + $0x8] sm:$0xff]
    %v3475 = vld [vmem:[#allocation2 + $0x10] sm:$0xff]
    %v3476 = vld [vmem:[#allocation2 + $0x18] sm:$0xff]
    %v3477 = vld [vmem:[#allocation2 + $0x20] sm:$0xff]
    %v3478 = vld [vmem:[#allocation2 + $0x28] sm:$0xff]
    %v3479 = vld [vmem:[#allocation2 + $0x30] sm:$0xff]
    %v3480 = vld [vmem:[#allocation2 + $0x38] sm:$0xff]
    %v3481 = vld [vmem:[#allocation2 + $0x40] sm:$0xf]
    %v3482 = vld [vmem:[#allocation2 + $0x48] sm:$0xf]
    %v3483 = vld [vmem:[#allocation2 + $0x50] sm:$0xf]
    %v3484 = vld [vmem:[#allocation2 + $0x58] sm:$0xf]
    %v3485 = vld [vmem:[#allocation2 + $0x60] sm:$0xf]
    %v3486 = vld [vmem:[#allocation2 + $0x68] sm:$0xf]
    %v3487 = vld [vmem:[#allocation2 + $0x70] sm:$0xf]
    %v3488 = vld [vmem:[#allocation2 + $0x78] sm:$0xf]
    %v3505 = vrot.slane %v3473, 4
    %v3506 = vrot.slane %v3474, 4
    %v3507 = vrot.slane %v3475, 4
    %v3508 = vrot.slane %v3476, 4
    %v3509 = vrot.slane %v3477, 4
    %v3510 = vrot.slane %v3478, 4
    %v3511 = vrot.slane %v3479, 4
    %v3512 = vrot.slane %v3480, 4
    %v3513 = vrot.slane %v3481, 4
    %v3514 = vsel %vm1593, %v3505, %v3513
    %v3515 = vrot.slane %v3482, 4
    %v3516 = vsel %vm1593, %v3506, %v3515
    %v3517 = vrot.slane %v3483, 4
    %v3518 = vsel %vm1593, %v3507, %v3517
    %v3519 = vrot.slane %v3484, 4
    %v3520 = vsel %vm1593, %v3508, %v3519
    %v3521 = vrot.slane %v3485, 4
    %v3522 = vsel %vm1593, %v3509, %v3521
    %v3523 = vrot.slane %v3486, 4
    %v3524 = vsel %vm1593, %v3510, %v3523
    %v3525 = vrot.slane %v3487, 4
    %v3526 = vsel %vm1593, %v3511, %v3525
    %v3527 = vrot.slane %v3488, 4
    %v3528 = vsel %vm1593, %v3512, %v3527
    %3529 = vrot.lane.b32.xlu0 %v3505, 85
    %v3530 = vpop.permute.xlu0 %3529
    %3531 = vrot.lane.b32.xlu0 %v3506, 85
    %v3532 = vpop.permute.xlu0 %3531
    %3533 = vrot.lane.b32.xlu0 %v3507, 85
    %v3534 = vpop.permute.xlu0 %3533
    %3535 = vrot.lane.b32.xlu0 %v3508, 85
    %v3536 = vpop.permute.xlu0 %3535
    %3537 = vrot.lane.b32.xlu0 %v3509, 85
    %v3538 = vpop.permute.xlu0 %3537
    %3539 = vrot.lane.b32.xlu0 %v3510, 85
    %v3540 = vpop.permute.xlu0 %3539
    %3541 = vrot.lane.b32.xlu0 %v3511, 85
    %v3542 = vpop.permute.xlu0 %3541
    %3543 = vrot.lane.b32.xlu0 %v3512, 85
    %v3544 = vpop.permute.xlu0 %3543
    %3545 = vrot.lane.b32.xlu0 %v3514, 85
    %v3546 = vpop.permute.xlu0 %3545
    %3547 = vrot.lane.b32.xlu0 %v3516, 85
    %v3548 = vpop.permute.xlu0 %3547
    %3549 = vrot.lane.b32.xlu0 %v3518, 85
    %v3550 = vpop.permute.xlu0 %3549
    %3551 = vrot.lane.b32.xlu0 %v3520, 85
    %v3552 = vpop.permute.xlu0 %3551
    %3553 = vrot.lane.b32.xlu0 %v3522, 85
    %v3554 = vpop.permute.xlu0 %3553
    %3555 = vrot.lane.b32.xlu0 %v3524, 85
    %v3556 = vpop.permute.xlu0 %3555
    %3557 = vrot.lane.b32.xlu0 %v3526, 85
    %v3558 = vpop.permute.xlu0 %3557
    %3559 = vrot.lane.b32.xlu0 %v3528, 85
    %v3560 = vpop.permute.xlu0 %3559
    %v3561 = vsel %vm835, %v3530, %v3532
    %v3562 = vsel %vm835, %v3532, %v3534
    %v3563 = vsel %vm835, %v3534, %v3536
    %v3564 = vsel %vm835, %v3536, %v3538
    %v3565 = vsel %vm835, %v3538, %v3540
    %v3566 = vsel %vm835, %v3540, %v3542
    %v3567 = vsel %vm835, %v3542, %v3544
    %v3568 = vsel %vm835, %v3546, %v3548
    %v3569 = vsel %vm835, %v3548, %v3550
    %v3570 = vsel %vm835, %v3550, %v3552
    %v3571 = vsel %vm835, %v3552, %v3554
    %v3572 = vsel %vm835, %v3554, %v3556
    %v3573 = vsel %vm835, %v3556, %v3558
    %v3574 = vsel %vm835, %v3558, %v3560
    %3589 = vst [vmem:[#allocation3 + $0x4c0] sm:$0xf0] %v3561
    %3590 = vst [vmem:[#allocation3 + $0x4c8] sm:$0xf0] %v3562
    %3591 = vst [vmem:[#allocation3 + $0x4d0] sm:$0xf0] %v3563
    %3592 = vst [vmem:[#allocation3 + $0x4d8] sm:$0xf0] %v3564
    %3593 = vst [vmem:[#allocation3 + $0x4e0] sm:$0xf0] %v3565
    %3594 = vst [vmem:[#allocation3 + $0x4e8] sm:$0xf0] %v3566
    %3595 = vst [vmem:[#allocation3 + $0x4f0] sm:$0xf0] %v3567
    %3596 = vst [vmem:[#allocation3 + $0x500] sm:$0xff] %v3568
    %3597 = vst [vmem:[#allocation3 + $0x508] sm:$0xff] %v3569
    %3598 = vst [vmem:[#allocation3 + $0x510] sm:$0xff] %v3570
    %3599 = vst [vmem:[#allocation3 + $0x518] sm:$0xff] %v3571
    %3600 = vst [vmem:[#allocation3 + $0x520] sm:$0xff] %v3572
    %3601 = vst [vmem:[#allocation3 + $0x528] sm:$0xff] %v3573
    %3602 = vst [vmem:[#allocation3 + $0x530] sm:$0xff] %v3574
    %v3603 = vld [vmem:[#allocation2] sm:$0xff]
    %v3604 = vld [vmem:[#allocation2 + $0x8] sm:$0xff]
    %v3605 = vld [vmem:[#allocation2 + $0x10] sm:$0xff]
    %v3606 = vld [vmem:[#allocation2 + $0x18] sm:$0xff]
    %v3607 = vld [vmem:[#allocation2 + $0x20] sm:$0xff]
    %v3608 = vld [vmem:[#allocation2 + $0x28] sm:$0xff]
    %v3609 = vld [vmem:[#allocation2 + $0x30] sm:$0xff]
    %v3610 = vld [vmem:[#allocation2 + $0x38] sm:$0xff]
    %v3611 = vld [vmem:[#allocation2 + $0x40] sm:$0xf]
    %v3612 = vld [vmem:[#allocation2 + $0x48] sm:$0xf]
    %v3613 = vld [vmem:[#allocation2 + $0x50] sm:$0xf]
    %v3614 = vld [vmem:[#allocation2 + $0x58] sm:$0xf]
    %v3615 = vld [vmem:[#allocation2 + $0x60] sm:$0xf]
    %v3616 = vld [vmem:[#allocation2 + $0x68] sm:$0xf]
    %v3617 = vld [vmem:[#allocation2 + $0x70] sm:$0xf]
    %v3618 = vld [vmem:[#allocation2 + $0x78] sm:$0xf]
    %3635 = vrot.lane.b32.xlu0 %v3603, 84
    %v3636 = vpop.permute.xlu0 %3635
    %3637 = vrot.lane.b32.xlu0 %v3604, 84
    %v3638 = vpop.permute.xlu0 %3637
    %3639 = vrot.lane.b32.xlu0 %v3605, 84
    %v3640 = vpop.permute.xlu0 %3639
    %3641 = vrot.lane.b32.xlu0 %v3606, 84
    %v3642 = vpop.permute.xlu0 %3641
    %3643 = vrot.lane.b32.xlu0 %v3607, 84
    %v3644 = vpop.permute.xlu0 %3643
    %3645 = vrot.lane.b32.xlu0 %v3608, 84
    %v3646 = vpop.permute.xlu0 %3645
    %3647 = vrot.lane.b32.xlu0 %v3609, 84
    %v3648 = vpop.permute.xlu0 %3647
    %3649 = vrot.lane.b32.xlu0 %v3610, 84
    %v3650 = vpop.permute.xlu0 %3649
    %3651 = vrot.lane.b32.xlu0 %v3611, 84
    %v3652 = vpop.permute.xlu0 %3651
    %3653 = vrot.lane.b32.xlu0 %v3612, 84
    %v3654 = vpop.permute.xlu0 %3653
    %3655 = vrot.lane.b32.xlu0 %v3613, 84
    %v3656 = vpop.permute.xlu0 %3655
    %3657 = vrot.lane.b32.xlu0 %v3614, 84
    %v3658 = vpop.permute.xlu0 %3657
    %3659 = vrot.lane.b32.xlu0 %v3615, 84
    %v3660 = vpop.permute.xlu0 %3659
    %3661 = vrot.lane.b32.xlu0 %v3616, 84
    %v3662 = vpop.permute.xlu0 %3661
    %3663 = vrot.lane.b32.xlu0 %v3617, 84
    %v3664 = vpop.permute.xlu0 %3663
    %3665 = vrot.lane.b32.xlu0 %v3618, 84
    %v3666 = vpop.permute.xlu0 %3665
    %v3667 = vsel %vm889, %v3636, %v3638
    %v3668 = vsel %vm889, %v3638, %v3640
    %v3669 = vsel %vm889, %v3640, %v3642
    %v3670 = vsel %vm889, %v3642, %v3644
    %v3671 = vsel %vm889, %v3644, %v3646
    %v3672 = vsel %vm889, %v3646, %v3648
    %v3673 = vsel %vm889, %v3648, %v3650
    %v3674 = vsel %vm889, %v3652, %v3654
    %v3675 = vsel %vm889, %v3654, %v3656
    %v3676 = vsel %vm889, %v3656, %v3658
    %v3677 = vsel %vm889, %v3658, %v3660
    %v3678 = vsel %vm889, %v3660, %v3662
    %v3679 = vsel %vm889, %v3662, %v3664
    %v3680 = vsel %vm889, %v3664, %v3666
    %3695 = vst [vmem:[#allocation3 + $0x540] sm:$0xff] %v3667
    %3696 = vst [vmem:[#allocation3 + $0x548] sm:$0xff] %v3668
    %3697 = vst [vmem:[#allocation3 + $0x550] sm:$0xff] %v3669
    %3698 = vst [vmem:[#allocation3 + $0x558] sm:$0xff] %v3670
    %3699 = vst [vmem:[#allocation3 + $0x560] sm:$0xff] %v3671
    %3700 = vst [vmem:[#allocation3 + $0x568] sm:$0xff] %v3672
    %3701 = vst [vmem:[#allocation3 + $0x570] sm:$0xff] %v3673
    %3702 = vst [vmem:[#allocation3 + $0x580] sm:$0xf] %v3674
    %3703 = vst [vmem:[#allocation3 + $0x588] sm:$0xf] %v3675
    %3704 = vst [vmem:[#allocation3 + $0x590] sm:$0xf] %v3676
    %3705 = vst [vmem:[#allocation3 + $0x598] sm:$0xf] %v3677
    %3706 = vst [vmem:[#allocation3 + $0x5a0] sm:$0xf] %v3678
    %3707 = vst [vmem:[#allocation3 + $0x5a8] sm:$0xf] %v3679
    %3708 = vst [vmem:[#allocation3 + $0x5b0] sm:$0xf] %v3680
    %v3709 = vld [vmem:[#allocation2] sm:$0xff]
    %v3710 = vld [vmem:[#allocation2 + $0x8] sm:$0xff]
    %v3711 = vld [vmem:[#allocation2 + $0x10] sm:$0xff]
    %v3712 = vld [vmem:[#allocation2 + $0x18] sm:$0xff]
    %v3713 = vld [vmem:[#allocation2 + $0x20] sm:$0xff]
    %v3714 = vld [vmem:[#allocation2 + $0x28] sm:$0xff]
    %v3715 = vld [vmem:[#allocation2 + $0x30] sm:$0xff]
    %v3716 = vld [vmem:[#allocation2 + $0x38] sm:$0xff]
    %v3717 = vld [vmem:[#allocation2 + $0x40] sm:$0xf]
    %v3718 = vld [vmem:[#allocation2 + $0x48] sm:$0xf]
    %v3719 = vld [vmem:[#allocation2 + $0x50] sm:$0xf]
    %v3720 = vld [vmem:[#allocation2 + $0x58] sm:$0xf]
    %v3721 = vld [vmem:[#allocation2 + $0x60] sm:$0xf]
    %v3722 = vld [vmem:[#allocation2 + $0x68] sm:$0xf]
    %v3723 = vld [vmem:[#allocation2 + $0x70] sm:$0xf]
    %v3724 = vld [vmem:[#allocation2 + $0x78] sm:$0xf]
    %v3741 = vrot.slane %v3709, 4
    %v3742 = vrot.slane %v3710, 4
    %v3743 = vrot.slane %v3711, 4
    %v3744 = vrot.slane %v3712, 4
    %v3745 = vrot.slane %v3713, 4
    %v3746 = vrot.slane %v3714, 4
    %v3747 = vrot.slane %v3715, 4
    %v3748 = vrot.slane %v3716, 4
    %v3749 = vrot.slane %v3717, 4
    %v3750 = vsel %vm1593, %v3741, %v3749
    %v3751 = vrot.slane %v3718, 4
    %v3752 = vsel %vm1593, %v3742, %v3751
    %v3753 = vrot.slane %v3719, 4
    %v3754 = vsel %vm1593, %v3743, %v3753
    %v3755 = vrot.slane %v3720, 4
    %v3756 = vsel %vm1593, %v3744, %v3755
    %v3757 = vrot.slane %v3721, 4
    %v3758 = vsel %vm1593, %v3745, %v3757
    %v3759 = vrot.slane %v3722, 4
    %v3760 = vsel %vm1593, %v3746, %v3759
    %v3761 = vrot.slane %v3723, 4
    %v3762 = vsel %vm1593, %v3747, %v3761
    %v3763 = vrot.slane %v3724, 4
    %v3764 = vsel %vm1593, %v3748, %v3763
    %3765 = vrot.lane.b32.xlu0 %v3741, 68
    %v3766 = vpop.permute.xlu0 %3765
    %3767 = vrot.lane.b32.xlu0 %v3742, 68
    %v3768 = vpop.permute.xlu0 %3767
    %3769 = vrot.lane.b32.xlu0 %v3743, 68
    %v3770 = vpop.permute.xlu0 %3769
    %3771 = vrot.lane.b32.xlu0 %v3744, 68
    %v3772 = vpop.permute.xlu0 %3771
    %3773 = vrot.lane.b32.xlu0 %v3745, 68
    %v3774 = vpop.permute.xlu0 %3773
    %3775 = vrot.lane.b32.xlu0 %v3746, 68
    %v3776 = vpop.permute.xlu0 %3775
    %3777 = vrot.lane.b32.xlu0 %v3747, 68
    %v3778 = vpop.permute.xlu0 %3777
    %3779 = vrot.lane.b32.xlu0 %v3748, 68
    %v3780 = vpop.permute.xlu0 %3779
    %3781 = vrot.lane.b32.xlu0 %v3750, 68
    %v3782 = vpop.permute.xlu0 %3781
    %3783 = vrot.lane.b32.xlu0 %v3752, 68
    %v3784 = vpop.permute.xlu0 %3783
    %3785 = vrot.lane.b32.xlu0 %v3754, 68
    %v3786 = vpop.permute.xlu0 %3785
    %3787 = vrot.lane.b32.xlu0 %v3756, 68
    %v3788 = vpop.permute.xlu0 %3787
    %3789 = vrot.lane.b32.xlu0 %v3758, 68
    %v3790 = vpop.permute.xlu0 %3789
    %3791 = vrot.lane.b32.xlu0 %v3760, 68
    %v3792 = vpop.permute.xlu0 %3791
    %3793 = vrot.lane.b32.xlu0 %v3762, 68
    %v3794 = vpop.permute.xlu0 %3793
    %3795 = vrot.lane.b32.xlu0 %v3764, 68
    %v3796 = vpop.permute.xlu0 %3795
    %v3797 = vsel %vm951, %v3766, %v3768
    %v3798 = vsel %vm951, %v3768, %v3770
    %v3799 = vsel %vm951, %v3770, %v3772
    %v3800 = vsel %vm951, %v3772, %v3774
    %v3801 = vsel %vm951, %v3774, %v3776
    %v3802 = vsel %vm951, %v3776, %v3778
    %v3803 = vsel %vm951, %v3778, %v3780
    %v3804 = vsel %vm951, %v3782, %v3784
    %v3805 = vsel %vm951, %v3784, %v3786
    %v3806 = vsel %vm951, %v3786, %v3788
    %v3807 = vsel %vm951, %v3788, %v3790
    %v3808 = vsel %vm951, %v3790, %v3792
    %v3809 = vsel %vm951, %v3792, %v3794
    %v3810 = vsel %vm951, %v3794, %v3796
    %3825 = vst [vmem:[#allocation3 + $0x580] sm:$0xf0] %v3797
    %3826 = vst [vmem:[#allocation3 + $0x588] sm:$0xf0] %v3798
    %3827 = vst [vmem:[#allocation3 + $0x590] sm:$0xf0] %v3799
    %3828 = vst [vmem:[#allocation3 + $0x598] sm:$0xf0] %v3800
    %3829 = vst [vmem:[#allocation3 + $0x5a0] sm:$0xf0] %v3801
    %3830 = vst [vmem:[#allocation3 + $0x5a8] sm:$0xf0] %v3802
    %3831 = vst [vmem:[#allocation3 + $0x5b0] sm:$0xf0] %v3803
    %3832 = vst [vmem:[#allocation3 + $0x5c0] sm:$0xff] %v3804
    %3833 = vst [vmem:[#allocation3 + $0x5c8] sm:$0xff] %v3805
    %3834 = vst [vmem:[#allocation3 + $0x5d0] sm:$0xff] %v3806
    %3835 = vst [vmem:[#allocation3 + $0x5d8] sm:$0xff] %v3807
    %3836 = vst [vmem:[#allocation3 + $0x5e0] sm:$0xff] %v3808
    %3837 = vst [vmem:[#allocation3 + $0x5e8] sm:$0xff] %v3809
    %3838 = vst [vmem:[#allocation3 + $0x5f0] sm:$0xff] %v3810
    %v3839 = vld [vmem:[#allocation2] sm:$0xff]
    %v3840 = vld [vmem:[#allocation2 + $0x8] sm:$0xff]
    %v3841 = vld [vmem:[#allocation2 + $0x10] sm:$0xff]
    %v3842 = vld [vmem:[#allocation2 + $0x18] sm:$0xff]
    %v3843 = vld [vmem:[#allocation2 + $0x20] sm:$0xff]
    %v3844 = vld [vmem:[#allocation2 + $0x28] sm:$0xff]
    %v3845 = vld [vmem:[#allocation2 + $0x30] sm:$0xff]
    %v3846 = vld [vmem:[#allocation2 + $0x38] sm:$0xff]
    %v3847 = vld [vmem:[#allocation2 + $0x40] sm:$0xf]
    %v3848 = vld [vmem:[#allocation2 + $0x48] sm:$0xf]
    %v3849 = vld [vmem:[#allocation2 + $0x50] sm:$0xf]
    %v3850 = vld [vmem:[#allocation2 + $0x58] sm:$0xf]
    %v3851 = vld [vmem:[#allocation2 + $0x60] sm:$0xf]
    %v3852 = vld [vmem:[#allocation2 + $0x68] sm:$0xf]
    %v3853 = vld [vmem:[#allocation2 + $0x70] sm:$0xf]
    %v3854 = vld [vmem:[#allocation2 + $0x78] sm:$0xf]
    %3871 = vrot.lane.b32.xlu0 %v3839, 67
    %v3872 = vpop.permute.xlu0 %3871
    %3873 = vrot.lane.b32.xlu0 %v3840, 67
    %v3874 = vpop.permute.xlu0 %3873
    %3875 = vrot.lane.b32.xlu0 %v3841, 67
    %v3876 = vpop.permute.xlu0 %3875
    %3877 = vrot.lane.b32.xlu0 %v3842, 67
    %v3878 = vpop.permute.xlu0 %3877
    %3879 = vrot.lane.b32.xlu0 %v3843, 67
    %v3880 = vpop.permute.xlu0 %3879
    %3881 = vrot.lane.b32.xlu0 %v3844, 67
    %v3882 = vpop.permute.xlu0 %3881
    %3883 = vrot.lane.b32.xlu0 %v3845, 67
    %v3884 = vpop.permute.xlu0 %3883
    %3885 = vrot.lane.b32.xlu0 %v3846, 67
    %v3886 = vpop.permute.xlu0 %3885
    %3887 = vrot.lane.b32.xlu0 %v3847, 67
    %v3888 = vpop.permute.xlu0 %3887
    %3889 = vrot.lane.b32.xlu0 %v3848, 67
    %v3890 = vpop.permute.xlu0 %3889
    %3891 = vrot.lane.b32.xlu0 %v3849, 67
    %v3892 = vpop.permute.xlu0 %3891
    %3893 = vrot.lane.b32.xlu0 %v3850, 67
    %v3894 = vpop.permute.xlu0 %3893
    %3895 = vrot.lane.b32.xlu0 %v3851, 67
    %v3896 = vpop.permute.xlu0 %3895
    %3897 = vrot.lane.b32.xlu0 %v3852, 67
    %v3898 = vpop.permute.xlu0 %3897
    %3899 = vrot.lane.b32.xlu0 %v3853, 67
    %v3900 = vpop.permute.xlu0 %3899
    %3901 = vrot.lane.b32.xlu0 %v3854, 67
    %v3902 = vpop.permute.xlu0 %3901
    %v3903 = vsel %vm1005, %v3872, %v3874
    %v3904 = vsel %vm1005, %v3874, %v3876
    %v3905 = vsel %vm1005, %v3876, %v3878
    %v3906 = vsel %vm1005, %v3878, %v3880
    %v3907 = vsel %vm1005, %v3880, %v3882
    %v3908 = vsel %vm1005, %v3882, %v3884
    %v3909 = vsel %vm1005, %v3884, %v3886
    %v3910 = vsel %vm1005, %v3888, %v3890
    %v3911 = vsel %vm1005, %v3890, %v3892
    %v3912 = vsel %vm1005, %v3892, %v3894
    %v3913 = vsel %vm1005, %v3894, %v3896
    %v3914 = vsel %vm1005, %v3896, %v3898
    %v3915 = vsel %vm1005, %v3898, %v3900
    %v3916 = vsel %vm1005, %v3900, %v3902
    %3931 = vst [vmem:[#allocation3 + $0x600] sm:$0xff] %v3903
    %3932 = vst [vmem:[#allocation3 + $0x608] sm:$0xff] %v3904
    %3933 = vst [vmem:[#allocation3 + $0x610] sm:$0xff] %v3905
    %3934 = vst [vmem:[#allocation3 + $0x618] sm:$0xff] %v3906
    %3935 = vst [vmem:[#allocation3 + $0x620] sm:$0xff] %v3907
    %3936 = vst [vmem:[#allocation3 + $0x628] sm:$0xff] %v3908
    %3937 = vst [vmem:[#allocation3 + $0x630] sm:$0xff] %v3909
    %3938 = vst [vmem:[#allocation3 + $0x640] sm:$0xf] %v3910
    %3939 = vst [vmem:[#allocation3 + $0x648] sm:$0xf] %v3911
    %3940 = vst [vmem:[#allocation3 + $0x650] sm:$0xf] %v3912
    %3941 = vst [vmem:[#allocation3 + $0x658] sm:$0xf] %v3913
    %3942 = vst [vmem:[#allocation3 + $0x660] sm:$0xf] %v3914
    %3943 = vst [vmem:[#allocation3 + $0x668] sm:$0xf] %v3915
    %3944 = vst [vmem:[#allocation3 + $0x670] sm:$0xf] %v3916
    %v3945 = vld [vmem:[#allocation2] sm:$0xff]
    %v3946 = vld [vmem:[#allocation2 + $0x8] sm:$0xff]
    %v3947 = vld [vmem:[#allocation2 + $0x10] sm:$0xff]
    %v3948 = vld [vmem:[#allocation2 + $0x18] sm:$0xff]
    %v3949 = vld [vmem:[#allocation2 + $0x20] sm:$0xff]
    %v3950 = vld [vmem:[#allocation2 + $0x28] sm:$0xff]
    %v3951 = vld [vmem:[#allocation2 + $0x30] sm:$0xff]
    %v3952 = vld [vmem:[#allocation2 + $0x38] sm:$0xff]
    %v3953 = vld [vmem:[#allocation2 + $0x40] sm:$0xf]
    %v3954 = vld [vmem:[#allocation2 + $0x48] sm:$0xf]
    %v3955 = vld [vmem:[#allocation2 + $0x50] sm:$0xf]
    %v3956 = vld [vmem:[#allocation2 + $0x58] sm:$0xf]
    %v3957 = vld [vmem:[#allocation2 + $0x60] sm:$0xf]
    %v3958 = vld [vmem:[#allocation2 + $0x68] sm:$0xf]
    %v3959 = vld [vmem:[#allocation2 + $0x70] sm:$0xf]
    %v3960 = vld [vmem:[#allocation2 + $0x78] sm:$0xf]
    %v3977 = vrot.slane %v3945, 4
    %v3978 = vrot.slane %v3946, 4
    %v3979 = vrot.slane %v3947, 4
    %v3980 = vrot.slane %v3948, 4
    %v3981 = vrot.slane %v3949, 4
    %v3982 = vrot.slane %v3950, 4
    %v3983 = vrot.slane %v3951, 4
    %v3984 = vrot.slane %v3952, 4
    %v3985 = vrot.slane %v3953, 4
    %v3986 = vsel %vm1593, %v3977, %v3985
    %v3987 = vrot.slane %v3954, 4
    %v3988 = vsel %vm1593, %v3978, %v3987
    %v3989 = vrot.slane %v3955, 4
    %v3990 = vsel %vm1593, %v3979, %v3989
    %v3991 = vrot.slane %v3956, 4
    %v3992 = vsel %vm1593, %v3980, %v3991
    %v3993 = vrot.slane %v3957, 4
    %v3994 = vsel %vm1593, %v3981, %v3993
    %v3995 = vrot.slane %v3958, 4
    %v3996 = vsel %vm1593, %v3982, %v3995
    %v3997 = vrot.slane %v3959, 4
    %v3998 = vsel %vm1593, %v3983, %v3997
    %v3999 = vrot.slane %v3960, 4
    %v4000 = vsel %vm1593, %v3984, %v3999
    %4001 = vrot.lane.b32.xlu0 %v3977, 66
    %v4002 = vpop.permute.xlu0 %4001
    %4003 = vrot.lane.b32.xlu0 %v3978, 66
    %v4004 = vpop.permute.xlu0 %4003
    %4005 = vrot.lane.b32.xlu0 %v3979, 66
    %v4006 = vpop.permute.xlu0 %4005
    %4007 = vrot.lane.b32.xlu0 %v3980, 66
    %v4008 = vpop.permute.xlu0 %4007
    %4009 = vrot.lane.b32.xlu0 %v3981, 66
    %v4010 = vpop.permute.xlu0 %4009
    %4011 = vrot.lane.b32.xlu0 %v3982, 66
    %v4012 = vpop.permute.xlu0 %4011
    %4013 = vrot.lane.b32.xlu0 %v3983, 66
    %v4014 = vpop.permute.xlu0 %4013
    %4015 = vrot.lane.b32.xlu0 %v3984, 66
    %v4016 = vpop.permute.xlu0 %4015
    %4017 = vrot.lane.b32.xlu0 %v3986, 66
    %v4018 = vpop.permute.xlu0 %4017
    %4019 = vrot.lane.b32.xlu0 %v3988, 66
    %v4020 = vpop.permute.xlu0 %4019
    %4021 = vrot.lane.b32.xlu0 %v3990, 66
    %v4022 = vpop.permute.xlu0 %4021
    %4023 = vrot.lane.b32.xlu0 %v3992, 66
    %v4024 = vpop.permute.xlu0 %4023
    %4025 = vrot.lane.b32.xlu0 %v3994, 66
    %v4026 = vpop.permute.xlu0 %4025
    %4027 = vrot.lane.b32.xlu0 %v3996, 66
    %v4028 = vpop.permute.xlu0 %4027
    %4029 = vrot.lane.b32.xlu0 %v3998, 66
    %v4030 = vpop.permute.xlu0 %4029
    %4031 = vrot.lane.b32.xlu0 %v4000, 66
    %v4032 = vpop.permute.xlu0 %4031
    %v4033 = vsel %vm1067, %v4002, %v4004
    %v4034 = vsel %vm1067, %v4004, %v4006
    %v4035 = vsel %vm1067, %v4006, %v4008
    %v4036 = vsel %vm1067, %v4008, %v4010
    %v4037 = vsel %vm1067, %v4010, %v4012
    %v4038 = vsel %vm1067, %v4012, %v4014
    %v4039 = vsel %vm1067, %v4014, %v4016
    %v4040 = vsel %vm1067, %v4018, %v4020
    %v4041 = vsel %vm1067, %v4020, %v4022
    %v4042 = vsel %vm1067, %v4022, %v4024
    %v4043 = vsel %vm1067, %v4024, %v4026
    %v4044 = vsel %vm1067, %v4026, %v4028
    %v4045 = vsel %vm1067, %v4028, %v4030
    %v4046 = vsel %vm1067, %v4030, %v4032
    %4061 = vst [vmem:[#allocation3 + $0x640] sm:$0xf0] %v4033
    %4062 = vst [vmem:[#allocation3 + $0x648] sm:$0xf0] %v4034
    %4063 = vst [vmem:[#allocation3 + $0x650] sm:$0xf0] %v4035
    %4064 = vst [vmem:[#allocation3 + $0x658] sm:$0xf0] %v4036
    %4065 = vst [vmem:[#allocation3 + $0x660] sm:$0xf0] %v4037
    %4066 = vst [vmem:[#allocation3 + $0x668] sm:$0xf0] %v4038
    %4067 = vst [vmem:[#allocation3 + $0x670] sm:$0xf0] %v4039
    %4068 = vst [vmem:[#allocation3 + $0x680] sm:$0xff] %v4040
    %4069 = vst [vmem:[#allocation3 + $0x688] sm:$0xff] %v4041
    %4070 = vst [vmem:[#allocation3 + $0x690] sm:$0xff] %v4042
    %4071 = vst [vmem:[#allocation3 + $0x698] sm:$0xff] %v4043
    %4072 = vst [vmem:[#allocation3 + $0x6a0] sm:$0xff] %v4044
    %4073 = vst [vmem:[#allocation3 + $0x6a8] sm:$0xff] %v4045
    %4074 = vst [vmem:[#allocation3 + $0x6b0] sm:$0xff] %v4046
    %v4075 = vld [vmem:[#allocation2] sm:$0xff]
    %v4076 = vld [vmem:[#allocation2 + $0x8] sm:$0xff]
    %v4077 = vld [vmem:[#allocation2 + $0x10] sm:$0xff]
    %v4078 = vld [vmem:[#allocation2 + $0x18] sm:$0xff]
    %v4079 = vld [vmem:[#allocation2 + $0x20] sm:$0xff]
    %v4080 = vld [vmem:[#allocation2 + $0x28] sm:$0xff]
    %v4081 = vld [vmem:[#allocation2 + $0x30] sm:$0xff]
    %v4082 = vld [vmem:[#allocation2 + $0x38] sm:$0xff]
    %v4083 = vld [vmem:[#allocation2 + $0x40] sm:$0xf]
    %v4084 = vld [vmem:[#allocation2 + $0x48] sm:$0xf]
    %v4085 = vld [vmem:[#allocation2 + $0x50] sm:$0xf]
    %v4086 = vld [vmem:[#allocation2 + $0x58] sm:$0xf]
    %v4087 = vld [vmem:[#allocation2 + $0x60] sm:$0xf]
    %v4088 = vld [vmem:[#allocation2 + $0x68] sm:$0xf]
    %v4089 = vld [vmem:[#allocation2 + $0x70] sm:$0xf]
    %v4090 = vld [vmem:[#allocation2 + $0x78] sm:$0xf]
    %4107 = vrot.lane.b32.xlu0 %v4075, 65
    %v4108 = vpop.permute.xlu0 %4107
    %4109 = vrot.lane.b32.xlu0 %v4076, 65
    %v4110 = vpop.permute.xlu0 %4109
    %4111 = vrot.lane.b32.xlu0 %v4077, 65
    %v4112 = vpop.permute.xlu0 %4111
    %4113 = vrot.lane.b32.xlu0 %v4078, 65
    %v4114 = vpop.permute.xlu0 %4113
    %4115 = vrot.lane.b32.xlu0 %v4079, 65
    %v4116 = vpop.permute.xlu0 %4115
    %4117 = vrot.lane.b32.xlu0 %v4080, 65
    %v4118 = vpop.permute.xlu0 %4117
    %4119 = vrot.lane.b32.xlu0 %v4081, 65
    %v4120 = vpop.permute.xlu0 %4119
    %4121 = vrot.lane.b32.xlu0 %v4082, 65
    %v4122 = vpop.permute.xlu0 %4121
    %4123 = vrot.lane.b32.xlu0 %v4083, 65
    %v4124 = vpop.permute.xlu0 %4123
    %4125 = vrot.lane.b32.xlu0 %v4084, 65
    %v4126 = vpop.permute.xlu0 %4125
    %4127 = vrot.lane.b32.xlu0 %v4085, 65
    %v4128 = vpop.permute.xlu0 %4127
    %4129 = vrot.lane.b32.xlu0 %v4086, 65
    %v4130 = vpop.permute.xlu0 %4129
    %4131 = vrot.lane.b32.xlu0 %v4087, 65
    %v4132 = vpop.permute.xlu0 %4131
    %4133 = vrot.lane.b32.xlu0 %v4088, 65
    %v4134 = vpop.permute.xlu0 %4133
    %4135 = vrot.lane.b32.xlu0 %v4089, 65
    %v4136 = vpop.permute.xlu0 %4135
    %4137 = vrot.lane.b32.xlu0 %v4090, 65
    %v4138 = vpop.permute.xlu0 %4137
    %v4139 = vsel %vm1121, %v4108, %v4110
    %v4140 = vsel %vm1121, %v4110, %v4112
    %v4141 = vsel %vm1121, %v4112, %v4114
    %v4142 = vsel %vm1121, %v4114, %v4116
    %v4143 = vsel %vm1121, %v4116, %v4118
    %v4144 = vsel %vm1121, %v4118, %v4120
    %v4145 = vsel %vm1121, %v4120, %v4122
    %v4146 = vsel %vm1121, %v4124, %v4126
    %v4147 = vsel %vm1121, %v4126, %v4128
    %v4148 = vsel %vm1121, %v4128, %v4130
    %v4149 = vsel %vm1121, %v4130, %v4132
    %v4150 = vsel %vm1121, %v4132, %v4134
    %v4151 = vsel %vm1121, %v4134, %v4136
    %v4152 = vsel %vm1121, %v4136, %v4138
    %4167 = vst [vmem:[#allocation3 + $0x6c0] sm:$0xff] %v4139
    %4168 = vst [vmem:[#allocation3 + $0x6c8] sm:$0xff] %v4140
    %4169 = vst [vmem:[#allocation3 + $0x6d0] sm:$0xff] %v4141
    %4170 = vst [vmem:[#allocation3 + $0x6d8] sm:$0xff] %v4142
    %4171 = vst [vmem:[#allocation3 + $0x6e0] sm:$0xff] %v4143
    %4172 = vst [vmem:[#allocation3 + $0x6e8] sm:$0xff] %v4144
    %4173 = vst [vmem:[#allocation3 + $0x6f0] sm:$0xff] %v4145
    %4174 = vst [vmem:[#allocation3 + $0x700] sm:$0xf] %v4146
    %4175 = vst [vmem:[#allocation3 + $0x708] sm:$0xf] %v4147
    %4176 = vst [vmem:[#allocation3 + $0x710] sm:$0xf] %v4148
    %4177 = vst [vmem:[#allocation3 + $0x718] sm:$0xf] %v4149
    %4178 = vst [vmem:[#allocation3 + $0x720] sm:$0xf] %v4150
    %4179 = vst [vmem:[#allocation3 + $0x728] sm:$0xf] %v4151
    %4180 = vst [vmem:[#allocation3 + $0x730] sm:$0xf] %v4152
    %v4181 = vld [vmem:[#allocation2] sm:$0xff]
    %v4182 = vld [vmem:[#allocation2 + $0x8] sm:$0xff]
    %v4183 = vld [vmem:[#allocation2 + $0x10] sm:$0xff]
    %v4184 = vld [vmem:[#allocation2 + $0x18] sm:$0xff]
    %v4185 = vld [vmem:[#allocation2 + $0x20] sm:$0xff]
    %v4186 = vld [vmem:[#allocation2 + $0x28] sm:$0xff]
    %v4187 = vld [vmem:[#allocation2 + $0x30] sm:$0xff]
    %v4188 = vld [vmem:[#allocation2 + $0x38] sm:$0xff]
    %v4189 = vld [vmem:[#allocation2 + $0x40] sm:$0xf]
    %v4190 = vld [vmem:[#allocation2 + $0x48] sm:$0xf]
    %v4191 = vld [vmem:[#allocation2 + $0x50] sm:$0xf]
    %v4192 = vld [vmem:[#allocation2 + $0x58] sm:$0xf]
    %v4193 = vld [vmem:[#allocation2 + $0x60] sm:$0xf]
    %v4194 = vld [vmem:[#allocation2 + $0x68] sm:$0xf]
    %v4195 = vld [vmem:[#allocation2 + $0x70] sm:$0xf]
    %v4196 = vld [vmem:[#allocation2 + $0x78] sm:$0xf]
    %v4213 = vrot.slane %v4181, 4
    %v4214 = vrot.slane %v4182, 4
    %v4215 = vrot.slane %v4183, 4
    %v4216 = vrot.slane %v4184, 4
    %v4217 = vrot.slane %v4185, 4
    %v4218 = vrot.slane %v4186, 4
    %v4219 = vrot.slane %v4187, 4
    %v4220 = vrot.slane %v4188, 4
    %v4221 = vrot.slane %v4189, 4
    %v4222 = vsel %vm1593, %v4213, %v4221
    %v4223 = vrot.slane %v4190, 4
    %v4224 = vsel %vm1593, %v4214, %v4223
    %v4225 = vrot.slane %v4191, 4
    %v4226 = vsel %vm1593, %v4215, %v4225
    %v4227 = vrot.slane %v4192, 4
    %v4228 = vsel %vm1593, %v4216, %v4227
    %v4229 = vrot.slane %v4193, 4
    %v4230 = vsel %vm1593, %v4217, %v4229
    %v4231 = vrot.slane %v4194, 4
    %v4232 = vsel %vm1593, %v4218, %v4231
    %v4233 = vrot.slane %v4195, 4
    %v4234 = vsel %vm1593, %v4219, %v4233
    %v4235 = vrot.slane %v4196, 4
    %v4236 = vsel %vm1593, %v4220, %v4235
    %4237 = vrot.lane.b32.xlu0 %v4213, 64
    %v4238 = vpop.permute.xlu0 %4237
    %4239 = vrot.lane.b32.xlu0 %v4214, 64
    %v4240 = vpop.permute.xlu0 %4239
    %4241 = vrot.lane.b32.xlu0 %v4215, 64
    %v4242 = vpop.permute.xlu0 %4241
    %4243 = vrot.lane.b32.xlu0 %v4216, 64
    %v4244 = vpop.permute.xlu0 %4243
    %4245 = vrot.lane.b32.xlu0 %v4217, 64
    %v4246 = vpop.permute.xlu0 %4245
    %4247 = vrot.lane.b32.xlu0 %v4218, 64
    %v4248 = vpop.permute.xlu0 %4247
    %4249 = vrot.lane.b32.xlu0 %v4219, 64
    %v4250 = vpop.permute.xlu0 %4249
    %4251 = vrot.lane.b32.xlu0 %v4220, 64
    %v4252 = vpop.permute.xlu0 %4251
    %4253 = vrot.lane.b32.xlu0 %v4222, 64
    %v4254 = vpop.permute.xlu0 %4253
    %4255 = vrot.lane.b32.xlu0 %v4224, 64
    %v4256 = vpop.permute.xlu0 %4255
    %4257 = vrot.lane.b32.xlu0 %v4226, 64
    %v4258 = vpop.permute.xlu0 %4257
    %4259 = vrot.lane.b32.xlu0 %v4228, 64
    %v4260 = vpop.permute.xlu0 %4259
    %4261 = vrot.lane.b32.xlu0 %v4230, 64
    %v4262 = vpop.permute.xlu0 %4261
    %4263 = vrot.lane.b32.xlu0 %v4232, 64
    %v4264 = vpop.permute.xlu0 %4263
    %4265 = vrot.lane.b32.xlu0 %v4234, 64
    %v4266 = vpop.permute.xlu0 %4265
    %4267 = vrot.lane.b32.xlu0 %v4236, 64
    %v4268 = vpop.permute.xlu0 %4267
    %v4269 = vsel %vm1183, %v4238, %v4240
    %v4270 = vsel %vm1183, %v4240, %v4242
    %v4271 = vsel %vm1183, %v4242, %v4244
    %v4272 = vsel %vm1183, %v4244, %v4246
    %v4273 = vsel %vm1183, %v4246, %v4248
    %v4274 = vsel %vm1183, %v4248, %v4250
    %v4275 = vsel %vm1183, %v4250, %v4252
    %v4276 = vsel %vm1183, %v4254, %v4256
    %v4277 = vsel %vm1183, %v4256, %v4258
    %v4278 = vsel %vm1183, %v4258, %v4260
    %v4279 = vsel %vm1183, %v4260, %v4262
    %v4280 = vsel %vm1183, %v4262, %v4264
    %v4281 = vsel %vm1183, %v4264, %v4266
    %v4282 = vsel %vm1183, %v4266, %v4268
    %4297 = vst [vmem:[#allocation3 + $0x700] sm:$0xf0] %v4269
    %4298 = vst [vmem:[#allocation3 + $0x708] sm:$0xf0] %v4270
    %4299 = vst [vmem:[#allocation3 + $0x710] sm:$0xf0] %v4271
    %4300 = vst [vmem:[#allocation3 + $0x718] sm:$0xf0] %v4272
    %4301 = vst [vmem:[#allocation3 + $0x720] sm:$0xf0] %v4273
    %4302 = vst [vmem:[#allocation3 + $0x728] sm:$0xf0] %v4274
    %4303 = vst [vmem:[#allocation3 + $0x730] sm:$0xf0] %v4275
    %4304 = vst [vmem:[#allocation3 + $0x740] sm:$0xff] %v4276
    %4305 = vst [vmem:[#allocation3 + $0x748] sm:$0xff] %v4277
    %4306 = vst [vmem:[#allocation3 + $0x750] sm:$0xff] %v4278
    %4307 = vst [vmem:[#allocation3 + $0x758] sm:$0xff] %v4279
    %4308 = vst [vmem:[#allocation3 + $0x760] sm:$0xff] %v4280
    %4309 = vst [vmem:[#allocation3 + $0x768] sm:$0xff] %v4281
    %4310 = vst [vmem:[#allocation3 + $0x770] sm:$0xff] %v4282
    %v4311 = vld [vmem:[#allocation2] sm:$0xff]
    %v4312 = vld [vmem:[#allocation2 + $0x8] sm:$0xff]
    %v4313 = vld [vmem:[#allocation2 + $0x10] sm:$0xff]
    %v4314 = vld [vmem:[#allocation2 + $0x18] sm:$0xff]
    %v4315 = vld [vmem:[#allocation2 + $0x20] sm:$0xff]
    %v4316 = vld [vmem:[#allocation2 + $0x28] sm:$0xff]
    %v4317 = vld [vmem:[#allocation2 + $0x30] sm:$0xff]
    %v4318 = vld [vmem:[#allocation2 + $0x38] sm:$0xff]
    %v4319 = vld [vmem:[#allocation2 + $0x40] sm:$0xf]
    %v4320 = vld [vmem:[#allocation2 + $0x48] sm:$0xf]
    %v4321 = vld [vmem:[#allocation2 + $0x50] sm:$0xf]
    %v4322 = vld [vmem:[#allocation2 + $0x58] sm:$0xf]
    %v4323 = vld [vmem:[#allocation2 + $0x60] sm:$0xf]
    %v4324 = vld [vmem:[#allocation2 + $0x68] sm:$0xf]
    %v4325 = vld [vmem:[#allocation2 + $0x70] sm:$0xf]
    %v4326 = vld [vmem:[#allocation2 + $0x78] sm:$0xf]
    %4343 = vrot.lane.b32.xlu0 %v4311, 48
    %v4344 = vpop.permute.xlu0 %4343
    %4345 = vrot.lane.b32.xlu0 %v4312, 48
    %v4346 = vpop.permute.xlu0 %4345
    %4347 = vrot.lane.b32.xlu0 %v4313, 48
    %v4348 = vpop.permute.xlu0 %4347
    %4349 = vrot.lane.b32.xlu0 %v4314, 48
    %v4350 = vpop.permute.xlu0 %4349
    %4351 = vrot.lane.b32.xlu0 %v4315, 48
    %v4352 = vpop.permute.xlu0 %4351
    %4353 = vrot.lane.b32.xlu0 %v4316, 48
    %v4354 = vpop.permute.xlu0 %4353
    %4355 = vrot.lane.b32.xlu0 %v4317, 48
    %v4356 = vpop.permute.xlu0 %4355
    %4357 = vrot.lane.b32.xlu0 %v4318, 48
    %v4358 = vpop.permute.xlu0 %4357
    %4359 = vrot.lane.b32.xlu0 %v4319, 48
    %v4360 = vpop.permute.xlu0 %4359
    %4361 = vrot.lane.b32.xlu0 %v4320, 48
    %v4362 = vpop.permute.xlu0 %4361
    %4363 = vrot.lane.b32.xlu0 %v4321, 48
    %v4364 = vpop.permute.xlu0 %4363
    %4365 = vrot.lane.b32.xlu0 %v4322, 48
    %v4366 = vpop.permute.xlu0 %4365
    %4367 = vrot.lane.b32.xlu0 %v4323, 48
    %v4368 = vpop.permute.xlu0 %4367
    %4369 = vrot.lane.b32.xlu0 %v4324, 48
    %v4370 = vpop.permute.xlu0 %4369
    %4371 = vrot.lane.b32.xlu0 %v4325, 48
    %v4372 = vpop.permute.xlu0 %4371
    %4373 = vrot.lane.b32.xlu0 %v4326, 48
    %v4374 = vpop.permute.xlu0 %4373
    %v4375 = vsel %vm1237, %v4344, %v4346
    %v4376 = vsel %vm1237, %v4346, %v4348
    %v4377 = vsel %vm1237, %v4348, %v4350
    %v4378 = vsel %vm1237, %v4350, %v4352
    %v4379 = vsel %vm1237, %v4352, %v4354
    %v4380 = vsel %vm1237, %v4354, %v4356
    %v4381 = vsel %vm1237, %v4356, %v4358
    %v4382 = vsel %vm1237, %v4360, %v4362
    %v4383 = vsel %vm1237, %v4362, %v4364
    %v4384 = vsel %vm1237, %v4364, %v4366
    %v4385 = vsel %vm1237, %v4366, %v4368
    %v4386 = vsel %vm1237, %v4368, %v4370
    %v4387 = vsel %vm1237, %v4370, %v4372
    %v4388 = vsel %vm1237, %v4372, %v4374
    %4403 = vst [vmem:[#allocation3 + $0x780] sm:$0xff] %v4375
    %4404 = vst [vmem:[#allocation3 + $0x788] sm:$0xff] %v4376
    %4405 = vst [vmem:[#allocation3 + $0x790] sm:$0xff] %v4377
    %4406 = vst [vmem:[#allocation3 + $0x798] sm:$0xff] %v4378
    %4407 = vst [vmem:[#allocation3 + $0x7a0] sm:$0xff] %v4379
    %4408 = vst [vmem:[#allocation3 + $0x7a8] sm:$0xff] %v4380
    %4409 = vst [vmem:[#allocation3 + $0x7b0] sm:$0xff] %v4381
    %4410 = vst [vmem:[#allocation3 + $0x7c0] sm:$0xf] %v4382
    %4411 = vst [vmem:[#allocation3 + $0x7c8] sm:$0xf] %v4383
    %4412 = vst [vmem:[#allocation3 + $0x7d0] sm:$0xf] %v4384
    %4413 = vst [vmem:[#allocation3 + $0x7d8] sm:$0xf] %v4385
    %4414 = vst [vmem:[#allocation3 + $0x7e0] sm:$0xf] %v4386
    %4415 = vst [vmem:[#allocation3 + $0x7e8] sm:$0xf] %v4387
    %4416 = vst [vmem:[#allocation3 + $0x7f0] sm:$0xf] %v4388
    %v4417 = vld [vmem:[#allocation2] sm:$0xff]
    %v4418 = vld [vmem:[#allocation2 + $0x8] sm:$0xff]
    %v4419 = vld [vmem:[#allocation2 + $0x10] sm:$0xff]
    %v4420 = vld [vmem:[#allocation2 + $0x18] sm:$0xff]
    %v4421 = vld [vmem:[#allocation2 + $0x20] sm:$0xff]
    %v4422 = vld [vmem:[#allocation2 + $0x28] sm:$0xff]
    %v4423 = vld [vmem:[#allocation2 + $0x30] sm:$0xff]
    %v4424 = vld [vmem:[#allocation2 + $0x38] sm:$0xff]
    %v4425 = vld [vmem:[#allocation2 + $0x40] sm:$0xf]
    %v4426 = vld [vmem:[#allocation2 + $0x48] sm:$0xf]
    %v4427 = vld [vmem:[#allocation2 + $0x50] sm:$0xf]
    %v4428 = vld [vmem:[#allocation2 + $0x58] sm:$0xf]
    %v4429 = vld [vmem:[#allocation2 + $0x60] sm:$0xf]
    %v4430 = vld [vmem:[#allocation2 + $0x68] sm:$0xf]
    %v4431 = vld [vmem:[#allocation2 + $0x70] sm:$0xf]
    %v4432 = vld [vmem:[#allocation2 + $0x78] sm:$0xf]
    %v4449 = vrot.slane %v4417, 4
    %v4450 = vrot.slane %v4418, 4
    %v4451 = vrot.slane %v4419, 4
    %v4452 = vrot.slane %v4420, 4
    %v4453 = vrot.slane %v4421, 4
    %v4454 = vrot.slane %v4422, 4
    %v4455 = vrot.slane %v4423, 4
    %v4456 = vrot.slane %v4424, 4
    %v4457 = vrot.slane %v4425, 4
    %v4458 = vsel %vm1593, %v4449, %v4457
    %v4459 = vrot.slane %v4426, 4
    %v4460 = vsel %vm1593, %v4450, %v4459
    %v4461 = vrot.slane %v4427, 4
    %v4462 = vsel %vm1593, %v4451, %v4461
    %v4463 = vrot.slane %v4428, 4
    %v4464 = vsel %vm1593, %v4452, %v4463
    %v4465 = vrot.slane %v4429, 4
    %v4466 = vsel %vm1593, %v4453, %v4465
    %v4467 = vrot.slane %v4430, 4
    %v4468 = vsel %vm1593, %v4454, %v4467
    %v4469 = vrot.slane %v4431, 4
    %v4470 = vsel %vm1593, %v4455, %v4469
    %v4471 = vrot.slane %v4432, 4
    %v4472 = vsel %vm1593, %v4456, %v4471
    %4473 = vrot.lane.b32.xlu0 %v4449, 47
    %v4474 = vpop.permute.xlu0 %4473
    %4475 = vrot.lane.b32.xlu0 %v4450, 47
    %v4476 = vpop.permute.xlu0 %4475
    %4477 = vrot.lane.b32.xlu0 %v4451, 47
    %v4478 = vpop.permute.xlu0 %4477
    %4479 = vrot.lane.b32.xlu0 %v4452, 47
    %v4480 = vpop.permute.xlu0 %4479
    %4481 = vrot.lane.b32.xlu0 %v4453, 47
    %v4482 = vpop.permute.xlu0 %4481
    %4483 = vrot.lane.b32.xlu0 %v4454, 47
    %v4484 = vpop.permute.xlu0 %4483
    %4485 = vrot.lane.b32.xlu0 %v4455, 47
    %v4486 = vpop.permute.xlu0 %4485
    %4487 = vrot.lane.b32.xlu0 %v4456, 47
    %v4488 = vpop.permute.xlu0 %4487
    %4489 = vrot.lane.b32.xlu0 %v4458, 47
    %v4490 = vpop.permute.xlu0 %4489
    %4491 = vrot.lane.b32.xlu0 %v4460, 47
    %v4492 = vpop.permute.xlu0 %4491
    %4493 = vrot.lane.b32.xlu0 %v4462, 47
    %v4494 = vpop.permute.xlu0 %4493
    %4495 = vrot.lane.b32.xlu0 %v4464, 47
    %v4496 = vpop.permute.xlu0 %4495
    %4497 = vrot.lane.b32.xlu0 %v4466, 47
    %v4498 = vpop.permute.xlu0 %4497
    %4499 = vrot.lane.b32.xlu0 %v4468, 47
    %v4500 = vpop.permute.xlu0 %4499
    %4501 = vrot.lane.b32.xlu0 %v4470, 47
    %v4502 = vpop.permute.xlu0 %4501
    %4503 = vrot.lane.b32.xlu0 %v4472, 47
    %v4504 = vpop.permute.xlu0 %4503
    %v4505 = vsel %vm1299, %v4474, %v4476
    %v4506 = vsel %vm1299, %v4476, %v4478
    %v4507 = vsel %vm1299, %v4478, %v4480
    %v4508 = vsel %vm1299, %v4480, %v4482
    %v4509 = vsel %vm1299, %v4482, %v4484
    %v4510 = vsel %vm1299, %v4484, %v4486
    %v4511 = vsel %vm1299, %v4486, %v4488
    %v4512 = vsel %vm1299, %v4490, %v4492
    %v4513 = vsel %vm1299, %v4492, %v4494
    %v4514 = vsel %vm1299, %v4494, %v4496
    %v4515 = vsel %vm1299, %v4496, %v4498
    %v4516 = vsel %vm1299, %v4498, %v4500
    %v4517 = vsel %vm1299, %v4500, %v4502
    %v4518 = vsel %vm1299, %v4502, %v4504
    %4533 = vst [vmem:[#allocation3 + $0x7c0] sm:$0xf0] %v4505
    %4534 = vst [vmem:[#allocation3 + $0x7c8] sm:$0xf0] %v4506
    %4535 = vst [vmem:[#allocation3 + $0x7d0] sm:$0xf0] %v4507
    %4536 = vst [vmem:[#allocation3 + $0x7d8] sm:$0xf0] %v4508
    %4537 = vst [vmem:[#allocation3 + $0x7e0] sm:$0xf0] %v4509
    %4538 = vst [vmem:[#allocation3 + $0x7e8] sm:$0xf0] %v4510
    %4539 = vst [vmem:[#allocation3 + $0x7f0] sm:$0xf0] %v4511
    %4540 = vst [vmem:[#allocation3 + $0x800] sm:$0xff] %v4512
    %4541 = vst [vmem:[#allocation3 + $0x808] sm:$0xff] %v4513
    %4542 = vst [vmem:[#allocation3 + $0x810] sm:$0xff] %v4514
    %4543 = vst [vmem:[#allocation3 + $0x818] sm:$0xff] %v4515
    %4544 = vst [vmem:[#allocation3 + $0x820] sm:$0xff] %v4516
    %4545 = vst [vmem:[#allocation3 + $0x828] sm:$0xff] %v4517
    %4546 = vst [vmem:[#allocation3 + $0x830] sm:$0xff] %v4518
    %v4547 = vld [vmem:[#allocation2] sm:$0xff]
    %v4548 = vld [vmem:[#allocation2 + $0x8] sm:$0xff]
    %v4549 = vld [vmem:[#allocation2 + $0x10] sm:$0xff]
    %v4550 = vld [vmem:[#allocation2 + $0x18] sm:$0xff]
    %v4551 = vld [vmem:[#allocation2 + $0x20] sm:$0xff]
    %v4552 = vld [vmem:[#allocation2 + $0x28] sm:$0xff]
    %v4553 = vld [vmem:[#allocation2 + $0x30] sm:$0xff]
    %v4554 = vld [vmem:[#allocation2 + $0x38] sm:$0xff]
    %v4555 = vld [vmem:[#allocation2 + $0x40] sm:$0xf]
    %v4556 = vld [vmem:[#allocation2 + $0x48] sm:$0xf]
    %v4557 = vld [vmem:[#allocation2 + $0x50] sm:$0xf]
    %v4558 = vld [vmem:[#allocation2 + $0x58] sm:$0xf]
    %v4559 = vld [vmem:[#allocation2 + $0x60] sm:$0xf]
    %v4560 = vld [vmem:[#allocation2 + $0x68] sm:$0xf]
    %v4561 = vld [vmem:[#allocation2 + $0x70] sm:$0xf]
    %v4562 = vld [vmem:[#allocation2 + $0x78] sm:$0xf]
    %4579 = vrot.lane.b32.xlu0 %v4547, 46
    %v4580 = vpop.permute.xlu0 %4579
    %4581 = vrot.lane.b32.xlu0 %v4548, 46
    %v4582 = vpop.permute.xlu0 %4581
    %4583 = vrot.lane.b32.xlu0 %v4549, 46
    %v4584 = vpop.permute.xlu0 %4583
    %4585 = vrot.lane.b32.xlu0 %v4550, 46
    %v4586 = vpop.permute.xlu0 %4585
    %4587 = vrot.lane.b32.xlu0 %v4551, 46
    %v4588 = vpop.permute.xlu0 %4587
    %4589 = vrot.lane.b32.xlu0 %v4552, 46
    %v4590 = vpop.permute.xlu0 %4589
    %4591 = vrot.lane.b32.xlu0 %v4553, 46
    %v4592 = vpop.permute.xlu0 %4591
    %4593 = vrot.lane.b32.xlu0 %v4554, 46
    %v4594 = vpop.permute.xlu0 %4593
    %4595 = vrot.lane.b32.xlu0 %v4555, 46
    %v4596 = vpop.permute.xlu0 %4595
    %4597 = vrot.lane.b32.xlu0 %v4556, 46
    %v4598 = vpop.permute.xlu0 %4597
    %4599 = vrot.lane.b32.xlu0 %v4557, 46
    %v4600 = vpop.permute.xlu0 %4599
    %4601 = vrot.lane.b32.xlu0 %v4558, 46
    %v4602 = vpop.permute.xlu0 %4601
    %4603 = vrot.lane.b32.xlu0 %v4559, 46
    %v4604 = vpop.permute.xlu0 %4603
    %4605 = vrot.lane.b32.xlu0 %v4560, 46
    %v4606 = vpop.permute.xlu0 %4605
    %4607 = vrot.lane.b32.xlu0 %v4561, 46
    %v4608 = vpop.permute.xlu0 %4607
    %4609 = vrot.lane.b32.xlu0 %v4562, 46
    %v4610 = vpop.permute.xlu0 %4609
    %v4611 = vsel %vm1353, %v4580, %v4582
    %v4612 = vsel %vm1353, %v4582, %v4584
    %v4613 = vsel %vm1353, %v4584, %v4586
    %v4614 = vsel %vm1353, %v4586, %v4588
    %v4615 = vsel %vm1353, %v4588, %v4590
    %v4616 = vsel %vm1353, %v4590, %v4592
    %v4617 = vsel %vm1353, %v4592, %v4594
    %v4618 = vsel %vm1353, %v4596, %v4598
    %v4619 = vsel %vm1353, %v4598, %v4600
    %v4620 = vsel %vm1353, %v4600, %v4602
    %v4621 = vsel %vm1353, %v4602, %v4604
    %v4622 = vsel %vm1353, %v4604, %v4606
    %v4623 = vsel %vm1353, %v4606, %v4608
    %v4624 = vsel %vm1353, %v4608, %v4610
    %4639 = vst [vmem:[#allocation3 + $0x840] sm:$0xff] %v4611
    %4640 = vst [vmem:[#allocation3 + $0x848] sm:$0xff] %v4612
    %4641 = vst [vmem:[#allocation3 + $0x850] sm:$0xff] %v4613
    %4642 = vst [vmem:[#allocation3 + $0x858] sm:$0xff] %v4614
    %4643 = vst [vmem:[#allocation3 + $0x860] sm:$0xff] %v4615
    %4644 = vst [vmem:[#allocation3 + $0x868] sm:$0xff] %v4616
    %4645 = vst [vmem:[#allocation3 + $0x870] sm:$0xff] %v4617
    %4646 = vst [vmem:[#allocation3 + $0x880] sm:$0xf] %v4618
    %4647 = vst [vmem:[#allocation3 + $0x888] sm:$0xf] %v4619
    %4648 = vst [vmem:[#allocation3 + $0x890] sm:$0xf] %v4620
    %4649 = vst [vmem:[#allocation3 + $0x898] sm:$0xf] %v4621
    %4650 = vst [vmem:[#allocation3 + $0x8a0] sm:$0xf] %v4622
    %4651 = vst [vmem:[#allocation3 + $0x8a8] sm:$0xf] %v4623
    %4652 = vst [vmem:[#allocation3 + $0x8b0] sm:$0xf] %v4624
    %v4653 = vld [vmem:[#allocation2] sm:$0xff]
    %v4654 = vld [vmem:[#allocation2 + $0x8] sm:$0xff]
    %v4655 = vld [vmem:[#allocation2 + $0x10] sm:$0xff]
    %v4656 = vld [vmem:[#allocation2 + $0x18] sm:$0xff]
    %v4657 = vld [vmem:[#allocation2 + $0x20] sm:$0xff]
    %v4658 = vld [vmem:[#allocation2 + $0x28] sm:$0xff]
    %v4659 = vld [vmem:[#allocation2 + $0x30] sm:$0xff]
    %v4660 = vld [vmem:[#allocation2 + $0x38] sm:$0xff]
    %v4661 = vld [vmem:[#allocation2 + $0x40] sm:$0xf]
    %v4662 = vld [vmem:[#allocation2 + $0x48] sm:$0xf]
    %v4663 = vld [vmem:[#allocation2 + $0x50] sm:$0xf]
    %v4664 = vld [vmem:[#allocation2 + $0x58] sm:$0xf]
    %v4665 = vld [vmem:[#allocation2 + $0x60] sm:$0xf]
    %v4666 = vld [vmem:[#allocation2 + $0x68] sm:$0xf]
    %v4667 = vld [vmem:[#allocation2 + $0x70] sm:$0xf]
    %v4668 = vld [vmem:[#allocation2 + $0x78] sm:$0xf]
    %v4685 = vrot.slane %v4653, 4
    %v4686 = vrot.slane %v4654, 4
    %v4687 = vrot.slane %v4655, 4
    %v4688 = vrot.slane %v4656, 4
    %v4689 = vrot.slane %v4657, 4
    %v4690 = vrot.slane %v4658, 4
    %v4691 = vrot.slane %v4659, 4
    %v4692 = vrot.slane %v4660, 4
    %v4693 = vrot.slane %v4661, 4
    %v4694 = vsel %vm1593, %v4685, %v4693
    %v4695 = vrot.slane %v4662, 4
    %v4696 = vsel %vm1593, %v4686, %v4695
    %v4697 = vrot.slane %v4663, 4
    %v4698 = vsel %vm1593, %v4687, %v4697
    %v4699 = vrot.slane %v4664, 4
    %v4700 = vsel %vm1593, %v4688, %v4699
    %v4701 = vrot.slane %v4665, 4
    %v4702 = vsel %vm1593, %v4689, %v4701
    %v4703 = vrot.slane %v4666, 4
    %v4704 = vsel %vm1593, %v4690, %v4703
    %v4705 = vrot.slane %v4667, 4
    %v4706 = vsel %vm1593, %v4691, %v4705
    %v4707 = vrot.slane %v4668, 4
    %v4708 = vsel %vm1593, %v4692, %v4707
    %4709 = vrot.lane.b32.xlu0 %v4685, 45
    %v4710 = vpop.permute.xlu0 %4709
    %4711 = vrot.lane.b32.xlu0 %v4686, 45
    %v4712 = vpop.permute.xlu0 %4711
    %4713 = vrot.lane.b32.xlu0 %v4687, 45
    %v4714 = vpop.permute.xlu0 %4713
    %4715 = vrot.lane.b32.xlu0 %v4688, 45
    %v4716 = vpop.permute.xlu0 %4715
    %4717 = vrot.lane.b32.xlu0 %v4689, 45
    %v4718 = vpop.permute.xlu0 %4717
    %4719 = vrot.lane.b32.xlu0 %v4690, 45
    %v4720 = vpop.permute.xlu0 %4719
    %4721 = vrot.lane.b32.xlu0 %v4691, 45
    %v4722 = vpop.permute.xlu0 %4721
    %4723 = vrot.lane.b32.xlu0 %v4692, 45
    %v4724 = vpop.permute.xlu0 %4723
    %4725 = vrot.lane.b32.xlu0 %v4694, 45
    %v4726 = vpop.permute.xlu0 %4725
    %4727 = vrot.lane.b32.xlu0 %v4696, 45
    %v4728 = vpop.permute.xlu0 %4727
    %4729 = vrot.lane.b32.xlu0 %v4698, 45
    %v4730 = vpop.permute.xlu0 %4729
    %4731 = vrot.lane.b32.xlu0 %v4700, 45
    %v4732 = vpop.permute.xlu0 %4731
    %4733 = vrot.lane.b32.xlu0 %v4702, 45
    %v4734 = vpop.permute.xlu0 %4733
    %4735 = vrot.lane.b32.xlu0 %v4704, 45
    %v4736 = vpop.permute.xlu0 %4735
    %4737 = vrot.lane.b32.xlu0 %v4706, 45
    %v4738 = vpop.permute.xlu0 %4737
    %4739 = vrot.lane.b32.xlu0 %v4708, 45
    %v4740 = vpop.permute.xlu0 %4739
    %v4741 = vsel %vm1415, %v4710, %v4712
    %v4742 = vsel %vm1415, %v4712, %v4714
    %v4743 = vsel %vm1415, %v4714, %v4716
    %v4744 = vsel %vm1415, %v4716, %v4718
    %v4745 = vsel %vm1415, %v4718, %v4720
    %v4746 = vsel %vm1415, %v4720, %v4722
    %v4747 = vsel %vm1415, %v4722, %v4724
    %v4748 = vsel %vm1415, %v4726, %v4728
    %v4749 = vsel %vm1415, %v4728, %v4730
    %v4750 = vsel %vm1415, %v4730, %v4732
    %v4751 = vsel %vm1415, %v4732, %v4734
    %v4752 = vsel %vm1415, %v4734, %v4736
    %v4753 = vsel %vm1415, %v4736, %v4738
    %v4754 = vsel %vm1415, %v4738, %v4740
    %4769 = vst [vmem:[#allocation3 + $0x880] sm:$0xf0] %v4741
    %4770 = vst [vmem:[#allocation3 + $0x888] sm:$0xf0] %v4742
    %4771 = vst [vmem:[#allocation3 + $0x890] sm:$0xf0] %v4743
    %4772 = vst [vmem:[#allocation3 + $0x898] sm:$0xf0] %v4744
    %4773 = vst [vmem:[#allocation3 + $0x8a0] sm:$0xf0] %v4745
    %4774 = vst [vmem:[#allocation3 + $0x8a8] sm:$0xf0] %v4746
    %4775 = vst [vmem:[#allocation3 + $0x8b0] sm:$0xf0] %v4747
    %4776 = vst [vmem:[#allocation3 + $0x8c0] sm:$0xff] %v4748
    %4777 = vst [vmem:[#allocation3 + $0x8c8] sm:$0xff] %v4749
    %4778 = vst [vmem:[#allocation3 + $0x8d0] sm:$0xff] %v4750
    %4779 = vst [vmem:[#allocation3 + $0x8d8] sm:$0xff] %v4751
    %4780 = vst [vmem:[#allocation3 + $0x8e0] sm:$0xff] %v4752
    %4781 = vst [vmem:[#allocation3 + $0x8e8] sm:$0xff] %v4753
    %4782 = vst [vmem:[#allocation3 + $0x8f0] sm:$0xff] %v4754
    %v4783 = vld [vmem:[#allocation2] sm:$0xff]
    %v4784 = vld [vmem:[#allocation2 + $0x8] sm:$0xff]
    %v4785 = vld [vmem:[#allocation2 + $0x10] sm:$0xff]
    %v4786 = vld [vmem:[#allocation2 + $0x18] sm:$0xff]
    %v4787 = vld [vmem:[#allocation2 + $0x20] sm:$0xff]
    %v4788 = vld [vmem:[#allocation2 + $0x28] sm:$0xff]
    %v4789 = vld [vmem:[#allocation2 + $0x30] sm:$0xff]
    %v4790 = vld [vmem:[#allocation2 + $0x38] sm:$0xff]
    %v4791 = vld [vmem:[#allocation2 + $0x40] sm:$0xf]
    %v4792 = vld [vmem:[#allocation2 + $0x48] sm:$0xf]
    %v4793 = vld [vmem:[#allocation2 + $0x50] sm:$0xf]
    %v4794 = vld [vmem:[#allocation2 + $0x58] sm:$0xf]
    %v4795 = vld [vmem:[#allocation2 + $0x60] sm:$0xf]
    %v4796 = vld [vmem:[#allocation2 + $0x68] sm:$0xf]
    %v4797 = vld [vmem:[#allocation2 + $0x70] sm:$0xf]
    %v4798 = vld [vmem:[#allocation2 + $0x78] sm:$0xf]
    %4815 = vrot.lane.b32.xlu0 %v4783, 44
    %v4816 = vpop.permute.xlu0 %4815
    %4817 = vrot.lane.b32.xlu0 %v4784, 44
    %v4818 = vpop.permute.xlu0 %4817
    %4819 = vrot.lane.b32.xlu0 %v4785, 44
    %v4820 = vpop.permute.xlu0 %4819
    %4821 = vrot.lane.b32.xlu0 %v4786, 44
    %v4822 = vpop.permute.xlu0 %4821
    %4823 = vrot.lane.b32.xlu0 %v4787, 44
    %v4824 = vpop.permute.xlu0 %4823
    %4825 = vrot.lane.b32.xlu0 %v4788, 44
    %v4826 = vpop.permute.xlu0 %4825
    %4827 = vrot.lane.b32.xlu0 %v4789, 44
    %v4828 = vpop.permute.xlu0 %4827
    %4829 = vrot.lane.b32.xlu0 %v4790, 44
    %v4830 = vpop.permute.xlu0 %4829
    %4831 = vrot.lane.b32.xlu0 %v4791, 44
    %v4832 = vpop.permute.xlu0 %4831
    %4833 = vrot.lane.b32.xlu0 %v4792, 44
    %v4834 = vpop.permute.xlu0 %4833
    %4835 = vrot.lane.b32.xlu0 %v4793, 44
    %v4836 = vpop.permute.xlu0 %4835
    %4837 = vrot.lane.b32.xlu0 %v4794, 44
    %v4838 = vpop.permute.xlu0 %4837
    %4839 = vrot.lane.b32.xlu0 %v4795, 44
    %v4840 = vpop.permute.xlu0 %4839
    %4841 = vrot.lane.b32.xlu0 %v4796, 44
    %v4842 = vpop.permute.xlu0 %4841
    %4843 = vrot.lane.b32.xlu0 %v4797, 44
    %v4844 = vpop.permute.xlu0 %4843
    %4845 = vrot.lane.b32.xlu0 %v4798, 44
    %v4846 = vpop.permute.xlu0 %4845
    %v4847 = vsel %vm1469, %v4816, %v4818
    %v4848 = vsel %vm1469, %v4818, %v4820
    %v4849 = vsel %vm1469, %v4820, %v4822
    %v4850 = vsel %vm1469, %v4822, %v4824
    %v4851 = vsel %vm1469, %v4824, %v4826
    %v4852 = vsel %vm1469, %v4826, %v4828
    %v4853 = vsel %vm1469, %v4828, %v4830
    %v4854 = vsel %vm1469, %v4832, %v4834
    %v4855 = vsel %vm1469, %v4834, %v4836
    %v4856 = vsel %vm1469, %v4836, %v4838
    %v4857 = vsel %vm1469, %v4838, %v4840
    %v4858 = vsel %vm1469, %v4840, %v4842
    %v4859 = vsel %vm1469, %v4842, %v4844
    %v4860 = vsel %vm1469, %v4844, %v4846
    %4875 = vst [vmem:[#allocation3 + $0x900] sm:$0xff] %v4847
    %4876 = vst [vmem:[#allocation3 + $0x908] sm:$0xff] %v4848
    %4877 = vst [vmem:[#allocation3 + $0x910] sm:$0xff] %v4849
    %4878 = vst [vmem:[#allocation3 + $0x918] sm:$0xff] %v4850
    %4879 = vst [vmem:[#allocation3 + $0x920] sm:$0xff] %v4851
    %4880 = vst [vmem:[#allocation3 + $0x928] sm:$0xff] %v4852
    %4881 = vst [vmem:[#allocation3 + $0x930] sm:$0xff] %v4853
    %4882 = vst [vmem:[#allocation3 + $0x940] sm:$0xf] %v4854
    %4883 = vst [vmem:[#allocation3 + $0x948] sm:$0xf] %v4855
    %4884 = vst [vmem:[#allocation3 + $0x950] sm:$0xf] %v4856
    %4885 = vst [vmem:[#allocation3 + $0x958] sm:$0xf] %v4857
    %4886 = vst [vmem:[#allocation3 + $0x960] sm:$0xf] %v4858
    %4887 = vst [vmem:[#allocation3 + $0x968] sm:$0xf] %v4859
    %4888 = vst [vmem:[#allocation3 + $0x970] sm:$0xf] %v4860
    %v4889 = vld [vmem:[%s4] sm:$0xff]
    %v4890 = vld [vmem:[%s4 + $0x8] sm:$0xff]
    %v4891 = vld [vmem:[%s4 + $0x10] sm:$0xff]
    %v4892 = vld [vmem:[#allocation3] sm:$0xff]
    %v4893 = vld [vmem:[#allocation3 + $0x8] sm:$0xff]
    %v4894 = vld [vmem:[#allocation3 + $0x10] sm:$0xff]
    %v4895 = vld [vmem:[#allocation3 + $0x18] sm:$0xff]
    %v4896 = vld [vmem:[#allocation3 + $0x20] sm:$0xff]
    %v4897 = vld [vmem:[#allocation3 + $0x28] sm:$0xff]
    %v4898 = vld [vmem:[#allocation3 + $0x30] sm:$0xff]
    %v4899 = vld [vmem:[#allocation3 + $0x40] sm:$0xff]
    %v4900 = vld [vmem:[#allocation3 + $0x48] sm:$0xff]
    %v4901 = vld [vmem:[#allocation3 + $0x50] sm:$0xff]
    %v4902 = vld [vmem:[#allocation3 + $0x58] sm:$0xff]
    %v4903 = vld [vmem:[#allocation3 + $0x60] sm:$0xff]
    %v4904 = vld [vmem:[#allocation3 + $0x68] sm:$0xff]
    %v4905 = vld [vmem:[#allocation3 + $0x70] sm:$0xff]
    %v4906 = vld [vmem:[#allocation3 + $0x80] sm:$0xff]
    %v4907 = vld [vmem:[#allocation3 + $0x88] sm:$0xff]
    %v4908 = vld [vmem:[#allocation3 + $0x90] sm:$0xff]
    %v4909 = vld [vmem:[#allocation3 + $0x98] sm:$0xff]
    %v4910 = vld [vmem:[#allocation3 + $0xa0] sm:$0xff]
    %v4911 = vld [vmem:[#allocation3 + $0xa8] sm:$0xff]
    %v4912 = vld [vmem:[#allocation3 + $0xb0] sm:$0xff]
    %v4913 = vld [vmem:[#allocation3 + $0xc0] sm:$0xff]
    %v4914 = vld [vmem:[#allocation3 + $0xc8] sm:$0xff]
    %v4915 = vld [vmem:[#allocation3 + $0xd0] sm:$0xff]
    %v4916 = vld [vmem:[#allocation3 + $0xd8] sm:$0xff]
    %v4917 = vld [vmem:[#allocation3 + $0xe0] sm:$0xff]
    %v4918 = vld [vmem:[#allocation3 + $0xe8] sm:$0xff]
    %v4919 = vld [vmem:[#allocation3 + $0xf0] sm:$0xff]
    %v4920 = vld [vmem:[#allocation3 + $0x100] sm:$0xff]
    %v4921 = vld [vmem:[#allocation3 + $0x108] sm:$0xff]
    %v4922 = vld [vmem:[#allocation3 + $0x110] sm:$0xff]
    %v4923 = vld [vmem:[#allocation3 + $0x118] sm:$0xff]
    %v4924 = vld [vmem:[#allocation3 + $0x120] sm:$0xff]
    %v4925 = vld [vmem:[#allocation3 + $0x128] sm:$0xff]
    %v4926 = vld [vmem:[#allocation3 + $0x130] sm:$0xff]
    %v4927 = vld [vmem:[#allocation3 + $0x140] sm:$0xff]
    %v4928 = vld [vmem:[#allocation3 + $0x148] sm:$0xff]
    %v4929 = vld [vmem:[#allocation3 + $0x150] sm:$0xff]
    %v4930 = vld [vmem:[#allocation3 + $0x158] sm:$0xff]
    %v4931 = vld [vmem:[#allocation3 + $0x160] sm:$0xff]
    %v4932 = vld [vmem:[#allocation3 + $0x168] sm:$0xff]
    %v4933 = vld [vmem:[#allocation3 + $0x170] sm:$0xff]
    %v4934 = vld [vmem:[#allocation3 + $0x180] sm:$0xff]
    %v4935 = vld [vmem:[#allocation3 + $0x188] sm:$0xff]
    %v4936 = vld [vmem:[#allocation3 + $0x190] sm:$0xff]
    %v4937 = vld [vmem:[#allocation3 + $0x198] sm:$0xff]
    %v4938 = vld [vmem:[#allocation3 + $0x1a0] sm:$0xff]
    %v4939 = vld [vmem:[#allocation3 + $0x1a8] sm:$0xff]
    %v4940 = vld [vmem:[#allocation3 + $0x1b0] sm:$0xff]
    %v4941 = vld [vmem:[#allocation3 + $0x1c0] sm:$0xff]
    %v4942 = vld [vmem:[#allocation3 + $0x1c8] sm:$0xff]
    %v4943 = vld [vmem:[#allocation3 + $0x1d0] sm:$0xff]
    %v4944 = vld [vmem:[#allocation3 + $0x1d8] sm:$0xff]
    %v4945 = vld [vmem:[#allocation3 + $0x1e0] sm:$0xff]
    %v4946 = vld [vmem:[#allocation3 + $0x1e8] sm:$0xff]
    %v4947 = vld [vmem:[#allocation3 + $0x1f0] sm:$0xff]
    %v4948 = vld [vmem:[#allocation3 + $0x200] sm:$0xff]
    %v4949 = vld [vmem:[#allocation3 + $0x208] sm:$0xff]
    %v4950 = vld [vmem:[#allocation3 + $0x210] sm:$0xff]
    %v4951 = vld [vmem:[#allocation3 + $0x218] sm:$0xff]
    %v4952 = vld [vmem:[#allocation3 + $0x220] sm:$0xff]
    %v4953 = vld [vmem:[#allocation3 + $0x228] sm:$0xff]
    %v4954 = vld [vmem:[#allocation3 + $0x230] sm:$0xff]
    %v4955 = vld [vmem:[#allocation3 + $0x240] sm:$0xff]
    %v4956 = vld [vmem:[#allocation3 + $0x248] sm:$0xff]
    %v4957 = vld [vmem:[#allocation3 + $0x250] sm:$0xff]
    %v4958 = vld [vmem:[#allocation3 + $0x258] sm:$0xff]
    %v4959 = vld [vmem:[#allocation3 + $0x260] sm:$0xff]
    %v4960 = vld [vmem:[#allocation3 + $0x268] sm:$0xff]
    %v4961 = vld [vmem:[#allocation3 + $0x270] sm:$0xff]
    %v4962 = vld [vmem:[#allocation3 + $0x280] sm:$0xff]
    %v4963 = vld [vmem:[#allocation3 + $0x288] sm:$0xff]
    %v4964 = vld [vmem:[#allocation3 + $0x290] sm:$0xff]
    %v4965 = vld [vmem:[#allocation3 + $0x298] sm:$0xff]
    %v4966 = vld [vmem:[#allocation3 + $0x2a0] sm:$0xff]
    %v4967 = vld [vmem:[#allocation3 + $0x2a8] sm:$0xff]
    %v4968 = vld [vmem:[#allocation3 + $0x2b0] sm:$0xff]
    %v4969 = vld [vmem:[#allocation3 + $0x2c0] sm:$0xff]
    %v4970 = vld [vmem:[#allocation3 + $0x2c8] sm:$0xff]
    %v4971 = vld [vmem:[#allocation3 + $0x2d0] sm:$0xff]
    %v4972 = vld [vmem:[#allocation3 + $0x2d8] sm:$0xff]
    %v4973 = vld [vmem:[#allocation3 + $0x2e0] sm:$0xff]
    %v4974 = vld [vmem:[#allocation3 + $0x2e8] sm:$0xff]
    %v4975 = vld [vmem:[#allocation3 + $0x2f0] sm:$0xff]
    %v4976 = vld [vmem:[#allocation3 + $0x300] sm:$0xff]
    %v4977 = vld [vmem:[#allocation3 + $0x308] sm:$0xff]
    %v4978 = vld [vmem:[#allocation3 + $0x310] sm:$0xff]
    %v4979 = vld [vmem:[#allocation3 + $0x318] sm:$0xff]
    %v4980 = vld [vmem:[#allocation3 + $0x320] sm:$0xff]
    %v4981 = vld [vmem:[#allocation3 + $0x328] sm:$0xff]
    %v4982 = vld [vmem:[#allocation3 + $0x330] sm:$0xff]
    %v4983 = vld [vmem:[#allocation3 + $0x340] sm:$0xff]
    %v4984 = vld [vmem:[#allocation3 + $0x348] sm:$0xff]
    %v4985 = vld [vmem:[#allocation3 + $0x350] sm:$0xff]
    %v4986 = vld [vmem:[#allocation3 + $0x358] sm:$0xff]
    %v4987 = vld [vmem:[#allocation3 + $0x360] sm:$0xff]
    %v4988 = vld [vmem:[#allocation3 + $0x368] sm:$0xff]
    %v4989 = vld [vmem:[#allocation3 + $0x370] sm:$0xff]
    %v4990 = vld [vmem:[#allocation3 + $0x380] sm:$0xff]
    %v4991 = vld [vmem:[#allocation3 + $0x388] sm:$0xff]
    %v4992 = vld [vmem:[#allocation3 + $0x390] sm:$0xff]
    %v4993 = vld [vmem:[#allocation3 + $0x398] sm:$0xff]
    %v4994 = vld [vmem:[#allocation3 + $0x3a0] sm:$0xff]
    %v4995 = vld [vmem:[#allocation3 + $0x3a8] sm:$0xff]
    %v4996 = vld [vmem:[#allocation3 + $0x3b0] sm:$0xff]
    %v4997 = vld [vmem:[#allocation3 + $0x3c0] sm:$0xff]
    %v4998 = vld [vmem:[#allocation3 + $0x3c8] sm:$0xff]
    %v4999 = vld [vmem:[#allocation3 + $0x3d0] sm:$0xff]
    %v5000 = vld [vmem:[#allocation3 + $0x3d8] sm:$0xff]
    %v5001 = vld [vmem:[#allocation3 + $0x3e0] sm:$0xff]
    %v5002 = vld [vmem:[#allocation3 + $0x3e8] sm:$0xff]
    %v5003 = vld [vmem:[#allocation3 + $0x3f0] sm:$0xff]
    %v5004 = vld [vmem:[#allocation3 + $0x400] sm:$0xff]
    %v5005 = vld [vmem:[#allocation3 + $0x408] sm:$0xff]
    %v5006 = vld [vmem:[#allocation3 + $0x410] sm:$0xff]
    %v5007 = vld [vmem:[#allocation3 + $0x418] sm:$0xff]
    %v5008 = vld [vmem:[#allocation3 + $0x420] sm:$0xff]
    %v5009 = vld [vmem:[#allocation3 + $0x428] sm:$0xff]
    %v5010 = vld [vmem:[#allocation3 + $0x430] sm:$0xff]
    %v5011 = vld [vmem:[#allocation3 + $0x440] sm:$0xff]
    %v5012 = vld [vmem:[#allocation3 + $0x448] sm:$0xff]
    %v5013 = vld [vmem:[#allocation3 + $0x450] sm:$0xff]
    %v5014 = vld [vmem:[#allocation3 + $0x458] sm:$0xff]
    %v5015 = vld [vmem:[#allocation3 + $0x460] sm:$0xff]
    %v5016 = vld [vmem:[#allocation3 + $0x468] sm:$0xff]
    %v5017 = vld [vmem:[#allocation3 + $0x470] sm:$0xff]
    %v5018 = vld [vmem:[#allocation3 + $0x480] sm:$0xff]
    %v5019 = vld [vmem:[#allocation3 + $0x488] sm:$0xff]
    %v5020 = vld [vmem:[#allocation3 + $0x490] sm:$0xff]
    %v5021 = vld [vmem:[#allocation3 + $0x498] sm:$0xff]
    %v5022 = vld [vmem:[#allocation3 + $0x4a0] sm:$0xff]
    %v5023 = vld [vmem:[#allocation3 + $0x4a8] sm:$0xff]
    %v5024 = vld [vmem:[#allocation3 + $0x4b0] sm:$0xff]
    %v5025 = vld [vmem:[#allocation3 + $0x4c0] sm:$0xff]
    %v5026 = vld [vmem:[#allocation3 + $0x4c8] sm:$0xff]
    %v5027 = vld [vmem:[#allocation3 + $0x4d0] sm:$0xff]
    %v5028 = vld [vmem:[#allocation3 + $0x4d8] sm:$0xff]
    %v5029 = vld [vmem:[#allocation3 + $0x4e0] sm:$0xff]
    %v5030 = vld [vmem:[#allocation3 + $0x4e8] sm:$0xff]
    %v5031 = vld [vmem:[#allocation3 + $0x4f0] sm:$0xff]
    %v5032 = vld [vmem:[#allocation3 + $0x500] sm:$0xff]
    %v5033 = vld [vmem:[#allocation3 + $0x508] sm:$0xff]
    %v5034 = vld [vmem:[#allocation3 + $0x510] sm:$0xff]
    %v5035 = vld [vmem:[#allocation3 + $0x518] sm:$0xff]
    %v5036 = vld [vmem:[#allocation3 + $0x520] sm:$0xff]
    %v5037 = vld [vmem:[#allocation3 + $0x528] sm:$0xff]
    %v5038 = vld [vmem:[#allocation3 + $0x530] sm:$0xff]
    %v5039 = vld [vmem:[#allocation3 + $0x540] sm:$0xff]
    %v5040 = vld [vmem:[#allocation3 + $0x548] sm:$0xff]
    %v5041 = vld [vmem:[#allocation3 + $0x550] sm:$0xff]
    %v5042 = vld [vmem:[#allocation3 + $0x558] sm:$0xff]
    %v5043 = vld [vmem:[#allocation3 + $0x560] sm:$0xff]
    %v5044 = vld [vmem:[#allocation3 + $0x568] sm:$0xff]
    %v5045 = vld [vmem:[#allocation3 + $0x570] sm:$0xff]
    %v5046 = vld [vmem:[#allocation3 + $0x580] sm:$0xff]
    %v5047 = vld [vmem:[#allocation3 + $0x588] sm:$0xff]
    %v5048 = vld [vmem:[#allocation3 + $0x590] sm:$0xff]
    %v5049 = vld [vmem:[#allocation3 + $0x598] sm:$0xff]
    %v5050 = vld [vmem:[#allocation3 + $0x5a0] sm:$0xff]
    %v5051 = vld [vmem:[#allocation3 + $0x5a8] sm:$0xff]
    %v5052 = vld [vmem:[#allocation3 + $0x5b0] sm:$0xff]
    %v5053 = vld [vmem:[#allocation3 + $0x5c0] sm:$0xff]
    %v5054 = vld [vmem:[#allocation3 + $0x5c8] sm:$0xff]
    %v5055 = vld [vmem:[#allocation3 + $0x5d0] sm:$0xff]
    %v5056 = vld [vmem:[#allocation3 + $0x5d8] sm:$0xff]
    %v5057 = vld [vmem:[#allocation3 + $0x5e0] sm:$0xff]
    %v5058 = vld [vmem:[#allocation3 + $0x5e8] sm:$0xff]
    %v5059 = vld [vmem:[#allocation3 + $0x5f0] sm:$0xff]
    %v5060 = vld [vmem:[#allocation3 + $0x600] sm:$0xff]
    %v5061 = vld [vmem:[#allocation3 + $0x608] sm:$0xff]
    %v5062 = vld [vmem:[#allocation3 + $0x610] sm:$0xff]
    %v5063 = vld [vmem:[#allocation3 + $0x618] sm:$0xff]
    %v5064 = vld [vmem:[#allocation3 + $0x620] sm:$0xff]
    %v5065 = vld [vmem:[#allocation3 + $0x628] sm:$0xff]
    %v5066 = vld [vmem:[#allocation3 + $0x630] sm:$0xff]
    %v5067 = vld [vmem:[#allocation3 + $0x640] sm:$0xff]
    %v5068 = vld [vmem:[#allocation3 + $0x648] sm:$0xff]
    %v5069 = vld [vmem:[#allocation3 + $0x650] sm:$0xff]
    %v5070 = vld [vmem:[#allocation3 + $0x658] sm:$0xff]
    %v5071 = vld [vmem:[#allocation3 + $0x660] sm:$0xff]
    %v5072 = vld [vmem:[#allocation3 + $0x668] sm:$0xff]
    %v5073 = vld [vmem:[#allocation3 + $0x670] sm:$0xff]
    %v5074 = vld [vmem:[#allocation3 + $0x680] sm:$0xff]
    %v5075 = vld [vmem:[#allocation3 + $0x688] sm:$0xff]
    %v5076 = vld [vmem:[#allocation3 + $0x690] sm:$0xff]
    %v5077 = vld [vmem:[#allocation3 + $0x698] sm:$0xff]
    %v5078 = vld [vmem:[#allocation3 + $0x6a0] sm:$0xff]
    %v5079 = vld [vmem:[#allocation3 + $0x6a8] sm:$0xff]
    %v5080 = vld [vmem:[#allocation3 + $0x6b0] sm:$0xff]
    %v5081 = vld [vmem:[#allocation3 + $0x6c0] sm:$0xff]
    %v5082 = vld [vmem:[#allocation3 + $0x6c8] sm:$0xff]
    %v5083 = vld [vmem:[#allocation3 + $0x6d0] sm:$0xff]
    %v5084 = vld [vmem:[#allocation3 + $0x6d8] sm:$0xff]
    %v5085 = vld [vmem:[#allocation3 + $0x6e0] sm:$0xff]
    %v5086 = vld [vmem:[#allocation3 + $0x6e8] sm:$0xff]
    %v5087 = vld [vmem:[#allocation3 + $0x6f0] sm:$0xff]
    %v5088 = vld [vmem:[#allocation3 + $0x700] sm:$0xff]
    %v5089 = vld [vmem:[#allocation3 + $0x708] sm:$0xff]
    %v5090 = vld [vmem:[#allocation3 + $0x710] sm:$0xff]
    %v5091 = vld [vmem:[#allocation3 + $0x718] sm:$0xff]
    %v5092 = vld [vmem:[#allocation3 + $0x720] sm:$0xff]
    %v5093 = vld [vmem:[#allocation3 + $0x728] sm:$0xff]
    %v5094 = vld [vmem:[#allocation3 + $0x730] sm:$0xff]
    %v5095 = vld [vmem:[#allocation3 + $0x740] sm:$0xff]
    %v5096 = vld [vmem:[#allocation3 + $0x748] sm:$0xff]
    %v5097 = vld [vmem:[#allocation3 + $0x750] sm:$0xff]
    %v5098 = vld [vmem:[#allocation3 + $0x758] sm:$0xff]
    %v5099 = vld [vmem:[#allocation3 + $0x760] sm:$0xff]
    %v5100 = vld [vmem:[#allocation3 + $0x768] sm:$0xff]
    %v5101 = vld [vmem:[#allocation3 + $0x770] sm:$0xff]
    %v5102 = vld [vmem:[#allocation3 + $0x780] sm:$0xff]
    %v5103 = vld [vmem:[#allocation3 + $0x788] sm:$0xff]
    %v5104 = vld [vmem:[#allocation3 + $0x790] sm:$0xff]
    %v5105 = vld [vmem:[#allocation3 + $0x798] sm:$0xff]
    %v5106 = vld [vmem:[#allocation3 + $0x7a0] sm:$0xff]
    %v5107 = vld [vmem:[#allocation3 + $0x7a8] sm:$0xff]
    %v5108 = vld [vmem:[#allocation3 + $0x7b0] sm:$0xff]
    %v5109 = vld [vmem:[#allocation3 + $0x7c0] sm:$0xff]
    %v5110 = vld [vmem:[#allocation3 + $0x7c8] sm:$0xff]
    %v5111 = vld [vmem:[#allocation3 + $0x7d0] sm:$0xff]
    %v5112 = vld [vmem:[#allocation3 + $0x7d8] sm:$0xff]
    %v5113 = vld [vmem:[#allocation3 + $0x7e0] sm:$0xff]
    %v5114 = vld [vmem:[#allocation3 + $0x7e8] sm:$0xff]
    %v5115 = vld [vmem:[#allocation3 + $0x7f0] sm:$0xff]
    %v5116 = vld [vmem:[#allocation3 + $0x800] sm:$0xff]
    %v5117 = vld [vmem:[#allocation3 + $0x808] sm:$0xff]
    %v5118 = vld [vmem:[#allocation3 + $0x810] sm:$0xff]
    %v5119 = vld [vmem:[#allocation3 + $0x818] sm:$0xff]
    %v5120 = vld [vmem:[#allocation3 + $0x820] sm:$0xff]
    %v5121 = vld [vmem:[#allocation3 + $0x828] sm:$0xff]
    %v5122 = vld [vmem:[#allocation3 + $0x830] sm:$0xff]
    %v5123 = vld [vmem:[#allocation3 + $0x840] sm:$0xff]
    %v5124 = vld [vmem:[#allocation3 + $0x848] sm:$0xff]
    %v5125 = vld [vmem:[#allocation3 + $0x850] sm:$0xff]
    %v5126 = vld [vmem:[#allocation3 + $0x858] sm:$0xff]
    %v5127 = vld [vmem:[#allocation3 + $0x860] sm:$0xff]
    %v5128 = vld [vmem:[#allocation3 + $0x868] sm:$0xff]
    %v5129 = vld [vmem:[#allocation3 + $0x870] sm:$0xff]
    %v5130 = vld [vmem:[#allocation3 + $0x880] sm:$0xff]
    %v5131 = vld [vmem:[#allocation3 + $0x888] sm:$0xff]
    %v5132 = vld [vmem:[#allocation3 + $0x890] sm:$0xff]
    %v5133 = vld [vmem:[#allocation3 + $0x898] sm:$0xff]
    %v5134 = vld [vmem:[#allocation3 + $0x8a0] sm:$0xff]
    %v5135 = vld [vmem:[#allocation3 + $0x8a8] sm:$0xff]
    %v5136 = vld [vmem:[#allocation3 + $0x8b0] sm:$0xff]
    %v5137 = vld [vmem:[#allocation3 + $0x8c0] sm:$0xff]
    %v5138 = vld [vmem:[#allocation3 + $0x8c8] sm:$0xff]
    %v5139 = vld [vmem:[#allocation3 + $0x8d0] sm:$0xff]
    %v5140 = vld [vmem:[#allocation3 + $0x8d8] sm:$0xff]
    %v5141 = vld [vmem:[#allocation3 + $0x8e0] sm:$0xff]
    %v5142 = vld [vmem:[#allocation3 + $0x8e8] sm:$0xff]
    %v5143 = vld [vmem:[#allocation3 + $0x8f0] sm:$0xff]
    %v5144 = vld [vmem:[#allocation3 + $0x900] sm:$0xff]
    %v5145 = vld [vmem:[#allocation3 + $0x908] sm:$0xff]
    %v5146 = vld [vmem:[#allocation3 + $0x910] sm:$0xff]
    %v5147 = vld [vmem:[#allocation3 + $0x918] sm:$0xff]
    %v5148 = vld [vmem:[#allocation3 + $0x920] sm:$0xff]
    %v5149 = vld [vmem:[#allocation3 + $0x928] sm:$0xff]
    %v5150 = vld [vmem:[#allocation3 + $0x930] sm:$0xff]
    %v5151 = vld [vmem:[#allocation3 + $0x940] sm:$0xf]
    %v5152 = vld [vmem:[#allocation3 + $0x948] sm:$0xf]
    %v5153 = vld [vmem:[#allocation3 + $0x950] sm:$0xf]
    %v5154 = vld [vmem:[#allocation3 + $0x958] sm:$0xf]
    %v5155 = vld [vmem:[#allocation3 + $0x960] sm:$0xf]
    %v5156 = vld [vmem:[#allocation3 + $0x968] sm:$0xf]
    %v5157 = vld [vmem:[#allocation3 + $0x970] sm:$0xf]
    %v5158 = vld [vmem:[%s5] sm:$0xff]
    %5160 = vset.pattern.permute.xlu0 0
    %5161 = vperm.xlu0 %5160, %v5158
    %v5162 = vpop.permute.xlu0 %5161
    %v5165 = vsel %vm1469, %v4891, 0
    %v5168 = vsel %vm1593, %v5151, 0
    %v5171 = vsel %vm1593, %v5152, 0
    %v5174 = vsel %vm1593, %v5153, 0
    %v5177 = vsel %vm1593, %v5154, 0
    %v5180 = vsel %vm1593, %v5155, 0
    %v5183 = vsel %vm1593, %v5156, 0
    %v5186 = vsel %vm1593, %v5157, 0
    %5188 = vmatprep.subr.mxu0 %v4893
    %5189 = vmatpush1.msra.mxu0 %v4892
    %5190 = vmatprep.subr.mxu0 %v4900
    %5191 = vmatpush1.msra.mxu0 %v4899
    %5192 = vmatprep.subr.mxu0 %v4907
    %5193 = vmatpush1.msra.mxu0 %v4906
    %5194 = vmatprep.subr.mxu0 %v4914
    %5195 = vmatpush1.msra.mxu0 %v4913
    %5196 = vmatprep.subr.mxu0 %v4921
    %5197 = vmatpush1.msra.mxu0 %v4920
    %5198 = vmatprep.subr.mxu0 %v4928
    %5199 = vmatpush1.msra.mxu0 %v4927
    %5200 = vmatprep.subr.mxu0 %v4935
    %5201 = vmatpush1.msra.mxu0 %v4934
    %5202 = vmatprep.subr.mxu0 %v4942
    %5203 = vmatpush1.msra.mxu0 %v4941
    %5204 = vmatprep.subr.mxu0 %v4949
    %5205 = vmatpush1.msra.mxu0 %v4948
    %5206 = vmatprep.subr.mxu0 %v4956
    %5207 = vmatpush1.msra.mxu0 %v4955
    %5208 = vmatprep.subr.mxu0 %v4963
    %5209 = vmatpush1.msra.mxu0 %v4962
    %5210 = vmatprep.subr.mxu0 %v4970
    %5211 = vmatpush1.msra.mxu0 %v4969
    %5212 = vmatprep.subr.mxu0 %v4977
    %5213 = vmatpush1.msra.mxu0 %v4976
    %5214 = vmatprep.subr.mxu0 %v4984
    %5215 = vmatpush1.msra.mxu0 %v4983
    %5216 = vmatprep.subr.mxu0 %v4991
    %5217 = vmatpush1.msra.mxu0 %v4990
    %5218 = vmatprep.subr.mxu0 %v4998
    %5219 = vmatpush1.msra.mxu0 %v4997
    %5220 = vmatprep.subr.mxu0 %v5005
    %5221 = vmatpush1.msra.mxu0 %v5004
    %5222 = vmatprep.subr.mxu0 %v5012
    %5223 = vmatpush1.msra.mxu0 %v5011
    %5224 = vmatprep.subr.mxu0 %v5019
    %5225 = vmatpush1.msra.mxu0 %v5018
    %5226 = vmatprep.subr.mxu0 %v5026
    %5227 = vmatpush1.msra.mxu0 %v5025
    %5228 = vmatprep.subr.mxu0 %v5033
    %5229 = vmatpush1.msra.mxu0 %v5032
    %5230 = vmatprep.subr.mxu0 %v5040
    %5231 = vmatpush1.msra.mxu0 %v5039
    %5232 = vmatprep.subr.mxu0 %v5047
    %5233 = vmatpush1.msra.mxu0 %v5046
    %5234 = vmatprep.subr.mxu0 %v5054
    %5235 = vmatpush1.msra.mxu0 %v5053
    %5236 = vmatprep.subr.mxu0 %v5061
    %5237 = vmatpush1.msra.mxu0 %v5060
    %5238 = vmatprep.subr.mxu0 %v5068
    %5239 = vmatpush1.msra.mxu0 %v5067
    %5240 = vmatprep.subr.mxu0 %v5075
    %5241 = vmatpush1.msra.mxu0 %v5074
    %5242 = vmatprep.subr.mxu0 %v5082
    %5243 = vmatpush1.msra.mxu0 %v5081
    %5244 = vmatprep.subr.mxu0 %v5089
    %5245 = vmatpush1.msra.mxu0 %v5088
    %5246 = vmatprep.subr.mxu0 %v5096
    %5247 = vmatpush1.msra.mxu0 %v5095
    %5248 = vmatprep.subr.mxu0 %v5103
    %5249 = vmatpush1.msra.mxu0 %v5102
    %5250 = vmatprep.subr.mxu0 %v5110
    %5251 = vmatpush1.msra.mxu0 %v5109
    %5252 = vmatprep.mubr.f32.mxu0 %v4890
    %5253 = vmatmul.mubr.f32.gmra.mrb[0].mxu0 %v4889
    %v5254 = vpop.f32.mrb[0].mxu0
    %v5255 = vadd.f32 %v5162, %v5254
    %v5256 = vpop.f32.mrb[0].mxu0
    %v5257 = vadd.f32 %v5162, %v5256
    %5258 = vdwg.mxu0
    %5259 = vmatprep.subr.mxu0 %v5117
    %5260 = vmatpush1.msra.mxu0 %v5116
    %5261 = vmatprep.subr.mxu0 %v5124
    %5262 = vmatpush1.msra.mxu0 %v5123
    %5263 = vmatprep.subr.mxu0 %v5131
    %5264 = vmatpush1.msra.mxu0 %v5130
    %5265 = vmatprep.subr.mxu0 %v5138
    %5266 = vmatpush1.msra.mxu0 %v5137
    %5267 = vmatprep.subr.mxu0 %v5145
    %5268 = vmatpush1.msra.mxu0 %v5144
    %5269 = vmatprep.subr.mxu0 %v5171
    %5270 = vmatpush1.msra.mxu0 %v5168
    %5271 = vmatprep.subr.mxu0 0.0
    %5272 = vmatpush1.msra.mxu0 0.0
    %5273 = vmatprep.subr.mxu0 0.0
    %5274 = vmatpush1.msra.mxu0 0.0
    %5275 = vmatprep.subr.mxu0 0.0
    %5276 = vmatpush1.msra.mxu0 0.0
    %5277 = vmatprep.subr.mxu0 0.0
    %5278 = vmatpush1.msra.mxu0 0.0
    %5279 = vmatprep.subr.mxu0 0.0
    %5280 = vmatpush1.msra.mxu0 0.0
    %5281 = vmatprep.subr.mxu0 0.0
    %5282 = vmatpush1.msra.mxu0 0.0
    %5283 = vmatprep.subr.mxu0 0.0
    %5284 = vmatpush1.msra.mxu0 0.0
    %5285 = vmatprep.subr.mxu0 0.0
    %5286 = vmatpush1.msra.mxu0 0.0
    %5287 = vmatprep.subr.mxu0 0.0
    %5288 = vmatpush1.msra.mxu0 0.0
    %5289 = vmatprep.subr.mxu0 0.0
    %5290 = vmatpush1.msra.mxu0 0.0
    %5291 = vmatprep.subr.mxu0 0.0
    %5292 = vmatpush1.msra.mxu0 0.0
    %5293 = vmatprep.subr.mxu0 0.0
    %5294 = vmatpush1.msra.mxu0 0.0
    %5295 = vmatprep.subr.mxu0 0.0
    %5296 = vmatpush1.msra.mxu0 0.0
    %5297 = vmatprep.subr.mxu0 0.0
    %5298 = vmatpush1.msra.mxu0 0.0
    %5299 = vmatprep.subr.mxu0 0.0
    %5300 = vmatpush1.msra.mxu0 0.0
    %5301 = vmatprep.subr.mxu0 0.0
    %5302 = vmatpush1.msra.mxu0 0.0
    %5303 = vmatprep.subr.mxu0 0.0
    %5304 = vmatpush1.msra.mxu0 0.0
    %5305 = vmatprep.subr.mxu0 0.0
    %5306 = vmatpush1.msra.mxu0 0.0
    %5307 = vmatprep.subr.mxu0 0.0
    %5308 = vmatpush1.msra.mxu0 0.0
    %5309 = vmatprep.subr.mxu0 0.0
    %5310 = vmatpush1.msra.mxu0 0.0
    %5311 = vmatprep.subr.mxu0 0.0
    %5312 = vmatpush1.msra.mxu0 0.0
    %5313 = vmatprep.subr.mxu0 0.0
    %5314 = vmatpush1.msra.mxu0 0.0
    %5315 = vmatprep.subr.mxu0 0.0
    %5316 = vmatpush1.msra.mxu0 0.0
    %5317 = vmatprep.subr.mxu0 0.0
    %5318 = vmatpush1.msra.mxu0 0.0
    %5319 = vmatprep.subr.mxu0 0.0
    %5320 = vmatpush1.msra.mxu0 0.0
    %5321 = vmatprep.subr.mxu0 0.0
    %5322 = vmatpush1.msra.mxu0 0.0
    %5323 = vmatprep.mubr.f32.mxu0 0.0
    %5324 = vmatmul.mubr.f32.gmra.mrb[0].mxu0 %v5165
    %v5325 = vpop.f32.mrb[0].mxu0
    %v5326 = vadd.f32 %v5255, %v5325
    %v5327 = vpop.f32.mrb[0].mxu0
    %v5328 = vadd.f32 %v5257, %v5327
    %5329 = vdwg.mxu0
    %5330 = vmatprep.subr.mxu0 %v4895
    %5331 = vmatpush1.msra.mxu0 %v4894
    %5332 = vmatprep.subr.mxu0 %v4902
    %5333 = vmatpush1.msra.mxu0 %v4901
    %5334 = vmatprep.subr.mxu0 %v4909
    %5335 = vmatpush1.msra.mxu0 %v4908
    %5336 = vmatprep.subr.mxu0 %v4916
    %5337 = vmatpush1.msra.mxu0 %v4915
    %5338 = vmatprep.subr.mxu0 %v4923
    %5339 = vmatpush1.msra.mxu0 %v4922
    %5340 = vmatprep.subr.mxu0 %v4930
    %5341 = vmatpush1.msra.mxu0 %v4929
    %5342 = vmatprep.subr.mxu0 %v4937
    %5343 = vmatpush1.msra.mxu0 %v4936
    %5344 = vmatprep.subr.mxu0 %v4944
    %5345 = vmatpush1.msra.mxu0 %v4943
    %5346 = vmatprep.subr.mxu0 %v4951
    %5347 = vmatpush1.msra.mxu0 %v4950
    %5348 = vmatprep.subr.mxu0 %v4958
    %5349 = vmatpush1.msra.mxu0 %v4957
    %5350 = vmatprep.subr.mxu0 %v4965
    %5351 = vmatpush1.msra.mxu0 %v4964
    %5352 = vmatprep.subr.mxu0 %v4972
    %5353 = vmatpush1.msra.mxu0 %v4971
    %5354 = vmatprep.subr.mxu0 %v4979
    %5355 = vmatpush1.msra.mxu0 %v4978
    %5356 = vmatprep.subr.mxu0 %v4986
    %5357 = vmatpush1.msra.mxu0 %v4985
    %5358 = vmatprep.subr.mxu0 %v4993
    %5359 = vmatpush1.msra.mxu0 %v4992
    %5360 = vmatprep.subr.mxu0 %v5000
    %5361 = vmatpush1.msra.mxu0 %v4999
    %5362 = vmatprep.subr.mxu0 %v5007
    %5363 = vmatpush1.msra.mxu0 %v5006
    %5364 = vmatprep.subr.mxu0 %v5014
    %5365 = vmatpush1.msra.mxu0 %v5013
    %5366 = vmatprep.subr.mxu0 %v5021
    %5367 = vmatpush1.msra.mxu0 %v5020
    %5368 = vmatprep.subr.mxu0 %v5028
    %5369 = vmatpush1.msra.mxu0 %v5027
    %5370 = vmatprep.subr.mxu0 %v5035
    %5371 = vmatpush1.msra.mxu0 %v5034
    %5372 = vmatprep.subr.mxu0 %v5042
    %5373 = vmatpush1.msra.mxu0 %v5041
    %5374 = vmatprep.subr.mxu0 %v5049
    %5375 = vmatpush1.msra.mxu0 %v5048
    %5376 = vmatprep.subr.mxu0 %v5056
    %5377 = vmatpush1.msra.mxu0 %v5055
    %5378 = vmatprep.subr.mxu0 %v5063
    %5379 = vmatpush1.msra.mxu0 %v5062
    %5380 = vmatprep.subr.mxu0 %v5070
    %5381 = vmatpush1.msra.mxu0 %v5069
    %5382 = vmatprep.subr.mxu0 %v5077
    %5383 = vmatpush1.msra.mxu0 %v5076
    %5384 = vmatprep.subr.mxu0 %v5084
    %5385 = vmatpush1.msra.mxu0 %v5083
    %5386 = vmatprep.subr.mxu0 %v5091
    %5387 = vmatpush1.msra.mxu0 %v5090
    %5388 = vmatprep.subr.mxu0 %v5098
    %5389 = vmatpush1.msra.mxu0 %v5097
    %5390 = vmatprep.subr.mxu0 %v5105
    %5391 = vmatpush1.msra.mxu0 %v5104
    %5392 = vmatprep.subr.mxu0 %v5112
    %5393 = vmatpush1.msra.mxu0 %v5111
    %5394 = vmatprep.mubr.f32.mxu0 %v4890
    %5395 = vmatmul.mubr.f32.gmra.mrb[0].mxu0 %v4889
    %v5396 = vpop.f32.mrb[0].mxu0
    %v5397 = vadd.f32 %v5162, %v5396
    %v5398 = vpop.f32.mrb[0].mxu0
    %v5399 = vadd.f32 %v5162, %v5398
    %5400 = vdwg.mxu0
    %5401 = vmatprep.subr.mxu0 %v5119
    %5402 = vmatpush1.msra.mxu0 %v5118
    %5403 = vmatprep.subr.mxu0 %v5126
    %5404 = vmatpush1.msra.mxu0 %v5125
    %5405 = vmatprep.subr.mxu0 %v5133
    %5406 = vmatpush1.msra.mxu0 %v5132
    %5407 = vmatprep.subr.mxu0 %v5140
    %5408 = vmatpush1.msra.mxu0 %v5139
    %5409 = vmatprep.subr.mxu0 %v5147
    %5410 = vmatpush1.msra.mxu0 %v5146
    %5411 = vmatprep.subr.mxu0 %v5177
    %5412 = vmatpush1.msra.mxu0 %v5174
    %5413 = vmatprep.subr.mxu0 0.0
    %5414 = vmatpush1.msra.mxu0 0.0
    %5415 = vmatprep.subr.mxu0 0.0
    %5416 = vmatpush1.msra.mxu0 0.0
    %5417 = vmatprep.subr.mxu0 0.0
    %5418 = vmatpush1.msra.mxu0 0.0
    %5419 = vmatprep.subr.mxu0 0.0
    %5420 = vmatpush1.msra.mxu0 0.0
    %5421 = vmatprep.subr.mxu0 0.0
    %5422 = vmatpush1.msra.mxu0 0.0
    %5423 = vmatprep.subr.mxu0 0.0
    %5424 = vmatpush1.msra.mxu0 0.0
    %5425 = vmatprep.subr.mxu0 0.0
    %5426 = vmatpush1.msra.mxu0 0.0
    %5427 = vmatprep.subr.mxu0 0.0
    %5428 = vmatpush1.msra.mxu0 0.0
    %5429 = vmatprep.subr.mxu0 0.0
    %5430 = vmatpush1.msra.mxu0 0.0
    %5431 = vmatprep.subr.mxu0 0.0
    %5432 = vmatpush1.msra.mxu0 0.0
    %5433 = vmatprep.subr.mxu0 0.0
    %5434 = vmatpush1.msra.mxu0 0.0
    %5435 = vmatprep.subr.mxu0 0.0
    %5436 = vmatpush1.msra.mxu0 0.0
    %5437 = vmatprep.subr.mxu0 0.0
    %5438 = vmatpush1.msra.mxu0 0.0
    %5439 = vmatprep.subr.mxu0 0.0
    %5440 = vmatpush1.msra.mxu0 0.0
    %5441 = vmatprep.subr.mxu0 0.0
    %5442 = vmatpush1.msra.mxu0 0.0
    %5443 = vmatprep.subr.mxu0 0.0
    %5444 = vmatpush1.msra.mxu0 0.0
    %5445 = vmatprep.subr.mxu0 0.0
    %5446 = vmatpush1.msra.mxu0 0.0
    %5447 = vmatprep.subr.mxu0 0.0
    %5448 = vmatpush1.msra.mxu0 0.0
    %5449 = vmatprep.subr.mxu0 0.0
    %5450 = vmatpush1.msra.mxu0 0.0
    %5451 = vmatprep.subr.mxu0 0.0
    %5452 = vmatpush1.msra.mxu0 0.0
    %5453 = vmatprep.subr.mxu0 0.0
    %5454 = vmatpush1.msra.mxu0 0.0
    %5455 = vmatprep.subr.mxu0 0.0
    %5456 = vmatpush1.msra.mxu0 0.0
    %5457 = vmatprep.subr.mxu0 0.0
    %5458 = vmatpush1.msra.mxu0 0.0
    %5459 = vmatprep.subr.mxu0 0.0
    %5460 = vmatpush1.msra.mxu0 0.0
    %5461 = vmatprep.subr.mxu0 0.0
    %5462 = vmatpush1.msra.mxu0 0.0
    %5463 = vmatprep.subr.mxu0 0.0
    %5464 = vmatpush1.msra.mxu0 0.0
    %5465 = vmatprep.mubr.f32.mxu0 0.0
    %5466 = vmatmul.mubr.f32.gmra.mrb[0].mxu0 %v5165
    %v5467 = vpop.f32.mrb[0].mxu0
    %v5468 = vadd.f32 %v5397, %v5467
    %v5469 = vpop.f32.mrb[0].mxu0
    %v5470 = vadd.f32 %v5399, %v5469
    %5471 = vdwg.mxu0
    %5472 = vmatprep.subr.mxu0 %v4897
    %5473 = vmatpush1.msra.mxu0 %v4896
    %5474 = vmatprep.subr.mxu0 %v4904
    %5475 = vmatpush1.msra.mxu0 %v4903
    %5476 = vmatprep.subr.mxu0 %v4911
    %5477 = vmatpush1.msra.mxu0 %v4910
    %5478 = vmatprep.subr.mxu0 %v4918
    %5479 = vmatpush1.msra.mxu0 %v4917
    %5480 = vmatprep.subr.mxu0 %v4925
    %5481 = vmatpush1.msra.mxu0 %v4924
    %5482 = vmatprep.subr.mxu0 %v4932
    %5483 = vmatpush1.msra.mxu0 %v4931
    %5484 = vmatprep.subr.mxu0 %v4939
    %5485 = vmatpush1.msra.mxu0 %v4938
    %5486 = vmatprep.subr.mxu0 %v4946
    %5487 = vmatpush1.msra.mxu0 %v4945
    %5488 = vmatprep.subr.mxu0 %v4953
    %5489 = vmatpush1.msra.mxu0 %v4952
    %5490 = vmatprep.subr.mxu0 %v4960
    %5491 = vmatpush1.msra.mxu0 %v4959
    %5492 = vmatprep.subr.mxu0 %v4967
    %5493 = vmatpush1.msra.mxu0 %v4966
    %5494 = vmatprep.subr.mxu0 %v4974
    %5495 = vmatpush1.msra.mxu0 %v4973
    %5496 = vmatprep.subr.mxu0 %v4981
    %5497 = vmatpush1.msra.mxu0 %v4980
    %5498 = vmatprep.subr.mxu0 %v4988
    %5499 = vmatpush1.msra.mxu0 %v4987
    %5500 = vmatprep.subr.mxu0 %v4995
    %5501 = vmatpush1.msra.mxu0 %v4994
    %5502 = vmatprep.subr.mxu0 %v5002
    %5503 = vmatpush1.msra.mxu0 %v5001
    %5504 = vmatprep.subr.mxu0 %v5009
    %5505 = vmatpush1.msra.mxu0 %v5008
    %5506 = vmatprep.subr.mxu0 %v5016
    %5507 = vmatpush1.msra.mxu0 %v5015
    %5508 = vmatprep.subr.mxu0 %v5023
    %5509 = vmatpush1.msra.mxu0 %v5022
    %5510 = vmatprep.subr.mxu0 %v5030
    %5511 = vmatpush1.msra.mxu0 %v5029
    %5512 = vmatprep.subr.mxu0 %v5037
    %5513 = vmatpush1.msra.mxu0 %v5036
    %5514 = vmatprep.subr.mxu0 %v5044
    %5515 = vmatpush1.msra.mxu0 %v5043
    %5516 = vmatprep.subr.mxu0 %v5051
    %5517 = vmatpush1.msra.mxu0 %v5050
    %5518 = vmatprep.subr.mxu0 %v5058
    %5519 = vmatpush1.msra.mxu0 %v5057
    %5520 = vmatprep.subr.mxu0 %v5065
    %5521 = vmatpush1.msra.mxu0 %v5064
    %5522 = vmatprep.subr.mxu0 %v5072
    %5523 = vmatpush1.msra.mxu0 %v5071
    %5524 = vmatprep.subr.mxu0 %v5079
    %5525 = vmatpush1.msra.mxu0 %v5078
    %5526 = vmatprep.subr.mxu0 %v5086
    %5527 = vmatpush1.msra.mxu0 %v5085
    %5528 = vmatprep.subr.mxu0 %v5093
    %5529 = vmatpush1.msra.mxu0 %v5092
    %5530 = vmatprep.subr.mxu0 %v5100
    %5531 = vmatpush1.msra.mxu0 %v5099
    %5532 = vmatprep.subr.mxu0 %v5107
    %5533 = vmatpush1.msra.mxu0 %v5106
    %5534 = vmatprep.subr.mxu0 %v5114
    %5535 = vmatpush1.msra.mxu0 %v5113
    %5536 = vmatprep.mubr.f32.mxu0 %v4890
    %5537 = vmatmul.mubr.f32.gmra.mrb[0].mxu0 %v4889
    %v5538 = vpop.f32.mrb[0].mxu0
    %v5539 = vadd.f32 %v5162, %v5538
    %v5540 = vpop.f32.mrb[0].mxu0
    %v5541 = vadd.f32 %v5162, %v5540
    %5542 = vdwg.mxu0
    %5543 = vmatprep.subr.mxu0 %v5121
    %5544 = vmatpush1.msra.mxu0 %v5120
    %5545 = vmatprep.subr.mxu0 %v5128
    %5546 = vmatpush1.msra.mxu0 %v5127
    %5547 = vmatprep.subr.mxu0 %v5135
    %5548 = vmatpush1.msra.mxu0 %v5134
    %5549 = vmatprep.subr.mxu0 %v5142
    %5550 = vmatpush1.msra.mxu0 %v5141
    %5551 = vmatprep.subr.mxu0 %v5149
    %5552 = vmatpush1.msra.mxu0 %v5148
    %5553 = vmatprep.subr.mxu0 %v5183
    %5554 = vmatpush1.msra.mxu0 %v5180
    %5555 = vmatprep.subr.mxu0 0.0
    %5556 = vmatpush1.msra.mxu0 0.0
    %5557 = vmatprep.subr.mxu0 0.0
    %5558 = vmatpush1.msra.mxu0 0.0
    %5559 = vmatprep.subr.mxu0 0.0
    %5560 = vmatpush1.msra.mxu0 0.0
    %5561 = vmatprep.subr.mxu0 0.0
    %5562 = vmatpush1.msra.mxu0 0.0
    %5563 = vmatprep.subr.mxu0 0.0
    %5564 = vmatpush1.msra.mxu0 0.0
    %5565 = vmatprep.subr.mxu0 0.0
    %5566 = vmatpush1.msra.mxu0 0.0
    %5567 = vmatprep.subr.mxu0 0.0
    %5568 = vmatpush1.msra.mxu0 0.0
    %5569 = vmatprep.subr.mxu0 0.0
    %5570 = vmatpush1.msra.mxu0 0.0
    %5571 = vmatprep.subr.mxu0 0.0
    %5572 = vmatpush1.msra.mxu0 0.0
    %5573 = vmatprep.subr.mxu0 0.0
    %5574 = vmatpush1.msra.mxu0 0.0
    %5575 = vmatprep.subr.mxu0 0.0
    %5576 = vmatpush1.msra.mxu0 0.0
    %5577 = vmatprep.subr.mxu0 0.0
    %5578 = vmatpush1.msra.mxu0 0.0
    %5579 = vmatprep.subr.mxu0 0.0
    %5580 = vmatpush1.msra.mxu0 0.0
    %5581 = vmatprep.subr.mxu0 0.0
    %5582 = vmatpush1.msra.mxu0 0.0
    %5583 = vmatprep.subr.mxu0 0.0
    %5584 = vmatpush1.msra.mxu0 0.0
    %5585 = vmatprep.subr.mxu0 0.0
    %5586 = vmatpush1.msra.mxu0 0.0
    %5587 = vmatprep.subr.mxu0 0.0
    %5588 = vmatpush1.msra.mxu0 0.0
    %5589 = vmatprep.subr.mxu0 0.0
    %5590 = vmatpush1.msra.mxu0 0.0
    %5591 = vmatprep.subr.mxu0 0.0
    %5592 = vmatpush1.msra.mxu0 0.0
    %5593 = vmatprep.subr.mxu0 0.0
    %5594 = vmatpush1.msra.mxu0 0.0
    %5595 = vmatprep.subr.mxu0 0.0
    %5596 = vmatpush1.msra.mxu0 0.0
    %5597 = vmatprep.subr.mxu0 0.0
    %5598 = vmatpush1.msra.mxu0 0.0
    %5599 = vmatprep.subr.mxu0 0.0
    %5600 = vmatpush1.msra.mxu0 0.0
    %5601 = vmatprep.subr.mxu0 0.0
    %5602 = vmatpush1.msra.mxu0 0.0
    %5603 = vmatprep.subr.mxu0 0.0
    %5604 = vmatpush1.msra.mxu0 0.0
    %5605 = vmatprep.subr.mxu0 0.0
    %5606 = vmatpush1.msra.mxu0 0.0
    %5607 = vmatprep.mubr.f32.mxu0 0.0
    %5608 = vmatmul.mubr.f32.gmra.mrb[0].mxu0 %v5165
    %v5609 = vpop.f32.mrb[0].mxu0
    %v5610 = vadd.f32 %v5539, %v5609
    %v5611 = vpop.f32.mrb[0].mxu0
    %v5612 = vadd.f32 %v5541, %v5611
    %5613 = vdwg.mxu0
    %5614 = vmatprep.subr.mxu0 0.0
    %5615 = vmatpush1.msra.mxu0 %v4898
    %5616 = vmatprep.subr.mxu0 0.0
    %5617 = vmatpush1.msra.mxu0 %v4905
    %5618 = vmatprep.subr.mxu0 0.0
    %5619 = vmatpush1.msra.mxu0 %v4912
    %5620 = vmatprep.subr.mxu0 0.0
    %5621 = vmatpush1.msra.mxu0 %v4919
    %5622 = vmatprep.subr.mxu0 0.0
    %5623 = vmatpush1.msra.mxu0 %v4926
    %5624 = vmatprep.subr.mxu0 0.0
    %5625 = vmatpush1.msra.mxu0 %v4933
    %5626 = vmatprep.subr.mxu0 0.0
    %5627 = vmatpush1.msra.mxu0 %v4940
    %5628 = vmatprep.subr.mxu0 0.0
    %5629 = vmatpush1.msra.mxu0 %v4947
    %5630 = vmatprep.subr.mxu0 0.0
    %5631 = vmatpush1.msra.mxu0 %v4954
    %5632 = vmatprep.subr.mxu0 0.0
    %5633 = vmatpush1.msra.mxu0 %v4961
    %5634 = vmatprep.subr.mxu0 0.0
    %5635 = vmatpush1.msra.mxu0 %v4968
    %5636 = vmatprep.subr.mxu0 0.0
    %5637 = vmatpush1.msra.mxu0 %v4975
    %5638 = vmatprep.subr.mxu0 0.0
    %5639 = vmatpush1.msra.mxu0 %v4982
    %5640 = vmatprep.subr.mxu0 0.0
    %5641 = vmatpush1.msra.mxu0 %v4989
    %5642 = vmatprep.subr.mxu0 0.0
    %5643 = vmatpush1.msra.mxu0 %v4996
    %5644 = vmatprep.subr.mxu0 0.0
    %5645 = vmatpush1.msra.mxu0 %v5003
    %5646 = vmatprep.subr.mxu0 0.0
    %5647 = vmatpush1.msra.mxu0 %v5010
    %5648 = vmatprep.subr.mxu0 0.0
    %5649 = vmatpush1.msra.mxu0 %v5017
    %5650 = vmatprep.subr.mxu0 0.0
    %5651 = vmatpush1.msra.mxu0 %v5024
    %5652 = vmatprep.subr.mxu0 0.0
    %5653 = vmatpush1.msra.mxu0 %v5031
    %5654 = vmatprep.subr.mxu0 0.0
    %5655 = vmatpush1.msra.mxu0 %v5038
    %5656 = vmatprep.subr.mxu0 0.0
    %5657 = vmatpush1.msra.mxu0 %v5045
    %5658 = vmatprep.subr.mxu0 0.0
    %5659 = vmatpush1.msra.mxu0 %v5052
    %5660 = vmatprep.subr.mxu0 0.0
    %5661 = vmatpush1.msra.mxu0 %v5059
    %5662 = vmatprep.subr.mxu0 0.0
    %5663 = vmatpush1.msra.mxu0 %v5066
    %5664 = vmatprep.subr.mxu0 0.0
    %5665 = vmatpush1.msra.mxu0 %v5073
    %5666 = vmatprep.subr.mxu0 0.0
    %5667 = vmatpush1.msra.mxu0 %v5080
    %5668 = vmatprep.subr.mxu0 0.0
    %5669 = vmatpush1.msra.mxu0 %v5087
    %5670 = vmatprep.subr.mxu0 0.0
    %5671 = vmatpush1.msra.mxu0 %v5094
    %5672 = vmatprep.subr.mxu0 0.0
    %5673 = vmatpush1.msra.mxu0 %v5101
    %5674 = vmatprep.subr.mxu0 0.0
    %5675 = vmatpush1.msra.mxu0 %v5108
    %5676 = vmatprep.subr.mxu0 0.0
    %5677 = vmatpush1.msra.mxu0 %v5115
    %5678 = vmatprep.mubr.f32.mxu0 %v4890
    %5679 = vmatmul.mubr.f32.gmra.mrb[0].mxu0 %v4889
    %v5680 = vpop.f32.mrb[0].mxu0
    %v5681 = vadd.f32 %v5162, %v5680
    %v5682 = vpop.f32.mrb[0].mxu0
    %5683 = vdwg.mxu0
    %5684 = vmatprep.subr.mxu0 0.0
    %5685 = vmatpush1.msra.mxu0 %v5122
    %5686 = vmatprep.subr.mxu0 0.0
    %5687 = vmatpush1.msra.mxu0 %v5129
    %5688 = vmatprep.subr.mxu0 0.0
    %5689 = vmatpush1.msra.mxu0 %v5136
    %5690 = vmatprep.subr.mxu0 0.0
    %5691 = vmatpush1.msra.mxu0 %v5143
    %5692 = vmatprep.subr.mxu0 0.0
    %5693 = vmatpush1.msra.mxu0 %v5150
    %5694 = vmatprep.subr.mxu0 0.0
    %5695 = vmatpush1.msra.mxu0 %v5186
    %5696 = vmatprep.subr.mxu0 0.0
    %5697 = vmatpush1.msra.mxu0 0.0
    %5698 = vmatprep.subr.mxu0 0.0
    %5699 = vmatpush1.msra.mxu0 0.0
    %5700 = vmatprep.subr.mxu0 0.0
    %5701 = vmatpush1.msra.mxu0 0.0
    %5702 = vmatprep.subr.mxu0 0.0
    %5703 = vmatpush1.msra.mxu0 0.0
    %5704 = vmatprep.subr.mxu0 0.0
    %5705 = vmatpush1.msra.mxu0 0.0
    %5706 = vmatprep.subr.mxu0 0.0
    %5707 = vmatpush1.msra.mxu0 0.0
    %5708 = vmatprep.subr.mxu0 0.0
    %5709 = vmatpush1.msra.mxu0 0.0
    %5710 = vmatprep.subr.mxu0 0.0
    %5711 = vmatpush1.msra.mxu0 0.0
    %5712 = vmatprep.subr.mxu0 0.0
    %5713 = vmatpush1.msra.mxu0 0.0
    %5714 = vmatprep.subr.mxu0 0.0
    %5715 = vmatpush1.msra.mxu0 0.0
    %5716 = vmatprep.subr.mxu0 0.0
    %5717 = vmatpush1.msra.mxu0 0.0
    %5718 = vmatprep.subr.mxu0 0.0
    %5719 = vmatpush1.msra.mxu0 0.0
    %5720 = vmatprep.subr.mxu0 0.0
    %5721 = vmatpush1.msra.mxu0 0.0
    %5722 = vmatprep.subr.mxu0 0.0
    %5723 = vmatpush1.msra.mxu0 0.0
    %5724 = vmatprep.subr.mxu0 0.0
    %5725 = vmatpush1.msra.mxu0 0.0
    %5726 = vmatprep.subr.mxu0 0.0
    %5727 = vmatpush1.msra.mxu0 0.0
    %5728 = vmatprep.subr.mxu0 0.0
    %5729 = vmatpush1.msra.mxu0 0.0
    %5730 = vmatprep.subr.mxu0 0.0
    %5731 = vmatpush1.msra.mxu0 0.0
    %5732 = vmatprep.subr.mxu0 0.0
    %5733 = vmatpush1.msra.mxu0 0.0
    %5734 = vmatprep.subr.mxu0 0.0
    %5735 = vmatpush1.msra.mxu0 0.0
    %5736 = vmatprep.subr.mxu0 0.0
    %5737 = vmatpush1.msra.mxu0 0.0
    %5738 = vmatprep.subr.mxu0 0.0
    %5739 = vmatpush1.msra.mxu0 0.0
    %5740 = vmatprep.subr.mxu0 0.0
    %5741 = vmatpush1.msra.mxu0 0.0
    %5742 = vmatprep.subr.mxu0 0.0
    %5743 = vmatpush1.msra.mxu0 0.0
    %5744 = vmatprep.subr.mxu0 0.0
    %5745 = vmatpush1.msra.mxu0 0.0
    %5746 = vmatprep.subr.mxu0 0.0
    %5747 = vmatpush1.msra.mxu0 0.0
    %5748 = vmatprep.mubr.f32.mxu0 0.0
    %5749 = vmatmul.mubr.f32.gmra.mrb[0].mxu0 %v5165
    %v5750 = vpop.f32.mrb[0].mxu0
    %v5751 = vadd.f32 %v5681, %v5750
    %v5752 = vpop.f32.mrb[0].mxu0
    %5753 = vdwg.mxu0
    %vm5754 = vcmp.ge.f32.partialorder %v5326, 0.0
    %vm5755 = vcmp.ge.f32.partialorder %v5328, 0.0
    %vm5756 = vcmp.ge.f32.partialorder %v5468, 0.0
    %vm5757 = vcmp.ge.f32.partialorder %v5470, 0.0
    %vm5758 = vcmp.ge.f32.partialorder %v5610, 0.0
    %vm5759 = vcmp.ge.f32.partialorder %v5612, 0.0
    %vm5760 = vcmp.ge.f32.partialorder %v5751, 0.0
    %v5761 = vmul.f32 %v55, %v5326
    %v5762 = vmul.f32 %v55, %v5328
    %v5763 = vmul.f32 %v55, %v5468
    %v5764 = vmul.f32 %v55, %v5470
    %v5765 = vmul.f32 %v55, %v5610
    %v5766 = vmul.f32 %v55, %v5612
    %v5767 = vmul.f32 %v55, %v5751
    %v5768 = vsel %vm5754, %v5326, %v5761
    %v5769 = vsel %vm5755, %v5328, %v5762
    %v5770 = vsel %vm5756, %v5468, %v5763
    %v5771 = vsel %vm5757, %v5470, %v5764
    %v5772 = vsel %vm5758, %v5610, %v5765
    %v5773 = vsel %vm5759, %v5612, %v5766
    %v5774 = vsel %vm5760, %v5751, %v5767
    %v5775 = vmul.f32 %v5768, %v1923
    %v5776 = vmul.f32 %v5769, %v1927
    %v5777 = vmul.f32 %v5770, %v1931
    %v5778 = vmul.f32 %v5771, %v1935
    %v5779 = vmul.f32 %v5772, %v1939
    %v5780 = vmul.f32 %v5773, %v1943
    %v5781 = vmul.f32 %v5774, %v1947
    %5782 = vst.msk [vmem:[#allocation2 + $0x40] sm:$0xf0] %vm1962, 0.0
    %5783 = vst.msk [vmem:[#allocation2 + $0x80] sm:$0xf] %vm1964, 0.0
    %v5791 = vrot.slane %v5775, 4
    %v5792 = vrot.slane %v5776, 4
    %v5793 = vrot.slane %v5777, 4
    %v5794 = vrot.slane %v5778, 4
    %v5795 = vrot.slane %v5779, 4
    %v5796 = vrot.slane %v5780, 4
    %v5797 = vrot.slane %v5781, 4
    %5798 = vrot.lane.b32.xlu0 %v5791, 42
    %v5799 = vpop.permute.xlu0 %5798
    %5800 = vrot.lane.b32.xlu0 %v5792, 42
    %v5801 = vpop.permute.xlu0 %5800
    %5802 = vrot.lane.b32.xlu0 %v5793, 42
    %v5803 = vpop.permute.xlu0 %5802
    %5804 = vrot.lane.b32.xlu0 %v5794, 42
    %v5805 = vpop.permute.xlu0 %5804
    %5806 = vrot.lane.b32.xlu0 %v5795, 42
    %v5807 = vpop.permute.xlu0 %5806
    %5808 = vrot.lane.b32.xlu0 %v5796, 42
    %v5809 = vpop.permute.xlu0 %5808
    %5810 = vrot.lane.b32.xlu0 %v5797, 42
    %v5811 = vpop.permute.xlu0 %5810
    %v5812 = vsel %vm1994, %v5799, %v5801
    %v5813 = vsel %vm1994, %v5801, %v5803
    %v5814 = vsel %vm1994, %v5803, %v5805
    %v5815 = vsel %vm1994, %v5805, %v5807
    %v5816 = vsel %vm1994, %v5807, %v5809
    %v5817 = vsel %vm1994, %v5809, %v5811
    %5826 = vst.msk [vmem:[#allocation2 + $0x40] sm:$0xf0] %vm2009, %v5799
    %5827 = vst [vmem:[#allocation2 + $0x48] sm:$0xf0] %v5812
    %5828 = vst [vmem:[#allocation2 + $0x50] sm:$0xf0] %v5813
    %5829 = vst [vmem:[#allocation2 + $0x58] sm:$0xf0] %v5814
    %5830 = vst [vmem:[#allocation2 + $0x60] sm:$0xf0] %v5815
    %5831 = vst [vmem:[#allocation2 + $0x68] sm:$0xf0] %v5816
    %5832 = vst [vmem:[#allocation2 + $0x70] sm:$0xf0] %v5817
    %5833 = vst.msk [vmem:[#allocation2 + $0x78] sm:$0xf0] %vm1962, %v5811
    %5834 = vst.msk [vmem:[#allocation2 + $0x80] sm:$0xf] %vm2018, %v5799
    %5835 = vst [vmem:[#allocation2 + $0x88] sm:$0xf] %v5812
    %5836 = vst [vmem:[#allocation2 + $0x90] sm:$0xf] %v5813
    %5837 = vst [vmem:[#allocation2 + $0x98] sm:$0xf] %v5814
    %5838 = vst [vmem:[#allocation2 + $0xa0] sm:$0xf] %v5815
    %5839 = vst [vmem:[#allocation2 + $0xa8] sm:$0xf] %v5816
    %5840 = vst [vmem:[#allocation2 + $0xb0] sm:$0xf] %v5817
    %5841 = vst.msk [vmem:[#allocation2 + $0xb8] sm:$0xf] %vm1964, %v5811
    %5842 = vst.msk [vmem:[#allocation2 + $0x78] sm:$0xf0] %vm2009, 0.0
    %5843 = vst.msk [vmem:[#allocation2 + $0xb8] sm:$0xf] %vm2018, 0.0
    %v5844 = vld [vmem:[%s6] sm:$0xff]
    %v5845 = vld [vmem:[#allocation2] sm:$0xff]
    %v5846 = vld [vmem:[#allocation2 + $0x8] sm:$0xff]
    %v5847 = vld [vmem:[#allocation2 + $0x10] sm:$0xff]
    %v5848 = vld [vmem:[#allocation2 + $0x18] sm:$0xff]
    %v5849 = vld [vmem:[#allocation2 + $0x20] sm:$0xff]
    %v5850 = vld [vmem:[#allocation2 + $0x28] sm:$0xff]
    %v5851 = vld [vmem:[#allocation2 + $0x30] sm:$0xff]
    %v5852 = vld [vmem:[#allocation2 + $0x38] sm:$0xff]
    %v5853 = vld [vmem:[#allocation2 + $0x40] sm:$0xff]
    %v5854 = vld [vmem:[#allocation2 + $0x48] sm:$0xff]
    %v5855 = vld [vmem:[#allocation2 + $0x50] sm:$0xff]
    %v5856 = vld [vmem:[#allocation2 + $0x58] sm:$0xff]
    %v5857 = vld [vmem:[#allocation2 + $0x60] sm:$0xff]
    %v5858 = vld [vmem:[#allocation2 + $0x68] sm:$0xff]
    %v5859 = vld [vmem:[#allocation2 + $0x70] sm:$0xff]
    %v5860 = vld [vmem:[#allocation2 + $0x78] sm:$0xff]
    %v5861 = vld [vmem:[#allocation2 + $0x80] sm:$0xf]
    %v5862 = vld [vmem:[#allocation2 + $0x88] sm:$0xf]
    %v5863 = vld [vmem:[#allocation2 + $0x90] sm:$0xf]
    %v5864 = vld [vmem:[#allocation2 + $0x98] sm:$0xf]
    %v5865 = vld [vmem:[#allocation2 + $0xa0] sm:$0xf]
    %v5866 = vld [vmem:[#allocation2 + $0xa8] sm:$0xf]
    %v5867 = vld [vmem:[#allocation2 + $0xb0] sm:$0xf]
    %v5868 = vld [vmem:[#allocation2 + $0xb8] sm:$0xf]
    %v5869 = vld [vmem:[%s7] sm:$0xff]
    %5871 = vset.pattern.permute.xlu0 0
    %5872 = vperm.xlu0 %5871, %v5869
    %v5873 = vpop.permute.xlu0 %5872
    %vm5875 = vcmask 162816
    %v5877 = vsel %vm5875, %v5844, 0
    %v5880 = vsel %vm1593, %v5861, 0
    %v5883 = vsel %vm1593, %v5862, 0
    %v5886 = vsel %vm1593, %v5863, 0
    %v5889 = vsel %vm1593, %v5864, 0
    %v5892 = vsel %vm1593, %v5865, 0
    %v5895 = vsel %vm1593, %v5866, 0
    %v5898 = vsel %vm1593, %v5867, 0
    %v5901 = vsel %vm1593, %v5868, 0
    %5903 = vmatprep.subr.mxu0 %v5846
    %5904 = vmatpush1.msra.mxu0 %v5845
    %5905 = vmatprep.subr.mxu0 %v5854
    %5906 = vmatpush1.msra.mxu0 %v5853
    %5907 = vmatprep.subr.mxu0 %v5883
    %5908 = vmatpush1.msra.mxu0 %v5880
    %5909 = vmatprep.subr.mxu0 0.0
    %5910 = vmatpush1.msra.mxu0 0.0
    %5911 = vmatprep.subr.mxu0 0.0
    %5912 = vmatpush1.msra.mxu0 0.0
    %5913 = vmatprep.subr.mxu0 0.0
    %5914 = vmatpush1.msra.mxu0 0.0
    %5915 = vmatprep.subr.mxu0 0.0
    %5916 = vmatpush1.msra.mxu0 0.0
    %5917 = vmatprep.subr.mxu0 0.0
    %5918 = vmatpush1.msra.mxu0 0.0
    %5919 = vmatprep.subr.mxu0 0.0
    %5920 = vmatpush1.msra.mxu0 0.0
    %5921 = vmatprep.subr.mxu0 0.0
    %5922 = vmatpush1.msra.mxu0 0.0
    %5923 = vmatprep.subr.mxu0 0.0
    %5924 = vmatpush1.msra.mxu0 0.0
    %5925 = vmatprep.subr.mxu0 0.0
    %5926 = vmatpush1.msra.mxu0 0.0
    %5927 = vmatprep.subr.mxu0 0.0
    %5928 = vmatpush1.msra.mxu0 0.0
    %5929 = vmatprep.subr.mxu0 0.0
    %5930 = vmatpush1.msra.mxu0 0.0
    %5931 = vmatprep.subr.mxu0 0.0
    %5932 = vmatpush1.msra.mxu0 0.0
    %5933 = vmatprep.subr.mxu0 0.0
    %5934 = vmatpush1.msra.mxu0 0.0
    %5935 = vmatprep.subr.mxu0 0.0
    %5936 = vmatpush1.msra.mxu0 0.0
    %5937 = vmatprep.subr.mxu0 0.0
    %5938 = vmatpush1.msra.mxu0 0.0
    %5939 = vmatprep.subr.mxu0 0.0
    %5940 = vmatpush1.msra.mxu0 0.0
    %5941 = vmatprep.subr.mxu0 0.0
    %5942 = vmatpush1.msra.mxu0 0.0
    %5943 = vmatprep.subr.mxu0 0.0
    %5944 = vmatpush1.msra.mxu0 0.0
    %5945 = vmatprep.subr.mxu0 0.0
    %5946 = vmatpush1.msra.mxu0 0.0
    %5947 = vmatprep.subr.mxu0 0.0
    %5948 = vmatpush1.msra.mxu0 0.0
    %5949 = vmatprep.subr.mxu0 0.0
    %5950 = vmatpush1.msra.mxu0 0.0
    %5951 = vmatprep.subr.mxu0 0.0
    %5952 = vmatpush1.msra.mxu0 0.0
    %5953 = vmatprep.subr.mxu0 0.0
    %5954 = vmatpush1.msra.mxu0 0.0
    %5955 = vmatprep.subr.mxu0 0.0
    %5956 = vmatpush1.msra.mxu0 0.0
    %5957 = vmatprep.subr.mxu0 0.0
    %5958 = vmatpush1.msra.mxu0 0.0
    %5959 = vmatprep.subr.mxu0 0.0
    %5960 = vmatpush1.msra.mxu0 0.0
    %5961 = vmatprep.subr.mxu0 0.0
    %5962 = vmatpush1.msra.mxu0 0.0
    %5963 = vmatprep.subr.mxu0 0.0
    %5964 = vmatpush1.msra.mxu0 0.0
    %5965 = vmatprep.subr.mxu0 0.0
    %5966 = vmatpush1.msra.mxu0 0.0
    %5967 = vmatprep.mubr.f32.mxu0 0.0
    %5968 = vmatmul.mubr.f32.gmra.mrb[0].mxu0 %v5877
    %v5969 = vpop.f32.mrb[0].mxu0
    %v5970 = vadd.f32 %v5873, %v5969
    %v5971 = vpop.f32.mrb[0].mxu0
    %v5972 = vadd.f32 %v5873, %v5971
    %5973 = vdwg.mxu0
    %5974 = vmatprep.subr.mxu0 %v5848
    %5975 = vmatpush1.msra.mxu0 %v5847
    %5976 = vmatprep.subr.mxu0 %v5856
    %5977 = vmatpush1.msra.mxu0 %v5855
    %5978 = vmatprep.subr.mxu0 %v5889
    %5979 = vmatpush1.msra.mxu0 %v5886
    %5980 = vmatprep.subr.mxu0 0.0
    %5981 = vmatpush1.msra.mxu0 0.0
    %5982 = vmatprep.subr.mxu0 0.0
    %5983 = vmatpush1.msra.mxu0 0.0
    %5984 = vmatprep.subr.mxu0 0.0
    %5985 = vmatpush1.msra.mxu0 0.0
    %5986 = vmatprep.subr.mxu0 0.0
    %5987 = vmatpush1.msra.mxu0 0.0
    %5988 = vmatprep.subr.mxu0 0.0
    %5989 = vmatpush1.msra.mxu0 0.0
    %5990 = vmatprep.subr.mxu0 0.0
    %5991 = vmatpush1.msra.mxu0 0.0
    %5992 = vmatprep.subr.mxu0 0.0
    %5993 = vmatpush1.msra.mxu0 0.0
    %5994 = vmatprep.subr.mxu0 0.0
    %5995 = vmatpush1.msra.mxu0 0.0
    %5996 = vmatprep.subr.mxu0 0.0
    %5997 = vmatpush1.msra.mxu0 0.0
    %5998 = vmatprep.subr.mxu0 0.0
    %5999 = vmatpush1.msra.mxu0 0.0
    %6000 = vmatprep.subr.mxu0 0.0
    %6001 = vmatpush1.msra.mxu0 0.0
    %6002 = vmatprep.subr.mxu0 0.0
    %6003 = vmatpush1.msra.mxu0 0.0
    %6004 = vmatprep.subr.mxu0 0.0
    %6005 = vmatpush1.msra.mxu0 0.0
    %6006 = vmatprep.subr.mxu0 0.0
    %6007 = vmatpush1.msra.mxu0 0.0
    %6008 = vmatprep.subr.mxu0 0.0
    %6009 = vmatpush1.msra.mxu0 0.0
    %6010 = vmatprep.subr.mxu0 0.0
    %6011 = vmatpush1.msra.mxu0 0.0
    %6012 = vmatprep.subr.mxu0 0.0
    %6013 = vmatpush1.msra.mxu0 0.0
    %6014 = vmatprep.subr.mxu0 0.0
    %6015 = vmatpush1.msra.mxu0 0.0
    %6016 = vmatprep.subr.mxu0 0.0
    %6017 = vmatpush1.msra.mxu0 0.0
    %6018 = vmatprep.subr.mxu0 0.0
    %6019 = vmatpush1.msra.mxu0 0.0
    %6020 = vmatprep.subr.mxu0 0.0
    %6021 = vmatpush1.msra.mxu0 0.0
    %6022 = vmatprep.subr.mxu0 0.0
    %6023 = vmatpush1.msra.mxu0 0.0
    %6024 = vmatprep.subr.mxu0 0.0
    %6025 = vmatpush1.msra.mxu0 0.0
    %6026 = vmatprep.subr.mxu0 0.0
    %6027 = vmatpush1.msra.mxu0 0.0
    %6028 = vmatprep.subr.mxu0 0.0
    %6029 = vmatpush1.msra.mxu0 0.0
    %6030 = vmatprep.subr.mxu0 0.0
    %6031 = vmatpush1.msra.mxu0 0.0
    %6032 = vmatprep.subr.mxu0 0.0
    %6033 = vmatpush1.msra.mxu0 0.0
    %6034 = vmatprep.subr.mxu0 0.0
    %6035 = vmatpush1.msra.mxu0 0.0
    %6036 = vmatprep.subr.mxu0 0.0
    %6037 = vmatpush1.msra.mxu0 0.0
    %6038 = vmatprep.mubr.f32.mxu0 0.0
    %6039 = vmatmul.mubr.f32.gmra.mrb[0].mxu0 %v5877
    %v6040 = vpop.f32.mrb[0].mxu0
    %v6041 = vadd.f32 %v5873, %v6040
    %v6042 = vpop.f32.mrb[0].mxu0
    %v6043 = vadd.f32 %v5873, %v6042
    %6044 = vdwg.mxu0
    %6045 = vmatprep.subr.mxu0 %v5850
    %6046 = vmatpush1.msra.mxu0 %v5849
    %6047 = vmatprep.subr.mxu0 %v5858
    %6048 = vmatpush1.msra.mxu0 %v5857
    %6049 = vmatprep.subr.mxu0 %v5895
    %6050 = vmatpush1.msra.mxu0 %v5892
    %6051 = vmatprep.subr.mxu0 0.0
    %6052 = vmatpush1.msra.mxu0 0.0
    %6053 = vmatprep.subr.mxu0 0.0
    %6054 = vmatpush1.msra.mxu0 0.0
    %6055 = vmatprep.subr.mxu0 0.0
    %6056 = vmatpush1.msra.mxu0 0.0
    %6057 = vmatprep.subr.mxu0 0.0
    %6058 = vmatpush1.msra.mxu0 0.0
    %6059 = vmatprep.subr.mxu0 0.0
    %6060 = vmatpush1.msra.mxu0 0.0
    %6061 = vmatprep.subr.mxu0 0.0
    %6062 = vmatpush1.msra.mxu0 0.0
    %6063 = vmatprep.subr.mxu0 0.0
    %6064 = vmatpush1.msra.mxu0 0.0
    %6065 = vmatprep.subr.mxu0 0.0
    %6066 = vmatpush1.msra.mxu0 0.0
    %6067 = vmatprep.subr.mxu0 0.0
    %6068 = vmatpush1.msra.mxu0 0.0
    %6069 = vmatprep.subr.mxu0 0.0
    %6070 = vmatpush1.msra.mxu0 0.0
    %6071 = vmatprep.subr.mxu0 0.0
    %6072 = vmatpush1.msra.mxu0 0.0
    %6073 = vmatprep.subr.mxu0 0.0
    %6074 = vmatpush1.msra.mxu0 0.0
    %6075 = vmatprep.subr.mxu0 0.0
    %6076 = vmatpush1.msra.mxu0 0.0
    %6077 = vmatprep.subr.mxu0 0.0
    %6078 = vmatpush1.msra.mxu0 0.0
    %6079 = vmatprep.subr.mxu0 0.0
    %6080 = vmatpush1.msra.mxu0 0.0
    %6081 = vmatprep.subr.mxu0 0.0
    %6082 = vmatpush1.msra.mxu0 0.0
    %6083 = vmatprep.subr.mxu0 0.0
    %6084 = vmatpush1.msra.mxu0 0.0
    %6085 = vmatprep.subr.mxu0 0.0
    %6086 = vmatpush1.msra.mxu0 0.0
    %6087 = vmatprep.subr.mxu0 0.0
    %6088 = vmatpush1.msra.mxu0 0.0
    %6089 = vmatprep.subr.mxu0 0.0
    %6090 = vmatpush1.msra.mxu0 0.0
    %6091 = vmatprep.subr.mxu0 0.0
    %6092 = vmatpush1.msra.mxu0 0.0
    %6093 = vmatprep.subr.mxu0 0.0
    %6094 = vmatpush1.msra.mxu0 0.0
    %6095 = vmatprep.subr.mxu0 0.0
    %6096 = vmatpush1.msra.mxu0 0.0
    %6097 = vmatprep.subr.mxu0 0.0
    %6098 = vmatpush1.msra.mxu0 0.0
    %6099 = vmatprep.subr.mxu0 0.0
    %6100 = vmatpush1.msra.mxu0 0.0
    %6101 = vmatprep.subr.mxu0 0.0
    %6102 = vmatpush1.msra.mxu0 0.0
    %6103 = vmatprep.subr.mxu0 0.0
    %6104 = vmatpush1.msra.mxu0 0.0
    %6105 = vmatprep.subr.mxu0 0.0
    %6106 = vmatpush1.msra.mxu0 0.0
    %6107 = vmatprep.subr.mxu0 0.0
    %6108 = vmatpush1.msra.mxu0 0.0
    %6109 = vmatprep.mubr.f32.mxu0 0.0
    %6110 = vmatmul.mubr.f32.gmra.mrb[0].mxu0 %v5877
    %v6111 = vpop.f32.mrb[0].mxu0
    %v6112 = vadd.f32 %v5873, %v6111
    %v6113 = vpop.f32.mrb[0].mxu0
    %v6114 = vadd.f32 %v5873, %v6113
    %6115 = vdwg.mxu0
    %6116 = vmatprep.subr.mxu0 %v5852
    %6117 = vmatpush1.msra.mxu0 %v5851
    %6118 = vmatprep.subr.mxu0 %v5860
    %6119 = vmatpush1.msra.mxu0 %v5859
    %6120 = vmatprep.subr.mxu0 %v5901
    %6121 = vmatpush1.msra.mxu0 %v5898
    %6122 = vmatprep.subr.mxu0 0.0
    %6123 = vmatpush1.msra.mxu0 0.0
    %6124 = vmatprep.subr.mxu0 0.0
    %6125 = vmatpush1.msra.mxu0 0.0
    %6126 = vmatprep.subr.mxu0 0.0
    %6127 = vmatpush1.msra.mxu0 0.0
    %6128 = vmatprep.subr.mxu0 0.0
    %6129 = vmatpush1.msra.mxu0 0.0
    %6130 = vmatprep.subr.mxu0 0.0
    %6131 = vmatpush1.msra.mxu0 0.0
    %6132 = vmatprep.subr.mxu0 0.0
    %6133 = vmatpush1.msra.mxu0 0.0
    %6134 = vmatprep.subr.mxu0 0.0
    %6135 = vmatpush1.msra.mxu0 0.0
    %6136 = vmatprep.subr.mxu0 0.0
    %6137 = vmatpush1.msra.mxu0 0.0
    %6138 = vmatprep.subr.mxu0 0.0
    %6139 = vmatpush1.msra.mxu0 0.0
    %6140 = vmatprep.subr.mxu0 0.0
    %6141 = vmatpush1.msra.mxu0 0.0
    %6142 = vmatprep.subr.mxu0 0.0
    %6143 = vmatpush1.msra.mxu0 0.0
    %6144 = vmatprep.subr.mxu0 0.0
    %6145 = vmatpush1.msra.mxu0 0.0
    %6146 = vmatprep.subr.mxu0 0.0
    %6147 = vmatpush1.msra.mxu0 0.0
    %6148 = vmatprep.subr.mxu0 0.0
    %6149 = vmatpush1.msra.mxu0 0.0
    %6150 = vmatprep.subr.mxu0 0.0
    %6151 = vmatpush1.msra.mxu0 0.0
    %6152 = vmatprep.subr.mxu0 0.0
    %6153 = vmatpush1.msra.mxu0 0.0
    %6154 = vmatprep.subr.mxu0 0.0
    %6155 = vmatpush1.msra.mxu0 0.0
    %6156 = vmatprep.subr.mxu0 0.0
    %6157 = vmatpush1.msra.mxu0 0.0
    %6158 = vmatprep.subr.mxu0 0.0
    %6159 = vmatpush1.msra.mxu0 0.0
    %6160 = vmatprep.subr.mxu0 0.0
    %6161 = vmatpush1.msra.mxu0 0.0
    %6162 = vmatprep.subr.mxu0 0.0
    %6163 = vmatpush1.msra.mxu0 0.0
    %6164 = vmatprep.subr.mxu0 0.0
    %6165 = vmatpush1.msra.mxu0 0.0
    %6166 = vmatprep.subr.mxu0 0.0
    %6167 = vmatpush1.msra.mxu0 0.0
    %6168 = vmatprep.subr.mxu0 0.0
    %6169 = vmatpush1.msra.mxu0 0.0
    %6170 = vmatprep.subr.mxu0 0.0
    %6171 = vmatpush1.msra.mxu0 0.0
    %6172 = vmatprep.subr.mxu0 0.0
    %6173 = vmatpush1.msra.mxu0 0.0
    %6174 = vmatprep.subr.mxu0 0.0
    %6175 = vmatpush1.msra.mxu0 0.0
    %6176 = vmatprep.subr.mxu0 0.0
    %6177 = vmatpush1.msra.mxu0 0.0
    %6178 = vmatprep.subr.mxu0 0.0
    %6179 = vmatpush1.msra.mxu0 0.0
    %6180 = vmatprep.mubr.f32.mxu0 0.0
    %6181 = vmatmul.mubr.f32.gmra.mrb[0].mxu0 %v5877
    %v6182 = vpop.f32.mrb[0].mxu0
    %v6183 = vadd.f32 %v5873, %v6182
    %v6184 = vpop.f32.mrb[0].mxu0
    %v6185 = vadd.f32 %v5873, %v6184
    %6186 = vdwg.mxu0
    %6187 = vst [vmem:[#allocation8] sm:$0xff] %v5970
    %6188 = vst [vmem:[#allocation8 + $0x8] sm:$0xff] %v5972
    %6189 = vst [vmem:[#allocation8 + $0x10] sm:$0xff] %v6041
    %6190 = vst [vmem:[#allocation8 + $0x18] sm:$0xff] %v6043
    %6191 = vst [vmem:[#allocation8 + $0x20] sm:$0xff] %v6112
    %6192 = vst [vmem:[#allocation8 + $0x28] sm:$0xff] %v6114
    %6193 = vst [vmem:[#allocation8 + $0x30] sm:$0xff] %v6183
    %6194 = vst [vmem:[#allocation8 + $0x38] sm:$0xff] %v6185
    // Predicated region
    $region42: #{tpu_custom_call.1} parent=1 // pred_check
      _
    $region43: #{tpu_custom_call.1} parent=1 // pred_check_branch
      %6196 = sbr.rel (0) target = $region45
    $region44: #{tpu_custom_call.1} parent=1 // pred_region
      %s6198 = ssub.s32 1024, 1024
      %6199 = vsyncadd [#allocation7], %s6198
      %s6201 = sshll.u32 [#allocation8], 4
      %s6202 = int_to_ptr.vmem [resolvable:$true] %s6201
      %6204 = dma.vmem_to_hbm [thread:$0]  %s6202, 1024, %s9, [#allocation7]
    $region45: #{tpu_custom_call.1} parent=1 // pred_fallthru
      _
    // Predicated region
    $region46: #{tpu_custom_call.1} parent=1 // pred_check
      _
    $region47: #{tpu_custom_call.1} parent=1 // pred_check_branch
      %6206 = sbr.rel (0) target = $region49
    $region48: #{tpu_custom_call.1} parent=1 // pred_region
      %6207 = dma.done [#allocation7], 1024
    $region49: #{tpu_custom_call.1} parent=1 // pred_fallthru
      _
    %6208 = vsyncpa [#allocation6], 1
    %6209 = vsyncpa [#allocation7], 1

</llo_original>
